<compile_context>
chip_gen: v7x
topology: tpu7x:2x2x1
jax: 0.10.0
libtpu: 0.0.40
codegen_flags: <defaults>
</compile_context>

<pallas_src>
import math
from functools import lru_cache

import jax
import jax.numpy as jnp
from jax.experimental import pallas as pl
from jax.experimental.pallas import tpu as pltpu

MXU_DTYPE = jnp.bfloat16   # matmul operand dtype (f32 accumulation)
ACT_DTYPE = jnp.bfloat16   # inter-layer activation storage dtype
BN_EPS = 1e-5


# ------------------------------------------------------------------ kernels --
@lru_cache(maxsize=None)
def _make_conv_kernel(act: str, has_res: bool):
    """Fused conv-as-matmul + BN shift + (residual) + activation epilogue."""

    def kernel(x_ref, w_ref, b_ref, *rest):
        if has_res:
            res_ref, o_ref = rest
        else:
            (o_ref,) = rest
        # bf16 x bf16 -> f32 accumulation on the MXU.
        acc = jnp.dot(x_ref[...], w_ref[...],
                      preferred_element_type=jnp.float32)
        acc = acc + b_ref[...]                      # folded BN shift (f32)
        if has_res:
            acc = acc + res_ref[...].astype(jnp.float32)
        if act == "relu":
            acc = jnp.maximum(acc, 0.0)
        o_ref[...] = acc.astype(o_ref.dtype)

    return kernel


def _maxpool_kernel(t_ref, o_ref):
    # t_ref: (9, tm, C) taps; elementwise max across the 9 taps.
    o_ref[...] = jnp.max(t_ref[...], axis=0).astype(o_ref.dtype)


# ----------------------------------------------------------------- helpers --
def choose_tm(M, cap=256):
    """Largest M-tile <= cap that divides M (multiple of 8), else whole M."""
    if M <= cap:
        return M
    t = cap - (cap % 8)
    while t >= 8:
        if M % t == 0:
            return t
        t -= 8
    return M


def fused_conv_matmul(x2d, w2d, bias, res2d, act):
    """(M,K) @ (K,C) + bias (+res) (+relu) -> (M,C) in ACT_DTYPE."""
    M, K = x2d.shape
    _, C = w2d.shape
    tm = choose_tm(M)
    grid = (M // tm,)

    in_specs = [
        pl.BlockSpec((tm, K), lambda i: (i, 0)),   # whole K in one block
        pl.BlockSpec((K, C), lambda i: (0, 0)),    # whole weight slab resident
        pl.BlockSpec((1, C), lambda i: (0, 0)),    # folded BN shift
    ]
    args = [x2d.astype(MXU_DTYPE), w2d.astype(MXU_DTYPE),
            bias.reshape(1, C).astype(jnp.float32)]
    if res2d is not None:
        in_specs.append(pl.BlockSpec((tm, C), lambda i: (i, 0)))
        args.append(res2d.astype(ACT_DTYPE))

    return pl.pallas_call(
        _make_conv_kernel(act, res2d is not None),
        out_shape=jax.ShapeDtypeStruct((M, C), ACT_DTYPE),
        grid=grid,
        in_specs=in_specs,
        out_specs=pl.BlockSpec((tm, C), lambda i: (i, 0)),
        compiler_params=pltpu.CompilerParams(
            dimension_semantics=("parallel",)),
    )(*args)


# --------------------------------------------------------------------- glue --
def zero_pad(x, pad):
    if pad == 0:
        return x
    return jnp.pad(x, ((0, 0), (pad, pad), (pad, pad), (0, 0)))


def im2col(xp, kh, kw, stride):
    """Padded NHWC -> (N*Ho*Wo, kh*kw*C) patches (plain-JAX glue, bf16)."""
    N, Hp, Wp, C = xp.shape
    Ho = (Hp - kh) // stride + 1
    Wo = (Wp - kw) // stride + 1
    cols = []
    for i in range(kh):
        for j in range(kw):
            cols.append(xp[:, i:i + stride * (Ho - 1) + 1:stride,
                           j:j + stride * (Wo - 1) + 1:stride, :])
    patches = jnp.stack(cols, axis=3)          # (N,Ho,Wo,kh*kw,C)
    return patches.reshape(N * Ho * Wo, kh * kw * C), (N, Ho, Wo)


def fold_bn(w, bn, eps=BN_EPS):
    """Eval-mode BatchNorm folded into conv weight + per-channel shift."""
    scale = bn["gamma"] / jnp.sqrt(bn["var"] + eps)
    w_f = w * scale.reshape(1, 1, 1, -1)
    b_f = bn["beta"] - bn["mean"] * scale
    return w_f, b_f


def conv_bn_fused(x, w, bn, stride, pad, act, residual=None):
    """conv (zero pad, no bias) + eval-BN + (residual) + act, one pallas_call."""
    w_f, b_f = fold_bn(w, bn)
    kh, kw, cin, cout = w.shape
    x2d, (N, Ho, Wo) = im2col(zero_pad(x, pad), kh, kw, stride)
    res2d = None if residual is None else residual.reshape(N * Ho * Wo, cout)
    y2d = fused_conv_matmul(x2d, w_f.reshape(kh * kw * cin, cout), b_f,
                            res2d, act)
    return y2d.reshape(N, Ho, Wo, cout)


def maxpool_3x3_s2(x):
    """nn.MaxPool2d(3, stride=2, padding=1) — implicit -inf padding."""
    N, H, W, C = x.shape
    xp = jnp.pad(x, ((0, 0), (1, 1), (1, 1), (0, 0)),
                 constant_values=float("-inf"))
    Ho = (H + 2 - 3) // 2 + 1
    Wo = (W + 2 - 3) // 2 + 1
    taps = []
    for i in range(3):
        for j in range(3):
            taps.append(xp[:, i:i + 2 * (Ho - 1) + 1:2,
                           j:j + 2 * (Wo - 1) + 1:2, :].reshape(N * Ho * Wo, C))
    t = jnp.stack(taps, axis=0)                # (9, M, C)
    M = N * Ho * Wo
    tm = choose_tm(M)
    out = pl.pallas_call(
        _maxpool_kernel,
        out_shape=jax.ShapeDtypeStruct((M, C), x.dtype),
        grid=(M // tm,),
        in_specs=[pl.BlockSpec((9, tm, C), lambda i: (0, i, 0))],
        out_specs=pl.BlockSpec((tm, C), lambda i: (i, 0)),
        compiler_params=pltpu.CompilerParams(
            dimension_semantics=("parallel",)),
    )(t)
    return out.reshape(N, Ho, Wo, C)


def bilinear_resize_align_corners(x, out_hw):
    """F.interpolate(mode='bilinear', align_corners=True) to out_hw."""
    # TODO(synk): irregular gather/lerp interpolation left in plain JAX.
    oh, ow = out_hw
    x = x.astype(jnp.float32)

    def resize_axis(a, axis, out_size):
        in_size = a.shape[axis]
        if in_size == out_size:
            return a
        if out_size == 1:
            return jnp.take(a, jnp.array([0], dtype=jnp.int32), axis=axis)
        src = jnp.arange(out_size, dtype=jnp.float32) * (in_size - 1) / (out_size - 1)
        i0 = jnp.floor(src).astype(jnp.int32)
        i1 = jnp.minimum(i0 + 1, in_size - 1)
        w1 = src - i0.astype(jnp.float32)
        shp = [1] * a.ndim
        shp[axis] = out_size
        w1 = w1.reshape(shp)
        return jnp.take(a, i0, axis=axis) * (1.0 - w1) + jnp.take(a, i1, axis=axis) * w1

    x = resize_axis(x, 1, oh)
    x = resize_axis(x, 2, ow)
    return x


# ----------------------------------------------------------- model building --
def basic_block(p, x, stride):
    h = conv_bn_fused(x, p["conv1_w"], p["bn1"], stride, 1, "relu")
    if "ds_w" in p:
        identity = conv_bn_fused(x, p["ds_w"], p["ds_bn"], stride, 0, "none")
    else:
        identity = x
    return conv_bn_fused(h, p["conv2_w"], p["bn2"], 1, 1, "relu",
                         residual=identity)


def run_layer(blocks, x, first_stride):
    for idx, blk in enumerate(blocks):
        x = basic_block(blk, x, first_stride if idx == 0 else 1)
    return x


def image_encoder_forward(params, x):
    x = x.astype(ACT_DTYPE)   # bf16 activation storage; f32 epilogue math in-kernel

    # stem: conv1 (7x7 s2, zero pad 3) + bn1 + relu   -> feats1
    feats1 = conv_bn_fused(x, params["conv1_w"], params["bn1"], 2, 3, "relu")

    h = maxpool_3x3_s2(feats1)
    feats2 = run_layer(params["layer1"], h, 1)
    feats3 = run_layer(params["layer2"], feats2, 2)
    feats4 = run_layer(params["layer3"], feats3, 2)

    latent_hw = feats1.shape[1:3]
    latents = [
        bilinear_resize_align_corners(feats1, latent_hw),   # identity resize
        bilinear_resize_align_corners(feats2, latent_hw),
        bilinear_resize_align_corners(feats3, latent_hw),
        bilinear_resize_align_corners(feats4, latent_hw),
    ]
    return jnp.concatenate(latents, axis=-1)                # (N, H/2, W/2, 512)


# ---------------------------------------------------------- parameter init --
def init_params(key, input_ch=3):
    # TODO(synk): torchvision pretrained=True weights cannot be loaded here;
    # deterministic random init with the exact ResNet-34 shapes instead.
    keys = iter(jax.random.split(key, 512))
    nk = lambda: next(keys)

    def conv_w(kh, kw, cin, cout):
        fan = kh * kw * cin
        return jax.random.normal(nk(), (kh, kw, cin, cout), jnp.float32) * math.sqrt(2.0 / fan)

    def bn_p(c):
        return {
            "gamma": 1.0 + 0.1 * jax.random.normal(nk(), (c,), jnp.float32),
            "beta": 0.1 * jax.random.normal(nk(), (c,), jnp.float32),
            "mean": 0.1 * jax.random.normal(nk(), (c,), jnp.float32),
            "var": 0.5 + jax.random.uniform(nk(), (c,), jnp.float32),
        }

    def block(cin, cout, stride):
        p = {"conv1_w": conv_w(3, 3, cin, cout), "bn1": bn_p(cout),
             "conv2_w": conv_w(3, 3, cout, cout), "bn2": bn_p(cout)}
        if stride != 1 or cin != cout:
            p["ds_w"] = conv_w(1, 1, cin, cout)
            p["ds_bn"] = bn_p(cout)
        return p

    def layer(cin, cout, n_blocks, stride):
        blocks = [block(cin, cout, stride)]
        for _ in range(n_blocks - 1):
            blocks.append(block(cout, cout, 1))
        return blocks

    return {
        "conv1_w": conv_w(7, 7, input_ch, 64),
        "bn1": bn_p(64),
        "layer1": layer(64, 64, 3, 1),      # ResNet-34: [3, 4, 6, 3]
        "layer2": layer(64, 128, 4, 2),
        "layer3": layer(128, 256, 6, 2),
        # layer4 is unused by ImageEncoder.forward
    }


# --------------------------------------------------------------------- main --
if __name__ == "__main__":
    N, H, W, CIN = 2, 32, 32, 3     # NHWC; PyTorch equivalent input is (2, 3, 32, 32)

    key = jax.random.PRNGKey(0)
    kx, kp = jax.random.split(key)
    x = jax.random.normal(kx, (N, H, W, CIN), jnp.float32)
    params = init_params(kp, CIN)

    fwd = jax.jit(image_encoder_forward)
    out = fwd(params, x)
    jax.block_until_ready(out)

    assert out.shape == (N, H // 2, W // 2, 64 + 64 + 128 + 256), out.shape
    assert bool(jnp.all(jnp.isfinite(out)))
    print("KERNEL_OK")
</pallas_src>

<mosaic_0001>
module attributes {stable_mosaic.version = 11 : i64} {
  func.func @kernel(%arg0: i32, %arg1: memref<256x147xbf16, #tpu.memory_space<vmem>>, %arg2: memref<147x64xbf16, #tpu.memory_space<vmem>>, %arg3: memref<1x64xf32, #tpu.memory_space<vmem>>, %arg4: memref<256x64xbf16, #tpu.memory_space<vmem>>) attributes {dimension_semantics = [#tpu.dimension_semantics<parallel>], iteration_bounds = array<i64: 2>, scalar_prefetch = 0 : i64, scratch_operands = 0 : i64, tpu.core_type = #tpu.core_type<tc>, window_params = [{transform_indices = @transform_0, window_bounds = array<i64: 256, 147>}, {pipeline_mode = #tpu.pipeline_mode<synchronous>, transform_indices = @transform_1, window_bounds = array<i64: 147, 64>}, {pipeline_mode = #tpu.pipeline_mode<synchronous>, transform_indices = @transform_2, window_bounds = array<i64: 1, 64>}, {transform_indices = @transform_3, window_bounds = array<i64: 256, 64>}]} {
    %c0 = arith.constant 0 : index
    %c0_0 = arith.constant 0 : index
    %0 = vector.load %arg1[%c0, %c0_0] : memref<256x147xbf16, #tpu.memory_space<vmem>>, vector<256x147xbf16>
    %c0_1 = arith.constant 0 : index
    %c0_2 = arith.constant 0 : index
    %1 = vector.load %arg2[%c0_1, %c0_2] : memref<147x64xbf16, #tpu.memory_space<vmem>>, vector<147x64xbf16>
    %cst = arith.constant dense<0.000000e+00> : vector<256x64xf32>
    %2 = tpu.matmul %0, %1, %cst {dimension_numbers = #tpu.dot_dimension_numbers<[1], [0], [0], [1], [0, 0, 1, 1], [], []>} : vector<256x147xbf16>, vector<147x64xbf16>, vector<256x64xf32> -> vector<256x64xf32>
    %c0_3 = arith.constant 0 : index
    %c0_4 = arith.constant 0 : index
    %3 = vector.load %arg3[%c0_3, %c0_4] : memref<1x64xf32, #tpu.memory_space<vmem>>, vector<1x64xf32>
    %4 = vector.broadcast %3 : vector<1x64xf32> to vector<256x64xf32>
    %5 = arith.addf %2, %4 : vector<256x64xf32>
    %cst_5 = arith.constant 0.000000e+00 : f32
    %6 = vector.broadcast %cst_5 : f32 to vector<256x64xf32>
    %7 = arith.maximumf %5, %6 : vector<256x64xf32>
    %8 = arith.truncf %7 : vector<256x64xf32> to vector<256x64xbf16>
    %c0_6 = arith.constant 0 : index
    %c0_7 = arith.constant 0 : index
    %9 = vector.load %arg4[%c0_6, %c0_7] : memref<256x64xbf16, #tpu.memory_space<vmem>>, vector<256x64xbf16>
    tpu.vector_store %arg4[%c0_6, %c0_7], %8 {strides = array<i32>} : memref<256x64xbf16, #tpu.memory_space<vmem>>, vector<256x64xbf16>,
    return
  }
  func.func @transform_0(%arg0: i32) -> (i32, i32) {
    %c0_i32 = arith.constant 0 : i32
    %c0_i32_0 = arith.constant 0 : i32
    return %arg0, %c0_i32 : i32, i32
  }
  func.func @transform_1(%arg0: i32) -> (i32, i32) {
    %c0_i32 = arith.constant 0 : i32
    %c0_i32_0 = arith.constant 0 : i32
    %c0_i32_1 = arith.constant 0 : i32
    return %c0_i32, %c0_i32_0 : i32, i32
  }
  func.func @transform_2(%arg0: i32) -> (i32, i32) {
    %c0_i32 = arith.constant 0 : i32
    %c0_i32_0 = arith.constant 0 : i32
    %c0_i32_1 = arith.constant 0 : i32
    return %c0_i32, %c0_i32_0 : i32, i32
  }
  func.func @transform_3(%arg0: i32) -> (i32, i32) {
    %c0_i32 = arith.constant 0 : i32
    %c0_i32_0 = arith.constant 0 : i32
    return %arg0, %c0_i32 : i32, i32
  }
}

module attributes {stable_mosaic.version = 11 : i64} {
  func.func @_maxpool_kernel(%arg0: i32, %arg1: memref<9x128x64xbf16, #tpu.memory_space<vmem>>, %arg2: memref<128x64xbf16, #tpu.memory_space<vmem>>) attributes {dimension_semantics = [#tpu.dimension_semantics<parallel>], iteration_bounds = array<i64: 1>, scalar_prefetch = 0 : i64, scratch_operands = 0 : i64, tpu.core_type = #tpu.core_type<tc>, window_params = [{transform_indices = @transform_0, window_bounds = array<i64: 9, 128, 64>}, {transform_indices = @transform_1, window_bounds = array<i64: 128, 64>}]} {
    %c0 = arith.constant 0 : index
    %c0_0 = arith.constant 0 : index
    %c0_1 = arith.constant 0 : index
    %0 = vector.load %arg1[%c0, %c0_0, %c0_1] : memref<9x128x64xbf16, #tpu.memory_space<vmem>>, vector<9x128x64xbf16>
    %cst = arith.constant dense<0xFF80> : vector<128x64xbf16>
    %1 = vector.multi_reduction <maximumf>, %0, %cst [0] : vector<9x128x64xbf16> to vector<128x64xbf16>
    %c0_2 = arith.constant 0 : index
    %c0_3 = arith.constant 0 : index
    %2 = vector.load %arg2[%c0_2, %c0_3] : memref<128x64xbf16, #tpu.memory_space<vmem>>, vector<128x64xbf16>
    tpu.vector_store %arg2[%c0_2, %c0_3], %1 {strides = array<i32>} : memref<128x64xbf16, #tpu.memory_space<vmem>>, vector<128x64xbf16>,
    return
  }
  func.func @transform_0(%arg0: i32) -> (i32, i32, i32) {
    %c0_i32 = arith.constant 0 : i32
    %c0_i32_0 = arith.constant 0 : i32
    %c0_i32_1 = arith.constant 0 : i32
    return %c0_i32, %arg0, %c0_i32_0 : i32, i32, i32
  }
  func.func @transform_1(%arg0: i32) -> (i32, i32) {
    %c0_i32 = arith.constant 0 : i32
    %c0_i32_0 = arith.constant 0 : i32
    return %arg0, %c0_i32 : i32, i32
  }
}

module attributes {stable_mosaic.version = 11 : i64} {
  func.func @kernel(%arg0: i32, %arg1: memref<128x576xbf16, #tpu.memory_space<vmem>>, %arg2: memref<576x64xbf16, #tpu.memory_space<vmem>>, %arg3: memref<1x64xf32, #tpu.memory_space<vmem>>, %arg4: memref<128x64xbf16, #tpu.memory_space<vmem>>, %arg5: memref<128x64xbf16, #tpu.memory_space<vmem>>) attributes {dimension_semantics = [#tpu.dimension_semantics<parallel>], iteration_bounds = array<i64: 1>, scalar_prefetch = 0 : i64, scratch_operands = 0 : i64, tpu.core_type = #tpu.core_type<tc>, window_params = [{transform_indices = @transform_0, window_bounds = array<i64: 128, 576>}, {pipeline_mode = #tpu.pipeline_mode<synchronous>, transform_indices = @transform_1, window_bounds = array<i64: 576, 64>}, {pipeline_mode = #tpu.pipeline_mode<synchronous>, transform_indices = @transform_2, window_bounds = array<i64: 1, 64>}, {transform_indices = @transform_3, window_bounds = array<i64: 128, 64>}, {transform_indices = @transform_4, window_bounds = array<i64: 128, 64>}]} {
    %c0 = arith.constant 0 : index
    %c0_0 = arith.constant 0 : index
    %0 = vector.load %arg1[%c0, %c0_0] : memref<128x576xbf16, #tpu.memory_space<vmem>>, vector<128x576xbf16>
    %c0_1 = arith.constant 0 : index
    %c0_2 = arith.constant 0 : index
    %1 = vector.load %arg2[%c0_1, %c0_2] : memref<576x64xbf16, #tpu.memory_space<vmem>>, vector<576x64xbf16>
    %cst = arith.constant dense<0.000000e+00> : vector<128x64xf32>
    %2 = tpu.matmul %0, %1, %cst {dimension_numbers = #tpu.dot_dimension_numbers<[1], [0], [0], [1], [0, 0, 1, 1], [], []>} : vector<128x576xbf16>, vector<576x64xbf16>, vector<128x64xf32> -> vector<128x64xf32>
    %c0_3 = arith.constant 0 : index
    %c0_4 = arith.constant 0 : index
    %3 = vector.load %arg3[%c0_3, %c0_4] : memref<1x64xf32, #tpu.memory_space<vmem>>, vector<1x64xf32>
    %4 = vector.broadcast %3 : vector<1x64xf32> to vector<128x64xf32>
    %5 = arith.addf %2, %4 : vector<128x64xf32>
    %c0_5 = arith.constant 0 : index
    %c0_6 = arith.constant 0 : index
    %6 = vector.load %arg4[%c0_5, %c0_6] : memref<128x64xbf16, #tpu.memory_space<vmem>>, vector<128x64xbf16>
    %7 = arith.extf %6 : vector<128x64xbf16> to vector<128x64xf32>
    %8 = arith.addf %5, %7 : vector<128x64xf32>
    %cst_7 = arith.constant 0.000000e+00 : f32
    %9 = vector.broadcast %cst_7 : f32 to vector<128x64xf32>
    %10 = arith.maximumf %8, %9 : vector<128x64xf32>
    %11 = arith.truncf %10 : vector<128x64xf32> to vector<128x64xbf16>
    %c0_8 = arith.constant 0 : index
    %c0_9 = arith.constant 0 : index
    %12 = vector.load %arg5[%c0_8, %c0_9] : memref<128x64xbf16, #tpu.memory_space<vmem>>, vector<128x64xbf16>
    tpu.vector_store %arg5[%c0_8, %c0_9], %11 {strides = array<i32>} : memref<128x64xbf16, #tpu.memory_space<vmem>>, vector<128x64xbf16>,
    return
  }
  func.func @transform_0(%arg0: i32) -> (i32, i32) {
    %c0_i32 = arith.constant 0 : i32
    %c0_i32_0 = arith.constant 0 : i32
    return %arg0, %c0_i32 : i32, i32
  }
  func.func @transform_1(%arg0: i32) -> (i32, i32) {
    %c0_i32 = arith.constant 0 : i32
    %c0_i32_0 = arith.constant 0 : i32
    %c0_i32_1 = arith.constant 0 : i32
    return %c0_i32, %c0_i32_0 : i32, i32
  }
  func.func @transform_2(%arg0: i32) -> (i32, i32) {
    %c0_i32 = arith.constant 0 : i32
    %c0_i32_0 = arith.constant 0 : i32
    %c0_i32_1 = arith.constant 0 : i32
    return %c0_i32, %c0_i32_0 : i32, i32
  }
  func.func @transform_3(%arg0: i32) -> (i32, i32) {
    %c0_i32 = arith.constant 0 : i32
    %c0_i32_0 = arith.constant 0 : i32
    return %arg0, %c0_i32 : i32, i32
  }
  func.func @transform_4(%arg0: i32) -> (i32, i32) {
    %c0_i32 = arith.constant 0 : i32
    %c0_i32_0 = arith.constant 0 : i32
    return %arg0, %c0_i32 : i32, i32
  }
}

module attributes {stable_mosaic.version = 11 : i64} {
  func.func @kernel(%arg0: i32, %arg1: memref<128x576xbf16, #tpu.memory_space<vmem>>, %arg2: memref<576x64xbf16, #tpu.memory_space<vmem>>, %arg3: memref<1x64xf32, #tpu.memory_space<vmem>>, %arg4: memref<128x64xbf16, #tpu.memory_space<vmem>>) attributes {dimension_semantics = [#tpu.dimension_semantics<parallel>], iteration_bounds = array<i64: 1>, scalar_prefetch = 0 : i64, scratch_operands = 0 : i64, tpu.core_type = #tpu.core_type<tc>, window_params = [{transform_indices = @transform_0, window_bounds = array<i64: 128, 576>}, {pipeline_mode = #tpu.pipeline_mode<synchronous>, transform_indices = @transform_1, window_bounds = array<i64: 576, 64>}, {pipeline_mode = #tpu.pipeline_mode<synchronous>, transform_indices = @transform_2, window_bounds = array<i64: 1, 64>}, {transform_indices = @transform_3, window_bounds = array<i64: 128, 64>}]} {
    %c0 = arith.constant 0 : index
    %c0_0 = arith.constant 0 : index
    %0 = vector.load %arg1[%c0, %c0_0] : memref<128x576xbf16, #tpu.memory_space<vmem>>, vector<128x576xbf16>
    %c0_1 = arith.constant 0 : index
    %c0_2 = arith.constant 0 : index
    %1 = vector.load %arg2[%c0_1, %c0_2] : memref<576x64xbf16, #tpu.memory_space<vmem>>, vector<576x64xbf16>
    %cst = arith.constant dense<0.000000e+00> : vector<128x64xf32>
    %2 = tpu.matmul %0, %1, %cst {dimension_numbers = #tpu.dot_dimension_numbers<[1], [0], [0], [1], [0, 0, 1, 1], [], []>} : vector<128x576xbf16>, vector<576x64xbf16>, vector<128x64xf32> -> vector<128x64xf32>
    %c0_3 = arith.constant 0 : index
    %c0_4 = arith.constant 0 : index
    %3 = vector.load %arg3[%c0_3, %c0_4] : memref<1x64xf32, #tpu.memory_space<vmem>>, vector<1x64xf32>
    %4 = vector.broadcast %3 : vector<1x64xf32> to vector<128x64xf32>
    %5 = arith.addf %2, %4 : vector<128x64xf32>
    %cst_5 = arith.constant 0.000000e+00 : f32
    %6 = vector.broadcast %cst_5 : f32 to vector<128x64xf32>
    %7 = arith.maximumf %5, %6 : vector<128x64xf32>
    %8 = arith.truncf %7 : vector<128x64xf32> to vector<128x64xbf16>
    %c0_6 = arith.constant 0 : index
    %c0_7 = arith.constant 0 : index
    %9 = vector.load %arg4[%c0_6, %c0_7] : memref<128x64xbf16, #tpu.memory_space<vmem>>, vector<128x64xbf16>
    tpu.vector_store %arg4[%c0_6, %c0_7], %8 {strides = array<i32>} : memref<128x64xbf16, #tpu.memory_space<vmem>>, vector<128x64xbf16>,
    return
  }
  func.func @transform_0(%arg0: i32) -> (i32, i32) {
    %c0_i32 = arith.constant 0 : i32
    %c0_i32_0 = arith.constant 0 : i32
    return %arg0, %c0_i32 : i32, i32
  }
  func.func @transform_1(%arg0: i32) -> (i32, i32) {
    %c0_i32 = arith.constant 0 : i32
    %c0_i32_0 = arith.constant 0 : i32
    %c0_i32_1 = arith.constant 0 : i32
    return %c0_i32, %c0_i32_0 : i32, i32
  }
  func.func @transform_2(%arg0: i32) -> (i32, i32) {
    %c0_i32 = arith.constant 0 : i32
    %c0_i32_0 = arith.constant 0 : i32
    %c0_i32_1 = arith.constant 0 : i32
    return %c0_i32, %c0_i32_0 : i32, i32
  }
  func.func @transform_3(%arg0: i32) -> (i32, i32) {
    %c0_i32 = arith.constant 0 : i32
    %c0_i32_0 = arith.constant 0 : i32
    return %arg0, %c0_i32 : i32, i32
  }
}

module attributes {stable_mosaic.version = 11 : i64} {
  func.func @kernel(%arg0: i32, %arg1: memref<32x576xbf16, #tpu.memory_space<vmem>>, %arg2: memref<576x128xbf16, #tpu.memory_space<vmem>>, %arg3: memref<1x128xf32, #tpu.memory_space<vmem>>, %arg4: memref<32x128xbf16, #tpu.memory_space<vmem>>) attributes {dimension_semantics = [#tpu.dimension_semantics<parallel>], iteration_bounds = array<i64: 1>, scalar_prefetch = 0 : i64, scratch_operands = 0 : i64, tpu.core_type = #tpu.core_type<tc>, window_params = [{transform_indices = @transform_0, window_bounds = array<i64: 32, 576>}, {pipeline_mode = #tpu.pipeline_mode<synchronous>, transform_indices = @transform_1, window_bounds = array<i64: 576, 128>}, {pipeline_mode = #tpu.pipeline_mode<synchronous>, transform_indices = @transform_2, window_bounds = array<i64: 1, 128>}, {transform_indices = @transform_3, window_bounds = array<i64: 32, 128>}]} {
    %c0 = arith.constant 0 : index
    %c0_0 = arith.constant 0 : index
    %0 = vector.load %arg1[%c0, %c0_0] : memref<32x576xbf16, #tpu.memory_space<vmem>>, vector<32x576xbf16>
    %c0_1 = arith.constant 0 : index
    %c0_2 = arith.constant 0 : index
    %1 = vector.load %arg2[%c0_1, %c0_2] : memref<576x128xbf16, #tpu.memory_space<vmem>>, vector<576x128xbf16>
    %cst = arith.constant dense<0.000000e+00> : vector<32x128xf32>
    %2 = tpu.matmul %0, %1, %cst {dimension_numbers = #tpu.dot_dimension_numbers<[1], [0], [0], [1], [0, 0, 1, 1], [], []>} : vector<32x576xbf16>, vector<576x128xbf16>, vector<32x128xf32> -> vector<32x128xf32>
    %c0_3 = arith.constant 0 : index
    %c0_4 = arith.constant 0 : index
    %3 = vector.load %arg3[%c0_3, %c0_4] : memref<1x128xf32, #tpu.memory_space<vmem>>, vector<1x128xf32>
    %4 = vector.broadcast %3 : vector<1x128xf32> to vector<32x128xf32>
    %5 = arith.addf %2, %4 : vector<32x128xf32>
    %cst_5 = arith.constant 0.000000e+00 : f32
    %6 = vector.broadcast %cst_5 : f32 to vector<32x128xf32>
    %7 = arith.maximumf %5, %6 : vector<32x128xf32>
    %8 = arith.truncf %7 : vector<32x128xf32> to vector<32x128xbf16>
    %c0_6 = arith.constant 0 : index
    %c0_7 = arith.constant 0 : index
    %9 = vector.load %arg4[%c0_6, %c0_7] : memref<32x128xbf16, #tpu.memory_space<vmem>>, vector<32x128xbf16>
    tpu.vector_store %arg4[%c0_6, %c0_7], %8 {strides = array<i32>} : memref<32x128xbf16, #tpu.memory_space<vmem>>, vector<32x128xbf16>,
    return
  }
  func.func @transform_0(%arg0: i32) -> (i32, i32) {
    %c0_i32 = arith.constant 0 : i32
    %c0_i32_0 = arith.constant 0 : i32
    return %arg0, %c0_i32 : i32, i32
  }
  func.func @transform_1(%arg0: i32) -> (i32, i32) {
    %c0_i32 = arith.constant 0 : i32
    %c0_i32_0 = arith.constant 0 : i32
    %c0_i32_1 = arith.constant 0 : i32
    return %c0_i32, %c0_i32_0 : i32, i32
  }
  func.func @transform_2(%arg0: i32) -> (i32, i32) {
    %c0_i32 = arith.constant 0 : i32
    %c0_i32_0 = arith.constant 0 : i32
    %c0_i32_1 = arith.constant 0 : i32
    return %c0_i32, %c0_i32_0 : i32, i32
  }
  func.func @transform_3(%arg0: i32) -> (i32, i32) {
    %c0_i32 = arith.constant 0 : i32
    %c0_i32_0 = arith.constant 0 : i32
    return %arg0, %c0_i32 : i32, i32
  }
}

module attributes {stable_mosaic.version = 11 : i64} {
  func.func @kernel(%arg0: i32, %arg1: memref<32x64xbf16, #tpu.memory_space<vmem>>, %arg2: memref<64x128xbf16, #tpu.memory_space<vmem>>, %arg3: memref<1x128xf32, #tpu.memory_space<vmem>>, %arg4: memref<32x128xbf16, #tpu.memory_space<vmem>>) attributes {dimension_semantics = [#tpu.dimension_semantics<parallel>], iteration_bounds = array<i64: 1>, scalar_prefetch = 0 : i64, scratch_operands = 0 : i64, tpu.core_type = #tpu.core_type<tc>, window_params = [{transform_indices = @transform_0, window_bounds = array<i64: 32, 64>}, {pipeline_mode = #tpu.pipeline_mode<synchronous>, transform_indices = @transform_1, window_bounds = array<i64: 64, 128>}, {pipeline_mode = #tpu.pipeline_mode<synchronous>, transform_indices = @transform_2, window_bounds = array<i64: 1, 128>}, {transform_indices = @transform_3, window_bounds = array<i64: 32, 128>}]} {
    %c0 = arith.constant 0 : index
    %c0_0 = arith.constant 0 : index
    %0 = vector.load %arg1[%c0, %c0_0] : memref<32x64xbf16, #tpu.memory_space<vmem>>, vector<32x64xbf16>
    %c0_1 = arith.constant 0 : index
    %c0_2 = arith.constant 0 : index
    %1 = vector.load %arg2[%c0_1, %c0_2] : memref<64x128xbf16, #tpu.memory_space<vmem>>, vector<64x128xbf16>
    %cst = arith.constant dense<0.000000e+00> : vector<32x128xf32>
    %2 = tpu.matmul %0, %1, %cst {dimension_numbers = #tpu.dot_dimension_numbers<[1], [0], [0], [1], [0, 0, 1, 1], [], []>} : vector<32x64xbf16>, vector<64x128xbf16>, vector<32x128xf32> -> vector<32x128xf32>
    %c0_3 = arith.constant 0 : index
    %c0_4 = arith.constant 0 : index
    %3 = vector.load %arg3[%c0_3, %c0_4] : memref<1x128xf32, #tpu.memory_space<vmem>>, vector<1x128xf32>
    %4 = vector.broadcast %3 : vector<1x128xf32> to vector<32x128xf32>
    %5 = arith.addf %2, %4 : vector<32x128xf32>
    %6 = arith.truncf %5 : vector<32x128xf32> to vector<32x128xbf16>
    %c0_5 = arith.constant 0 : index
    %c0_6 = arith.constant 0 : index
    %7 = vector.load %arg4[%c0_5, %c0_6] : memref<32x128xbf16, #tpu.memory_space<vmem>>, vector<32x128xbf16>
    tpu.vector_store %arg4[%c0_5, %c0_6], %6 {strides = array<i32>} : memref<32x128xbf16, #tpu.memory_space<vmem>>, vector<32x128xbf16>,
    return
  }
  func.func @transform_0(%arg0: i32) -> (i32, i32) {
    %c0_i32 = arith.constant 0 : i32
    %c0_i32_0 = arith.constant 0 : i32
    return %arg0, %c0_i32 : i32, i32
  }
  func.func @transform_1(%arg0: i32) -> (i32, i32) {
    %c0_i32 = arith.constant 0 : i32
    %c0_i32_0 = arith.constant 0 : i32
    %c0_i32_1 = arith.constant 0 : i32
    return %c0_i32, %c0_i32_0 : i32, i32
  }
  func.func @transform_2(%arg0: i32) -> (i32, i32) {
    %c0_i32 = arith.constant 0 : i32
    %c0_i32_0 = arith.constant 0 : i32
    %c0_i32_1 = arith.constant 0 : i32
    return %c0_i32, %c0_i32_0 : i32, i32
  }
  func.func @transform_3(%arg0: i32) -> (i32, i32) {
    %c0_i32 = arith.constant 0 : i32
    %c0_i32_0 = arith.constant 0 : i32
    return %arg0, %c0_i32 : i32, i32
  }
}

module attributes {stable_mosaic.version = 11 : i64} {
  func.func @kernel(%arg0: i32, %arg1: memref<32x1152xbf16, #tpu.memory_space<vmem>>, %arg2: memref<1152x128xbf16, #tpu.memory_space<vmem>>, %arg3: memref<1x128xf32, #tpu.memory_space<vmem>>, %arg4: memref<32x128xbf16, #tpu.memory_space<vmem>>, %arg5: memref<32x128xbf16, #tpu.memory_space<vmem>>) attributes {dimension_semantics = [#tpu.dimension_semantics<parallel>], iteration_bounds = array<i64: 1>, scalar_prefetch = 0 : i64, scratch_operands = 0 : i64, tpu.core_type = #tpu.core_type<tc>, window_params = [{transform_indices = @transform_0, window_bounds = array<i64: 32, 1152>}, {pipeline_mode = #tpu.pipeline_mode<synchronous>, transform_indices = @transform_1, window_bounds = array<i64: 1152, 128>}, {pipeline_mode = #tpu.pipeline_mode<synchronous>, transform_indices = @transform_2, window_bounds = array<i64: 1, 128>}, {transform_indices = @transform_3, window_bounds = array<i64: 32, 128>}, {transform_indices = @transform_4, window_bounds = array<i64: 32, 128>}]} {
    %c0 = arith.constant 0 : index
    %c0_0 = arith.constant 0 : index
    %0 = vector.load %arg1[%c0, %c0_0] : memref<32x1152xbf16, #tpu.memory_space<vmem>>, vector<32x1152xbf16>
    %c0_1 = arith.constant 0 : index
    %c0_2 = arith.constant 0 : index
    %1 = vector.load %arg2[%c0_1, %c0_2] : memref<1152x128xbf16, #tpu.memory_space<vmem>>, vector<1152x128xbf16>
    %cst = arith.constant dense<0.000000e+00> : vector<32x128xf32>
    %2 = tpu.matmul %0, %1, %cst {dimension_numbers = #tpu.dot_dimension_numbers<[1], [0], [0], [1], [0, 0, 1, 1], [], []>} : vector<32x1152xbf16>, vector<1152x128xbf16>, vector<32x128xf32> -> vector<32x128xf32>
    %c0_3 = arith.constant 0 : index
    %c0_4 = arith.constant 0 : index
    %3 = vector.load %arg3[%c0_3, %c0_4] : memref<1x128xf32, #tpu.memory_space<vmem>>, vector<1x128xf32>
    %4 = vector.broadcast %3 : vector<1x128xf32> to vector<32x128xf32>
    %5 = arith.addf %2, %4 : vector<32x128xf32>
    %c0_5 = arith.constant 0 : index
    %c0_6 = arith.constant 0 : index
    %6 = vector.load %arg4[%c0_5, %c0_6] : memref<32x128xbf16, #tpu.memory_space<vmem>>, vector<32x128xbf16>
    %7 = arith.extf %6 : vector<32x128xbf16> to vector<32x128xf32>
    %8 = arith.addf %5, %7 : vector<32x128xf32>
    %cst_7 = arith.constant 0.000000e+00 : f32
    %9 = vector.broadcast %cst_7 : f32 to vector<32x128xf32>
    %10 = arith.maximumf %8, %9 : vector<32x128xf32>
    %11 = arith.truncf %10 : vector<32x128xf32> to vector<32x128xbf16>
    %c0_8 = arith.constant 0 : index
    %c0_9 = arith.constant 0 : index
    %12 = vector.load %arg5[%c0_8, %c0_9] : memref<32x128xbf16, #tpu.memory_space<vmem>>, vector<32x128xbf16>
    tpu.vector_store %arg5[%c0_8, %c0_9], %11 {strides = array<i32>} : memref<32x128xbf16, #tpu.memory_space<vmem>>, vector<32x128xbf16>,
    return
  }
  func.func @transform_0(%arg0: i32) -> (i32, i32) {
    %c0_i32 = arith.constant 0 : i32
    %c0_i32_0 = arith.constant 0 : i32
    return %arg0, %c0_i32 : i32, i32
  }
  func.func @transform_1(%arg0: i32) -> (i32, i32) {
    %c0_i32 = arith.constant 0 : i32
    %c0_i32_0 = arith.constant 0 : i32
    %c0_i32_1 = arith.constant 0 : i32
    return %c0_i32, %c0_i32_0 : i32, i32
  }
  func.func @transform_2(%arg0: i32) -> (i32, i32) {
    %c0_i32 = arith.constant 0 : i32
    %c0_i32_0 = arith.constant 0 : i32
    %c0_i32_1 = arith.constant 0 : i32
    return %c0_i32, %c0_i32_0 : i32, i32
  }
  func.func @transform_3(%arg0: i32) -> (i32, i32) {
    %c0_i32 = arith.constant 0 : i32
    %c0_i32_0 = arith.constant 0 : i32
    return %arg0, %c0_i32 : i32, i32
  }
  func.func @transform_4(%arg0: i32) -> (i32, i32) {
    %c0_i32 = arith.constant 0 : i32
    %c0_i32_0 = arith.constant 0 : i32
    return %arg0, %c0_i32 : i32, i32
  }
}

module attributes {stable_mosaic.version = 11 : i64} {
  func.func @kernel(%arg0: i32, %arg1: memref<32x1152xbf16, #tpu.memory_space<vmem>>, %arg2: memref<1152x128xbf16, #tpu.memory_space<vmem>>, %arg3: memref<1x128xf32, #tpu.memory_space<vmem>>, %arg4: memref<32x128xbf16, #tpu.memory_space<vmem>>) attributes {dimension_semantics = [#tpu.dimension_semantics<parallel>], iteration_bounds = array<i64: 1>, scalar_prefetch = 0 : i64, scratch_operands = 0 : i64, tpu.core_type = #tpu.core_type<tc>, window_params = [{transform_indices = @transform_0, window_bounds = array<i64: 32, 1152>}, {pipeline_mode = #tpu.pipeline_mode<synchronous>, transform_indices = @transform_1, window_bounds = array<i64: 1152, 128>}, {pipeline_mode = #tpu.pipeline_mode<synchronous>, transform_indices = @transform_2, window_bounds = array<i64: 1, 128>}, {transform_indices = @transform_3, window_bounds = array<i64: 32, 128>}]} {
    %c0 = arith.constant 0 : index
    %c0_0 = arith.constant 0 : index
    %0 = vector.load %arg1[%c0, %c0_0] : memref<32x1152xbf16, #tpu.memory_space<vmem>>, vector<32x1152xbf16>
    %c0_1 = arith.constant 0 : index
    %c0_2 = arith.constant 0 : index
    %1 = vector.load %arg2[%c0_1, %c0_2] : memref<1152x128xbf16, #tpu.memory_space<vmem>>, vector<1152x128xbf16>
    %cst = arith.constant dense<0.000000e+00> : vector<32x128xf32>
    %2 = tpu.matmul %0, %1, %cst {dimension_numbers = #tpu.dot_dimension_numbers<[1], [0], [0], [1], [0, 0, 1, 1], [], []>} : vector<32x1152xbf16>, vector<1152x128xbf16>, vector<32x128xf32> -> vector<32x128xf32>
    %c0_3 = arith.constant 0 : index
    %c0_4 = arith.constant 0 : index
    %3 = vector.load %arg3[%c0_3, %c0_4] : memref<1x128xf32, #tpu.memory_space<vmem>>, vector<1x128xf32>
    %4 = vector.broadcast %3 : vector<1x128xf32> to vector<32x128xf32>
    %5 = arith.addf %2, %4 : vector<32x128xf32>
    %cst_5 = arith.constant 0.000000e+00 : f32
    %6 = vector.broadcast %cst_5 : f32 to vector<32x128xf32>
    %7 = arith.maximumf %5, %6 : vector<32x128xf32>
    %8 = arith.truncf %7 : vector<32x128xf32> to vector<32x128xbf16>
    %c0_6 = arith.constant 0 : index
    %c0_7 = arith.constant 0 : index
    %9 = vector.load %arg4[%c0_6, %c0_7] : memref<32x128xbf16, #tpu.memory_space<vmem>>, vector<32x128xbf16>
    tpu.vector_store %arg4[%c0_6, %c0_7], %8 {strides = array<i32>} : memref<32x128xbf16, #tpu.memory_space<vmem>>, vector<32x128xbf16>,
    return
  }
  func.func @transform_0(%arg0: i32) -> (i32, i32) {
    %c0_i32 = arith.constant 0 : i32
    %c0_i32_0 = arith.constant 0 : i32
    return %arg0, %c0_i32 : i32, i32
  }
  func.func @transform_1(%arg0: i32) -> (i32, i32) {
    %c0_i32 = arith.constant 0 : i32
    %c0_i32_0 = arith.constant 0 : i32
    %c0_i32_1 = arith.constant 0 : i32
    return %c0_i32, %c0_i32_0 : i32, i32
  }
  func.func @transform_2(%arg0: i32) -> (i32, i32) {
    %c0_i32 = arith.constant 0 : i32
    %c0_i32_0 = arith.constant 0 : i32
    %c0_i32_1 = arith.constant 0 : i32
    return %c0_i32, %c0_i32_0 : i32, i32
  }
  func.func @transform_3(%arg0: i32) -> (i32, i32) {
    %c0_i32 = arith.constant 0 : i32
    %c0_i32_0 = arith.constant 0 : i32
    return %arg0, %c0_i32 : i32, i32
  }
}

module attributes {stable_mosaic.version = 11 : i64} {
  func.func @kernel(%arg0: i32, %arg1: memref<8x1152xbf16, #tpu.memory_space<vmem>>, %arg2: memref<1152x256xbf16, #tpu.memory_space<vmem>>, %arg3: memref<1x256xf32, #tpu.memory_space<vmem>>, %arg4: memref<8x256xbf16, #tpu.memory_space<vmem>>) attributes {dimension_semantics = [#tpu.dimension_semantics<parallel>], iteration_bounds = array<i64: 1>, scalar_prefetch = 0 : i64, scratch_operands = 0 : i64, tpu.core_type = #tpu.core_type<tc>, window_params = [{transform_indices = @transform_0, window_bounds = array<i64: 8, 1152>}, {pipeline_mode = #tpu.pipeline_mode<synchronous>, transform_indices = @transform_1, window_bounds = array<i64: 1152, 256>}, {pipeline_mode = #tpu.pipeline_mode<synchronous>, transform_indices = @transform_2, window_bounds = array<i64: 1, 256>}, {transform_indices = @transform_3, window_bounds = array<i64: 8, 256>}]} {
    %c0 = arith.constant 0 : index
    %c0_0 = arith.constant 0 : index
    %0 = vector.load %arg1[%c0, %c0_0] : memref<8x1152xbf16, #tpu.memory_space<vmem>>, vector<8x1152xbf16>
    %c0_1 = arith.constant 0 : index
    %c0_2 = arith.constant 0 : index
    %1 = vector.load %arg2[%c0_1, %c0_2] : memref<1152x256xbf16, #tpu.memory_space<vmem>>, vector<1152x256xbf16>
    %cst = arith.constant dense<0.000000e+00> : vector<8x256xf32>
    %2 = tpu.matmul %0, %1, %cst {dimension_numbers = #tpu.dot_dimension_numbers<[1], [0], [0], [1], [0, 0, 1, 1], [], []>} : vector<8x1152xbf16>, vector<1152x256xbf16>, vector<8x256xf32> -> vector<8x256xf32>
    %c0_3 = arith.constant 0 : index
    %c0_4 = arith.constant 0 : index
    %3 = vector.load %arg3[%c0_3, %c0_4] : memref<1x256xf32, #tpu.memory_space<vmem>>, vector<1x256xf32>
    %4 = vector.broadcast %3 : vector<1x256xf32> to vector<8x256xf32>
    %5 = arith.addf %2, %4 : vector<8x256xf32>
    %cst_5 = arith.constant 0.000000e+00 : f32
    %6 = vector.broadcast %cst_5 : f32 to vector<8x256xf32>
    %7 = arith.maximumf %5, %6 : vector<8x256xf32>
    %8 = arith.truncf %7 : vector<8x256xf32> to vector<8x256xbf16>
    %c0_6 = arith.constant 0 : index
    %c0_7 = arith.constant 0 : index
    %9 = vector.load %arg4[%c0_6, %c0_7] : memref<8x256xbf16, #tpu.memory_space<vmem>>, vector<8x256xbf16>
    tpu.vector_store %arg4[%c0_6, %c0_7], %8 {strides = array<i32>} : memref<8x256xbf16, #tpu.memory_space<vmem>>, vector<8x256xbf16>,
    return
  }
  func.func @transform_0(%arg0: i32) -> (i32, i32) {
    %c0_i32 = arith.constant 0 : i32
    %c0_i32_0 = arith.constant 0 : i32
    return %arg0, %c0_i32 : i32, i32
  }
  func.func @transform_1(%arg0: i32) -> (i32, i32) {
    %c0_i32 = arith.constant 0 : i32
    %c0_i32_0 = arith.constant 0 : i32
    %c0_i32_1 = arith.constant 0 : i32
    return %c0_i32, %c0_i32_0 : i32, i32
  }
  func.func @transform_2(%arg0: i32) -> (i32, i32) {
    %c0_i32 = arith.constant 0 : i32
    %c0_i32_0 = arith.constant 0 : i32
    %c0_i32_1 = arith.constant 0 : i32
    return %c0_i32, %c0_i32_0 : i32, i32
  }
  func.func @transform_3(%arg0: i32) -> (i32, i32) {
    %c0_i32 = arith.constant 0 : i32
    %c0_i32_0 = arith.constant 0 : i32
    return %arg0, %c0_i32 : i32, i32
  }
}

module attributes {stable_mosaic.version = 11 : i64} {
  func.func @kernel(%arg0: i32, %arg1: memref<8x128xbf16, #tpu.memory_space<vmem>>, %arg2: memref<128x256xbf16, #tpu.memory_space<vmem>>, %arg3: memref<1x256xf32, #tpu.memory_space<vmem>>, %arg4: memref<8x256xbf16, #tpu.memory_space<vmem>>) attributes {dimension_semantics = [#tpu.dimension_semantics<parallel>], iteration_bounds = array<i64: 1>, scalar_prefetch = 0 : i64, scratch_operands = 0 : i64, tpu.core_type = #tpu.core_type<tc>, window_params = [{transform_indices = @transform_0, window_bounds = array<i64: 8, 128>}, {pipeline_mode = #tpu.pipeline_mode<synchronous>, transform_indices = @transform_1, window_bounds = array<i64: 128, 256>}, {pipeline_mode = #tpu.pipeline_mode<synchronous>, transform_indices = @transform_2, window_bounds = array<i64: 1, 256>}, {transform_indices = @transform_3, window_bounds = array<i64: 8, 256>}]} {
    %c0 = arith.constant 0 : index
    %c0_0 = arith.constant 0 : index
    %0 = vector.load %arg1[%c0, %c0_0] : memref<8x128xbf16, #tpu.memory_space<vmem>>, vector<8x128xbf16>
    %c0_1 = arith.constant 0 : index
    %c0_2 = arith.constant 0 : index
    %1 = vector.load %arg2[%c0_1, %c0_2] : memref<128x256xbf16, #tpu.memory_space<vmem>>, vector<128x256xbf16>
    %cst = arith.constant dense<0.000000e+00> : vector<8x256xf32>
    %2 = tpu.matmul %0, %1, %cst {dimension_numbers = #tpu.dot_dimension_numbers<[1], [0], [0], [1], [0, 0, 1, 1], [], []>} : vector<8x128xbf16>, vector<128x256xbf16>, vector<8x256xf32> -> vector<8x256xf32>
    %c0_3 = arith.constant 0 : index
    %c0_4 = arith.constant 0 : index
    %3 = vector.load %arg3[%c0_3, %c0_4] : memref<1x256xf32, #tpu.memory_space<vmem>>, vector<1x256xf32>
    %4 = vector.broadcast %3 : vector<1x256xf32> to vector<8x256xf32>
    %5 = arith.addf %2, %4 : vector<8x256xf32>
    %6 = arith.truncf %5 : vector<8x256xf32> to vector<8x256xbf16>
    %c0_5 = arith.constant 0 : index
    %c0_6 = arith.constant 0 : index
    %7 = vector.load %arg4[%c0_5, %c0_6] : memref<8x256xbf16, #tpu.memory_space<vmem>>, vector<8x256xbf16>
    tpu.vector_store %arg4[%c0_5, %c0_6], %6 {strides = array<i32>} : memref<8x256xbf16, #tpu.memory_space<vmem>>, vector<8x256xbf16>,
    return
  }
  func.func @transform_0(%arg0: i32) -> (i32, i32) {
    %c0_i32 = arith.constant 0 : i32
    %c0_i32_0 = arith.constant 0 : i32
    return %arg0, %c0_i32 : i32, i32
  }
  func.func @transform_1(%arg0: i32) -> (i32, i32) {
    %c0_i32 = arith.constant 0 : i32
    %c0_i32_0 = arith.constant 0 : i32
    %c0_i32_1 = arith.constant 0 : i32
    return %c0_i32, %c0_i32_0 : i32, i32
  }
  func.func @transform_2(%arg0: i32) -> (i32, i32) {
    %c0_i32 = arith.constant 0 : i32
    %c0_i32_0 = arith.constant 0 : i32
    %c0_i32_1 = arith.constant 0 : i32
    return %c0_i32, %c0_i32_0 : i32, i32
  }
  func.func @transform_3(%arg0: i32) -> (i32, i32) {
    %c0_i32 = arith.constant 0 : i32
    %c0_i32_0 = arith.constant 0 : i32
    return %arg0, %c0_i32 : i32, i32
  }
}

module attributes {stable_mosaic.version = 11 : i64} {
  func.func @kernel(%arg0: i32, %arg1: memref<8x2304xbf16, #tpu.memory_space<vmem>>, %arg2: memref<2304x256xbf16, #tpu.memory_space<vmem>>, %arg3: memref<1x256xf32, #tpu.memory_space<vmem>>, %arg4: memref<8x256xbf16, #tpu.memory_space<vmem>>, %arg5: memref<8x256xbf16, #tpu.memory_space<vmem>>) attributes {dimension_semantics = [#tpu.dimension_semantics<parallel>], iteration_bounds = array<i64: 1>, scalar_prefetch = 0 : i64, scratch_operands = 0 : i64, tpu.core_type = #tpu.core_type<tc>, window_params = [{transform_indices = @transform_0, window_bounds = array<i64: 8, 2304>}, {pipeline_mode = #tpu.pipeline_mode<synchronous>, transform_indices = @transform_1, window_bounds = array<i64: 2304, 256>}, {pipeline_mode = #tpu.pipeline_mode<synchronous>, transform_indices = @transform_2, window_bounds = array<i64: 1, 256>}, {transform_indices = @transform_3, window_bounds = array<i64: 8, 256>}, {transform_indices = @transform_4, window_bounds = array<i64: 8, 256>}]} {
    %c0 = arith.constant 0 : index
    %c0_0 = arith.constant 0 : index
    %0 = vector.load %arg1[%c0, %c0_0] : memref<8x2304xbf16, #tpu.memory_space<vmem>>, vector<8x2304xbf16>
    %c0_1 = arith.constant 0 : index
    %c0_2 = arith.constant 0 : index
    %1 = vector.load %arg2[%c0_1, %c0_2] : memref<2304x256xbf16, #tpu.memory_space<vmem>>, vector<2304x256xbf16>
    %cst = arith.constant dense<0.000000e+00> : vector<8x256xf32>
    %2 = tpu.matmul %0, %1, %cst {dimension_numbers = #tpu.dot_dimension_numbers<[1], [0], [0], [1], [0, 0, 1, 1], [], []>} : vector<8x2304xbf16>, vector<2304x256xbf16>, vector<8x256xf32> -> vector<8x256xf32>
    %c0_3 = arith.constant 0 : index
    %c0_4 = arith.constant 0 : index
    %3 = vector.load %arg3[%c0_3, %c0_4] : memref<1x256xf32, #tpu.memory_space<vmem>>, vector<1x256xf32>
    %4 = vector.broadcast %3 : vector<1x256xf32> to vector<8x256xf32>
    %5 = arith.addf %2, %4 : vector<8x256xf32>
    %c0_5 = arith.constant 0 : index
    %c0_6 = arith.constant 0 : index
    %6 = vector.load %arg4[%c0_5, %c0_6] : memref<8x256xbf16, #tpu.memory_space<vmem>>, vector<8x256xbf16>
    %7 = arith.extf %6 : vector<8x256xbf16> to vector<8x256xf32>
    %8 = arith.addf %5, %7 : vector<8x256xf32>
    %cst_7 = arith.constant 0.000000e+00 : f32
    %9 = vector.broadcast %cst_7 : f32 to vector<8x256xf32>
    %10 = arith.maximumf %8, %9 : vector<8x256xf32>
    %11 = arith.truncf %10 : vector<8x256xf32> to vector<8x256xbf16>
    %c0_8 = arith.constant 0 : index
    %c0_9 = arith.constant 0 : index
    %12 = vector.load %arg5[%c0_8, %c0_9] : memref<8x256xbf16, #tpu.memory_space<vmem>>, vector<8x256xbf16>
    tpu.vector_store %arg5[%c0_8, %c0_9], %11 {strides = array<i32>} : memref<8x256xbf16, #tpu.memory_space<vmem>>, vector<8x256xbf16>,
    return
  }
  func.func @transform_0(%arg0: i32) -> (i32, i32) {
    %c0_i32 = arith.constant 0 : i32
    %c0_i32_0 = arith.constant 0 : i32
    return %arg0, %c0_i32 : i32, i32
  }
  func.func @transform_1(%arg0: i32) -> (i32, i32) {
    %c0_i32 = arith.constant 0 : i32
    %c0_i32_0 = arith.constant 0 : i32
    %c0_i32_1 = arith.constant 0 : i32
    return %c0_i32, %c0_i32_0 : i32, i32
  }
  func.func @transform_2(%arg0: i32) -> (i32, i32) {
    %c0_i32 = arith.constant 0 : i32
    %c0_i32_0 = arith.constant 0 : i32
    %c0_i32_1 = arith.constant 0 : i32
    return %c0_i32, %c0_i32_0 : i32, i32
  }
  func.func @transform_3(%arg0: i32) -> (i32, i32) {
    %c0_i32 = arith.constant 0 : i32
    %c0_i32_0 = arith.constant 0 : i32
    return %arg0, %c0_i32 : i32, i32
  }
  func.func @transform_4(%arg0: i32) -> (i32, i32) {
    %c0_i32 = arith.constant 0 : i32
    %c0_i32_0 = arith.constant 0 : i32
    return %arg0, %c0_i32 : i32, i32
  }
}

module attributes {stable_mosaic.version = 11 : i64} {
  func.func @kernel(%arg0: i32, %arg1: memref<8x2304xbf16, #tpu.memory_space<vmem>>, %arg2: memref<2304x256xbf16, #tpu.memory_space<vmem>>, %arg3: memref<1x256xf32, #tpu.memory_space<vmem>>, %arg4: memref<8x256xbf16, #tpu.memory_space<vmem>>) attributes {dimension_semantics = [#tpu.dimension_semantics<parallel>], iteration_bounds = array<i64: 1>, scalar_prefetch = 0 : i64, scratch_operands = 0 : i64, tpu.core_type = #tpu.core_type<tc>, window_params = [{transform_indices = @transform_0, window_bounds = array<i64: 8, 2304>}, {pipeline_mode = #tpu.pipeline_mode<synchronous>, transform_indices = @transform_1, window_bounds = array<i64: 2304, 256>}, {pipeline_mode = #tpu.pipeline_mode<synchronous>, transform_indices = @transform_2, window_bounds = array<i64: 1, 256>}, {transform_indices = @transform_3, window_bounds = array<i64: 8, 256>}]} {
    %c0 = arith.constant 0 : index
    %c0_0 = arith.constant 0 : index
    %0 = vector.load %arg1[%c0, %c0_0] : memref<8x2304xbf16, #tpu.memory_space<vmem>>, vector<8x2304xbf16>
    %c0_1 = arith.constant 0 : index
    %c0_2 = arith.constant 0 : index
    %1 = vector.load %arg2[%c0_1, %c0_2] : memref<2304x256xbf16, #tpu.memory_space<vmem>>, vector<2304x256xbf16>
    %cst = arith.constant dense<0.000000e+00> : vector<8x256xf32>
    %2 = tpu.matmul %0, %1, %cst {dimension_numbers = #tpu.dot_dimension_numbers<[1], [0], [0], [1], [0, 0, 1, 1], [], []>} : vector<8x2304xbf16>, vector<2304x256xbf16>, vector<8x256xf32> -> vector<8x256xf32>
    %c0_3 = arith.constant 0 : index
    %c0_4 = arith.constant 0 : index
    %3 = vector.load %arg3[%c0_3, %c0_4] : memref<1x256xf32, #tpu.memory_space<vmem>>, vector<1x256xf32>
    %4 = vector.broadcast %3 : vector<1x256xf32> to vector<8x256xf32>
    %5 = arith.addf %2, %4 : vector<8x256xf32>
    %cst_5 = arith.constant 0.000000e+00 : f32
    %6 = vector.broadcast %cst_5 : f32 to vector<8x256xf32>
    %7 = arith.maximumf %5, %6 : vector<8x256xf32>
    %8 = arith.truncf %7 : vector<8x256xf32> to vector<8x256xbf16>
    %c0_6 = arith.constant 0 : index
    %c0_7 = arith.constant 0 : index
    %9 = vector.load %arg4[%c0_6, %c0_7] : memref<8x256xbf16, #tpu.memory_space<vmem>>, vector<8x256xbf16>
    tpu.vector_store %arg4[%c0_6, %c0_7], %8 {strides = array<i32>} : memref<8x256xbf16, #tpu.memory_space<vmem>>, vector<8x256xbf16>,
    return
  }
  func.func @transform_0(%arg0: i32) -> (i32, i32) {
    %c0_i32 = arith.constant 0 : i32
    %c0_i32_0 = arith.constant 0 : i32
    return %arg0, %c0_i32 : i32, i32
  }
  func.func @transform_1(%arg0: i32) -> (i32, i32) {
    %c0_i32 = arith.constant 0 : i32
    %c0_i32_0 = arith.constant 0 : i32
    %c0_i32_1 = arith.constant 0 : i32
    return %c0_i32, %c0_i32_0 : i32, i32
  }
  func.func @transform_2(%arg0: i32) -> (i32, i32) {
    %c0_i32 = arith.constant 0 : i32
    %c0_i32_0 = arith.constant 0 : i32
    %c0_i32_1 = arith.constant 0 : i32
    return %c0_i32, %c0_i32_0 : i32, i32
  }
  func.func @transform_3(%arg0: i32) -> (i32, i32) {
    %c0_i32 = arith.constant 0 : i32
    %c0_i32_0 = arith.constant 0 : i32
    return %arg0, %c0_i32 : i32, i32
  }
}

</mosaic_0001>

<llo_original>
// kernel: image_encoder_forward.30
$region0: #{image_encoder_forward.30}
  #allocation0 [shape = 'u32[]', space=smem, size = 0x4, offset = 0x4, fixed_abs, tag = 'smem constant byte address 0x4 - core index']
  #allocation1 [shape = 'u32[144,128]{1,0:T(1,128)}', space=vmem, size = 0x12000, scoped, tag = 'internal scratch']
  %s0 = inlined_call_operand.vmem [shape: bf16[512,147], index: 0, kind: input, shape index: {}]
  %s1 = inlined_call_operand.vmem [shape: bf16[147,64], index: 1, kind: input, shape index: {}]
  %s2 = inlined_call_operand.vmem [shape: f32[1,64], index: 2, kind: input, shape index: {}]
  %s3 = inlined_call_operand.vmem [shape: bf16[512,64], index: 3, kind: output, shape index: {}]
  %s4 = sld [smem:[#allocation0]]
  $region45: #{image_encoder_forward.30} parent=0
    _
  %s6 = ssub.s32 1, %s4
  %s7 = scalar_select 0, %s6, %s4
  loop: start=0, step=1, limit=4
  $region2: #{image_encoder_forward.30} parent=0 // loop_pre_header
    _
  $region3: #{image_encoder_forward.30} parent=0 // loop_header
    %s9 = sphi 0, %s13
    %p10 = scmp.ge.s32.totalorder %s9, 4
    %s19 = sphi 0, %s21
    %s22 = sphi 0, %s19
    %s23 = sphi 0, %s22
    %s39 = sphi 0, %s23
    %s43 = sphi 0, %s43
    %s45 = sphi 0, %s43
    %s46 = sphi 0, %s45
    %s60 = sphi 0, %s46
    %s64 = sphi 0, %s64
    %s66 = sphi 0, %s64
    %s67 = sphi 0, %s66
    %s81 = sphi 0, %s67
    %s87 = sphi 0, %s89
    %s90 = sphi 0, %s87
    %s91 = sphi 0, %s90
    %s107 = sphi 0, %s91
  $region4: #{image_encoder_forward.30} parent=0 // loop_header_branch
    %12 = sbr.rel (%p10) target = $region8
  $region5: #{image_encoder_forward.30} parent=0 // loop_body
    %s14 = ssub.s32 %s9, 1
    %s15 = ssub.s32 %s9, 2
    %s16 = sadd.s32 %s9, 1
    %s17 = ssub.s32 %s9, %s16
    %p18 = scmp.eq.s32.totalorder %s17, 0
    %s20 = sadd.s32 %s19, 1
    %s21 = scalar_select %p18, %s19, %s20
    %p24 = pneg %p18
    %p25 = scmp.eq.s32.totalorder %s9, 1
    %p26 = por %p24, %p25
    %p27 = scmp.ne.s32.totalorder %s19, %s22
    %p28 = scmp.eq.s32.totalorder %s9, 0
    %p29 = por %p27, %p28
    %p30 = scmp.ne.s32.totalorder %s19, %s22
    %p31 = scmp.eq.s32.totalorder %s14, 1
    %p32 = por %p30, %p31
    %p33 = scmp.ne.s32.totalorder %s22, %s23
    %p34 = scmp.eq.s32.totalorder %s14, 0
    %p35 = por %p33, %p34
    %p36 = scmp.ne.s32.totalorder %s22, %s23
    %p37 = scmp.eq.s32.totalorder %s15, 1
    %p38 = por %p36, %p37
    %p40 = scmp.ne.s32.totalorder %s23, %s39
    %p41 = scmp.eq.s32.totalorder %s15, 0
    %p42 = por %p40, %p41
    %s44 = sadd.s32 %s43, 1
    %p47 = scmp.eq.s32.totalorder %s9, 1
    %p48 = scmp.ne.s32.totalorder %s43, %s45
    %p49 = scmp.eq.s32.totalorder %s9, 0
    %p50 = por %p48, %p49
    %p51 = scmp.ne.s32.totalorder %s43, %s45
    %p52 = scmp.eq.s32.totalorder %s14, 1
    %p53 = por %p51, %p52
    %p54 = scmp.ne.s32.totalorder %s45, %s46
    %p55 = scmp.eq.s32.totalorder %s14, 0
    %p56 = por %p54, %p55
    %p57 = scmp.ne.s32.totalorder %s45, %s46
    %p58 = scmp.eq.s32.totalorder %s15, 1
    %p59 = por %p57, %p58
    %p61 = scmp.ne.s32.totalorder %s46, %s60
    %p62 = scmp.eq.s32.totalorder %s15, 0
    %p63 = por %p61, %p62
    %s65 = sadd.s32 %s64, 1
    %p68 = scmp.eq.s32.totalorder %s9, 1
    %p69 = scmp.ne.s32.totalorder %s64, %s66
    %p70 = scmp.eq.s32.totalorder %s9, 0
    %p71 = por %p69, %p70
    %p72 = scmp.ne.s32.totalorder %s64, %s66
    %p73 = scmp.eq.s32.totalorder %s14, 1
    %p74 = por %p72, %p73
    %p75 = scmp.ne.s32.totalorder %s66, %s67
    %p76 = scmp.eq.s32.totalorder %s14, 0
    %p77 = por %p75, %p76
    %p78 = scmp.ne.s32.totalorder %s66, %s67
    %p79 = scmp.eq.s32.totalorder %s15, 1
    %p80 = por %p78, %p79
    %p82 = scmp.ne.s32.totalorder %s67, %s81
    %p83 = scmp.eq.s32.totalorder %s15, 0
    %p84 = por %p82, %p83
    %s85 = ssub.s32 %s9, %s16
    %p86 = scmp.eq.s32.totalorder %s85, 0
    %s88 = sadd.s32 %s87, 1
    %s89 = scalar_select %p86, %s87, %s88
    %p92 = pneg %p86
    %p93 = scmp.eq.s32.totalorder %s9, 1
    %p94 = por %p92, %p93
    %p95 = scmp.ne.s32.totalorder %s87, %s90
    %p96 = scmp.eq.s32.totalorder %s9, 0
    %p97 = por %p95, %p96
    %p98 = scmp.ne.s32.totalorder %s87, %s90
    %p99 = scmp.eq.s32.totalorder %s14, 1
    %p100 = por %p98, %p99
    %p101 = scmp.ne.s32.totalorder %s90, %s91
    %p102 = scmp.eq.s32.totalorder %s14, 0
    %p103 = por %p101, %p102
    %p104 = scmp.ne.s32.totalorder %s90, %s91
    %p105 = scmp.eq.s32.totalorder %s15, 1
    %p106 = por %p104, %p105
    %p108 = scmp.ne.s32.totalorder %s91, %s107
    %p109 = scmp.eq.s32.totalorder %s15, 0
    %p110 = por %p108, %p109
    %p111 = scmp.le.s32.totalorder 1, %s9
    %p112 = scmp.lt.s32.totalorder %s9, 3
    %p113 = pnand %p111, %p112
    %p114 = pneg %p113
    // Predicated region
    $region9: #{image_encoder_forward.30} parent=5 // pred_check
      _
    $region10: #{image_encoder_forward.30} parent=5 // pred_check_branch
      %116 = sbr.rel (%p113) target = $region12
    $region11: #{image_encoder_forward.30} parent=5 // pred_region
      %s117 = ssub.s32 %s9, 1
      // Predicated region
      $region13: #{image_encoder_forward.30} parent=11 // pred_check
        %p118 = pneg %p56
      $region14: #{image_encoder_forward.30} parent=11 // pred_check_branch
        %120 = sbr.rel (%p118) target = $region16
      $region15: #{image_encoder_forward.30} parent=11 // pred_region
        _
      $region16: #{image_encoder_forward.30} parent=11 // pred_fallthru
        _
      // Predicated region
      $region17: #{image_encoder_forward.30} parent=11 // pred_check
        %p121 = pneg %p77
      $region18: #{image_encoder_forward.30} parent=11 // pred_check_branch
        %123 = sbr.rel (%p121) target = $region20
      $region19: #{image_encoder_forward.30} parent=11 // pred_region
        _
      $region20: #{image_encoder_forward.30} parent=11 // pred_fallthru
        _
    $region12: #{image_encoder_forward.30} parent=5 // pred_fallthru
      _
    %p124 = scmp.lt.s32.totalorder %s9, 2
    // Predicated region
    $region21: #{image_encoder_forward.30} parent=5 // pred_check
      %p125 = pneg %p124
    $region22: #{image_encoder_forward.30} parent=5 // pred_check_branch
      %127 = sbr.rel (%p125) target = $region24
    $region23: #{image_encoder_forward.30} parent=5 // pred_region
      // Predicated region
      $region25: #{image_encoder_forward.30} parent=23 // pred_check
        %p128 = pneg %p29
      $region26: #{image_encoder_forward.30} parent=23 // pred_check_branch
        %130 = sbr.rel (%p128) target = $region28
      $region27: #{image_encoder_forward.30} parent=23 // pred_region
        %s131 = smul.u32 32, %s9
        %p132 = scmp.lt.s32.totalorder %s131, 63
        %s133 = scalar_select %p132, %s131, 63
        %s134 = smul.addr %s133, 2
        %s135 = smul.addr %s134, 4
        %s136 = scalar_lea.vmem %s0, %s135
        %s137 = smul.u32 32, %s9
      $region28: #{image_encoder_forward.30} parent=23 // pred_fallthru
        _
    $region24: #{image_encoder_forward.30} parent=5 // pred_fallthru
      _
    %p138 = scmp.le.s32.totalorder 1, %s9
    %p139 = scmp.lt.s32.totalorder %s9, 3
    %p140 = pnand %p138, %p139
    %p141 = pneg %p140
    // Predicated region
    $region29: #{image_encoder_forward.30} parent=5 // pred_check
      _
    $region30: #{image_encoder_forward.30} parent=5 // pred_check_branch
      %143 = sbr.rel (%p140) target = $region32
    $region31: #{image_encoder_forward.30} parent=5 // pred_region
      %s144 = ssub.s32 %s9, 1
      %s145 = smul.u32 32, %s14
      %p146 = scmp.lt.s32.totalorder %s145, 63
      %s147 = scalar_select %p146, %s145, 63
      %s148 = smul.addr %s147, 2
      %s149 = smul.addr %s148, 4
      %s150 = scalar_lea.vmem %s0, %s149
      %p151 = pneg %p35
      %p152 = pneg %p32
      %p153 = pneg %p56
      %p154 = pneg %p53
      %p155 = pneg %p77
      %p156 = pneg %p74
      %p157 = pneg %p103
      %p158 = pneg %p100
      %s159 = smul.u32 32, %s14
      %p160 = scmp.lt.s32.totalorder %s159, 63
      %s161 = scalar_select %p160, %s159, 63
      %s162 = smul.addr %s161, 4
      %s163 = scalar_lea.vmem %s3, %s162
      %s164 = smul.u32 32, %s14
      %p165 = scmp.lt.s32.totalorder %s164, 63
      %s166 = scalar_select %p165, %s164, 63
      %s167 = smul.addr %s166, 2
      %s168 = smul.addr %s167, 4
      %s169 = scalar_lea.vmem %s0, %s168
      %s170 = smul.u32 32, %s14
      %s171 = smul.u32 32, %s14
      %p172 = scmp.lt.s32.totalorder %s171, 63
      %s173 = scalar_select %p172, %s171, 63
      %s174 = smul.addr %s173, 4
      %s175 = scalar_lea.vmem %s3, %s174
      %s176 = smul.u32 32, %s14
      %v178 = vld [vmem:[%s169] sm:$0xff]
      %v179 = vld [vmem:[%s169 + $0x8] sm:$0xff]
      %v180 = vld [vmem:[%s169 + $0x10] sm:$0xff]
      %v181 = vld [vmem:[%s169 + $0x18] sm:$0xff]
      %v182 = vld [vmem:[%s169 + $0x20] sm:$0xff]
      %v183 = vld [vmem:[%s169 + $0x28] sm:$0xff]
      %v184 = vld [vmem:[%s169 + $0x30] sm:$0xff]
      %v185 = vld [vmem:[%s169 + $0x38] sm:$0xff]
      %v186 = vld [vmem:[%s169 + $0x40] sm:$0xff]
      %v187 = vld [vmem:[%s169 + $0x48] sm:$0xff]
      %v188 = vld [vmem:[%s169 + $0x50] sm:$0xff]
      %v189 = vld [vmem:[%s169 + $0x58] sm:$0xff]
      %v190 = vld [vmem:[%s169 + $0x60] sm:$0xff]
      %v191 = vld [vmem:[%s169 + $0x68] sm:$0xff]
      %v192 = vld [vmem:[%s169 + $0x70] sm:$0xff]
      %v193 = vld [vmem:[%s169 + $0x78] sm:$0xff]
      %v194 = vld [vmem:[%s169 + $0x80] sm:$0xff]
      %v195 = vld [vmem:[%s169 + $0x88] sm:$0xff]
      %v196 = vld [vmem:[%s169 + $0x90] sm:$0xff]
      %v197 = vld [vmem:[%s169 + $0x98] sm:$0xff]
      %v198 = vld [vmem:[%s169 + $0xa0] sm:$0xff]
      %v199 = vld [vmem:[%s169 + $0xa8] sm:$0xff]
      %v200 = vld [vmem:[%s169 + $0xb0] sm:$0xff]
      %v201 = vld [vmem:[%s169 + $0xb8] sm:$0xff]
      %v202 = vld [vmem:[%s169 + $0xc0] sm:$0xff]
      %v203 = vld [vmem:[%s169 + $0xc8] sm:$0xff]
      %v204 = vld [vmem:[%s169 + $0xd0] sm:$0xff]
      %v205 = vld [vmem:[%s169 + $0xd8] sm:$0xff]
      %v206 = vld [vmem:[%s169 + $0xe0] sm:$0xff]
      %v207 = vld [vmem:[%s169 + $0xe8] sm:$0xff]
      %v208 = vld [vmem:[%s169 + $0xf0] sm:$0xff]
      %v209 = vld [vmem:[%s169 + $0xf8] sm:$0xff]
      %v210 = vld [vmem:[%s1] sm:$0xf]
      %v211 = vld [vmem:[%s1 + $0x4] sm:$0xf]
      %v212 = vld [vmem:[%s1 + $0x8] sm:$0xf]
      %v213 = vld [vmem:[%s1 + $0xc] sm:$0xf]
      %v214 = vld [vmem:[%s1 + $0x10] sm:$0xf]
      %v215 = vld [vmem:[%s1 + $0x14] sm:$0xf]
      %v216 = vld [vmem:[%s1 + $0x18] sm:$0xf]
      %v217 = vld [vmem:[%s1 + $0x1c] sm:$0xf]
      %v218 = vld [vmem:[%s1 + $0x20] sm:$0xf]
      %v219 = vld [vmem:[%s1 + $0x24] sm:$0xf]
      %v220 = vld [vmem:[%s1 + $0x28] sm:$0xf]
      %v221 = vld [vmem:[%s1 + $0x2c] sm:$0xf]
      %v222 = vld [vmem:[%s1 + $0x30] sm:$0xf]
      %v223 = vld [vmem:[%s1 + $0x34] sm:$0xf]
      %v224 = vld [vmem:[%s1 + $0x38] sm:$0xf]
      %v225 = vld [vmem:[%s1 + $0x3c] sm:$0xf]
      %v226 = vld [vmem:[%s1 + $0x40] sm:$0xf]
      %v227 = vld [vmem:[%s1 + $0x44] sm:$0xf]
      %v228 = vld [vmem:[%s1 + $0x48] sm:$0x3]
      %v229 = vld [vmem:[%s2] sm:$0x1]
      %v231 = vlaneseq
      %v232 = vshrl.u32 %v231, 7
      %v233 = vsub.s32 0, %v232
      %v234 = vrot.slane %v229, %v233
      %v268 = vunpack.c.l.b16 %v178
      %v269 = vunpack.c.h.b16 %v178
      %v270 = vunpack.c.l.b16 %v179
      %v271 = vunpack.c.h.b16 %v179
      %v272 = vunpack.c.l.b16 %v180
      %v273 = vunpack.c.h.b16 %v180
      %v274 = vunpack.c.l.b16 %v181
      %v275 = vunpack.c.h.b16 %v181
      %v276 = vunpack.c.l.b16 %v182
      %v277 = vunpack.c.h.b16 %v182
      %v278 = vunpack.c.l.b16 %v183
      %v279 = vunpack.c.h.b16 %v183
      %v280 = vunpack.c.l.b16 %v184
      %v281 = vunpack.c.h.b16 %v184
      %v282 = vunpack.c.l.b16 %v185
      %v283 = vunpack.c.h.b16 %v185
      %v284 = vunpack.c.l.b16 %v186
      %v285 = vunpack.c.h.b16 %v186
      %v286 = vunpack.c.l.b16 %v187
      %v287 = vunpack.c.h.b16 %v187
      %v288 = vunpack.c.l.b16 %v188
      %v289 = vunpack.c.h.b16 %v188
      %v290 = vunpack.c.l.b16 %v189
      %v291 = vunpack.c.h.b16 %v189
      %v292 = vunpack.c.l.b16 %v190
      %v293 = vunpack.c.h.b16 %v190
      %v294 = vunpack.c.l.b16 %v191
      %v295 = vunpack.c.h.b16 %v191
      %v296 = vunpack.c.l.b16 %v192
      %v297 = vunpack.c.h.b16 %v192
      %v298 = vunpack.c.l.b16 %v193
      %v299 = vunpack.c.h.b16 %v193
      %v300 = vunpack.c.l.b16 %v194
      %v301 = vunpack.c.h.b16 %v194
      %v302 = vunpack.c.l.b16 %v195
      %v303 = vunpack.c.h.b16 %v195
      %v304 = vunpack.c.l.b16 %v196
      %v305 = vunpack.c.h.b16 %v196
      %v306 = vunpack.c.l.b16 %v197
      %v307 = vunpack.c.h.b16 %v197
      %v308 = vunpack.c.l.b16 %v198
      %v309 = vunpack.c.h.b16 %v198
      %v310 = vunpack.c.l.b16 %v199
      %v311 = vunpack.c.h.b16 %v199
      %v312 = vunpack.c.l.b16 %v200
      %v313 = vunpack.c.h.b16 %v200
      %v314 = vunpack.c.l.b16 %v201
      %v315 = vunpack.c.h.b16 %v201
      %v316 = vunpack.c.l.b16 %v202
      %v317 = vunpack.c.h.b16 %v202
      %v318 = vunpack.c.l.b16 %v203
      %v319 = vunpack.c.h.b16 %v203
      %v320 = vunpack.c.l.b16 %v204
      %v321 = vunpack.c.h.b16 %v204
      %v322 = vunpack.c.l.b16 %v205
      %v323 = vunpack.c.h.b16 %v205
      %v324 = vunpack.c.l.b16 %v206
      %v325 = vunpack.c.h.b16 %v206
      %v326 = vunpack.c.l.b16 %v207
      %v327 = vunpack.c.h.b16 %v207
      %v328 = vunpack.c.l.b16 %v208
      %v329 = vunpack.c.h.b16 %v208
      %v330 = vunpack.c.l.b16 %v209
      %v331 = vunpack.c.h.b16 %v209
      %v332 = vpack.c.b16 %v270, %v268
      %v333 = vpack.c.b16 %v271, %v269
      %v334 = vpack.c.b16 %v274, %v272
      %v335 = vpack.c.b16 %v275, %v273
      %v336 = vpack.c.b16 %v278, %v276
      %v337 = vpack.c.b16 %v279, %v277
      %v338 = vpack.c.b16 %v282, %v280
      %v339 = vpack.c.b16 %v283, %v281
      %v340 = vpack.c.b16 %v286, %v284
      %v341 = vpack.c.b16 %v287, %v285
      %v342 = vpack.c.b16 %v290, %v288
      %v343 = vpack.c.b16 %v291, %v289
      %v344 = vpack.c.b16 %v294, %v292
      %v345 = vpack.c.b16 %v295, %v293
      %v346 = vpack.c.b16 %v298, %v296
      %v347 = vpack.c.b16 %v299, %v297
      %v348 = vpack.c.b16 %v302, %v300
      %v349 = vpack.c.b16 %v303, %v301
      %v350 = vpack.c.b16 %v306, %v304
      %v351 = vpack.c.b16 %v307, %v305
      %v352 = vpack.c.b16 %v310, %v308
      %v353 = vpack.c.b16 %v311, %v309
      %v354 = vpack.c.b16 %v314, %v312
      %v355 = vpack.c.b16 %v315, %v313
      %v356 = vpack.c.b16 %v318, %v316
      %v357 = vpack.c.b16 %v319, %v317
      %v358 = vpack.c.b16 %v322, %v320
      %v359 = vpack.c.b16 %v323, %v321
      %v360 = vpack.c.b16 %v326, %v324
      %v361 = vpack.c.b16 %v327, %v325
      %v362 = vpack.c.b16 %v330, %v328
      %v363 = vpack.c.b16 %v331, %v329
      %v399 = vunpack.c.l.b16 %v210
      %v400 = vunpack.c.l.b16 %v211
      %v401 = vunpack.c.l.b16 %v212
      %v402 = vunpack.c.l.b16 %v213
      %v403 = vunpack.c.l.b16 %v214
      %v404 = vunpack.c.l.b16 %v215
      %v405 = vunpack.c.l.b16 %v216
      %v406 = vunpack.c.l.b16 %v217
      %v407 = vunpack.c.l.b16 %v218
      %v408 = vunpack.c.l.b16 %v219
      %v409 = vunpack.c.l.b16 %v220
      %v410 = vunpack.c.l.b16 %v221
      %v411 = vunpack.c.l.b16 %v222
      %v412 = vunpack.c.l.b16 %v223
      %v413 = vunpack.c.l.b16 %v224
      %v414 = vunpack.c.l.b16 %v225
      %v415 = vunpack.c.l.b16 %v226
      %v416 = vunpack.c.l.b16 %v227
      %v417 = vunpack.c.l.b16 %v228
      %v418 = vpack.c.b16 %v400, %v399
      %v419 = vpack.c.b16 %v402, %v401
      %v420 = vpack.c.b16 %v404, %v403
      %v421 = vpack.c.b16 %v406, %v405
      %v422 = vpack.c.b16 %v408, %v407
      %v423 = vpack.c.b16 %v410, %v409
      %v424 = vpack.c.b16 %v412, %v411
      %v425 = vpack.c.b16 %v414, %v413
      %v426 = vpack.c.b16 %v416, %v415
      %v427 = vpack.c.b16 %v417, %v417
      %vm437 = vcmask 154624
      %v439 = vsel %vm437, %v333, 0
      %v442 = vsel %vm437, %v335, 0
      %v445 = vsel %vm437, %v337, 0
      %v448 = vsel %vm437, %v339, 0
      %v451 = vsel %vm437, %v341, 0
      %v454 = vsel %vm437, %v343, 0
      %v457 = vsel %vm437, %v345, 0
      %v460 = vsel %vm437, %v347, 0
      %v463 = vsel %vm437, %v349, 0
      %v466 = vsel %vm437, %v351, 0
      %v469 = vsel %vm437, %v353, 0
      %v472 = vsel %vm437, %v355, 0
      %v475 = vsel %vm437, %v357, 0
      %v478 = vsel %vm437, %v359, 0
      %v481 = vsel %vm437, %v361, 0
      %v484 = vsel %vm437, %v363, 0
      %vm486 = vcmask 1040384
      %vm487 = vcmask 1041408
      %v488 = vsel %vm486, 4294967295, 65535
      %v489 = vsel %vm487, %v488, 0
      %v491 = vand.u32 %v427, %v489
      %493 = vmatprep.subr.bf16.mxu0 0
      %494 = vmatpush1.bf16.msra.mxu0 %v418
      %495 = vmatprep.subr.bf16.mxu0 0
      %496 = vmatpush1.bf16.msra.mxu0 %v419
      %497 = vmatprep.subr.bf16.mxu0 0
      %498 = vmatpush1.bf16.msra.mxu0 %v420
      %499 = vmatprep.subr.bf16.mxu0 0
      %500 = vmatpush1.bf16.msra.mxu0 %v421
      %501 = vmatprep.subr.bf16.mxu0 0
      %502 = vmatpush1.bf16.msra.mxu0 %v422
      %503 = vmatprep.subr.bf16.mxu0 0
      %504 = vmatpush1.bf16.msra.mxu0 %v423
      %505 = vmatprep.subr.bf16.mxu0 0
      %506 = vmatpush1.bf16.msra.mxu0 %v424
      %507 = vmatprep.subr.bf16.mxu0 0
      %508 = vmatpush1.bf16.msra.mxu0 %v425
      %509 = vmatprep.subr.bf16.mxu0 0
      %510 = vmatpush1.bf16.msra.mxu0 %v426
      %511 = vmatprep.subr.bf16.mxu0 0
      %512 = vmatpush1.bf16.msra.mxu0 %v491
      %513 = vmatprep.subr.bf16.mxu0 0
      %514 = vmatpush1.bf16.msra.mxu0 0
      %515 = vmatprep.subr.bf16.mxu0 0
      %516 = vmatpush1.bf16.msra.mxu0 0
      %517 = vmatprep.subr.bf16.mxu0 0
      %518 = vmatpush1.bf16.msra.mxu0 0
      %519 = vmatprep.subr.bf16.mxu0 0
      %520 = vmatpush1.bf16.msra.mxu0 0
      %521 = vmatprep.subr.bf16.mxu0 0
      %522 = vmatpush1.bf16.msra.mxu0 0
      %523 = vmatprep.subr.bf16.mxu0 0
      %524 = vmatpush1.bf16.msra.mxu0 0
      %525 = vmatprep.mubr.bf16.mxu0 %v439
      %526 = vmatmul.mubr.bf16.gmra.mrb[0].mxu0 %v332
      %v527 = vpop.f32.mrb[0].mxu0
      %v528 = vadd.f32 %v234, %v527
      %v529 = vpop.f32.mrb[0].mxu0
      %v530 = vpop.f32.mrb[0].mxu0
      %v531 = vadd.f32 %v234, %v530
      %v532 = vpop.f32.mrb[0].mxu0
      %533 = vmatprep.mubr.bf16.mxu0 %v442
      %534 = vmatmul.mubr.bf16.gmra.mrb[0].mxu0 %v334
      %v535 = vpop.f32.mrb[0].mxu0
      %v536 = vadd.f32 %v234, %v535
      %v537 = vpop.f32.mrb[0].mxu0
      %v538 = vpop.f32.mrb[0].mxu0
      %v539 = vadd.f32 %v234, %v538
      %v540 = vpop.f32.mrb[0].mxu0
      %541 = vmatprep.mubr.bf16.mxu0 %v445
      %542 = vmatmul.mubr.bf16.gmra.mrb[0].mxu0 %v336
      %v543 = vpop.f32.mrb[0].mxu0
      %v544 = vadd.f32 %v234, %v543
      %v545 = vpop.f32.mrb[0].mxu0
      %v546 = vpop.f32.mrb[0].mxu0
      %v547 = vadd.f32 %v234, %v546
      %v548 = vpop.f32.mrb[0].mxu0
      %549 = vmatprep.mubr.bf16.mxu0 %v448
      %550 = vmatmul.mubr.bf16.gmra.mrb[0].mxu0 %v338
      %v551 = vpop.f32.mrb[0].mxu0
      %v552 = vadd.f32 %v234, %v551
      %v553 = vpop.f32.mrb[0].mxu0
      %v554 = vpop.f32.mrb[0].mxu0
      %v555 = vadd.f32 %v234, %v554
      %v556 = vpop.f32.mrb[0].mxu0
      %557 = vmatprep.mubr.bf16.mxu0 %v451
      %558 = vmatmul.mubr.bf16.gmra.mrb[0].mxu0 %v340
      %v559 = vpop.f32.mrb[0].mxu0
      %v560 = vadd.f32 %v234, %v559
      %v561 = vpop.f32.mrb[0].mxu0
      %v562 = vpop.f32.mrb[0].mxu0
      %v563 = vadd.f32 %v234, %v562
      %v564 = vpop.f32.mrb[0].mxu0
      %565 = vmatprep.mubr.bf16.mxu0 %v454
      %566 = vmatmul.mubr.bf16.gmra.mrb[0].mxu0 %v342
      %v567 = vpop.f32.mrb[0].mxu0
      %v568 = vadd.f32 %v234, %v567
      %v569 = vpop.f32.mrb[0].mxu0
      %v570 = vpop.f32.mrb[0].mxu0
      %v571 = vadd.f32 %v234, %v570
      %v572 = vpop.f32.mrb[0].mxu0
      %573 = vmatprep.mubr.bf16.mxu0 %v457
      %574 = vmatmul.mubr.bf16.gmra.mrb[0].mxu0 %v344
      %v575 = vpop.f32.mrb[0].mxu0
      %v576 = vadd.f32 %v234, %v575
      %v577 = vpop.f32.mrb[0].mxu0
      %v578 = vpop.f32.mrb[0].mxu0
      %v579 = vadd.f32 %v234, %v578
      %v580 = vpop.f32.mrb[0].mxu0
      %581 = vmatprep.mubr.bf16.mxu0 %v460
      %582 = vmatmul.mubr.bf16.gmra.mrb[0].mxu0 %v346
      %v583 = vpop.f32.mrb[0].mxu0
      %v584 = vadd.f32 %v234, %v583
      %v585 = vpop.f32.mrb[0].mxu0
      %v586 = vpop.f32.mrb[0].mxu0
      %v587 = vadd.f32 %v234, %v586
      %v588 = vpop.f32.mrb[0].mxu0
      %589 = vmatprep.mubr.bf16.mxu0 %v463
      %590 = vmatmul.mubr.bf16.gmra.mrb[0].mxu0 %v348
      %v591 = vpop.f32.mrb[0].mxu0
      %v592 = vadd.f32 %v234, %v591
      %v593 = vpop.f32.mrb[0].mxu0
      %v594 = vpop.f32.mrb[0].mxu0
      %v595 = vadd.f32 %v234, %v594
      %v596 = vpop.f32.mrb[0].mxu0
      %597 = vmatprep.mubr.bf16.mxu0 %v466
      %598 = vmatmul.mubr.bf16.gmra.mrb[0].mxu0 %v350
      %v599 = vpop.f32.mrb[0].mxu0
      %v600 = vadd.f32 %v234, %v599
      %v601 = vpop.f32.mrb[0].mxu0
      %v602 = vpop.f32.mrb[0].mxu0
      %v603 = vadd.f32 %v234, %v602
      %v604 = vpop.f32.mrb[0].mxu0
      %605 = vmatprep.mubr.bf16.mxu0 %v469
      %606 = vmatmul.mubr.bf16.gmra.mrb[0].mxu0 %v352
      %v607 = vpop.f32.mrb[0].mxu0
      %v608 = vadd.f32 %v234, %v607
      %v609 = vpop.f32.mrb[0].mxu0
      %v610 = vpop.f32.mrb[0].mxu0
      %v611 = vadd.f32 %v234, %v610
      %v612 = vpop.f32.mrb[0].mxu0
      %613 = vmatprep.mubr.bf16.mxu0 %v472
      %614 = vmatmul.mubr.bf16.gmra.mrb[0].mxu0 %v354
      %v615 = vpop.f32.mrb[0].mxu0
      %v616 = vadd.f32 %v234, %v615
      %v617 = vpop.f32.mrb[0].mxu0
      %v618 = vpop.f32.mrb[0].mxu0
      %v619 = vadd.f32 %v234, %v618
      %v620 = vpop.f32.mrb[0].mxu0
      %621 = vmatprep.mubr.bf16.mxu0 %v475
      %622 = vmatmul.mubr.bf16.gmra.mrb[0].mxu0 %v356
      %v623 = vpop.f32.mrb[0].mxu0
      %v624 = vadd.f32 %v234, %v623
      %v625 = vpop.f32.mrb[0].mxu0
      %v626 = vpop.f32.mrb[0].mxu0
      %v627 = vadd.f32 %v234, %v626
      %v628 = vpop.f32.mrb[0].mxu0
      %629 = vmatprep.mubr.bf16.mxu0 %v478
      %630 = vmatmul.mubr.bf16.gmra.mrb[0].mxu0 %v358
      %v631 = vpop.f32.mrb[0].mxu0
      %v632 = vadd.f32 %v234, %v631
      %v633 = vpop.f32.mrb[0].mxu0
      %v634 = vpop.f32.mrb[0].mxu0
      %v635 = vadd.f32 %v234, %v634
      %v636 = vpop.f32.mrb[0].mxu0
      %637 = vmatprep.mubr.bf16.mxu0 %v481
      %638 = vmatmul.mubr.bf16.gmra.mrb[0].mxu0 %v360
      %v639 = vpop.f32.mrb[0].mxu0
      %v640 = vadd.f32 %v234, %v639
      %v641 = vpop.f32.mrb[0].mxu0
      %v642 = vpop.f32.mrb[0].mxu0
      %v643 = vadd.f32 %v234, %v642
      %v644 = vpop.f32.mrb[0].mxu0
      %645 = vmatprep.mubr.bf16.mxu0 %v484
      %646 = vmatmul.mubr.bf16.gmra.mrb[0].mxu0 %v362
      %v647 = vpop.f32.mrb[0].mxu0
      %v648 = vadd.f32 %v234, %v647
      %v649 = vpop.f32.mrb[0].mxu0
      %v650 = vpop.f32.mrb[0].mxu0
      %v651 = vadd.f32 %v234, %v650
      %v652 = vpop.f32.mrb[0].mxu0
      %653 = vdwg.mxu0
      %v654 = vmax.f32 %v528, 0.0
      %v655 = vmax.f32 %v531, 0.0
      %v656 = vmax.f32 %v536, 0.0
      %v657 = vmax.f32 %v539, 0.0
      %v658 = vmax.f32 %v544, 0.0
      %v659 = vmax.f32 %v547, 0.0
      %v660 = vmax.f32 %v552, 0.0
      %v661 = vmax.f32 %v555, 0.0
      %v662 = vmax.f32 %v560, 0.0
      %v663 = vmax.f32 %v563, 0.0
      %v664 = vmax.f32 %v568, 0.0
      %v665 = vmax.f32 %v571, 0.0
      %v666 = vmax.f32 %v576, 0.0
      %v667 = vmax.f32 %v579, 0.0
      %v668 = vmax.f32 %v584, 0.0
      %v669 = vmax.f32 %v587, 0.0
      %v670 = vmax.f32 %v592, 0.0
      %v671 = vmax.f32 %v595, 0.0
      %v672 = vmax.f32 %v600, 0.0
      %v673 = vmax.f32 %v603, 0.0
      %v674 = vmax.f32 %v608, 0.0
      %v675 = vmax.f32 %v611, 0.0
      %v676 = vmax.f32 %v616, 0.0
      %v677 = vmax.f32 %v619, 0.0
      %v678 = vmax.f32 %v624, 0.0
      %v679 = vmax.f32 %v627, 0.0
      %v680 = vmax.f32 %v632, 0.0
      %v681 = vmax.f32 %v635, 0.0
      %v682 = vmax.f32 %v640, 0.0
      %v683 = vmax.f32 %v643, 0.0
      %v684 = vmax.f32 %v648, 0.0
      %v685 = vmax.f32 %v651, 0.0
      %v686 = vpack.c.bf16 %v655, %v654
      %v687 = vpack.c.bf16 %v657, %v656
      %v688 = vpack.c.bf16 %v659, %v658
      %v689 = vpack.c.bf16 %v661, %v660
      %v690 = vpack.c.bf16 %v663, %v662
      %v691 = vpack.c.bf16 %v665, %v664
      %v692 = vpack.c.bf16 %v667, %v666
      %v693 = vpack.c.bf16 %v669, %v668
      %v694 = vpack.c.bf16 %v671, %v670
      %v695 = vpack.c.bf16 %v673, %v672
      %v696 = vpack.c.bf16 %v675, %v674
      %v697 = vpack.c.bf16 %v677, %v676
      %v698 = vpack.c.bf16 %v679, %v678
      %v699 = vpack.c.bf16 %v681, %v680
      %v700 = vpack.c.bf16 %v683, %v682
      %v701 = vpack.c.bf16 %v685, %v684
      %v718 = vunpack.c.l.b16 %v686
      %v719 = vunpack.c.h.b16 %v686
      %v720 = vunpack.c.l.b16 %v687
      %v721 = vunpack.c.h.b16 %v687
      %v722 = vunpack.c.l.b16 %v688
      %v723 = vunpack.c.h.b16 %v688
      %v724 = vunpack.c.l.b16 %v689
      %v725 = vunpack.c.h.b16 %v689
      %v726 = vunpack.c.l.b16 %v690
      %v727 = vunpack.c.h.b16 %v690
      %v728 = vunpack.c.l.b16 %v691
      %v729 = vunpack.c.h.b16 %v691
      %v730 = vunpack.c.l.b16 %v692
      %v731 = vunpack.c.h.b16 %v692
      %v732 = vunpack.c.l.b16 %v693
      %v733 = vunpack.c.h.b16 %v693
      %v734 = vunpack.c.l.b16 %v694
      %v735 = vunpack.c.h.b16 %v694
      %v736 = vunpack.c.l.b16 %v695
      %v737 = vunpack.c.h.b16 %v695
      %v738 = vunpack.c.l.b16 %v696
      %v739 = vunpack.c.h.b16 %v696
      %v740 = vunpack.c.l.b16 %v697
      %v741 = vunpack.c.h.b16 %v697
      %v742 = vunpack.c.l.b16 %v698
      %v743 = vunpack.c.h.b16 %v698
      %v744 = vunpack.c.l.b16 %v699
      %v745 = vunpack.c.h.b16 %v699
      %v746 = vunpack.c.l.b16 %v700
      %v747 = vunpack.c.h.b16 %v700
      %v748 = vunpack.c.l.b16 %v701
      %v749 = vunpack.c.h.b16 %v701
      %v750 = vpack.c.b16 %v718, %v718
      %v751 = vpack.c.b16 %v719, %v719
      %v752 = vpack.c.b16 %v720, %v720
      %v753 = vpack.c.b16 %v721, %v721
      %v754 = vpack.c.b16 %v722, %v722
      %v755 = vpack.c.b16 %v723, %v723
      %v756 = vpack.c.b16 %v724, %v724
      %v757 = vpack.c.b16 %v725, %v725
      %v758 = vpack.c.b16 %v726, %v726
      %v759 = vpack.c.b16 %v727, %v727
      %v760 = vpack.c.b16 %v728, %v728
      %v761 = vpack.c.b16 %v729, %v729
      %v762 = vpack.c.b16 %v730, %v730
      %v763 = vpack.c.b16 %v731, %v731
      %v764 = vpack.c.b16 %v732, %v732
      %v765 = vpack.c.b16 %v733, %v733
      %v766 = vpack.c.b16 %v734, %v734
      %v767 = vpack.c.b16 %v735, %v735
      %v768 = vpack.c.b16 %v736, %v736
      %v769 = vpack.c.b16 %v737, %v737
      %v770 = vpack.c.b16 %v738, %v738
      %v771 = vpack.c.b16 %v739, %v739
      %v772 = vpack.c.b16 %v740, %v740
      %v773 = vpack.c.b16 %v741, %v741
      %v774 = vpack.c.b16 %v742, %v742
      %v775 = vpack.c.b16 %v743, %v743
      %v776 = vpack.c.b16 %v744, %v744
      %v777 = vpack.c.b16 %v745, %v745
      %v778 = vpack.c.b16 %v746, %v746
      %v779 = vpack.c.b16 %v747, %v747
      %v780 = vpack.c.b16 %v748, %v748
      %v781 = vpack.c.b16 %v749, %v749
      %vm814 = vcmask 519168
      %815 = vst.msk [vmem:[%s175] sm:$0xf] %vm814, %v750
      %816 = vst.msk [vmem:[%s175 + $0x4] sm:$0xf] %vm814, %v751
      %817 = vst.msk [vmem:[%s175 + $0x8] sm:$0xf] %vm814, %v752
      %818 = vst.msk [vmem:[%s175 + $0xc] sm:$0xf] %vm814, %v753
      %819 = vst.msk [vmem:[%s175 + $0x10] sm:$0xf] %vm814, %v754
      %820 = vst.msk [vmem:[%s175 + $0x14] sm:$0xf] %vm814, %v755
      %821 = vst.msk [vmem:[%s175 + $0x18] sm:$0xf] %vm814, %v756
      %822 = vst.msk [vmem:[%s175 + $0x1c] sm:$0xf] %vm814, %v757
      %823 = vst.msk [vmem:[%s175 + $0x20] sm:$0xf] %vm814, %v758
      %824 = vst.msk [vmem:[%s175 + $0x24] sm:$0xf] %vm814, %v759
      %825 = vst.msk [vmem:[%s175 + $0x28] sm:$0xf] %vm814, %v760
      %826 = vst.msk [vmem:[%s175 + $0x2c] sm:$0xf] %vm814, %v761
      %827 = vst.msk [vmem:[%s175 + $0x30] sm:$0xf] %vm814, %v762
      %828 = vst.msk [vmem:[%s175 + $0x34] sm:$0xf] %vm814, %v763
      %829 = vst.msk [vmem:[%s175 + $0x38] sm:$0xf] %vm814, %v764
      %830 = vst.msk [vmem:[%s175 + $0x3c] sm:$0xf] %vm814, %v765
      %831 = vst.msk [vmem:[%s175 + $0x40] sm:$0xf] %vm814, %v766
      %832 = vst.msk [vmem:[%s175 + $0x44] sm:$0xf] %vm814, %v767
      %833 = vst.msk [vmem:[%s175 + $0x48] sm:$0xf] %vm814, %v768
      %834 = vst.msk [vmem:[%s175 + $0x4c] sm:$0xf] %vm814, %v769
      %835 = vst.msk [vmem:[%s175 + $0x50] sm:$0xf] %vm814, %v770
      %836 = vst.msk [vmem:[%s175 + $0x54] sm:$0xf] %vm814, %v771
      %837 = vst.msk [vmem:[%s175 + $0x58] sm:$0xf] %vm814, %v772
      %838 = vst.msk [vmem:[%s175 + $0x5c] sm:$0xf] %vm814, %v773
      %839 = vst.msk [vmem:[%s175 + $0x60] sm:$0xf] %vm814, %v774
      %840 = vst.msk [vmem:[%s175 + $0x64] sm:$0xf] %vm814, %v775
      %841 = vst.msk [vmem:[%s175 + $0x68] sm:$0xf] %vm814, %v776
      %842 = vst.msk [vmem:[%s175 + $0x6c] sm:$0xf] %vm814, %v777
      %843 = vst.msk [vmem:[%s175 + $0x70] sm:$0xf] %vm814, %v778
      %844 = vst.msk [vmem:[%s175 + $0x74] sm:$0xf] %vm814, %v779
      %845 = vst.msk [vmem:[%s175 + $0x78] sm:$0xf] %vm814, %v780
      %846 = vst.msk [vmem:[%s175 + $0x7c] sm:$0xf] %vm814, %v781
      %s847 = smul.u32 32, %s14
      %p848 = scmp.lt.s32.totalorder %s847, 63
      %s849 = scalar_select %p848, %s847, 63
      %s850 = smul.addr %s849, 4
      %s851 = scalar_lea.vmem %s3, %s850
      // Predicated region
      $region33: #{image_encoder_forward.30} parent=31 // pred_check
        %p852 = pneg %p100
      $region34: #{image_encoder_forward.30} parent=31 // pred_check_branch
        %854 = sbr.rel (%p852) target = $region36
      $region35: #{image_encoder_forward.30} parent=31 // pred_region
        %s855 = smul.u32 32, %s14
      $region36: #{image_encoder_forward.30} parent=31 // pred_fallthru
        _
    $region32: #{image_encoder_forward.30} parent=5 // pred_fallthru
      _
    %p856 = scmp.le.s32.totalorder 2, %s9
    // Predicated region
    $region37: #{image_encoder_forward.30} parent=5 // pred_check
      %p857 = pneg %p856
    $region38: #{image_encoder_forward.30} parent=5 // pred_check_branch
      %859 = sbr.rel (%p857) target = $region40
    $region39: #{image_encoder_forward.30} parent=5 // pred_region
      %s860 = ssub.s32 %s9, 2
      // Predicated region
      $region41: #{image_encoder_forward.30} parent=39 // pred_check
        %p861 = pneg %p106
      $region42: #{image_encoder_forward.30} parent=39 // pred_check_branch
        %863 = sbr.rel (%p861) target = $region44
      $region43: #{image_encoder_forward.30} parent=39 // pred_region
        %s864 = smul.u32 32, %s15
        %p865 = scmp.lt.s32.totalorder %s864, 63
        %s866 = scalar_select %p865, %s864, 63
        %s867 = smul.addr %s866, 4
        %s868 = scalar_lea.vmem %s3, %s867
      $region44: #{image_encoder_forward.30} parent=39 // pred_fallthru
        _
    $region40: #{image_encoder_forward.30} parent=5 // pred_fallthru
      _
  $region6: #{image_encoder_forward.30} parent=0 // loop_footer
    %s13 = sadd.s32 1, %s9
  $region7: #{image_encoder_forward.30} parent=0 // loop_footer_branch
    %8 = sbr.rel target = $region3
  $region8: #{image_encoder_forward.30} parent=0 // loop_exit
    _

// kernel: image_encoder_forward.31
$region0: #{image_encoder_forward.31}
  #allocation0 [shape = 'u32[]', space=smem, size = 0x4, offset = 0x4, fixed_abs, tag = 'smem constant byte address 0x4 - core index']
  #allocation1 [shape = 'u32[144,128]{1,0:T(1,128)}', space=vmem, size = 0x12000, scoped, tag = 'internal scratch']
  %s0 = inlined_call_operand.vmem [shape: bf16[9,128,64], index: 0, kind: input, shape index: {}]
  %s1 = inlined_call_operand.vmem [shape: bf16[128,64], index: 1, kind: output, shape index: {}]
  %s2 = sld [smem:[#allocation0]]
  $region14: #{image_encoder_forward.31} parent=0
    _
  %s4 = ssub.s32 1, %s2
  %s5 = scalar_select 0, %s4, %s2
  // Predicated region
  $region2: #{image_encoder_forward.31} parent=0 // pred_check
    _
  $region3: #{image_encoder_forward.31} parent=0 // pred_check_branch
    %7 = sbr.rel (0) target = $region5
  $region4: #{image_encoder_forward.31} parent=0 // pred_region
    _
  $region5: #{image_encoder_forward.31} parent=0 // pred_fallthru
    _
  %v9 = vld [vmem:[%s0] sm:$0xf]
  %v10 = vld [vmem:[%s0 + $0x4] sm:$0xf]
  %v11 = vld [vmem:[%s0 + $0x8] sm:$0xf]
  %v12 = vld [vmem:[%s0 + $0xc] sm:$0xf]
  %v13 = vld [vmem:[%s0 + $0x10] sm:$0xf]
  %v14 = vld [vmem:[%s0 + $0x14] sm:$0xf]
  %v15 = vld [vmem:[%s0 + $0x18] sm:$0xf]
  %v16 = vld [vmem:[%s0 + $0x1c] sm:$0xf]
  %v17 = vld [vmem:[%s0 + $0x20] sm:$0xf]
  %v18 = vld [vmem:[%s0 + $0x24] sm:$0xf]
  %v19 = vld [vmem:[%s0 + $0x28] sm:$0xf]
  %v20 = vld [vmem:[%s0 + $0x2c] sm:$0xf]
  %v21 = vld [vmem:[%s0 + $0x30] sm:$0xf]
  %v22 = vld [vmem:[%s0 + $0x34] sm:$0xf]
  %v23 = vld [vmem:[%s0 + $0x38] sm:$0xf]
  %v24 = vld [vmem:[%s0 + $0x3c] sm:$0xf]
  %v25 = vld [vmem:[%s0 + $0x40] sm:$0xf]
  %v26 = vld [vmem:[%s0 + $0x44] sm:$0xf]
  %v27 = vld [vmem:[%s0 + $0x48] sm:$0xf]
  %v28 = vld [vmem:[%s0 + $0x4c] sm:$0xf]
  %v29 = vld [vmem:[%s0 + $0x50] sm:$0xf]
  %v30 = vld [vmem:[%s0 + $0x54] sm:$0xf]
  %v31 = vld [vmem:[%s0 + $0x58] sm:$0xf]
  %v32 = vld [vmem:[%s0 + $0x5c] sm:$0xf]
  %v33 = vld [vmem:[%s0 + $0x60] sm:$0xf]
  %v34 = vld [vmem:[%s0 + $0x64] sm:$0xf]
  %v35 = vld [vmem:[%s0 + $0x68] sm:$0xf]
  %v36 = vld [vmem:[%s0 + $0x6c] sm:$0xf]
  %v37 = vld [vmem:[%s0 + $0x70] sm:$0xf]
  %v38 = vld [vmem:[%s0 + $0x74] sm:$0xf]
  %v39 = vld [vmem:[%s0 + $0x78] sm:$0xf]
  %v40 = vld [vmem:[%s0 + $0x7c] sm:$0xf]
  %v41 = vld [vmem:[%s0 + $0x80] sm:$0xf]
  %v42 = vld [vmem:[%s0 + $0x84] sm:$0xf]
  %v43 = vld [vmem:[%s0 + $0x88] sm:$0xf]
  %v44 = vld [vmem:[%s0 + $0x8c] sm:$0xf]
  %v45 = vld [vmem:[%s0 + $0x90] sm:$0xf]
  %v46 = vld [vmem:[%s0 + $0x94] sm:$0xf]
  %v47 = vld [vmem:[%s0 + $0x98] sm:$0xf]
  %v48 = vld [vmem:[%s0 + $0x9c] sm:$0xf]
  %v49 = vld [vmem:[%s0 + $0xa0] sm:$0xf]
  %v50 = vld [vmem:[%s0 + $0xa4] sm:$0xf]
  %v51 = vld [vmem:[%s0 + $0xa8] sm:$0xf]
  %v52 = vld [vmem:[%s0 + $0xac] sm:$0xf]
  %v53 = vld [vmem:[%s0 + $0xb0] sm:$0xf]
  %v54 = vld [vmem:[%s0 + $0xb4] sm:$0xf]
  %v55 = vld [vmem:[%s0 + $0xb8] sm:$0xf]
  %v56 = vld [vmem:[%s0 + $0xbc] sm:$0xf]
  %v57 = vld [vmem:[%s0 + $0xc0] sm:$0xf]
  %v58 = vld [vmem:[%s0 + $0xc4] sm:$0xf]
  %v59 = vld [vmem:[%s0 + $0xc8] sm:$0xf]
  %v60 = vld [vmem:[%s0 + $0xcc] sm:$0xf]
  %v61 = vld [vmem:[%s0 + $0xd0] sm:$0xf]
  %v62 = vld [vmem:[%s0 + $0xd4] sm:$0xf]
  %v63 = vld [vmem:[%s0 + $0xd8] sm:$0xf]
  %v64 = vld [vmem:[%s0 + $0xdc] sm:$0xf]
  %v65 = vld [vmem:[%s0 + $0xe0] sm:$0xf]
  %v66 = vld [vmem:[%s0 + $0xe4] sm:$0xf]
  %v67 = vld [vmem:[%s0 + $0xe8] sm:$0xf]
  %v68 = vld [vmem:[%s0 + $0xec] sm:$0xf]
  %v69 = vld [vmem:[%s0 + $0xf0] sm:$0xf]
  %v70 = vld [vmem:[%s0 + $0xf4] sm:$0xf]
  %v71 = vld [vmem:[%s0 + $0xf8] sm:$0xf]
  %v72 = vld [vmem:[%s0 + $0xfc] sm:$0xf]
  %v73 = vld [vmem:[%s0 + $0x100] sm:$0xf]
  %v74 = vld [vmem:[%s0 + $0x104] sm:$0xf]
  %v75 = vld [vmem:[%s0 + $0x108] sm:$0xf]
  %v76 = vld [vmem:[%s0 + $0x10c] sm:$0xf]
  %v77 = vld [vmem:[%s0 + $0x110] sm:$0xf]
  %v78 = vld [vmem:[%s0 + $0x114] sm:$0xf]
  %v79 = vld [vmem:[%s0 + $0x118] sm:$0xf]
  %v80 = vld [vmem:[%s0 + $0x11c] sm:$0xf]
  %v81 = vld [vmem:[%s0 + $0x120] sm:$0xf]
  %v82 = vld [vmem:[%s0 + $0x124] sm:$0xf]
  %v83 = vld [vmem:[%s0 + $0x128] sm:$0xf]
  %v84 = vld [vmem:[%s0 + $0x12c] sm:$0xf]
  %v85 = vld [vmem:[%s0 + $0x130] sm:$0xf]
  %v86 = vld [vmem:[%s0 + $0x134] sm:$0xf]
  %v87 = vld [vmem:[%s0 + $0x138] sm:$0xf]
  %v88 = vld [vmem:[%s0 + $0x13c] sm:$0xf]
  %v89 = vld [vmem:[%s0 + $0x140] sm:$0xf]
  %v90 = vld [vmem:[%s0 + $0x144] sm:$0xf]
  %v91 = vld [vmem:[%s0 + $0x148] sm:$0xf]
  %v92 = vld [vmem:[%s0 + $0x14c] sm:$0xf]
  %v93 = vld [vmem:[%s0 + $0x150] sm:$0xf]
  %v94 = vld [vmem:[%s0 + $0x154] sm:$0xf]
  %v95 = vld [vmem:[%s0 + $0x158] sm:$0xf]
  %v96 = vld [vmem:[%s0 + $0x15c] sm:$0xf]
  %v97 = vld [vmem:[%s0 + $0x160] sm:$0xf]
  %v98 = vld [vmem:[%s0 + $0x164] sm:$0xf]
  %v99 = vld [vmem:[%s0 + $0x168] sm:$0xf]
  %v100 = vld [vmem:[%s0 + $0x16c] sm:$0xf]
  %v101 = vld [vmem:[%s0 + $0x170] sm:$0xf]
  %v102 = vld [vmem:[%s0 + $0x174] sm:$0xf]
  %v103 = vld [vmem:[%s0 + $0x178] sm:$0xf]
  %v104 = vld [vmem:[%s0 + $0x17c] sm:$0xf]
  %v105 = vld [vmem:[%s0 + $0x180] sm:$0xf]
  %v106 = vld [vmem:[%s0 + $0x184] sm:$0xf]
  %v107 = vld [vmem:[%s0 + $0x188] sm:$0xf]
  %v108 = vld [vmem:[%s0 + $0x18c] sm:$0xf]
  %v109 = vld [vmem:[%s0 + $0x190] sm:$0xf]
  %v110 = vld [vmem:[%s0 + $0x194] sm:$0xf]
  %v111 = vld [vmem:[%s0 + $0x198] sm:$0xf]
  %v112 = vld [vmem:[%s0 + $0x19c] sm:$0xf]
  %v113 = vld [vmem:[%s0 + $0x1a0] sm:$0xf]
  %v114 = vld [vmem:[%s0 + $0x1a4] sm:$0xf]
  %v115 = vld [vmem:[%s0 + $0x1a8] sm:$0xf]
  %v116 = vld [vmem:[%s0 + $0x1ac] sm:$0xf]
  %v117 = vld [vmem:[%s0 + $0x1b0] sm:$0xf]
  %v118 = vld [vmem:[%s0 + $0x1b4] sm:$0xf]
  %v119 = vld [vmem:[%s0 + $0x1b8] sm:$0xf]
  %v120 = vld [vmem:[%s0 + $0x1bc] sm:$0xf]
  %v121 = vld [vmem:[%s0 + $0x1c0] sm:$0xf]
  %v122 = vld [vmem:[%s0 + $0x1c4] sm:$0xf]
  %v123 = vld [vmem:[%s0 + $0x1c8] sm:$0xf]
  %v124 = vld [vmem:[%s0 + $0x1cc] sm:$0xf]
  %v125 = vld [vmem:[%s0 + $0x1d0] sm:$0xf]
  %v126 = vld [vmem:[%s0 + $0x1d4] sm:$0xf]
  %v127 = vld [vmem:[%s0 + $0x1d8] sm:$0xf]
  %v128 = vld [vmem:[%s0 + $0x1dc] sm:$0xf]
  %v129 = vld [vmem:[%s0 + $0x1e0] sm:$0xf]
  %v130 = vld [vmem:[%s0 + $0x1e4] sm:$0xf]
  %v131 = vld [vmem:[%s0 + $0x1e8] sm:$0xf]
  %v132 = vld [vmem:[%s0 + $0x1ec] sm:$0xf]
  %v133 = vld [vmem:[%s0 + $0x1f0] sm:$0xf]
  %v134 = vld [vmem:[%s0 + $0x1f4] sm:$0xf]
  %v135 = vld [vmem:[%s0 + $0x1f8] sm:$0xf]
  %v136 = vld [vmem:[%s0 + $0x1fc] sm:$0xf]
  %v137 = vld [vmem:[%s0 + $0x200] sm:$0xf]
  %v138 = vld [vmem:[%s0 + $0x204] sm:$0xf]
  %v139 = vld [vmem:[%s0 + $0x208] sm:$0xf]
  %v140 = vld [vmem:[%s0 + $0x20c] sm:$0xf]
  %v141 = vld [vmem:[%s0 + $0x210] sm:$0xf]
  %v142 = vld [vmem:[%s0 + $0x214] sm:$0xf]
  %v143 = vld [vmem:[%s0 + $0x218] sm:$0xf]
  %v144 = vld [vmem:[%s0 + $0x21c] sm:$0xf]
  %v145 = vld [vmem:[%s0 + $0x220] sm:$0xf]
  %v146 = vld [vmem:[%s0 + $0x224] sm:$0xf]
  %v147 = vld [vmem:[%s0 + $0x228] sm:$0xf]
  %v148 = vld [vmem:[%s0 + $0x22c] sm:$0xf]
  %v149 = vld [vmem:[%s0 + $0x230] sm:$0xf]
  %v150 = vld [vmem:[%s0 + $0x234] sm:$0xf]
  %v151 = vld [vmem:[%s0 + $0x238] sm:$0xf]
  %v152 = vld [vmem:[%s0 + $0x23c] sm:$0xf]
  %vm153 = vcmask 519168
  %v156 = vsel %vm153, %v9, 4286644096
  %v159 = vsel %vm153, %v25, 4286644096
  %v161 = vmax.bf16 %v156, %v159
  %v163 = vsel %vm153, %v41, 4286644096
  %v165 = vmax.bf16 %v161, %v163
  %v167 = vsel %vm153, %v57, 4286644096
  %v169 = vmax.bf16 %v165, %v167
  %v171 = vsel %vm153, %v73, 4286644096
  %v173 = vmax.bf16 %v169, %v171
  %v175 = vsel %vm153, %v89, 4286644096
  %v177 = vmax.bf16 %v173, %v175
  %v179 = vsel %vm153, %v105, 4286644096
  %v181 = vmax.bf16 %v177, %v179
  %v183 = vsel %vm153, %v121, 4286644096
  %v185 = vmax.bf16 %v181, %v183
  %v187 = vsel %vm153, %v137, 4286644096
  %v189 = vmax.bf16 %v185, %v187
  %v191 = vsel %vm153, %v10, 4286644096
  %v194 = vsel %vm153, %v26, 4286644096
  %v196 = vmax.bf16 %v191, %v194
  %v198 = vsel %vm153, %v42, 4286644096
  %v200 = vmax.bf16 %v196, %v198
  %v202 = vsel %vm153, %v58, 4286644096
  %v204 = vmax.bf16 %v200, %v202
  %v206 = vsel %vm153, %v74, 4286644096
  %v208 = vmax.bf16 %v204, %v206
  %v210 = vsel %vm153, %v90, 4286644096
  %v212 = vmax.bf16 %v208, %v210
  %v214 = vsel %vm153, %v106, 4286644096
  %v216 = vmax.bf16 %v212, %v214
  %v218 = vsel %vm153, %v122, 4286644096
  %v220 = vmax.bf16 %v216, %v218
  %v222 = vsel %vm153, %v138, 4286644096
  %v224 = vmax.bf16 %v220, %v222
  %v226 = vsel %vm153, %v11, 4286644096
  %v229 = vsel %vm153, %v27, 4286644096
  %v231 = vmax.bf16 %v226, %v229
  %v233 = vsel %vm153, %v43, 4286644096
  %v235 = vmax.bf16 %v231, %v233
  %v237 = vsel %vm153, %v59, 4286644096
  %v239 = vmax.bf16 %v235, %v237
  %v241 = vsel %vm153, %v75, 4286644096
  %v243 = vmax.bf16 %v239, %v241
  %v245 = vsel %vm153, %v91, 4286644096
  %v247 = vmax.bf16 %v243, %v245
  %v249 = vsel %vm153, %v107, 4286644096
  %v251 = vmax.bf16 %v247, %v249
  %v253 = vsel %vm153, %v123, 4286644096
  %v255 = vmax.bf16 %v251, %v253
  %v257 = vsel %vm153, %v139, 4286644096
  %v259 = vmax.bf16 %v255, %v257
  %v261 = vsel %vm153, %v12, 4286644096
  %v264 = vsel %vm153, %v28, 4286644096
  %v266 = vmax.bf16 %v261, %v264
  %v268 = vsel %vm153, %v44, 4286644096
  %v270 = vmax.bf16 %v266, %v268
  %v272 = vsel %vm153, %v60, 4286644096
  %v274 = vmax.bf16 %v270, %v272
  %v276 = vsel %vm153, %v76, 4286644096
  %v278 = vmax.bf16 %v274, %v276
  %v280 = vsel %vm153, %v92, 4286644096
  %v282 = vmax.bf16 %v278, %v280
  %v284 = vsel %vm153, %v108, 4286644096
  %v286 = vmax.bf16 %v282, %v284
  %v288 = vsel %vm153, %v124, 4286644096
  %v290 = vmax.bf16 %v286, %v288
  %v292 = vsel %vm153, %v140, 4286644096
  %v294 = vmax.bf16 %v290, %v292
  %v296 = vsel %vm153, %v13, 4286644096
  %v299 = vsel %vm153, %v29, 4286644096
  %v301 = vmax.bf16 %v296, %v299
  %v303 = vsel %vm153, %v45, 4286644096
  %v305 = vmax.bf16 %v301, %v303
  %v307 = vsel %vm153, %v61, 4286644096
  %v309 = vmax.bf16 %v305, %v307
  %v311 = vsel %vm153, %v77, 4286644096
  %v313 = vmax.bf16 %v309, %v311
  %v315 = vsel %vm153, %v93, 4286644096
  %v317 = vmax.bf16 %v313, %v315
  %v319 = vsel %vm153, %v109, 4286644096
  %v321 = vmax.bf16 %v317, %v319
  %v323 = vsel %vm153, %v125, 4286644096
  %v325 = vmax.bf16 %v321, %v323
  %v327 = vsel %vm153, %v141, 4286644096
  %v329 = vmax.bf16 %v325, %v327
  %v331 = vsel %vm153, %v14, 4286644096
  %v334 = vsel %vm153, %v30, 4286644096
  %v336 = vmax.bf16 %v331, %v334
  %v338 = vsel %vm153, %v46, 4286644096
  %v340 = vmax.bf16 %v336, %v338
  %v342 = vsel %vm153, %v62, 4286644096
  %v344 = vmax.bf16 %v340, %v342
  %v346 = vsel %vm153, %v78, 4286644096
  %v348 = vmax.bf16 %v344, %v346
  %v350 = vsel %vm153, %v94, 4286644096
  %v352 = vmax.bf16 %v348, %v350
  %v354 = vsel %vm153, %v110, 4286644096
  %v356 = vmax.bf16 %v352, %v354
  %v358 = vsel %vm153, %v126, 4286644096
  %v360 = vmax.bf16 %v356, %v358
  %v362 = vsel %vm153, %v142, 4286644096
  %v364 = vmax.bf16 %v360, %v362
  %v366 = vsel %vm153, %v15, 4286644096
  %v369 = vsel %vm153, %v31, 4286644096
  %v371 = vmax.bf16 %v366, %v369
  %v373 = vsel %vm153, %v47, 4286644096
  %v375 = vmax.bf16 %v371, %v373
  %v377 = vsel %vm153, %v63, 4286644096
  %v379 = vmax.bf16 %v375, %v377
  %v381 = vsel %vm153, %v79, 4286644096
  %v383 = vmax.bf16 %v379, %v381
  %v385 = vsel %vm153, %v95, 4286644096
  %v387 = vmax.bf16 %v383, %v385
  %v389 = vsel %vm153, %v111, 4286644096
  %v391 = vmax.bf16 %v387, %v389
  %v393 = vsel %vm153, %v127, 4286644096
  %v395 = vmax.bf16 %v391, %v393
  %v397 = vsel %vm153, %v143, 4286644096
  %v399 = vmax.bf16 %v395, %v397
  %v401 = vsel %vm153, %v16, 4286644096
  %v404 = vsel %vm153, %v32, 4286644096
  %v406 = vmax.bf16 %v401, %v404
  %v408 = vsel %vm153, %v48, 4286644096
  %v410 = vmax.bf16 %v406, %v408
  %v412 = vsel %vm153, %v64, 4286644096
  %v414 = vmax.bf16 %v410, %v412
  %v416 = vsel %vm153, %v80, 4286644096
  %v418 = vmax.bf16 %v414, %v416
  %v420 = vsel %vm153, %v96, 4286644096
  %v422 = vmax.bf16 %v418, %v420
  %v424 = vsel %vm153, %v112, 4286644096
  %v426 = vmax.bf16 %v422, %v424
  %v428 = vsel %vm153, %v128, 4286644096
  %v430 = vmax.bf16 %v426, %v428
  %v432 = vsel %vm153, %v144, 4286644096
  %v434 = vmax.bf16 %v430, %v432
  %v436 = vsel %vm153, %v17, 4286644096
  %v439 = vsel %vm153, %v33, 4286644096
  %v441 = vmax.bf16 %v436, %v439
  %v443 = vsel %vm153, %v49, 4286644096
  %v445 = vmax.bf16 %v441, %v443
  %v447 = vsel %vm153, %v65, 4286644096
  %v449 = vmax.bf16 %v445, %v447
  %v451 = vsel %vm153, %v81, 4286644096
  %v453 = vmax.bf16 %v449, %v451
  %v455 = vsel %vm153, %v97, 4286644096
  %v457 = vmax.bf16 %v453, %v455
  %v459 = vsel %vm153, %v113, 4286644096
  %v461 = vmax.bf16 %v457, %v459
  %v463 = vsel %vm153, %v129, 4286644096
  %v465 = vmax.bf16 %v461, %v463
  %v467 = vsel %vm153, %v145, 4286644096
  %v469 = vmax.bf16 %v465, %v467
  %v471 = vsel %vm153, %v18, 4286644096
  %v474 = vsel %vm153, %v34, 4286644096
  %v476 = vmax.bf16 %v471, %v474
  %v478 = vsel %vm153, %v50, 4286644096
  %v480 = vmax.bf16 %v476, %v478
  %v482 = vsel %vm153, %v66, 4286644096
  %v484 = vmax.bf16 %v480, %v482
  %v486 = vsel %vm153, %v82, 4286644096
  %v488 = vmax.bf16 %v484, %v486
  %v490 = vsel %vm153, %v98, 4286644096
  %v492 = vmax.bf16 %v488, %v490
  %v494 = vsel %vm153, %v114, 4286644096
  %v496 = vmax.bf16 %v492, %v494
  %v498 = vsel %vm153, %v130, 4286644096
  %v500 = vmax.bf16 %v496, %v498
  %v502 = vsel %vm153, %v146, 4286644096
  %v504 = vmax.bf16 %v500, %v502
  %v506 = vsel %vm153, %v19, 4286644096
  %v509 = vsel %vm153, %v35, 4286644096
  %v511 = vmax.bf16 %v506, %v509
  %v513 = vsel %vm153, %v51, 4286644096
  %v515 = vmax.bf16 %v511, %v513
  %v517 = vsel %vm153, %v67, 4286644096
  %v519 = vmax.bf16 %v515, %v517
  %v521 = vsel %vm153, %v83, 4286644096
  %v523 = vmax.bf16 %v519, %v521
  %v525 = vsel %vm153, %v99, 4286644096
  %v527 = vmax.bf16 %v523, %v525
  %v529 = vsel %vm153, %v115, 4286644096
  %v531 = vmax.bf16 %v527, %v529
  %v533 = vsel %vm153, %v131, 4286644096
  %v535 = vmax.bf16 %v531, %v533
  %v537 = vsel %vm153, %v147, 4286644096
  %v539 = vmax.bf16 %v535, %v537
  %v541 = vsel %vm153, %v20, 4286644096
  %v544 = vsel %vm153, %v36, 4286644096
  %v546 = vmax.bf16 %v541, %v544
  %v548 = vsel %vm153, %v52, 4286644096
  %v550 = vmax.bf16 %v546, %v548
  %v552 = vsel %vm153, %v68, 4286644096
  %v554 = vmax.bf16 %v550, %v552
  %v556 = vsel %vm153, %v84, 4286644096
  %v558 = vmax.bf16 %v554, %v556
  %v560 = vsel %vm153, %v100, 4286644096
  %v562 = vmax.bf16 %v558, %v560
  %v564 = vsel %vm153, %v116, 4286644096
  %v566 = vmax.bf16 %v562, %v564
  %v568 = vsel %vm153, %v132, 4286644096
  %v570 = vmax.bf16 %v566, %v568
  %v572 = vsel %vm153, %v148, 4286644096
  %v574 = vmax.bf16 %v570, %v572
  %v576 = vsel %vm153, %v21, 4286644096
  %v579 = vsel %vm153, %v37, 4286644096
  %v581 = vmax.bf16 %v576, %v579
  %v583 = vsel %vm153, %v53, 4286644096
  %v585 = vmax.bf16 %v581, %v583
  %v587 = vsel %vm153, %v69, 4286644096
  %v589 = vmax.bf16 %v585, %v587
  %v591 = vsel %vm153, %v85, 4286644096
  %v593 = vmax.bf16 %v589, %v591
  %v595 = vsel %vm153, %v101, 4286644096
  %v597 = vmax.bf16 %v593, %v595
  %v599 = vsel %vm153, %v117, 4286644096
  %v601 = vmax.bf16 %v597, %v599
  %v603 = vsel %vm153, %v133, 4286644096
  %v605 = vmax.bf16 %v601, %v603
  %v607 = vsel %vm153, %v149, 4286644096
  %v609 = vmax.bf16 %v605, %v607
  %v611 = vsel %vm153, %v22, 4286644096
  %v614 = vsel %vm153, %v38, 4286644096
  %v616 = vmax.bf16 %v611, %v614
  %v618 = vsel %vm153, %v54, 4286644096
  %v620 = vmax.bf16 %v616, %v618
  %v622 = vsel %vm153, %v70, 4286644096
  %v624 = vmax.bf16 %v620, %v622
  %v626 = vsel %vm153, %v86, 4286644096
  %v628 = vmax.bf16 %v624, %v626
  %v630 = vsel %vm153, %v102, 4286644096
  %v632 = vmax.bf16 %v628, %v630
  %v634 = vsel %vm153, %v118, 4286644096
  %v636 = vmax.bf16 %v632, %v634
  %v638 = vsel %vm153, %v134, 4286644096
  %v640 = vmax.bf16 %v636, %v638
  %v642 = vsel %vm153, %v150, 4286644096
  %v644 = vmax.bf16 %v640, %v642
  %v646 = vsel %vm153, %v23, 4286644096
  %v649 = vsel %vm153, %v39, 4286644096
  %v651 = vmax.bf16 %v646, %v649
  %v653 = vsel %vm153, %v55, 4286644096
  %v655 = vmax.bf16 %v651, %v653
  %v657 = vsel %vm153, %v71, 4286644096
  %v659 = vmax.bf16 %v655, %v657
  %v661 = vsel %vm153, %v87, 4286644096
  %v663 = vmax.bf16 %v659, %v661
  %v665 = vsel %vm153, %v103, 4286644096
  %v667 = vmax.bf16 %v663, %v665
  %v669 = vsel %vm153, %v119, 4286644096
  %v671 = vmax.bf16 %v667, %v669
  %v673 = vsel %vm153, %v135, 4286644096
  %v675 = vmax.bf16 %v671, %v673
  %v677 = vsel %vm153, %v151, 4286644096
  %v679 = vmax.bf16 %v675, %v677
  %v681 = vsel %vm153, %v24, 4286644096
  %v684 = vsel %vm153, %v40, 4286644096
  %v686 = vmax.bf16 %v681, %v684
  %v688 = vsel %vm153, %v56, 4286644096
  %v690 = vmax.bf16 %v686, %v688
  %v692 = vsel %vm153, %v72, 4286644096
  %v694 = vmax.bf16 %v690, %v692
  %v696 = vsel %vm153, %v88, 4286644096
  %v698 = vmax.bf16 %v694, %v696
  %v700 = vsel %vm153, %v104, 4286644096
  %v702 = vmax.bf16 %v698, %v700
  %v704 = vsel %vm153, %v120, 4286644096
  %v706 = vmax.bf16 %v702, %v704
  %v708 = vsel %vm153, %v136, 4286644096
  %v710 = vmax.bf16 %v706, %v708
  %v712 = vsel %vm153, %v152, 4286644096
  %v714 = vmax.bf16 %v710, %v712
  %715 = vst.msk [vmem:[%s1] sm:$0xf] %vm153, %v189
  %716 = vst.msk [vmem:[%s1 + $0x4] sm:$0xf] %vm153, %v224
  %717 = vst.msk [vmem:[%s1 + $0x8] sm:$0xf] %vm153, %v259
  %718 = vst.msk [vmem:[%s1 + $0xc] sm:$0xf] %vm153, %v294
  %719 = vst.msk [vmem:[%s1 + $0x10] sm:$0xf] %vm153, %v329
  %720 = vst.msk [vmem:[%s1 + $0x14] sm:$0xf] %vm153, %v364
  %721 = vst.msk [vmem:[%s1 + $0x18] sm:$0xf] %vm153, %v399
  %722 = vst.msk [vmem:[%s1 + $0x1c] sm:$0xf] %vm153, %v434
  %723 = vst.msk [vmem:[%s1 + $0x20] sm:$0xf] %vm153, %v469
  %724 = vst.msk [vmem:[%s1 + $0x24] sm:$0xf] %vm153, %v504
  %725 = vst.msk [vmem:[%s1 + $0x28] sm:$0xf] %vm153, %v539
  %726 = vst.msk [vmem:[%s1 + $0x2c] sm:$0xf] %vm153, %v574
  %727 = vst.msk [vmem:[%s1 + $0x30] sm:$0xf] %vm153, %v609
  %728 = vst.msk [vmem:[%s1 + $0x34] sm:$0xf] %vm153, %v644
  %729 = vst.msk [vmem:[%s1 + $0x38] sm:$0xf] %vm153, %v679
  %730 = vst.msk [vmem:[%s1 + $0x3c] sm:$0xf] %vm153, %v714
  // Predicated region
  $region6: #{image_encoder_forward.31} parent=0 // pred_check
    _
  $region7: #{image_encoder_forward.31} parent=0 // pred_check_branch
    %732 = sbr.rel (0) target = $region9
  $region8: #{image_encoder_forward.31} parent=0 // pred_region
    _
  $region9: #{image_encoder_forward.31} parent=0 // pred_fallthru
    _
  // Predicated region
  $region10: #{image_encoder_forward.31} parent=0 // pred_check
    _
  $region11: #{image_encoder_forward.31} parent=0 // pred_check_branch
    %734 = sbr.rel (0) target = $region13
  $region12: #{image_encoder_forward.31} parent=0 // pred_region
    _
  $region13: #{image_encoder_forward.31} parent=0 // pred_fallthru
    _

// kernel: image_encoder_forward.33
$region0: #{image_encoder_forward.33}
  #allocation0 [shape = 'u32[]', space=smem, size = 0x4, offset = 0x4, fixed_abs, tag = 'smem constant byte address 0x4 - core index']
  #allocation1 [shape = 'u32[144,128]{1,0:T(1,128)}', space=vmem, size = 0x12000, scoped, tag = 'internal scratch']
  %s0 = inlined_call_operand.vmem [shape: bf16[128,576], index: 0, kind: input, shape index: {}]
  %s1 = inlined_call_operand.vmem [shape: bf16[576,64], index: 1, kind: input, shape index: {}]
  %s2 = inlined_call_operand.vmem [shape: f32[1,64], index: 2, kind: input, shape index: {}]
  %s3 = inlined_call_operand.vmem [shape: bf16[128,64], index: 3, kind: input, shape index: {}]
  %s4 = inlined_call_operand.vmem [shape: bf16[128,64], index: 4, kind: output, shape index: {}]
  %s5 = sld [smem:[#allocation0]]
  $region26: #{image_encoder_forward.33} parent=0
    _
  %s7 = ssub.s32 1, %s5
  %s8 = scalar_select 0, %s7, %s5
  // Predicated region
  $region2: #{image_encoder_forward.33} parent=0 // pred_check
    _
  $region3: #{image_encoder_forward.33} parent=0 // pred_check_branch
    %10 = sbr.rel (0) target = $region5
  $region4: #{image_encoder_forward.33} parent=0 // pred_region
    _
  $region5: #{image_encoder_forward.33} parent=0 // pred_fallthru
    _
  // Predicated region
  $region6: #{image_encoder_forward.33} parent=0 // pred_check
    _
  $region7: #{image_encoder_forward.33} parent=0 // pred_check_branch
    %12 = sbr.rel (0) target = $region9
  $region8: #{image_encoder_forward.33} parent=0 // pred_region
    _
  $region9: #{image_encoder_forward.33} parent=0 // pred_fallthru
    _
  // Predicated region
  $region10: #{image_encoder_forward.33} parent=0 // pred_check
    _
  $region11: #{image_encoder_forward.33} parent=0 // pred_check_branch
    %14 = sbr.rel (0) target = $region13
  $region12: #{image_encoder_forward.33} parent=0 // pred_region
    _
  $region13: #{image_encoder_forward.33} parent=0 // pred_fallthru
    _
  // Predicated region
  $region14: #{image_encoder_forward.33} parent=0 // pred_check
    _
  $region15: #{image_encoder_forward.33} parent=0 // pred_check_branch
    %16 = sbr.rel (0) target = $region17
  $region16: #{image_encoder_forward.33} parent=0 // pred_region
    _
  $region17: #{image_encoder_forward.33} parent=0 // pred_fallthru
    _
  %v18 = vld [vmem:[%s0] sm:$0xff]
  %v19 = vld [vmem:[%s0 + $0x8] sm:$0xff]
  %v20 = vld [vmem:[%s0 + $0x10] sm:$0xf]
  %v21 = vld [vmem:[%s0 + $0x14] sm:$0xff]
  %v22 = vld [vmem:[%s0 + $0x1c] sm:$0xff]
  %v23 = vld [vmem:[%s0 + $0x24] sm:$0xf]
  %v24 = vld [vmem:[%s0 + $0x28] sm:$0xff]
  %v25 = vld [vmem:[%s0 + $0x30] sm:$0xff]
  %v26 = vld [vmem:[%s0 + $0x38] sm:$0xf]
  %v27 = vld [vmem:[%s0 + $0x3c] sm:$0xff]
  %v28 = vld [vmem:[%s0 + $0x44] sm:$0xff]
  %v29 = vld [vmem:[%s0 + $0x4c] sm:$0xf]
  %v30 = vld [vmem:[%s0 + $0x50] sm:$0xff]
  %v31 = vld [vmem:[%s0 + $0x58] sm:$0xff]
  %v32 = vld [vmem:[%s0 + $0x60] sm:$0xf]
  %v33 = vld [vmem:[%s0 + $0x64] sm:$0xff]
  %v34 = vld [vmem:[%s0 + $0x6c] sm:$0xff]
  %v35 = vld [vmem:[%s0 + $0x74] sm:$0xf]
  %v36 = vld [vmem:[%s0 + $0x78] sm:$0xff]
  %v37 = vld [vmem:[%s0 + $0x80] sm:$0xff]
  %v38 = vld [vmem:[%s0 + $0x88] sm:$0xf]
  %v39 = vld [vmem:[%s0 + $0x8c] sm:$0xff]
  %v40 = vld [vmem:[%s0 + $0x94] sm:$0xff]
  %v41 = vld [vmem:[%s0 + $0x9c] sm:$0xf]
  %v42 = vld [vmem:[%s0 + $0xa0] sm:$0xff]
  %v43 = vld [vmem:[%s0 + $0xa8] sm:$0xff]
  %v44 = vld [vmem:[%s0 + $0xb0] sm:$0xf]
  %v45 = vld [vmem:[%s0 + $0xb4] sm:$0xff]
  %v46 = vld [vmem:[%s0 + $0xbc] sm:$0xff]
  %v47 = vld [vmem:[%s0 + $0xc4] sm:$0xf]
  %v48 = vld [vmem:[%s0 + $0xc8] sm:$0xff]
  %v49 = vld [vmem:[%s0 + $0xd0] sm:$0xff]
  %v50 = vld [vmem:[%s0 + $0xd8] sm:$0xf]
  %v51 = vld [vmem:[%s0 + $0xdc] sm:$0xff]
  %v52 = vld [vmem:[%s0 + $0xe4] sm:$0xff]
  %v53 = vld [vmem:[%s0 + $0xec] sm:$0xf]
  %v54 = vld [vmem:[%s0 + $0xf0] sm:$0xff]
  %v55 = vld [vmem:[%s0 + $0xf8] sm:$0xff]
  %v56 = vld [vmem:[%s0 + $0x100] sm:$0xf]
  %v57 = vld [vmem:[%s0 + $0x104] sm:$0xff]
  %v58 = vld [vmem:[%s0 + $0x10c] sm:$0xff]
  %v59 = vld [vmem:[%s0 + $0x114] sm:$0xf]
  %v60 = vld [vmem:[%s0 + $0x118] sm:$0xff]
  %v61 = vld [vmem:[%s0 + $0x120] sm:$0xff]
  %v62 = vld [vmem:[%s0 + $0x128] sm:$0xf]
  %v63 = vld [vmem:[%s0 + $0x12c] sm:$0xff]
  %v64 = vld [vmem:[%s0 + $0x134] sm:$0xff]
  %v65 = vld [vmem:[%s0 + $0x13c] sm:$0xf]
  %v66 = vld [vmem:[%s1] sm:$0xf]
  %v67 = vld [vmem:[%s1 + $0x4] sm:$0xf]
  %v68 = vld [vmem:[%s1 + $0x8] sm:$0xf]
  %v69 = vld [vmem:[%s1 + $0xc] sm:$0xf]
  %v70 = vld [vmem:[%s1 + $0x10] sm:$0xf]
  %v71 = vld [vmem:[%s1 + $0x14] sm:$0xf]
  %v72 = vld [vmem:[%s1 + $0x18] sm:$0xf]
  %v73 = vld [vmem:[%s1 + $0x1c] sm:$0xf]
  %v74 = vld [vmem:[%s1 + $0x20] sm:$0xf]
  %v75 = vld [vmem:[%s1 + $0x24] sm:$0xf]
  %v76 = vld [vmem:[%s1 + $0x28] sm:$0xf]
  %v77 = vld [vmem:[%s1 + $0x2c] sm:$0xf]
  %v78 = vld [vmem:[%s1 + $0x30] sm:$0xf]
  %v79 = vld [vmem:[%s1 + $0x34] sm:$0xf]
  %v80 = vld [vmem:[%s1 + $0x38] sm:$0xf]
  %v81 = vld [vmem:[%s1 + $0x3c] sm:$0xf]
  %v82 = vld [vmem:[%s1 + $0x40] sm:$0xf]
  %v83 = vld [vmem:[%s1 + $0x44] sm:$0xf]
  %v84 = vld [vmem:[%s1 + $0x48] sm:$0xf]
  %v85 = vld [vmem:[%s1 + $0x4c] sm:$0xf]
  %v86 = vld [vmem:[%s1 + $0x50] sm:$0xf]
  %v87 = vld [vmem:[%s1 + $0x54] sm:$0xf]
  %v88 = vld [vmem:[%s1 + $0x58] sm:$0xf]
  %v89 = vld [vmem:[%s1 + $0x5c] sm:$0xf]
  %v90 = vld [vmem:[%s1 + $0x60] sm:$0xf]
  %v91 = vld [vmem:[%s1 + $0x64] sm:$0xf]
  %v92 = vld [vmem:[%s1 + $0x68] sm:$0xf]
  %v93 = vld [vmem:[%s1 + $0x6c] sm:$0xf]
  %v94 = vld [vmem:[%s1 + $0x70] sm:$0xf]
  %v95 = vld [vmem:[%s1 + $0x74] sm:$0xf]
  %v96 = vld [vmem:[%s1 + $0x78] sm:$0xf]
  %v97 = vld [vmem:[%s1 + $0x7c] sm:$0xf]
  %v98 = vld [vmem:[%s1 + $0x80] sm:$0xf]
  %v99 = vld [vmem:[%s1 + $0x84] sm:$0xf]
  %v100 = vld [vmem:[%s1 + $0x88] sm:$0xf]
  %v101 = vld [vmem:[%s1 + $0x8c] sm:$0xf]
  %v102 = vld [vmem:[%s1 + $0x90] sm:$0xf]
  %v103 = vld [vmem:[%s1 + $0x94] sm:$0xf]
  %v104 = vld [vmem:[%s1 + $0x98] sm:$0xf]
  %v105 = vld [vmem:[%s1 + $0x9c] sm:$0xf]
  %v106 = vld [vmem:[%s1 + $0xa0] sm:$0xf]
  %v107 = vld [vmem:[%s1 + $0xa4] sm:$0xf]
  %v108 = vld [vmem:[%s1 + $0xa8] sm:$0xf]
  %v109 = vld [vmem:[%s1 + $0xac] sm:$0xf]
  %v110 = vld [vmem:[%s1 + $0xb0] sm:$0xf]
  %v111 = vld [vmem:[%s1 + $0xb4] sm:$0xf]
  %v112 = vld [vmem:[%s1 + $0xb8] sm:$0xf]
  %v113 = vld [vmem:[%s1 + $0xbc] sm:$0xf]
  %v114 = vld [vmem:[%s1 + $0xc0] sm:$0xf]
  %v115 = vld [vmem:[%s1 + $0xc4] sm:$0xf]
  %v116 = vld [vmem:[%s1 + $0xc8] sm:$0xf]
  %v117 = vld [vmem:[%s1 + $0xcc] sm:$0xf]
  %v118 = vld [vmem:[%s1 + $0xd0] sm:$0xf]
  %v119 = vld [vmem:[%s1 + $0xd4] sm:$0xf]
  %v120 = vld [vmem:[%s1 + $0xd8] sm:$0xf]
  %v121 = vld [vmem:[%s1 + $0xdc] sm:$0xf]
  %v122 = vld [vmem:[%s1 + $0xe0] sm:$0xf]
  %v123 = vld [vmem:[%s1 + $0xe4] sm:$0xf]
  %v124 = vld [vmem:[%s1 + $0xe8] sm:$0xf]
  %v125 = vld [vmem:[%s1 + $0xec] sm:$0xf]
  %v126 = vld [vmem:[%s1 + $0xf0] sm:$0xf]
  %v127 = vld [vmem:[%s1 + $0xf4] sm:$0xf]
  %v128 = vld [vmem:[%s1 + $0xf8] sm:$0xf]
  %v129 = vld [vmem:[%s1 + $0xfc] sm:$0xf]
  %v130 = vld [vmem:[%s1 + $0x100] sm:$0xf]
  %v131 = vld [vmem:[%s1 + $0x104] sm:$0xf]
  %v132 = vld [vmem:[%s1 + $0x108] sm:$0xf]
  %v133 = vld [vmem:[%s1 + $0x10c] sm:$0xf]
  %v134 = vld [vmem:[%s1 + $0x110] sm:$0xf]
  %v135 = vld [vmem:[%s1 + $0x114] sm:$0xf]
  %v136 = vld [vmem:[%s1 + $0x118] sm:$0xf]
  %v137 = vld [vmem:[%s1 + $0x11c] sm:$0xf]
  %v138 = vld [vmem:[%s2] sm:$0x1]
  %v140 = vlaneseq
  %v141 = vshrl.u32 %v140, 7
  %v142 = vsub.s32 0, %v141
  %v143 = vrot.slane %v138, %v142
  %v193 = vunpack.c.l.b16 %v18
  %v194 = vunpack.c.h.b16 %v18
  %v195 = vunpack.c.l.b16 %v19
  %v196 = vunpack.c.h.b16 %v19
  %v197 = vunpack.c.l.b16 %v20
  %v198 = vunpack.c.l.b16 %v21
  %v199 = vunpack.c.h.b16 %v21
  %v200 = vunpack.c.l.b16 %v22
  %v201 = vunpack.c.h.b16 %v22
  %v202 = vunpack.c.l.b16 %v23
  %v203 = vunpack.c.l.b16 %v24
  %v204 = vunpack.c.h.b16 %v24
  %v205 = vunpack.c.l.b16 %v25
  %v206 = vunpack.c.h.b16 %v25
  %v207 = vunpack.c.l.b16 %v26
  %v208 = vunpack.c.l.b16 %v27
  %v209 = vunpack.c.h.b16 %v27
  %v210 = vunpack.c.l.b16 %v28
  %v211 = vunpack.c.h.b16 %v28
  %v212 = vunpack.c.l.b16 %v29
  %v213 = vunpack.c.l.b16 %v30
  %v214 = vunpack.c.h.b16 %v30
  %v215 = vunpack.c.l.b16 %v31
  %v216 = vunpack.c.h.b16 %v31
  %v217 = vunpack.c.l.b16 %v32
  %v218 = vunpack.c.l.b16 %v33
  %v219 = vunpack.c.h.b16 %v33
  %v220 = vunpack.c.l.b16 %v34
  %v221 = vunpack.c.h.b16 %v34
  %v222 = vunpack.c.l.b16 %v35
  %v223 = vunpack.c.l.b16 %v36
  %v224 = vunpack.c.h.b16 %v36
  %v225 = vunpack.c.l.b16 %v37
  %v226 = vunpack.c.h.b16 %v37
  %v227 = vunpack.c.l.b16 %v38
  %v228 = vunpack.c.l.b16 %v39
  %v229 = vunpack.c.h.b16 %v39
  %v230 = vunpack.c.l.b16 %v40
  %v231 = vunpack.c.h.b16 %v40
  %v232 = vunpack.c.l.b16 %v41
  %v233 = vunpack.c.l.b16 %v42
  %v234 = vunpack.c.h.b16 %v42
  %v235 = vunpack.c.l.b16 %v43
  %v236 = vunpack.c.h.b16 %v43
  %v237 = vunpack.c.l.b16 %v44
  %v238 = vunpack.c.l.b16 %v45
  %v239 = vunpack.c.h.b16 %v45
  %v240 = vunpack.c.l.b16 %v46
  %v241 = vunpack.c.h.b16 %v46
  %v242 = vunpack.c.l.b16 %v47
  %v243 = vunpack.c.l.b16 %v48
  %v244 = vunpack.c.h.b16 %v48
  %v245 = vunpack.c.l.b16 %v49
  %v246 = vunpack.c.h.b16 %v49
  %v247 = vunpack.c.l.b16 %v50
  %v248 = vunpack.c.l.b16 %v51
  %v249 = vunpack.c.h.b16 %v51
  %v250 = vunpack.c.l.b16 %v52
  %v251 = vunpack.c.h.b16 %v52
  %v252 = vunpack.c.l.b16 %v53
  %v253 = vunpack.c.l.b16 %v54
  %v254 = vunpack.c.h.b16 %v54
  %v255 = vunpack.c.l.b16 %v55
  %v256 = vunpack.c.h.b16 %v55
  %v257 = vunpack.c.l.b16 %v56
  %v258 = vunpack.c.l.b16 %v57
  %v259 = vunpack.c.h.b16 %v57
  %v260 = vunpack.c.l.b16 %v58
  %v261 = vunpack.c.h.b16 %v58
  %v262 = vunpack.c.l.b16 %v59
  %v263 = vunpack.c.l.b16 %v60
  %v264 = vunpack.c.h.b16 %v60
  %v265 = vunpack.c.l.b16 %v61
  %v266 = vunpack.c.h.b16 %v61
  %v267 = vunpack.c.l.b16 %v62
  %v268 = vunpack.c.l.b16 %v63
  %v269 = vunpack.c.h.b16 %v63
  %v270 = vunpack.c.l.b16 %v64
  %v271 = vunpack.c.h.b16 %v64
  %v272 = vunpack.c.l.b16 %v65
  %v273 = vpack.c.b16 %v198, %v193
  %v274 = vpack.c.b16 %v199, %v194
  %v275 = vpack.c.b16 %v200, %v195
  %v276 = vpack.c.b16 %v201, %v196
  %v277 = vpack.c.b16 %v202, %v197
  %v278 = vpack.c.b16 %v208, %v203
  %v279 = vpack.c.b16 %v209, %v204
  %v280 = vpack.c.b16 %v210, %v205
  %v281 = vpack.c.b16 %v211, %v206
  %v282 = vpack.c.b16 %v212, %v207
  %v283 = vpack.c.b16 %v218, %v213
  %v284 = vpack.c.b16 %v219, %v214
  %v285 = vpack.c.b16 %v220, %v215
  %v286 = vpack.c.b16 %v221, %v216
  %v287 = vpack.c.b16 %v222, %v217
  %v288 = vpack.c.b16 %v228, %v223
  %v289 = vpack.c.b16 %v229, %v224
  %v290 = vpack.c.b16 %v230, %v225
  %v291 = vpack.c.b16 %v231, %v226
  %v292 = vpack.c.b16 %v232, %v227
  %v293 = vpack.c.b16 %v238, %v233
  %v294 = vpack.c.b16 %v239, %v234
  %v295 = vpack.c.b16 %v240, %v235
  %v296 = vpack.c.b16 %v241, %v236
  %v297 = vpack.c.b16 %v242, %v237
  %v298 = vpack.c.b16 %v248, %v243
  %v299 = vpack.c.b16 %v249, %v244
  %v300 = vpack.c.b16 %v250, %v245
  %v301 = vpack.c.b16 %v251, %v246
  %v302 = vpack.c.b16 %v252, %v247
  %v303 = vpack.c.b16 %v258, %v253
  %v304 = vpack.c.b16 %v259, %v254
  %v305 = vpack.c.b16 %v260, %v255
  %v306 = vpack.c.b16 %v261, %v256
  %v307 = vpack.c.b16 %v262, %v257
  %v308 = vpack.c.b16 %v268, %v263
  %v309 = vpack.c.b16 %v269, %v264
  %v310 = vpack.c.b16 %v270, %v265
  %v311 = vpack.c.b16 %v271, %v266
  %v312 = vpack.c.b16 %v272, %v267
  %v417 = vunpack.c.l.b16 %v66
  %v418 = vunpack.c.l.b16 %v67
  %v419 = vunpack.c.l.b16 %v68
  %v420 = vunpack.c.l.b16 %v69
  %v421 = vunpack.c.l.b16 %v70
  %v422 = vunpack.c.l.b16 %v71
  %v423 = vunpack.c.l.b16 %v72
  %v424 = vunpack.c.l.b16 %v73
  %v425 = vunpack.c.l.b16 %v74
  %v426 = vunpack.c.l.b16 %v75
  %v427 = vunpack.c.l.b16 %v76
  %v428 = vunpack.c.l.b16 %v77
  %v429 = vunpack.c.l.b16 %v78
  %v430 = vunpack.c.l.b16 %v79
  %v431 = vunpack.c.l.b16 %v80
  %v432 = vunpack.c.l.b16 %v81
  %v433 = vunpack.c.l.b16 %v82
  %v434 = vunpack.c.l.b16 %v83
  %v435 = vunpack.c.l.b16 %v84
  %v436 = vunpack.c.l.b16 %v85
  %v437 = vunpack.c.l.b16 %v86
  %v438 = vunpack.c.l.b16 %v87
  %v439 = vunpack.c.l.b16 %v88
  %v440 = vunpack.c.l.b16 %v89
  %v441 = vunpack.c.l.b16 %v90
  %v442 = vunpack.c.l.b16 %v91
  %v443 = vunpack.c.l.b16 %v92
  %v444 = vunpack.c.l.b16 %v93
  %v445 = vunpack.c.l.b16 %v94
  %v446 = vunpack.c.l.b16 %v95
  %v447 = vunpack.c.l.b16 %v96
  %v448 = vunpack.c.l.b16 %v97
  %v449 = vunpack.c.l.b16 %v98
  %v450 = vunpack.c.l.b16 %v99
  %v451 = vunpack.c.l.b16 %v100
  %v452 = vunpack.c.l.b16 %v101
  %v453 = vunpack.c.l.b16 %v102
  %v454 = vunpack.c.l.b16 %v103
  %v455 = vunpack.c.l.b16 %v104
  %v456 = vunpack.c.l.b16 %v105
  %v457 = vunpack.c.l.b16 %v106
  %v458 = vunpack.c.l.b16 %v107
  %v459 = vunpack.c.l.b16 %v108
  %v460 = vunpack.c.l.b16 %v109
  %v461 = vunpack.c.l.b16 %v110
  %v462 = vunpack.c.l.b16 %v111
  %v463 = vunpack.c.l.b16 %v112
  %v464 = vunpack.c.l.b16 %v113
  %v465 = vunpack.c.l.b16 %v114
  %v466 = vunpack.c.l.b16 %v115
  %v467 = vunpack.c.l.b16 %v116
  %v468 = vunpack.c.l.b16 %v117
  %v469 = vunpack.c.l.b16 %v118
  %v470 = vunpack.c.l.b16 %v119
  %v471 = vunpack.c.l.b16 %v120
  %v472 = vunpack.c.l.b16 %v121
  %v473 = vunpack.c.l.b16 %v122
  %v474 = vunpack.c.l.b16 %v123
  %v475 = vunpack.c.l.b16 %v124
  %v476 = vunpack.c.l.b16 %v125
  %v477 = vunpack.c.l.b16 %v126
  %v478 = vunpack.c.l.b16 %v127
  %v479 = vunpack.c.l.b16 %v128
  %v480 = vunpack.c.l.b16 %v129
  %v481 = vunpack.c.l.b16 %v130
  %v482 = vunpack.c.l.b16 %v131
  %v483 = vunpack.c.l.b16 %v132
  %v484 = vunpack.c.l.b16 %v133
  %v485 = vunpack.c.l.b16 %v134
  %v486 = vunpack.c.l.b16 %v135
  %v487 = vunpack.c.l.b16 %v136
  %v488 = vunpack.c.l.b16 %v137
  %v489 = vpack.c.b16 %v418, %v417
  %v490 = vpack.c.b16 %v420, %v419
  %v491 = vpack.c.b16 %v422, %v421
  %v492 = vpack.c.b16 %v424, %v423
  %v493 = vpack.c.b16 %v426, %v425
  %v494 = vpack.c.b16 %v428, %v427
  %v495 = vpack.c.b16 %v430, %v429
  %v496 = vpack.c.b16 %v432, %v431
  %v497 = vpack.c.b16 %v434, %v433
  %v498 = vpack.c.b16 %v436, %v435
  %v499 = vpack.c.b16 %v438, %v437
  %v500 = vpack.c.b16 %v440, %v439
  %v501 = vpack.c.b16 %v442, %v441
  %v502 = vpack.c.b16 %v444, %v443
  %v503 = vpack.c.b16 %v446, %v445
  %v504 = vpack.c.b16 %v448, %v447
  %v505 = vpack.c.b16 %v450, %v449
  %v506 = vpack.c.b16 %v452, %v451
  %v507 = vpack.c.b16 %v454, %v453
  %v508 = vpack.c.b16 %v456, %v455
  %v509 = vpack.c.b16 %v458, %v457
  %v510 = vpack.c.b16 %v460, %v459
  %v511 = vpack.c.b16 %v462, %v461
  %v512 = vpack.c.b16 %v464, %v463
  %v513 = vpack.c.b16 %v466, %v465
  %v514 = vpack.c.b16 %v468, %v467
  %v515 = vpack.c.b16 %v470, %v469
  %v516 = vpack.c.b16 %v472, %v471
  %v517 = vpack.c.b16 %v474, %v473
  %v518 = vpack.c.b16 %v476, %v475
  %v519 = vpack.c.b16 %v478, %v477
  %v520 = vpack.c.b16 %v480, %v479
  %v521 = vpack.c.b16 %v482, %v481
  %v522 = vpack.c.b16 %v484, %v483
  %v523 = vpack.c.b16 %v486, %v485
  %v524 = vpack.c.b16 %v488, %v487
  %vm561 = vcmask 523264
  %v563 = vsel %vm561, %v277, 0
  %v566 = vsel %vm561, %v282, 0
  %v569 = vsel %vm561, %v287, 0
  %v572 = vsel %vm561, %v292, 0
  %v575 = vsel %vm561, %v297, 0
  %v578 = vsel %vm561, %v302, 0
  %v581 = vsel %vm561, %v307, 0
  %v584 = vsel %vm561, %v312, 0
  %586 = vmatprep.subr.bf16.mxu0 0
  %587 = vmatpush1.bf16.msra.mxu0 %v489
  %588 = vmatprep.subr.bf16.mxu0 0
  %589 = vmatpush1.bf16.msra.mxu0 %v490
  %590 = vmatprep.subr.bf16.mxu0 0
  %591 = vmatpush1.bf16.msra.mxu0 %v491
  %592 = vmatprep.subr.bf16.mxu0 0
  %593 = vmatpush1.bf16.msra.mxu0 %v492
  %594 = vmatprep.subr.bf16.mxu0 0
  %595 = vmatpush1.bf16.msra.mxu0 %v493
  %596 = vmatprep.subr.bf16.mxu0 0
  %597 = vmatpush1.bf16.msra.mxu0 %v494
  %598 = vmatprep.subr.bf16.mxu0 0
  %599 = vmatpush1.bf16.msra.mxu0 %v495
  %600 = vmatprep.subr.bf16.mxu0 0
  %601 = vmatpush1.bf16.msra.mxu0 %v496
  %602 = vmatprep.subr.bf16.mxu0 0
  %603 = vmatpush1.bf16.msra.mxu0 %v497
  %604 = vmatprep.subr.bf16.mxu0 0
  %605 = vmatpush1.bf16.msra.mxu0 %v498
  %606 = vmatprep.subr.bf16.mxu0 0
  %607 = vmatpush1.bf16.msra.mxu0 %v499
  %608 = vmatprep.subr.bf16.mxu0 0
  %609 = vmatpush1.bf16.msra.mxu0 %v500
  %610 = vmatprep.subr.bf16.mxu0 0
  %611 = vmatpush1.bf16.msra.mxu0 %v501
  %612 = vmatprep.subr.bf16.mxu0 0
  %613 = vmatpush1.bf16.msra.mxu0 %v502
  %614 = vmatprep.subr.bf16.mxu0 0
  %615 = vmatpush1.bf16.msra.mxu0 %v503
  %616 = vmatprep.subr.bf16.mxu0 0
  %617 = vmatpush1.bf16.msra.mxu0 %v504
  %618 = vmatprep.mubr.bf16.mxu0 %v274
  %619 = vmatmul.mubr.bf16.gmra.mrb[0].mxu0 %v273
  %v620 = vpop.f32.mrb[0].mxu0
  %v621 = vadd.f32 %v143, %v620
  %v622 = vpop.f32.mrb[0].mxu0
  %v623 = vpop.f32.mrb[0].mxu0
  %v624 = vadd.f32 %v143, %v623
  %v625 = vpop.f32.mrb[0].mxu0
  %626 = vmatprep.mubr.bf16.mxu0 %v279
  %627 = vmatmul.mubr.bf16.gmra.mrb[0].mxu0 %v278
  %v628 = vpop.f32.mrb[0].mxu0
  %v629 = vadd.f32 %v143, %v628
  %v630 = vpop.f32.mrb[0].mxu0
  %v631 = vpop.f32.mrb[0].mxu0
  %v632 = vadd.f32 %v143, %v631
  %v633 = vpop.f32.mrb[0].mxu0
  %634 = vmatprep.mubr.bf16.mxu0 %v284
  %635 = vmatmul.mubr.bf16.gmra.mrb[0].mxu0 %v283
  %v636 = vpop.f32.mrb[0].mxu0
  %v637 = vadd.f32 %v143, %v636
  %v638 = vpop.f32.mrb[0].mxu0
  %v639 = vpop.f32.mrb[0].mxu0
  %v640 = vadd.f32 %v143, %v639
  %v641 = vpop.f32.mrb[0].mxu0
  %642 = vmatprep.mubr.bf16.mxu0 %v289
  %643 = vmatmul.mubr.bf16.gmra.mrb[0].mxu0 %v288
  %v644 = vpop.f32.mrb[0].mxu0
  %v645 = vadd.f32 %v143, %v644
  %v646 = vpop.f32.mrb[0].mxu0
  %v647 = vpop.f32.mrb[0].mxu0
  %v648 = vadd.f32 %v143, %v647
  %v649 = vpop.f32.mrb[0].mxu0
  %650 = vmatprep.mubr.bf16.mxu0 %v294
  %651 = vmatmul.mubr.bf16.gmra.mrb[0].mxu0 %v293
  %v652 = vpop.f32.mrb[0].mxu0
  %v653 = vadd.f32 %v143, %v652
  %v654 = vpop.f32.mrb[0].mxu0
  %v655 = vpop.f32.mrb[0].mxu0
  %v656 = vadd.f32 %v143, %v655
  %v657 = vpop.f32.mrb[0].mxu0
  %658 = vmatprep.mubr.bf16.mxu0 %v299
  %659 = vmatmul.mubr.bf16.gmra.mrb[0].mxu0 %v298
  %v660 = vpop.f32.mrb[0].mxu0
  %v661 = vadd.f32 %v143, %v660
  %v662 = vpop.f32.mrb[0].mxu0
  %v663 = vpop.f32.mrb[0].mxu0
  %v664 = vadd.f32 %v143, %v663
  %v665 = vpop.f32.mrb[0].mxu0
  %666 = vmatprep.mubr.bf16.mxu0 %v304
  %667 = vmatmul.mubr.bf16.gmra.mrb[0].mxu0 %v303
  %v668 = vpop.f32.mrb[0].mxu0
  %v669 = vadd.f32 %v143, %v668
  %v670 = vpop.f32.mrb[0].mxu0
  %v671 = vpop.f32.mrb[0].mxu0
  %v672 = vadd.f32 %v143, %v671
  %v673 = vpop.f32.mrb[0].mxu0
  %674 = vmatprep.mubr.bf16.mxu0 %v309
  %675 = vmatmul.mubr.bf16.gmra.mrb[0].mxu0 %v308
  %v676 = vpop.f32.mrb[0].mxu0
  %v677 = vadd.f32 %v143, %v676
  %v678 = vpop.f32.mrb[0].mxu0
  %v679 = vpop.f32.mrb[0].mxu0
  %v680 = vadd.f32 %v143, %v679
  %v681 = vpop.f32.mrb[0].mxu0
  %682 = vdwg.mxu0
  %683 = vmatprep.subr.bf16.mxu0 0
  %684 = vmatpush1.bf16.msra.mxu0 %v505
  %685 = vmatprep.subr.bf16.mxu0 0
  %686 = vmatpush1.bf16.msra.mxu0 %v506
  %687 = vmatprep.subr.bf16.mxu0 0
  %688 = vmatpush1.bf16.msra.mxu0 %v507
  %689 = vmatprep.subr.bf16.mxu0 0
  %690 = vmatpush1.bf16.msra.mxu0 %v508
  %691 = vmatprep.subr.bf16.mxu0 0
  %692 = vmatpush1.bf16.msra.mxu0 %v509
  %693 = vmatprep.subr.bf16.mxu0 0
  %694 = vmatpush1.bf16.msra.mxu0 %v510
  %695 = vmatprep.subr.bf16.mxu0 0
  %696 = vmatpush1.bf16.msra.mxu0 %v511
  %697 = vmatprep.subr.bf16.mxu0 0
  %698 = vmatpush1.bf16.msra.mxu0 %v512
  %699 = vmatprep.subr.bf16.mxu0 0
  %700 = vmatpush1.bf16.msra.mxu0 %v513
  %701 = vmatprep.subr.bf16.mxu0 0
  %702 = vmatpush1.bf16.msra.mxu0 %v514
  %703 = vmatprep.subr.bf16.mxu0 0
  %704 = vmatpush1.bf16.msra.mxu0 %v515
  %705 = vmatprep.subr.bf16.mxu0 0
  %706 = vmatpush1.bf16.msra.mxu0 %v516
  %707 = vmatprep.subr.bf16.mxu0 0
  %708 = vmatpush1.bf16.msra.mxu0 %v517
  %709 = vmatprep.subr.bf16.mxu0 0
  %710 = vmatpush1.bf16.msra.mxu0 %v518
  %711 = vmatprep.subr.bf16.mxu0 0
  %712 = vmatpush1.bf16.msra.mxu0 %v519
  %713 = vmatprep.subr.bf16.mxu0 0
  %714 = vmatpush1.bf16.msra.mxu0 %v520
  %715 = vmatprep.mubr.bf16.mxu0 %v276
  %716 = vmatmul.mubr.bf16.gmra.mrb[0].mxu0 %v275
  %v717 = vpop.f32.mrb[0].mxu0
  %v718 = vadd.f32 %v621, %v717
  %v719 = vpop.f32.mrb[0].mxu0
  %v720 = vpop.f32.mrb[0].mxu0
  %v721 = vadd.f32 %v624, %v720
  %v722 = vpop.f32.mrb[0].mxu0
  %723 = vmatprep.mubr.bf16.mxu0 %v281
  %724 = vmatmul.mubr.bf16.gmra.mrb[0].mxu0 %v280
  %v725 = vpop.f32.mrb[0].mxu0
  %v726 = vadd.f32 %v629, %v725
  %v727 = vpop.f32.mrb[0].mxu0
  %v728 = vpop.f32.mrb[0].mxu0
  %v729 = vadd.f32 %v632, %v728
  %v730 = vpop.f32.mrb[0].mxu0
  %731 = vmatprep.mubr.bf16.mxu0 %v286
  %732 = vmatmul.mubr.bf16.gmra.mrb[0].mxu0 %v285
  %v733 = vpop.f32.mrb[0].mxu0
  %v734 = vadd.f32 %v637, %v733
  %v735 = vpop.f32.mrb[0].mxu0
  %v736 = vpop.f32.mrb[0].mxu0
  %v737 = vadd.f32 %v640, %v736
  %v738 = vpop.f32.mrb[0].mxu0
  %739 = vmatprep.mubr.bf16.mxu0 %v291
  %740 = vmatmul.mubr.bf16.gmra.mrb[0].mxu0 %v290
  %v741 = vpop.f32.mrb[0].mxu0
  %v742 = vadd.f32 %v645, %v741
  %v743 = vpop.f32.mrb[0].mxu0
  %v744 = vpop.f32.mrb[0].mxu0
  %v745 = vadd.f32 %v648, %v744
  %v746 = vpop.f32.mrb[0].mxu0
  %747 = vmatprep.mubr.bf16.mxu0 %v296
  %748 = vmatmul.mubr.bf16.gmra.mrb[0].mxu0 %v295
  %v749 = vpop.f32.mrb[0].mxu0
  %v750 = vadd.f32 %v653, %v749
  %v751 = vpop.f32.mrb[0].mxu0
  %v752 = vpop.f32.mrb[0].mxu0
  %v753 = vadd.f32 %v656, %v752
  %v754 = vpop.f32.mrb[0].mxu0
  %755 = vmatprep.mubr.bf16.mxu0 %v301
  %756 = vmatmul.mubr.bf16.gmra.mrb[0].mxu0 %v300
  %v757 = vpop.f32.mrb[0].mxu0
  %v758 = vadd.f32 %v661, %v757
  %v759 = vpop.f32.mrb[0].mxu0
  %v760 = vpop.f32.mrb[0].mxu0
  %v761 = vadd.f32 %v664, %v760
  %v762 = vpop.f32.mrb[0].mxu0
  %763 = vmatprep.mubr.bf16.mxu0 %v306
  %764 = vmatmul.mubr.bf16.gmra.mrb[0].mxu0 %v305
  %v765 = vpop.f32.mrb[0].mxu0
  %v766 = vadd.f32 %v669, %v765
  %v767 = vpop.f32.mrb[0].mxu0
  %v768 = vpop.f32.mrb[0].mxu0
  %v769 = vadd.f32 %v672, %v768
  %v770 = vpop.f32.mrb[0].mxu0
  %771 = vmatprep.mubr.bf16.mxu0 %v311
  %772 = vmatmul.mubr.bf16.gmra.mrb[0].mxu0 %v310
  %v773 = vpop.f32.mrb[0].mxu0
  %v774 = vadd.f32 %v677, %v773
  %v775 = vpop.f32.mrb[0].mxu0
  %v776 = vpop.f32.mrb[0].mxu0
  %v777 = vadd.f32 %v680, %v776
  %v778 = vpop.f32.mrb[0].mxu0
  %779 = vdwg.mxu0
  %780 = vmatprep.subr.bf16.mxu0 0
  %781 = vmatpush1.bf16.msra.mxu0 %v521
  %782 = vmatprep.subr.bf16.mxu0 0
  %783 = vmatpush1.bf16.msra.mxu0 %v522
  %784 = vmatprep.subr.bf16.mxu0 0
  %785 = vmatpush1.bf16.msra.mxu0 %v523
  %786 = vmatprep.subr.bf16.mxu0 0
  %787 = vmatpush1.bf16.msra.mxu0 %v524
  %788 = vmatprep.subr.bf16.mxu0 0
  %789 = vmatpush1.bf16.msra.mxu0 0
  %790 = vmatprep.subr.bf16.mxu0 0
  %791 = vmatpush1.bf16.msra.mxu0 0
  %792 = vmatprep.subr.bf16.mxu0 0
  %793 = vmatpush1.bf16.msra.mxu0 0
  %794 = vmatprep.subr.bf16.mxu0 0
  %795 = vmatpush1.bf16.msra.mxu0 0
  %796 = vmatprep.subr.bf16.mxu0 0
  %797 = vmatpush1.bf16.msra.mxu0 0
  %798 = vmatprep.subr.bf16.mxu0 0
  %799 = vmatpush1.bf16.msra.mxu0 0
  %800 = vmatprep.subr.bf16.mxu0 0
  %801 = vmatpush1.bf16.msra.mxu0 0
  %802 = vmatprep.subr.bf16.mxu0 0
  %803 = vmatpush1.bf16.msra.mxu0 0
  %804 = vmatprep.subr.bf16.mxu0 0
  %805 = vmatpush1.bf16.msra.mxu0 0
  %806 = vmatprep.subr.bf16.mxu0 0
  %807 = vmatpush1.bf16.msra.mxu0 0
  %808 = vmatprep.subr.bf16.mxu0 0
  %809 = vmatpush1.bf16.msra.mxu0 0
  %810 = vmatprep.subr.bf16.mxu0 0
  %811 = vmatpush1.bf16.msra.mxu0 0
  %812 = vmatprep.mubr.bf16.mxu0 0
  %813 = vmatmul.mubr.bf16.gmra.mrb[0].mxu0 %v563
  %v814 = vpop.f32.mrb[0].mxu0
  %v815 = vadd.f32 %v718, %v814
  %v816 = vpop.f32.mrb[0].mxu0
  %v817 = vpop.f32.mrb[0].mxu0
  %v818 = vadd.f32 %v721, %v817
  %v819 = vpop.f32.mrb[0].mxu0
  %820 = vmatprep.mubr.bf16.mxu0 0
  %821 = vmatmul.mubr.bf16.gmra.mrb[0].mxu0 %v566
  %v822 = vpop.f32.mrb[0].mxu0
  %v823 = vadd.f32 %v726, %v822
  %v824 = vpop.f32.mrb[0].mxu0
  %v825 = vpop.f32.mrb[0].mxu0
  %v826 = vadd.f32 %v729, %v825
  %v827 = vpop.f32.mrb[0].mxu0
  %828 = vmatprep.mubr.bf16.mxu0 0
  %829 = vmatmul.mubr.bf16.gmra.mrb[0].mxu0 %v569
  %v830 = vpop.f32.mrb[0].mxu0
  %v831 = vadd.f32 %v734, %v830
  %v832 = vpop.f32.mrb[0].mxu0
  %v833 = vpop.f32.mrb[0].mxu0
  %v834 = vadd.f32 %v737, %v833
  %v835 = vpop.f32.mrb[0].mxu0
  %836 = vmatprep.mubr.bf16.mxu0 0
  %837 = vmatmul.mubr.bf16.gmra.mrb[0].mxu0 %v572
  %v838 = vpop.f32.mrb[0].mxu0
  %v839 = vadd.f32 %v742, %v838
  %v840 = vpop.f32.mrb[0].mxu0
  %v841 = vpop.f32.mrb[0].mxu0
  %v842 = vadd.f32 %v745, %v841
  %v843 = vpop.f32.mrb[0].mxu0
  %844 = vmatprep.mubr.bf16.mxu0 0
  %845 = vmatmul.mubr.bf16.gmra.mrb[0].mxu0 %v575
  %v846 = vpop.f32.mrb[0].mxu0
  %v847 = vadd.f32 %v750, %v846
  %v848 = vpop.f32.mrb[0].mxu0
  %v849 = vpop.f32.mrb[0].mxu0
  %v850 = vadd.f32 %v753, %v849
  %v851 = vpop.f32.mrb[0].mxu0
  %852 = vmatprep.mubr.bf16.mxu0 0
  %853 = vmatmul.mubr.bf16.gmra.mrb[0].mxu0 %v578
  %v854 = vpop.f32.mrb[0].mxu0
  %v855 = vadd.f32 %v758, %v854
  %v856 = vpop.f32.mrb[0].mxu0
  %v857 = vpop.f32.mrb[0].mxu0
  %v858 = vadd.f32 %v761, %v857
  %v859 = vpop.f32.mrb[0].mxu0
  %860 = vmatprep.mubr.bf16.mxu0 0
  %861 = vmatmul.mubr.bf16.gmra.mrb[0].mxu0 %v581
  %v862 = vpop.f32.mrb[0].mxu0
  %v863 = vadd.f32 %v766, %v862
  %v864 = vpop.f32.mrb[0].mxu0
  %v865 = vpop.f32.mrb[0].mxu0
  %v866 = vadd.f32 %v769, %v865
  %v867 = vpop.f32.mrb[0].mxu0
  %868 = vmatprep.mubr.bf16.mxu0 0
  %869 = vmatmul.mubr.bf16.gmra.mrb[0].mxu0 %v584
  %v870 = vpop.f32.mrb[0].mxu0
  %v871 = vadd.f32 %v774, %v870
  %v872 = vpop.f32.mrb[0].mxu0
  %v873 = vpop.f32.mrb[0].mxu0
  %v874 = vadd.f32 %v777, %v873
  %v875 = vpop.f32.mrb[0].mxu0
  %876 = vdwg.mxu0
  %v877 = vld [vmem:[%s3] sm:$0xf]
  %v878 = vld [vmem:[%s3 + $0x4] sm:$0xf]
  %v879 = vld [vmem:[%s3 + $0x8] sm:$0xf]
  %v880 = vld [vmem:[%s3 + $0xc] sm:$0xf]
  %v881 = vld [vmem:[%s3 + $0x10] sm:$0xf]
  %v882 = vld [vmem:[%s3 + $0x14] sm:$0xf]
  %v883 = vld [vmem:[%s3 + $0x18] sm:$0xf]
  %v884 = vld [vmem:[%s3 + $0x1c] sm:$0xf]
  %v885 = vld [vmem:[%s3 + $0x20] sm:$0xf]
  %v886 = vld [vmem:[%s3 + $0x24] sm:$0xf]
  %v887 = vld [vmem:[%s3 + $0x28] sm:$0xf]
  %v888 = vld [vmem:[%s3 + $0x2c] sm:$0xf]
  %v889 = vld [vmem:[%s3 + $0x30] sm:$0xf]
  %v890 = vld [vmem:[%s3 + $0x34] sm:$0xf]
  %v891 = vld [vmem:[%s3 + $0x38] sm:$0xf]
  %v892 = vld [vmem:[%s3 + $0x3c] sm:$0xf]
  %v893 = vunpack.c.l.bf16 %v877
  %v894 = vunpack.c.l.bf16 %v878
  %v895 = vunpack.c.l.bf16 %v879
  %v896 = vunpack.c.l.bf16 %v880
  %v897 = vunpack.c.l.bf16 %v881
  %v898 = vunpack.c.l.bf16 %v882
  %v899 = vunpack.c.l.bf16 %v883
  %v900 = vunpack.c.l.bf16 %v884
  %v901 = vunpack.c.l.bf16 %v885
  %v902 = vunpack.c.l.bf16 %v886
  %v903 = vunpack.c.l.bf16 %v887
  %v904 = vunpack.c.l.bf16 %v888
  %v905 = vunpack.c.l.bf16 %v889
  %v906 = vunpack.c.l.bf16 %v890
  %v907 = vunpack.c.l.bf16 %v891
  %v908 = vunpack.c.l.bf16 %v892
  %v909 = vadd.f32 %v815, %v893
  %v910 = vadd.f32 %v818, %v894
  %v911 = vadd.f32 %v823, %v895
  %v912 = vadd.f32 %v826, %v896
  %v913 = vadd.f32 %v831, %v897
  %v914 = vadd.f32 %v834, %v898
  %v915 = vadd.f32 %v839, %v899
  %v916 = vadd.f32 %v842, %v900
  %v917 = vadd.f32 %v847, %v901
  %v918 = vadd.f32 %v850, %v902
  %v919 = vadd.f32 %v855, %v903
  %v920 = vadd.f32 %v858, %v904
  %v921 = vadd.f32 %v863, %v905
  %v922 = vadd.f32 %v866, %v906
  %v923 = vadd.f32 %v871, %v907
  %v924 = vadd.f32 %v874, %v908
  %v925 = vmax.f32 %v909, 0.0
  %v926 = vmax.f32 %v910, 0.0
  %v927 = vmax.f32 %v911, 0.0
  %v928 = vmax.f32 %v912, 0.0
  %v929 = vmax.f32 %v913, 0.0
  %v930 = vmax.f32 %v914, 0.0
  %v931 = vmax.f32 %v915, 0.0
  %v932 = vmax.f32 %v916, 0.0
  %v933 = vmax.f32 %v917, 0.0
  %v934 = vmax.f32 %v918, 0.0
  %v935 = vmax.f32 %v919, 0.0
  %v936 = vmax.f32 %v920, 0.0
  %v937 = vmax.f32 %v921, 0.0
  %v938 = vmax.f32 %v922, 0.0
  %v939 = vmax.f32 %v923, 0.0
  %v940 = vmax.f32 %v924, 0.0
  %v941 = vpack.c.bf16 %v926, %v925
  %v942 = vpack.c.bf16 %v928, %v927
  %v943 = vpack.c.bf16 %v930, %v929
  %v944 = vpack.c.bf16 %v932, %v931
  %v945 = vpack.c.bf16 %v934, %v933
  %v946 = vpack.c.bf16 %v936, %v935
  %v947 = vpack.c.bf16 %v938, %v937
  %v948 = vpack.c.bf16 %v940, %v939
  %v957 = vunpack.c.l.b16 %v941
  %v958 = vunpack.c.h.b16 %v941
  %v959 = vunpack.c.l.b16 %v942
  %v960 = vunpack.c.h.b16 %v942
  %v961 = vunpack.c.l.b16 %v943
  %v962 = vunpack.c.h.b16 %v943
  %v963 = vunpack.c.l.b16 %v944
  %v964 = vunpack.c.h.b16 %v944
  %v965 = vunpack.c.l.b16 %v945
  %v966 = vunpack.c.h.b16 %v945
  %v967 = vunpack.c.l.b16 %v946
  %v968 = vunpack.c.h.b16 %v946
  %v969 = vunpack.c.l.b16 %v947
  %v970 = vunpack.c.h.b16 %v947
  %v971 = vunpack.c.l.b16 %v948
  %v972 = vunpack.c.h.b16 %v948
  %v973 = vpack.c.b16 %v957, %v957
  %v974 = vpack.c.b16 %v958, %v958
  %v975 = vpack.c.b16 %v959, %v959
  %v976 = vpack.c.b16 %v960, %v960
  %v977 = vpack.c.b16 %v961, %v961
  %v978 = vpack.c.b16 %v962, %v962
  %v979 = vpack.c.b16 %v963, %v963
  %v980 = vpack.c.b16 %v964, %v964
  %v981 = vpack.c.b16 %v965, %v965
  %v982 = vpack.c.b16 %v966, %v966
  %v983 = vpack.c.b16 %v967, %v967
  %v984 = vpack.c.b16 %v968, %v968
  %v985 = vpack.c.b16 %v969, %v969
  %v986 = vpack.c.b16 %v970, %v970
  %v987 = vpack.c.b16 %v971, %v971
  %v988 = vpack.c.b16 %v972, %v972
  %vm1005 = vcmask 519168
  %1006 = vst.msk [vmem:[%s4] sm:$0xf] %vm1005, %v973
  %1007 = vst.msk [vmem:[%s4 + $0x4] sm:$0xf] %vm1005, %v974
  %1008 = vst.msk [vmem:[%s4 + $0x8] sm:$0xf] %vm1005, %v975
  %1009 = vst.msk [vmem:[%s4 + $0xc] sm:$0xf] %vm1005, %v976
  %1010 = vst.msk [vmem:[%s4 + $0x10] sm:$0xf] %vm1005, %v977
  %1011 = vst.msk [vmem:[%s4 + $0x14] sm:$0xf] %vm1005, %v978
  %1012 = vst.msk [vmem:[%s4 + $0x18] sm:$0xf] %vm1005, %v979
  %1013 = vst.msk [vmem:[%s4 + $0x1c] sm:$0xf] %vm1005, %v980
  %1014 = vst.msk [vmem:[%s4 + $0x20] sm:$0xf] %vm1005, %v981
  %1015 = vst.msk [vmem:[%s4 + $0x24] sm:$0xf] %vm1005, %v982
  %1016 = vst.msk [vmem:[%s4 + $0x28] sm:$0xf] %vm1005, %v983
  %1017 = vst.msk [vmem:[%s4 + $0x2c] sm:$0xf] %vm1005, %v984
  %1018 = vst.msk [vmem:[%s4 + $0x30] sm:$0xf] %vm1005, %v985
  %1019 = vst.msk [vmem:[%s4 + $0x34] sm:$0xf] %vm1005, %v986
  %1020 = vst.msk [vmem:[%s4 + $0x38] sm:$0xf] %vm1005, %v987
  %1021 = vst.msk [vmem:[%s4 + $0x3c] sm:$0xf] %vm1005, %v988
  // Predicated region
  $region18: #{image_encoder_forward.33} parent=0 // pred_check
    _
  $region19: #{image_encoder_forward.33} parent=0 // pred_check_branch
    %1023 = sbr.rel (0) target = $region21
  $region20: #{image_encoder_forward.33} parent=0 // pred_region
    _
  $region21: #{image_encoder_forward.33} parent=0 // pred_fallthru
    _
  // Predicated region
  $region22: #{image_encoder_forward.33} parent=0 // pred_check
    _
  $region23: #{image_encoder_forward.33} parent=0 // pred_check_branch
    %1025 = sbr.rel (0) target = $region25
  $region24: #{image_encoder_forward.33} parent=0 // pred_region
    _
  $region25: #{image_encoder_forward.33} parent=0 // pred_fallthru
    _

// kernel: image_encoder_forward.32
$region0: #{image_encoder_forward.32}
  #allocation0 [shape = 'u32[]', space=smem, size = 0x4, offset = 0x4, fixed_abs, tag = 'smem constant byte address 0x4 - core index']
  #allocation1 [shape = 'u32[144,128]{1,0:T(1,128)}', space=vmem, size = 0x12000, scoped, tag = 'internal scratch']
  %s0 = inlined_call_operand.vmem [shape: bf16[128,576], index: 0, kind: input, shape index: {}]
  %s1 = inlined_call_operand.vmem [shape: bf16[576,64], index: 1, kind: input, shape index: {}]
  %s2 = inlined_call_operand.vmem [shape: f32[1,64], index: 2, kind: input, shape index: {}]
  %s3 = inlined_call_operand.vmem [shape: bf16[128,64], index: 3, kind: output, shape index: {}]
  %s4 = sld [smem:[#allocation0]]
  $region22: #{image_encoder_forward.32} parent=0
    _
  %s6 = ssub.s32 1, %s4
  %s7 = scalar_select 0, %s6, %s4
  // Predicated region
  $region2: #{image_encoder_forward.32} parent=0 // pred_check
    _
  $region3: #{image_encoder_forward.32} parent=0 // pred_check_branch
    %9 = sbr.rel (0) target = $region5
  $region4: #{image_encoder_forward.32} parent=0 // pred_region
    _
  $region5: #{image_encoder_forward.32} parent=0 // pred_fallthru
    _
  // Predicated region
  $region6: #{image_encoder_forward.32} parent=0 // pred_check
    _
  $region7: #{image_encoder_forward.32} parent=0 // pred_check_branch
    %11 = sbr.rel (0) target = $region9
  $region8: #{image_encoder_forward.32} parent=0 // pred_region
    _
  $region9: #{image_encoder_forward.32} parent=0 // pred_fallthru
    _
  // Predicated region
  $region10: #{image_encoder_forward.32} parent=0 // pred_check
    _
  $region11: #{image_encoder_forward.32} parent=0 // pred_check_branch
    %13 = sbr.rel (0) target = $region13
  $region12: #{image_encoder_forward.32} parent=0 // pred_region
    _
  $region13: #{image_encoder_forward.32} parent=0 // pred_fallthru
    _
  %v15 = vld [vmem:[%s0] sm:$0xff]
  %v16 = vld [vmem:[%s0 + $0x8] sm:$0xff]
  %v17 = vld [vmem:[%s0 + $0x10] sm:$0xf]
  %v18 = vld [vmem:[%s0 + $0x14] sm:$0xff]
  %v19 = vld [vmem:[%s0 + $0x1c] sm:$0xff]
  %v20 = vld [vmem:[%s0 + $0x24] sm:$0xf]
  %v21 = vld [vmem:[%s0 + $0x28] sm:$0xff]
  %v22 = vld [vmem:[%s0 + $0x30] sm:$0xff]
  %v23 = vld [vmem:[%s0 + $0x38] sm:$0xf]
  %v24 = vld [vmem:[%s0 + $0x3c] sm:$0xff]
  %v25 = vld [vmem:[%s0 + $0x44] sm:$0xff]
  %v26 = vld [vmem:[%s0 + $0x4c] sm:$0xf]
  %v27 = vld [vmem:[%s0 + $0x50] sm:$0xff]
  %v28 = vld [vmem:[%s0 + $0x58] sm:$0xff]
  %v29 = vld [vmem:[%s0 + $0x60] sm:$0xf]
  %v30 = vld [vmem:[%s0 + $0x64] sm:$0xff]
  %v31 = vld [vmem:[%s0 + $0x6c] sm:$0xff]
  %v32 = vld [vmem:[%s0 + $0x74] sm:$0xf]
  %v33 = vld [vmem:[%s0 + $0x78] sm:$0xff]
  %v34 = vld [vmem:[%s0 + $0x80] sm:$0xff]
  %v35 = vld [vmem:[%s0 + $0x88] sm:$0xf]
  %v36 = vld [vmem:[%s0 + $0x8c] sm:$0xff]
  %v37 = vld [vmem:[%s0 + $0x94] sm:$0xff]
  %v38 = vld [vmem:[%s0 + $0x9c] sm:$0xf]
  %v39 = vld [vmem:[%s0 + $0xa0] sm:$0xff]
  %v40 = vld [vmem:[%s0 + $0xa8] sm:$0xff]
  %v41 = vld [vmem:[%s0 + $0xb0] sm:$0xf]
  %v42 = vld [vmem:[%s0 + $0xb4] sm:$0xff]
  %v43 = vld [vmem:[%s0 + $0xbc] sm:$0xff]
  %v44 = vld [vmem:[%s0 + $0xc4] sm:$0xf]
  %v45 = vld [vmem:[%s0 + $0xc8] sm:$0xff]
  %v46 = vld [vmem:[%s0 + $0xd0] sm:$0xff]
  %v47 = vld [vmem:[%s0 + $0xd8] sm:$0xf]
  %v48 = vld [vmem:[%s0 + $0xdc] sm:$0xff]
  %v49 = vld [vmem:[%s0 + $0xe4] sm:$0xff]
  %v50 = vld [vmem:[%s0 + $0xec] sm:$0xf]
  %v51 = vld [vmem:[%s0 + $0xf0] sm:$0xff]
  %v52 = vld [vmem:[%s0 + $0xf8] sm:$0xff]
  %v53 = vld [vmem:[%s0 + $0x100] sm:$0xf]
  %v54 = vld [vmem:[%s0 + $0x104] sm:$0xff]
  %v55 = vld [vmem:[%s0 + $0x10c] sm:$0xff]
  %v56 = vld [vmem:[%s0 + $0x114] sm:$0xf]
  %v57 = vld [vmem:[%s0 + $0x118] sm:$0xff]
  %v58 = vld [vmem:[%s0 + $0x120] sm:$0xff]
  %v59 = vld [vmem:[%s0 + $0x128] sm:$0xf]
  %v60 = vld [vmem:[%s0 + $0x12c] sm:$0xff]
  %v61 = vld [vmem:[%s0 + $0x134] sm:$0xff]
  %v62 = vld [vmem:[%s0 + $0x13c] sm:$0xf]
  %v63 = vld [vmem:[%s1] sm:$0xf]
  %v64 = vld [vmem:[%s1 + $0x4] sm:$0xf]
  %v65 = vld [vmem:[%s1 + $0x8] sm:$0xf]
  %v66 = vld [vmem:[%s1 + $0xc] sm:$0xf]
  %v67 = vld [vmem:[%s1 + $0x10] sm:$0xf]
  %v68 = vld [vmem:[%s1 + $0x14] sm:$0xf]
  %v69 = vld [vmem:[%s1 + $0x18] sm:$0xf]
  %v70 = vld [vmem:[%s1 + $0x1c] sm:$0xf]
  %v71 = vld [vmem:[%s1 + $0x20] sm:$0xf]
  %v72 = vld [vmem:[%s1 + $0x24] sm:$0xf]
  %v73 = vld [vmem:[%s1 + $0x28] sm:$0xf]
  %v74 = vld [vmem:[%s1 + $0x2c] sm:$0xf]
  %v75 = vld [vmem:[%s1 + $0x30] sm:$0xf]
  %v76 = vld [vmem:[%s1 + $0x34] sm:$0xf]
  %v77 = vld [vmem:[%s1 + $0x38] sm:$0xf]
  %v78 = vld [vmem:[%s1 + $0x3c] sm:$0xf]
  %v79 = vld [vmem:[%s1 + $0x40] sm:$0xf]
  %v80 = vld [vmem:[%s1 + $0x44] sm:$0xf]
  %v81 = vld [vmem:[%s1 + $0x48] sm:$0xf]
  %v82 = vld [vmem:[%s1 + $0x4c] sm:$0xf]
  %v83 = vld [vmem:[%s1 + $0x50] sm:$0xf]
  %v84 = vld [vmem:[%s1 + $0x54] sm:$0xf]
  %v85 = vld [vmem:[%s1 + $0x58] sm:$0xf]
  %v86 = vld [vmem:[%s1 + $0x5c] sm:$0xf]
  %v87 = vld [vmem:[%s1 + $0x60] sm:$0xf]
  %v88 = vld [vmem:[%s1 + $0x64] sm:$0xf]
  %v89 = vld [vmem:[%s1 + $0x68] sm:$0xf]
  %v90 = vld [vmem:[%s1 + $0x6c] sm:$0xf]
  %v91 = vld [vmem:[%s1 + $0x70] sm:$0xf]
  %v92 = vld [vmem:[%s1 + $0x74] sm:$0xf]
  %v93 = vld [vmem:[%s1 + $0x78] sm:$0xf]
  %v94 = vld [vmem:[%s1 + $0x7c] sm:$0xf]
  %v95 = vld [vmem:[%s1 + $0x80] sm:$0xf]
  %v96 = vld [vmem:[%s1 + $0x84] sm:$0xf]
  %v97 = vld [vmem:[%s1 + $0x88] sm:$0xf]
  %v98 = vld [vmem:[%s1 + $0x8c] sm:$0xf]
  %v99 = vld [vmem:[%s1 + $0x90] sm:$0xf]
  %v100 = vld [vmem:[%s1 + $0x94] sm:$0xf]
  %v101 = vld [vmem:[%s1 + $0x98] sm:$0xf]
  %v102 = vld [vmem:[%s1 + $0x9c] sm:$0xf]
  %v103 = vld [vmem:[%s1 + $0xa0] sm:$0xf]
  %v104 = vld [vmem:[%s1 + $0xa4] sm:$0xf]
  %v105 = vld [vmem:[%s1 + $0xa8] sm:$0xf]
  %v106 = vld [vmem:[%s1 + $0xac] sm:$0xf]
  %v107 = vld [vmem:[%s1 + $0xb0] sm:$0xf]
  %v108 = vld [vmem:[%s1 + $0xb4] sm:$0xf]
  %v109 = vld [vmem:[%s1 + $0xb8] sm:$0xf]
  %v110 = vld [vmem:[%s1 + $0xbc] sm:$0xf]
  %v111 = vld [vmem:[%s1 + $0xc0] sm:$0xf]
  %v112 = vld [vmem:[%s1 + $0xc4] sm:$0xf]
  %v113 = vld [vmem:[%s1 + $0xc8] sm:$0xf]
  %v114 = vld [vmem:[%s1 + $0xcc] sm:$0xf]
  %v115 = vld [vmem:[%s1 + $0xd0] sm:$0xf]
  %v116 = vld [vmem:[%s1 + $0xd4] sm:$0xf]
  %v117 = vld [vmem:[%s1 + $0xd8] sm:$0xf]
  %v118 = vld [vmem:[%s1 + $0xdc] sm:$0xf]
  %v119 = vld [vmem:[%s1 + $0xe0] sm:$0xf]
  %v120 = vld [vmem:[%s1 + $0xe4] sm:$0xf]
  %v121 = vld [vmem:[%s1 + $0xe8] sm:$0xf]
  %v122 = vld [vmem:[%s1 + $0xec] sm:$0xf]
  %v123 = vld [vmem:[%s1 + $0xf0] sm:$0xf]
  %v124 = vld [vmem:[%s1 + $0xf4] sm:$0xf]
  %v125 = vld [vmem:[%s1 + $0xf8] sm:$0xf]
  %v126 = vld [vmem:[%s1 + $0xfc] sm:$0xf]
  %v127 = vld [vmem:[%s1 + $0x100] sm:$0xf]
  %v128 = vld [vmem:[%s1 + $0x104] sm:$0xf]
  %v129 = vld [vmem:[%s1 + $0x108] sm:$0xf]
  %v130 = vld [vmem:[%s1 + $0x10c] sm:$0xf]
  %v131 = vld [vmem:[%s1 + $0x110] sm:$0xf]
  %v132 = vld [vmem:[%s1 + $0x114] sm:$0xf]
  %v133 = vld [vmem:[%s1 + $0x118] sm:$0xf]
  %v134 = vld [vmem:[%s1 + $0x11c] sm:$0xf]
  %v135 = vld [vmem:[%s2] sm:$0x1]
  %v137 = vlaneseq
  %v138 = vshrl.u32 %v137, 7
  %v139 = vsub.s32 0, %v138
  %v140 = vrot.slane %v135, %v139
  %v190 = vunpack.c.l.b16 %v15
  %v191 = vunpack.c.h.b16 %v15
  %v192 = vunpack.c.l.b16 %v16
  %v193 = vunpack.c.h.b16 %v16
  %v194 = vunpack.c.l.b16 %v17
  %v195 = vunpack.c.l.b16 %v18
  %v196 = vunpack.c.h.b16 %v18
  %v197 = vunpack.c.l.b16 %v19
  %v198 = vunpack.c.h.b16 %v19
  %v199 = vunpack.c.l.b16 %v20
  %v200 = vunpack.c.l.b16 %v21
  %v201 = vunpack.c.h.b16 %v21
  %v202 = vunpack.c.l.b16 %v22
  %v203 = vunpack.c.h.b16 %v22
  %v204 = vunpack.c.l.b16 %v23
  %v205 = vunpack.c.l.b16 %v24
  %v206 = vunpack.c.h.b16 %v24
  %v207 = vunpack.c.l.b16 %v25
  %v208 = vunpack.c.h.b16 %v25
  %v209 = vunpack.c.l.b16 %v26
  %v210 = vunpack.c.l.b16 %v27
  %v211 = vunpack.c.h.b16 %v27
  %v212 = vunpack.c.l.b16 %v28
  %v213 = vunpack.c.h.b16 %v28
  %v214 = vunpack.c.l.b16 %v29
  %v215 = vunpack.c.l.b16 %v30
  %v216 = vunpack.c.h.b16 %v30
  %v217 = vunpack.c.l.b16 %v31
  %v218 = vunpack.c.h.b16 %v31
  %v219 = vunpack.c.l.b16 %v32
  %v220 = vunpack.c.l.b16 %v33
  %v221 = vunpack.c.h.b16 %v33
  %v222 = vunpack.c.l.b16 %v34
  %v223 = vunpack.c.h.b16 %v34
  %v224 = vunpack.c.l.b16 %v35
  %v225 = vunpack.c.l.b16 %v36
  %v226 = vunpack.c.h.b16 %v36
  %v227 = vunpack.c.l.b16 %v37
  %v228 = vunpack.c.h.b16 %v37
  %v229 = vunpack.c.l.b16 %v38
  %v230 = vunpack.c.l.b16 %v39
  %v231 = vunpack.c.h.b16 %v39
  %v232 = vunpack.c.l.b16 %v40
  %v233 = vunpack.c.h.b16 %v40
  %v234 = vunpack.c.l.b16 %v41
  %v235 = vunpack.c.l.b16 %v42
  %v236 = vunpack.c.h.b16 %v42
  %v237 = vunpack.c.l.b16 %v43
  %v238 = vunpack.c.h.b16 %v43
  %v239 = vunpack.c.l.b16 %v44
  %v240 = vunpack.c.l.b16 %v45
  %v241 = vunpack.c.h.b16 %v45
  %v242 = vunpack.c.l.b16 %v46
  %v243 = vunpack.c.h.b16 %v46
  %v244 = vunpack.c.l.b16 %v47
  %v245 = vunpack.c.l.b16 %v48
  %v246 = vunpack.c.h.b16 %v48
  %v247 = vunpack.c.l.b16 %v49
  %v248 = vunpack.c.h.b16 %v49
  %v249 = vunpack.c.l.b16 %v50
  %v250 = vunpack.c.l.b16 %v51
  %v251 = vunpack.c.h.b16 %v51
  %v252 = vunpack.c.l.b16 %v52
  %v253 = vunpack.c.h.b16 %v52
  %v254 = vunpack.c.l.b16 %v53
  %v255 = vunpack.c.l.b16 %v54
  %v256 = vunpack.c.h.b16 %v54
  %v257 = vunpack.c.l.b16 %v55
  %v258 = vunpack.c.h.b16 %v55
  %v259 = vunpack.c.l.b16 %v56
  %v260 = vunpack.c.l.b16 %v57
  %v261 = vunpack.c.h.b16 %v57
  %v262 = vunpack.c.l.b16 %v58
  %v263 = vunpack.c.h.b16 %v58
  %v264 = vunpack.c.l.b16 %v59
  %v265 = vunpack.c.l.b16 %v60
  %v266 = vunpack.c.h.b16 %v60
  %v267 = vunpack.c.l.b16 %v61
  %v268 = vunpack.c.h.b16 %v61
  %v269 = vunpack.c.l.b16 %v62
  %v270 = vpack.c.b16 %v195, %v190
  %v271 = vpack.c.b16 %v196, %v191
  %v272 = vpack.c.b16 %v197, %v192
  %v273 = vpack.c.b16 %v198, %v193
  %v274 = vpack.c.b16 %v199, %v194
  %v275 = vpack.c.b16 %v205, %v200
  %v276 = vpack.c.b16 %v206, %v201
  %v277 = vpack.c.b16 %v207, %v202
  %v278 = vpack.c.b16 %v208, %v203
  %v279 = vpack.c.b16 %v209, %v204
  %v280 = vpack.c.b16 %v215, %v210
  %v281 = vpack.c.b16 %v216, %v211
  %v282 = vpack.c.b16 %v217, %v212
  %v283 = vpack.c.b16 %v218, %v213
  %v284 = vpack.c.b16 %v219, %v214
  %v285 = vpack.c.b16 %v225, %v220
  %v286 = vpack.c.b16 %v226, %v221
  %v287 = vpack.c.b16 %v227, %v222
  %v288 = vpack.c.b16 %v228, %v223
  %v289 = vpack.c.b16 %v229, %v224
  %v290 = vpack.c.b16 %v235, %v230
  %v291 = vpack.c.b16 %v236, %v231
  %v292 = vpack.c.b16 %v237, %v232
  %v293 = vpack.c.b16 %v238, %v233
  %v294 = vpack.c.b16 %v239, %v234
  %v295 = vpack.c.b16 %v245, %v240
  %v296 = vpack.c.b16 %v246, %v241
  %v297 = vpack.c.b16 %v247, %v242
  %v298 = vpack.c.b16 %v248, %v243
  %v299 = vpack.c.b16 %v249, %v244
  %v300 = vpack.c.b16 %v255, %v250
  %v301 = vpack.c.b16 %v256, %v251
  %v302 = vpack.c.b16 %v257, %v252
  %v303 = vpack.c.b16 %v258, %v253
  %v304 = vpack.c.b16 %v259, %v254
  %v305 = vpack.c.b16 %v265, %v260
  %v306 = vpack.c.b16 %v266, %v261
  %v307 = vpack.c.b16 %v267, %v262
  %v308 = vpack.c.b16 %v268, %v263
  %v309 = vpack.c.b16 %v269, %v264
  %v414 = vunpack.c.l.b16 %v63
  %v415 = vunpack.c.l.b16 %v64
  %v416 = vunpack.c.l.b16 %v65
  %v417 = vunpack.c.l.b16 %v66
  %v418 = vunpack.c.l.b16 %v67
  %v419 = vunpack.c.l.b16 %v68
  %v420 = vunpack.c.l.b16 %v69
  %v421 = vunpack.c.l.b16 %v70
  %v422 = vunpack.c.l.b16 %v71
  %v423 = vunpack.c.l.b16 %v72
  %v424 = vunpack.c.l.b16 %v73
  %v425 = vunpack.c.l.b16 %v74
  %v426 = vunpack.c.l.b16 %v75
  %v427 = vunpack.c.l.b16 %v76
  %v428 = vunpack.c.l.b16 %v77
  %v429 = vunpack.c.l.b16 %v78
  %v430 = vunpack.c.l.b16 %v79
  %v431 = vunpack.c.l.b16 %v80
  %v432 = vunpack.c.l.b16 %v81
  %v433 = vunpack.c.l.b16 %v82
  %v434 = vunpack.c.l.b16 %v83
  %v435 = vunpack.c.l.b16 %v84
  %v436 = vunpack.c.l.b16 %v85
  %v437 = vunpack.c.l.b16 %v86
  %v438 = vunpack.c.l.b16 %v87
  %v439 = vunpack.c.l.b16 %v88
  %v440 = vunpack.c.l.b16 %v89
  %v441 = vunpack.c.l.b16 %v90
  %v442 = vunpack.c.l.b16 %v91
  %v443 = vunpack.c.l.b16 %v92
  %v444 = vunpack.c.l.b16 %v93
  %v445 = vunpack.c.l.b16 %v94
  %v446 = vunpack.c.l.b16 %v95
  %v447 = vunpack.c.l.b16 %v96
  %v448 = vunpack.c.l.b16 %v97
  %v449 = vunpack.c.l.b16 %v98
  %v450 = vunpack.c.l.b16 %v99
  %v451 = vunpack.c.l.b16 %v100
  %v452 = vunpack.c.l.b16 %v101
  %v453 = vunpack.c.l.b16 %v102
  %v454 = vunpack.c.l.b16 %v103
  %v455 = vunpack.c.l.b16 %v104
  %v456 = vunpack.c.l.b16 %v105
  %v457 = vunpack.c.l.b16 %v106
  %v458 = vunpack.c.l.b16 %v107
  %v459 = vunpack.c.l.b16 %v108
  %v460 = vunpack.c.l.b16 %v109
  %v461 = vunpack.c.l.b16 %v110
  %v462 = vunpack.c.l.b16 %v111
  %v463 = vunpack.c.l.b16 %v112
  %v464 = vunpack.c.l.b16 %v113
  %v465 = vunpack.c.l.b16 %v114
  %v466 = vunpack.c.l.b16 %v115
  %v467 = vunpack.c.l.b16 %v116
  %v468 = vunpack.c.l.b16 %v117
  %v469 = vunpack.c.l.b16 %v118
  %v470 = vunpack.c.l.b16 %v119
  %v471 = vunpack.c.l.b16 %v120
  %v472 = vunpack.c.l.b16 %v121
  %v473 = vunpack.c.l.b16 %v122
  %v474 = vunpack.c.l.b16 %v123
  %v475 = vunpack.c.l.b16 %v124
  %v476 = vunpack.c.l.b16 %v125
  %v477 = vunpack.c.l.b16 %v126
  %v478 = vunpack.c.l.b16 %v127
  %v479 = vunpack.c.l.b16 %v128
  %v480 = vunpack.c.l.b16 %v129
  %v481 = vunpack.c.l.b16 %v130
  %v482 = vunpack.c.l.b16 %v131
  %v483 = vunpack.c.l.b16 %v132
  %v484 = vunpack.c.l.b16 %v133
  %v485 = vunpack.c.l.b16 %v134
  %v486 = vpack.c.b16 %v415, %v414
  %v487 = vpack.c.b16 %v417, %v416
  %v488 = vpack.c.b16 %v419, %v418
  %v489 = vpack.c.b16 %v421, %v420
  %v490 = vpack.c.b16 %v423, %v422
  %v491 = vpack.c.b16 %v425, %v424
  %v492 = vpack.c.b16 %v427, %v426
  %v493 = vpack.c.b16 %v429, %v428
  %v494 = vpack.c.b16 %v431, %v430
  %v495 = vpack.c.b16 %v433, %v432
  %v496 = vpack.c.b16 %v435, %v434
  %v497 = vpack.c.b16 %v437, %v436
  %v498 = vpack.c.b16 %v439, %v438
  %v499 = vpack.c.b16 %v441, %v440
  %v500 = vpack.c.b16 %v443, %v442
  %v501 = vpack.c.b16 %v445, %v444
  %v502 = vpack.c.b16 %v447, %v446
  %v503 = vpack.c.b16 %v449, %v448
  %v504 = vpack.c.b16 %v451, %v450
  %v505 = vpack.c.b16 %v453, %v452
  %v506 = vpack.c.b16 %v455, %v454
  %v507 = vpack.c.b16 %v457, %v456
  %v508 = vpack.c.b16 %v459, %v458
  %v509 = vpack.c.b16 %v461, %v460
  %v510 = vpack.c.b16 %v463, %v462
  %v511 = vpack.c.b16 %v465, %v464
  %v512 = vpack.c.b16 %v467, %v466
  %v513 = vpack.c.b16 %v469, %v468
  %v514 = vpack.c.b16 %v471, %v470
  %v515 = vpack.c.b16 %v473, %v472
  %v516 = vpack.c.b16 %v475, %v474
  %v517 = vpack.c.b16 %v477, %v476
  %v518 = vpack.c.b16 %v479, %v478
  %v519 = vpack.c.b16 %v481, %v480
  %v520 = vpack.c.b16 %v483, %v482
  %v521 = vpack.c.b16 %v485, %v484
  %vm558 = vcmask 523264
  %v560 = vsel %vm558, %v274, 0
  %v563 = vsel %vm558, %v279, 0
  %v566 = vsel %vm558, %v284, 0
  %v569 = vsel %vm558, %v289, 0
  %v572 = vsel %vm558, %v294, 0
  %v575 = vsel %vm558, %v299, 0
  %v578 = vsel %vm558, %v304, 0
  %v581 = vsel %vm558, %v309, 0
  %583 = vmatprep.subr.bf16.mxu0 0
  %584 = vmatpush1.bf16.msra.mxu0 %v486
  %585 = vmatprep.subr.bf16.mxu0 0
  %586 = vmatpush1.bf16.msra.mxu0 %v487
  %587 = vmatprep.subr.bf16.mxu0 0
  %588 = vmatpush1.bf16.msra.mxu0 %v488
  %589 = vmatprep.subr.bf16.mxu0 0
  %590 = vmatpush1.bf16.msra.mxu0 %v489
  %591 = vmatprep.subr.bf16.mxu0 0
  %592 = vmatpush1.bf16.msra.mxu0 %v490
  %593 = vmatprep.subr.bf16.mxu0 0
  %594 = vmatpush1.bf16.msra.mxu0 %v491
  %595 = vmatprep.subr.bf16.mxu0 0
  %596 = vmatpush1.bf16.msra.mxu0 %v492
  %597 = vmatprep.subr.bf16.mxu0 0
  %598 = vmatpush1.bf16.msra.mxu0 %v493
  %599 = vmatprep.subr.bf16.mxu0 0
  %600 = vmatpush1.bf16.msra.mxu0 %v494
  %601 = vmatprep.subr.bf16.mxu0 0
  %602 = vmatpush1.bf16.msra.mxu0 %v495
  %603 = vmatprep.subr.bf16.mxu0 0
  %604 = vmatpush1.bf16.msra.mxu0 %v496
  %605 = vmatprep.subr.bf16.mxu0 0
  %606 = vmatpush1.bf16.msra.mxu0 %v497
  %607 = vmatprep.subr.bf16.mxu0 0
  %608 = vmatpush1.bf16.msra.mxu0 %v498
  %609 = vmatprep.subr.bf16.mxu0 0
  %610 = vmatpush1.bf16.msra.mxu0 %v499
  %611 = vmatprep.subr.bf16.mxu0 0
  %612 = vmatpush1.bf16.msra.mxu0 %v500
  %613 = vmatprep.subr.bf16.mxu0 0
  %614 = vmatpush1.bf16.msra.mxu0 %v501
  %615 = vmatprep.mubr.bf16.mxu0 %v271
  %616 = vmatmul.mubr.bf16.gmra.mrb[0].mxu0 %v270
  %v617 = vpop.f32.mrb[0].mxu0
  %v618 = vadd.f32 %v140, %v617
  %v619 = vpop.f32.mrb[0].mxu0
  %v620 = vpop.f32.mrb[0].mxu0
  %v621 = vadd.f32 %v140, %v620
  %v622 = vpop.f32.mrb[0].mxu0
  %623 = vmatprep.mubr.bf16.mxu0 %v276
  %624 = vmatmul.mubr.bf16.gmra.mrb[0].mxu0 %v275
  %v625 = vpop.f32.mrb[0].mxu0
  %v626 = vadd.f32 %v140, %v625
  %v627 = vpop.f32.mrb[0].mxu0
  %v628 = vpop.f32.mrb[0].mxu0
  %v629 = vadd.f32 %v140, %v628
  %v630 = vpop.f32.mrb[0].mxu0
  %631 = vmatprep.mubr.bf16.mxu0 %v281
  %632 = vmatmul.mubr.bf16.gmra.mrb[0].mxu0 %v280
  %v633 = vpop.f32.mrb[0].mxu0
  %v634 = vadd.f32 %v140, %v633
  %v635 = vpop.f32.mrb[0].mxu0
  %v636 = vpop.f32.mrb[0].mxu0
  %v637 = vadd.f32 %v140, %v636
  %v638 = vpop.f32.mrb[0].mxu0
  %639 = vmatprep.mubr.bf16.mxu0 %v286
  %640 = vmatmul.mubr.bf16.gmra.mrb[0].mxu0 %v285
  %v641 = vpop.f32.mrb[0].mxu0
  %v642 = vadd.f32 %v140, %v641
  %v643 = vpop.f32.mrb[0].mxu0
  %v644 = vpop.f32.mrb[0].mxu0
  %v645 = vadd.f32 %v140, %v644
  %v646 = vpop.f32.mrb[0].mxu0
  %647 = vmatprep.mubr.bf16.mxu0 %v291
  %648 = vmatmul.mubr.bf16.gmra.mrb[0].mxu0 %v290
  %v649 = vpop.f32.mrb[0].mxu0
  %v650 = vadd.f32 %v140, %v649
  %v651 = vpop.f32.mrb[0].mxu0
  %v652 = vpop.f32.mrb[0].mxu0
  %v653 = vadd.f32 %v140, %v652
  %v654 = vpop.f32.mrb[0].mxu0
  %655 = vmatprep.mubr.bf16.mxu0 %v296
  %656 = vmatmul.mubr.bf16.gmra.mrb[0].mxu0 %v295
  %v657 = vpop.f32.mrb[0].mxu0
  %v658 = vadd.f32 %v140, %v657
  %v659 = vpop.f32.mrb[0].mxu0
  %v660 = vpop.f32.mrb[0].mxu0
  %v661 = vadd.f32 %v140, %v660
  %v662 = vpop.f32.mrb[0].mxu0
  %663 = vmatprep.mubr.bf16.mxu0 %v301
  %664 = vmatmul.mubr.bf16.gmra.mrb[0].mxu0 %v300
  %v665 = vpop.f32.mrb[0].mxu0
  %v666 = vadd.f32 %v140, %v665
  %v667 = vpop.f32.mrb[0].mxu0
  %v668 = vpop.f32.mrb[0].mxu0
  %v669 = vadd.f32 %v140, %v668
  %v670 = vpop.f32.mrb[0].mxu0
  %671 = vmatprep.mubr.bf16.mxu0 %v306
  %672 = vmatmul.mubr.bf16.gmra.mrb[0].mxu0 %v305
  %v673 = vpop.f32.mrb[0].mxu0
  %v674 = vadd.f32 %v140, %v673
  %v675 = vpop.f32.mrb[0].mxu0
  %v676 = vpop.f32.mrb[0].mxu0
  %v677 = vadd.f32 %v140, %v676
  %v678 = vpop.f32.mrb[0].mxu0
  %679 = vdwg.mxu0
  %680 = vmatprep.subr.bf16.mxu0 0
  %681 = vmatpush1.bf16.msra.mxu0 %v502
  %682 = vmatprep.subr.bf16.mxu0 0
  %683 = vmatpush1.bf16.msra.mxu0 %v503
  %684 = vmatprep.subr.bf16.mxu0 0
  %685 = vmatpush1.bf16.msra.mxu0 %v504
  %686 = vmatprep.subr.bf16.mxu0 0
  %687 = vmatpush1.bf16.msra.mxu0 %v505
  %688 = vmatprep.subr.bf16.mxu0 0
  %689 = vmatpush1.bf16.msra.mxu0 %v506
  %690 = vmatprep.subr.bf16.mxu0 0
  %691 = vmatpush1.bf16.msra.mxu0 %v507
  %692 = vmatprep.subr.bf16.mxu0 0
  %693 = vmatpush1.bf16.msra.mxu0 %v508
  %694 = vmatprep.subr.bf16.mxu0 0
  %695 = vmatpush1.bf16.msra.mxu0 %v509
  %696 = vmatprep.subr.bf16.mxu0 0
  %697 = vmatpush1.bf16.msra.mxu0 %v510
  %698 = vmatprep.subr.bf16.mxu0 0
  %699 = vmatpush1.bf16.msra.mxu0 %v511
  %700 = vmatprep.subr.bf16.mxu0 0
  %701 = vmatpush1.bf16.msra.mxu0 %v512
  %702 = vmatprep.subr.bf16.mxu0 0
  %703 = vmatpush1.bf16.msra.mxu0 %v513
  %704 = vmatprep.subr.bf16.mxu0 0
  %705 = vmatpush1.bf16.msra.mxu0 %v514
  %706 = vmatprep.subr.bf16.mxu0 0
  %707 = vmatpush1.bf16.msra.mxu0 %v515
  %708 = vmatprep.subr.bf16.mxu0 0
  %709 = vmatpush1.bf16.msra.mxu0 %v516
  %710 = vmatprep.subr.bf16.mxu0 0
  %711 = vmatpush1.bf16.msra.mxu0 %v517
  %712 = vmatprep.mubr.bf16.mxu0 %v273
  %713 = vmatmul.mubr.bf16.gmra.mrb[0].mxu0 %v272
  %v714 = vpop.f32.mrb[0].mxu0
  %v715 = vadd.f32 %v618, %v714
  %v716 = vpop.f32.mrb[0].mxu0
  %v717 = vpop.f32.mrb[0].mxu0
  %v718 = vadd.f32 %v621, %v717
  %v719 = vpop.f32.mrb[0].mxu0
  %720 = vmatprep.mubr.bf16.mxu0 %v278
  %721 = vmatmul.mubr.bf16.gmra.mrb[0].mxu0 %v277
  %v722 = vpop.f32.mrb[0].mxu0
  %v723 = vadd.f32 %v626, %v722
  %v724 = vpop.f32.mrb[0].mxu0
  %v725 = vpop.f32.mrb[0].mxu0
  %v726 = vadd.f32 %v629, %v725
  %v727 = vpop.f32.mrb[0].mxu0
  %728 = vmatprep.mubr.bf16.mxu0 %v283
  %729 = vmatmul.mubr.bf16.gmra.mrb[0].mxu0 %v282
  %v730 = vpop.f32.mrb[0].mxu0
  %v731 = vadd.f32 %v634, %v730
  %v732 = vpop.f32.mrb[0].mxu0
  %v733 = vpop.f32.mrb[0].mxu0
  %v734 = vadd.f32 %v637, %v733
  %v735 = vpop.f32.mrb[0].mxu0
  %736 = vmatprep.mubr.bf16.mxu0 %v288
  %737 = vmatmul.mubr.bf16.gmra.mrb[0].mxu0 %v287
  %v738 = vpop.f32.mrb[0].mxu0
  %v739 = vadd.f32 %v642, %v738
  %v740 = vpop.f32.mrb[0].mxu0
  %v741 = vpop.f32.mrb[0].mxu0
  %v742 = vadd.f32 %v645, %v741
  %v743 = vpop.f32.mrb[0].mxu0
  %744 = vmatprep.mubr.bf16.mxu0 %v293
  %745 = vmatmul.mubr.bf16.gmra.mrb[0].mxu0 %v292
  %v746 = vpop.f32.mrb[0].mxu0
  %v747 = vadd.f32 %v650, %v746
  %v748 = vpop.f32.mrb[0].mxu0
  %v749 = vpop.f32.mrb[0].mxu0
  %v750 = vadd.f32 %v653, %v749
  %v751 = vpop.f32.mrb[0].mxu0
  %752 = vmatprep.mubr.bf16.mxu0 %v298
  %753 = vmatmul.mubr.bf16.gmra.mrb[0].mxu0 %v297
  %v754 = vpop.f32.mrb[0].mxu0
  %v755 = vadd.f32 %v658, %v754
  %v756 = vpop.f32.mrb[0].mxu0
  %v757 = vpop.f32.mrb[0].mxu0
  %v758 = vadd.f32 %v661, %v757
  %v759 = vpop.f32.mrb[0].mxu0
  %760 = vmatprep.mubr.bf16.mxu0 %v303
  %761 = vmatmul.mubr.bf16.gmra.mrb[0].mxu0 %v302
  %v762 = vpop.f32.mrb[0].mxu0
  %v763 = vadd.f32 %v666, %v762
  %v764 = vpop.f32.mrb[0].mxu0
  %v765 = vpop.f32.mrb[0].mxu0
  %v766 = vadd.f32 %v669, %v765
  %v767 = vpop.f32.mrb[0].mxu0
  %768 = vmatprep.mubr.bf16.mxu0 %v308
  %769 = vmatmul.mubr.bf16.gmra.mrb[0].mxu0 %v307
  %v770 = vpop.f32.mrb[0].mxu0
  %v771 = vadd.f32 %v674, %v770
  %v772 = vpop.f32.mrb[0].mxu0
  %v773 = vpop.f32.mrb[0].mxu0
  %v774 = vadd.f32 %v677, %v773
  %v775 = vpop.f32.mrb[0].mxu0
  %776 = vdwg.mxu0
  %777 = vmatprep.subr.bf16.mxu0 0
  %778 = vmatpush1.bf16.msra.mxu0 %v518
  %779 = vmatprep.subr.bf16.mxu0 0
  %780 = vmatpush1.bf16.msra.mxu0 %v519
  %781 = vmatprep.subr.bf16.mxu0 0
  %782 = vmatpush1.bf16.msra.mxu0 %v520
  %783 = vmatprep.subr.bf16.mxu0 0
  %784 = vmatpush1.bf16.msra.mxu0 %v521
  %785 = vmatprep.subr.bf16.mxu0 0
  %786 = vmatpush1.bf16.msra.mxu0 0
  %787 = vmatprep.subr.bf16.mxu0 0
  %788 = vmatpush1.bf16.msra.mxu0 0
  %789 = vmatprep.subr.bf16.mxu0 0
  %790 = vmatpush1.bf16.msra.mxu0 0
  %791 = vmatprep.subr.bf16.mxu0 0
  %792 = vmatpush1.bf16.msra.mxu0 0
  %793 = vmatprep.subr.bf16.mxu0 0
  %794 = vmatpush1.bf16.msra.mxu0 0
  %795 = vmatprep.subr.bf16.mxu0 0
  %796 = vmatpush1.bf16.msra.mxu0 0
  %797 = vmatprep.subr.bf16.mxu0 0
  %798 = vmatpush1.bf16.msra.mxu0 0
  %799 = vmatprep.subr.bf16.mxu0 0
  %800 = vmatpush1.bf16.msra.mxu0 0
  %801 = vmatprep.subr.bf16.mxu0 0
  %802 = vmatpush1.bf16.msra.mxu0 0
  %803 = vmatprep.subr.bf16.mxu0 0
  %804 = vmatpush1.bf16.msra.mxu0 0
  %805 = vmatprep.subr.bf16.mxu0 0
  %806 = vmatpush1.bf16.msra.mxu0 0
  %807 = vmatprep.subr.bf16.mxu0 0
  %808 = vmatpush1.bf16.msra.mxu0 0
  %809 = vmatprep.mubr.bf16.mxu0 0
  %810 = vmatmul.mubr.bf16.gmra.mrb[0].mxu0 %v560
  %v811 = vpop.f32.mrb[0].mxu0
  %v812 = vadd.f32 %v715, %v811
  %v813 = vpop.f32.mrb[0].mxu0
  %v814 = vpop.f32.mrb[0].mxu0
  %v815 = vadd.f32 %v718, %v814
  %v816 = vpop.f32.mrb[0].mxu0
  %817 = vmatprep.mubr.bf16.mxu0 0
  %818 = vmatmul.mubr.bf16.gmra.mrb[0].mxu0 %v563
  %v819 = vpop.f32.mrb[0].mxu0
  %v820 = vadd.f32 %v723, %v819
  %v821 = vpop.f32.mrb[0].mxu0
  %v822 = vpop.f32.mrb[0].mxu0
  %v823 = vadd.f32 %v726, %v822
  %v824 = vpop.f32.mrb[0].mxu0
  %825 = vmatprep.mubr.bf16.mxu0 0
  %826 = vmatmul.mubr.bf16.gmra.mrb[0].mxu0 %v566
  %v827 = vpop.f32.mrb[0].mxu0
  %v828 = vadd.f32 %v731, %v827
  %v829 = vpop.f32.mrb[0].mxu0
  %v830 = vpop.f32.mrb[0].mxu0
  %v831 = vadd.f32 %v734, %v830
  %v832 = vpop.f32.mrb[0].mxu0
  %833 = vmatprep.mubr.bf16.mxu0 0
  %834 = vmatmul.mubr.bf16.gmra.mrb[0].mxu0 %v569
  %v835 = vpop.f32.mrb[0].mxu0
  %v836 = vadd.f32 %v739, %v835
  %v837 = vpop.f32.mrb[0].mxu0
  %v838 = vpop.f32.mrb[0].mxu0
  %v839 = vadd.f32 %v742, %v838
  %v840 = vpop.f32.mrb[0].mxu0
  %841 = vmatprep.mubr.bf16.mxu0 0
  %842 = vmatmul.mubr.bf16.gmra.mrb[0].mxu0 %v572
  %v843 = vpop.f32.mrb[0].mxu0
  %v844 = vadd.f32 %v747, %v843
  %v845 = vpop.f32.mrb[0].mxu0
  %v846 = vpop.f32.mrb[0].mxu0
  %v847 = vadd.f32 %v750, %v846
  %v848 = vpop.f32.mrb[0].mxu0
  %849 = vmatprep.mubr.bf16.mxu0 0
  %850 = vmatmul.mubr.bf16.gmra.mrb[0].mxu0 %v575
  %v851 = vpop.f32.mrb[0].mxu0
  %v852 = vadd.f32 %v755, %v851
  %v853 = vpop.f32.mrb[0].mxu0
  %v854 = vpop.f32.mrb[0].mxu0
  %v855 = vadd.f32 %v758, %v854
  %v856 = vpop.f32.mrb[0].mxu0
  %857 = vmatprep.mubr.bf16.mxu0 0
  %858 = vmatmul.mubr.bf16.gmra.mrb[0].mxu0 %v578
  %v859 = vpop.f32.mrb[0].mxu0
  %v860 = vadd.f32 %v763, %v859
  %v861 = vpop.f32.mrb[0].mxu0
  %v862 = vpop.f32.mrb[0].mxu0
  %v863 = vadd.f32 %v766, %v862
  %v864 = vpop.f32.mrb[0].mxu0
  %865 = vmatprep.mubr.bf16.mxu0 0
  %866 = vmatmul.mubr.bf16.gmra.mrb[0].mxu0 %v581
  %v867 = vpop.f32.mrb[0].mxu0
  %v868 = vadd.f32 %v771, %v867
  %v869 = vpop.f32.mrb[0].mxu0
  %v870 = vpop.f32.mrb[0].mxu0
  %v871 = vadd.f32 %v774, %v870
  %v872 = vpop.f32.mrb[0].mxu0
  %873 = vdwg.mxu0
  %v874 = vmax.f32 %v812, 0.0
  %v875 = vmax.f32 %v815, 0.0
  %v876 = vmax.f32 %v820, 0.0
  %v877 = vmax.f32 %v823, 0.0
  %v878 = vmax.f32 %v828, 0.0
  %v879 = vmax.f32 %v831, 0.0
  %v880 = vmax.f32 %v836, 0.0
  %v881 = vmax.f32 %v839, 0.0
  %v882 = vmax.f32 %v844, 0.0
  %v883 = vmax.f32 %v847, 0.0
  %v884 = vmax.f32 %v852, 0.0
  %v885 = vmax.f32 %v855, 0.0
  %v886 = vmax.f32 %v860, 0.0
  %v887 = vmax.f32 %v863, 0.0
  %v888 = vmax.f32 %v868, 0.0
  %v889 = vmax.f32 %v871, 0.0
  %v890 = vpack.c.bf16 %v875, %v874
  %v891 = vpack.c.bf16 %v877, %v876
  %v892 = vpack.c.bf16 %v879, %v878
  %v893 = vpack.c.bf16 %v881, %v880
  %v894 = vpack.c.bf16 %v883, %v882
  %v895 = vpack.c.bf16 %v885, %v884
  %v896 = vpack.c.bf16 %v887, %v886
  %v897 = vpack.c.bf16 %v889, %v888
  %v906 = vunpack.c.l.b16 %v890
  %v907 = vunpack.c.h.b16 %v890
  %v908 = vunpack.c.l.b16 %v891
  %v909 = vunpack.c.h.b16 %v891
  %v910 = vunpack.c.l.b16 %v892
  %v911 = vunpack.c.h.b16 %v892
  %v912 = vunpack.c.l.b16 %v893
  %v913 = vunpack.c.h.b16 %v893
  %v914 = vunpack.c.l.b16 %v894
  %v915 = vunpack.c.h.b16 %v894
  %v916 = vunpack.c.l.b16 %v895
  %v917 = vunpack.c.h.b16 %v895
  %v918 = vunpack.c.l.b16 %v896
  %v919 = vunpack.c.h.b16 %v896
  %v920 = vunpack.c.l.b16 %v897
  %v921 = vunpack.c.h.b16 %v897
  %v922 = vpack.c.b16 %v906, %v906
  %v923 = vpack.c.b16 %v907, %v907
  %v924 = vpack.c.b16 %v908, %v908
  %v925 = vpack.c.b16 %v909, %v909
  %v926 = vpack.c.b16 %v910, %v910
  %v927 = vpack.c.b16 %v911, %v911
  %v928 = vpack.c.b16 %v912, %v912
  %v929 = vpack.c.b16 %v913, %v913
  %v930 = vpack.c.b16 %v914, %v914
  %v931 = vpack.c.b16 %v915, %v915
  %v932 = vpack.c.b16 %v916, %v916
  %v933 = vpack.c.b16 %v917, %v917
  %v934 = vpack.c.b16 %v918, %v918
  %v935 = vpack.c.b16 %v919, %v919
  %v936 = vpack.c.b16 %v920, %v920
  %v937 = vpack.c.b16 %v921, %v921
  %vm954 = vcmask 519168
  %955 = vst.msk [vmem:[%s3] sm:$0xf] %vm954, %v922
  %956 = vst.msk [vmem:[%s3 + $0x4] sm:$0xf] %vm954, %v923
  %957 = vst.msk [vmem:[%s3 + $0x8] sm:$0xf] %vm954, %v924
  %958 = vst.msk [vmem:[%s3 + $0xc] sm:$0xf] %vm954, %v925
  %959 = vst.msk [vmem:[%s3 + $0x10] sm:$0xf] %vm954, %v926
  %960 = vst.msk [vmem:[%s3 + $0x14] sm:$0xf] %vm954, %v927
  %961 = vst.msk [vmem:[%s3 + $0x18] sm:$0xf] %vm954, %v928
  %962 = vst.msk [vmem:[%s3 + $0x1c] sm:$0xf] %vm954, %v929
  %963 = vst.msk [vmem:[%s3 + $0x20] sm:$0xf] %vm954, %v930
  %964 = vst.msk [vmem:[%s3 + $0x24] sm:$0xf] %vm954, %v931
  %965 = vst.msk [vmem:[%s3 + $0x28] sm:$0xf] %vm954, %v932
  %966 = vst.msk [vmem:[%s3 + $0x2c] sm:$0xf] %vm954, %v933
  %967 = vst.msk [vmem:[%s3 + $0x30] sm:$0xf] %vm954, %v934
  %968 = vst.msk [vmem:[%s3 + $0x34] sm:$0xf] %vm954, %v935
  %969 = vst.msk [vmem:[%s3 + $0x38] sm:$0xf] %vm954, %v936
  %970 = vst.msk [vmem:[%s3 + $0x3c] sm:$0xf] %vm954, %v937
  // Predicated region
  $region14: #{image_encoder_forward.32} parent=0 // pred_check
    _
  $region15: #{image_encoder_forward.32} parent=0 // pred_check_branch
    %972 = sbr.rel (0) target = $region17
  $region16: #{image_encoder_forward.32} parent=0 // pred_region
    _
  $region17: #{image_encoder_forward.32} parent=0 // pred_fallthru
    _
  // Predicated region
  $region18: #{image_encoder_forward.32} parent=0 // pred_check
    _
  $region19: #{image_encoder_forward.32} parent=0 // pred_check_branch
    %974 = sbr.rel (0) target = $region21
  $region20: #{image_encoder_forward.32} parent=0 // pred_region
    _
  $region21: #{image_encoder_forward.32} parent=0 // pred_fallthru
    _

// kernel: image_encoder_forward.39
$region0: #{image_encoder_forward.39}
  #allocation0 [shape = 'u32[]', space=smem, size = 0x4, offset = 0x4, fixed_abs, tag = 'smem constant byte address 0x4 - core index']
  #allocation1 [shape = 'u32[144,128]{1,0:T(1,128)}', space=vmem, size = 0x12000, scoped, tag = 'internal scratch']
  %s0 = inlined_call_operand.vmem [shape: bf16[32,64], index: 0, kind: input, shape index: {}]
  %s1 = inlined_call_operand.vmem [shape: bf16[64,128], index: 1, kind: input, shape index: {}]
  %s2 = inlined_call_operand.vmem [shape: f32[1,128], index: 2, kind: input, shape index: {}]
  %s3 = inlined_call_operand.vmem [shape: bf16[32,128], index: 3, kind: output, shape index: {}]
  %s4 = sld [smem:[#allocation0]]
  $region22: #{image_encoder_forward.39} parent=0
    _
  %s6 = ssub.s32 1, %s4
  %s7 = scalar_select 0, %s6, %s4
  // Predicated region
  $region2: #{image_encoder_forward.39} parent=0 // pred_check
    _
  $region3: #{image_encoder_forward.39} parent=0 // pred_check_branch
    %9 = sbr.rel (0) target = $region5
  $region4: #{image_encoder_forward.39} parent=0 // pred_region
    _
  $region5: #{image_encoder_forward.39} parent=0 // pred_fallthru
    _
  // Predicated region
  $region6: #{image_encoder_forward.39} parent=0 // pred_check
    _
  $region7: #{image_encoder_forward.39} parent=0 // pred_check_branch
    %11 = sbr.rel (0) target = $region9
  $region8: #{image_encoder_forward.39} parent=0 // pred_region
    _
  $region9: #{image_encoder_forward.39} parent=0 // pred_fallthru
    _
  // Predicated region
  $region10: #{image_encoder_forward.39} parent=0 // pred_check
    _
  $region11: #{image_encoder_forward.39} parent=0 // pred_check_branch
    %13 = sbr.rel (0) target = $region13
  $region12: #{image_encoder_forward.39} parent=0 // pred_region
    _
  $region13: #{image_encoder_forward.39} parent=0 // pred_fallthru
    _
  %v15 = vld [vmem:[%s0] sm:$0xf]
  %v16 = vld [vmem:[%s0 + $0x4] sm:$0xf]
  %v17 = vld [vmem:[%s0 + $0x8] sm:$0xf]
  %v18 = vld [vmem:[%s0 + $0xc] sm:$0xf]
  %v19 = vld [vmem:[%s1] sm:$0xf]
  %v20 = vld [vmem:[%s1 + $0x4] sm:$0xf]
  %v21 = vld [vmem:[%s1 + $0x8] sm:$0xf]
  %v22 = vld [vmem:[%s1 + $0xc] sm:$0xf]
  %v23 = vld [vmem:[%s1 + $0x10] sm:$0xf]
  %v24 = vld [vmem:[%s1 + $0x14] sm:$0xf]
  %v25 = vld [vmem:[%s1 + $0x18] sm:$0xf]
  %v26 = vld [vmem:[%s1 + $0x1c] sm:$0xf]
  %v27 = vld [vmem:[%s2] sm:$0x1]
  %v29 = vlaneseq
  %v30 = vshrl.u32 %v29, 7
  %v31 = vsub.s32 0, %v30
  %v32 = vrot.slane %v27, %v31
  %v38 = vunpack.c.l.b16 %v15
  %v39 = vunpack.c.l.b16 %v16
  %v40 = vunpack.c.l.b16 %v17
  %v41 = vunpack.c.l.b16 %v18
  %v42 = vpack.c.b16 %v39, %v38
  %v43 = vpack.c.b16 %v41, %v40
  %v52 = vunpack.c.l.b16 %v19
  %v53 = vunpack.c.l.b16 %v20
  %v54 = vunpack.c.l.b16 %v21
  %v55 = vunpack.c.l.b16 %v22
  %v56 = vunpack.c.l.b16 %v23
  %v57 = vunpack.c.l.b16 %v24
  %v58 = vunpack.c.l.b16 %v25
  %v59 = vunpack.c.l.b16 %v26
  %v60 = vpack.c.b16 %v53, %v52
  %v61 = vpack.c.b16 %v55, %v54
  %v62 = vpack.c.b16 %v57, %v56
  %v63 = vpack.c.b16 %v59, %v58
  %vm68 = vcmask 523264
  %v70 = vsel %vm68, %v42, 0
  %v73 = vsel %vm68, %v43, 0
  %75 = vmatprep.subr.bf16.mxu0 0
  %76 = vmatpush1.bf16.msra.mxu0 %v60
  %77 = vmatprep.subr.bf16.mxu0 0
  %78 = vmatpush1.bf16.msra.mxu0 %v61
  %79 = vmatprep.subr.bf16.mxu0 0
  %80 = vmatpush1.bf16.msra.mxu0 %v62
  %81 = vmatprep.subr.bf16.mxu0 0
  %82 = vmatpush1.bf16.msra.mxu0 %v63
  %83 = vmatprep.subr.bf16.mxu0 0
  %84 = vmatpush1.bf16.msra.mxu0 0
  %85 = vmatprep.subr.bf16.mxu0 0
  %86 = vmatpush1.bf16.msra.mxu0 0
  %87 = vmatprep.subr.bf16.mxu0 0
  %88 = vmatpush1.bf16.msra.mxu0 0
  %89 = vmatprep.subr.bf16.mxu0 0
  %90 = vmatpush1.bf16.msra.mxu0 0
  %91 = vmatprep.subr.bf16.mxu0 0
  %92 = vmatpush1.bf16.msra.mxu0 0
  %93 = vmatprep.subr.bf16.mxu0 0
  %94 = vmatpush1.bf16.msra.mxu0 0
  %95 = vmatprep.subr.bf16.mxu0 0
  %96 = vmatpush1.bf16.msra.mxu0 0
  %97 = vmatprep.subr.bf16.mxu0 0
  %98 = vmatpush1.bf16.msra.mxu0 0
  %99 = vmatprep.subr.bf16.mxu0 0
  %100 = vmatpush1.bf16.msra.mxu0 0
  %101 = vmatprep.subr.bf16.mxu0 0
  %102 = vmatpush1.bf16.msra.mxu0 0
  %103 = vmatprep.subr.bf16.mxu0 0
  %104 = vmatpush1.bf16.msra.mxu0 0
  %105 = vmatprep.subr.bf16.mxu0 0
  %106 = vmatpush1.bf16.msra.mxu0 0
  %107 = vmatprep.mubr.bf16.mxu0 0
  %108 = vmatmul.mubr.bf16.gmra.mrb[0].mxu0 %v70
  %v109 = vpop.f32.mrb[0].mxu0
  %v110 = vadd.f32 %v32, %v109
  %v111 = vpop.f32.mrb[0].mxu0
  %v112 = vpop.f32.mrb[0].mxu0
  %v113 = vadd.f32 %v32, %v112
  %v114 = vpop.f32.mrb[0].mxu0
  %115 = vmatprep.mubr.bf16.mxu0 0
  %116 = vmatmul.mubr.bf16.gmra.mrb[0].mxu0 %v73
  %v117 = vpop.f32.mrb[0].mxu0
  %v118 = vadd.f32 %v32, %v117
  %v119 = vpop.f32.mrb[0].mxu0
  %v120 = vpop.f32.mrb[0].mxu0
  %v121 = vadd.f32 %v32, %v120
  %v122 = vpop.f32.mrb[0].mxu0
  %123 = vdwg.mxu0
  %v124 = vpack.c.bf16 %v113, %v110
  %v125 = vpack.c.bf16 %v121, %v118
  %v128 = vunpack.c.l.b16 %v124
  %v129 = vunpack.c.h.b16 %v124
  %v130 = vunpack.c.l.b16 %v125
  %v131 = vunpack.c.h.b16 %v125
  %v132 = vpack.c.b16 %v128, %v128
  %v133 = vpack.c.b16 %v129, %v129
  %v134 = vpack.c.b16 %v130, %v130
  %v135 = vpack.c.b16 %v131, %v131
  %140 = vst [vmem:[%s3] sm:$0xf] %v132
  %141 = vst [vmem:[%s3 + $0x4] sm:$0xf] %v133
  %142 = vst [vmem:[%s3 + $0x8] sm:$0xf] %v134
  %143 = vst [vmem:[%s3 + $0xc] sm:$0xf] %v135
  // Predicated region
  $region14: #{image_encoder_forward.39} parent=0 // pred_check
    _
  $region15: #{image_encoder_forward.39} parent=0 // pred_check_branch
    %145 = sbr.rel (0) target = $region17
  $region16: #{image_encoder_forward.39} parent=0 // pred_region
    _
  $region17: #{image_encoder_forward.39} parent=0 // pred_fallthru
    _
  // Predicated region
  $region18: #{image_encoder_forward.39} parent=0 // pred_check
    _
  $region19: #{image_encoder_forward.39} parent=0 // pred_check_branch
    %147 = sbr.rel (0) target = $region21
  $region20: #{image_encoder_forward.39} parent=0 // pred_region
    _
  $region21: #{image_encoder_forward.39} parent=0 // pred_fallthru
    _

// kernel: image_encoder_forward.38
$region0: #{image_encoder_forward.38}
  #allocation0 [shape = 'u32[]', space=smem, size = 0x4, offset = 0x4, fixed_abs, tag = 'smem constant byte address 0x4 - core index']
  #allocation1 [shape = 'u32[144,128]{1,0:T(1,128)}', space=vmem, size = 0x12000, scoped, tag = 'internal scratch']
  %s0 = inlined_call_operand.vmem [shape: bf16[32,576], index: 0, kind: input, shape index: {}]
  %s1 = inlined_call_operand.vmem [shape: bf16[576,128], index: 1, kind: input, shape index: {}]
  %s2 = inlined_call_operand.vmem [shape: f32[1,128], index: 2, kind: input, shape index: {}]
  %s3 = inlined_call_operand.vmem [shape: bf16[32,128], index: 3, kind: output, shape index: {}]
  %s4 = sld [smem:[#allocation0]]
  $region22: #{image_encoder_forward.38} parent=0
    _
  %s6 = ssub.s32 1, %s4
  %s7 = scalar_select 0, %s6, %s4
  // Predicated region
  $region2: #{image_encoder_forward.38} parent=0 // pred_check
    _
  $region3: #{image_encoder_forward.38} parent=0 // pred_check_branch
    %9 = sbr.rel (0) target = $region5
  $region4: #{image_encoder_forward.38} parent=0 // pred_region
    _
  $region5: #{image_encoder_forward.38} parent=0 // pred_fallthru
    _
  // Predicated region
  $region6: #{image_encoder_forward.38} parent=0 // pred_check
    _
  $region7: #{image_encoder_forward.38} parent=0 // pred_check_branch
    %11 = sbr.rel (0) target = $region9
  $region8: #{image_encoder_forward.38} parent=0 // pred_region
    _
  $region9: #{image_encoder_forward.38} parent=0 // pred_fallthru
    _
  // Predicated region
  $region10: #{image_encoder_forward.38} parent=0 // pred_check
    _
  $region11: #{image_encoder_forward.38} parent=0 // pred_check_branch
    %13 = sbr.rel (0) target = $region13
  $region12: #{image_encoder_forward.38} parent=0 // pred_region
    _
  $region13: #{image_encoder_forward.38} parent=0 // pred_fallthru
    _
  %v15 = vld [vmem:[%s0] sm:$0xff]
  %v16 = vld [vmem:[%s0 + $0x8] sm:$0xff]
  %v17 = vld [vmem:[%s0 + $0x10] sm:$0xf]
  %v18 = vld [vmem:[%s0 + $0x14] sm:$0xff]
  %v19 = vld [vmem:[%s0 + $0x1c] sm:$0xff]
  %v20 = vld [vmem:[%s0 + $0x24] sm:$0xf]
  %v21 = vld [vmem:[%s0 + $0x28] sm:$0xff]
  %v22 = vld [vmem:[%s0 + $0x30] sm:$0xff]
  %v23 = vld [vmem:[%s0 + $0x38] sm:$0xf]
  %v24 = vld [vmem:[%s0 + $0x3c] sm:$0xff]
  %v25 = vld [vmem:[%s0 + $0x44] sm:$0xff]
  %v26 = vld [vmem:[%s0 + $0x4c] sm:$0xf]
  %v27 = vld [vmem:[%s1] sm:$0xf]
  %v28 = vld [vmem:[%s1 + $0x4] sm:$0xf]
  %v29 = vld [vmem:[%s1 + $0x8] sm:$0xf]
  %v30 = vld [vmem:[%s1 + $0xc] sm:$0xf]
  %v31 = vld [vmem:[%s1 + $0x10] sm:$0xf]
  %v32 = vld [vmem:[%s1 + $0x14] sm:$0xf]
  %v33 = vld [vmem:[%s1 + $0x18] sm:$0xf]
  %v34 = vld [vmem:[%s1 + $0x1c] sm:$0xf]
  %v35 = vld [vmem:[%s1 + $0x20] sm:$0xf]
  %v36 = vld [vmem:[%s1 + $0x24] sm:$0xf]
  %v37 = vld [vmem:[%s1 + $0x28] sm:$0xf]
  %v38 = vld [vmem:[%s1 + $0x2c] sm:$0xf]
  %v39 = vld [vmem:[%s1 + $0x30] sm:$0xf]
  %v40 = vld [vmem:[%s1 + $0x34] sm:$0xf]
  %v41 = vld [vmem:[%s1 + $0x38] sm:$0xf]
  %v42 = vld [vmem:[%s1 + $0x3c] sm:$0xf]
  %v43 = vld [vmem:[%s1 + $0x40] sm:$0xf]
  %v44 = vld [vmem:[%s1 + $0x44] sm:$0xf]
  %v45 = vld [vmem:[%s1 + $0x48] sm:$0xf]
  %v46 = vld [vmem:[%s1 + $0x4c] sm:$0xf]
  %v47 = vld [vmem:[%s1 + $0x50] sm:$0xf]
  %v48 = vld [vmem:[%s1 + $0x54] sm:$0xf]
  %v49 = vld [vmem:[%s1 + $0x58] sm:$0xf]
  %v50 = vld [vmem:[%s1 + $0x5c] sm:$0xf]
  %v51 = vld [vmem:[%s1 + $0x60] sm:$0xf]
  %v52 = vld [vmem:[%s1 + $0x64] sm:$0xf]
  %v53 = vld [vmem:[%s1 + $0x68] sm:$0xf]
  %v54 = vld [vmem:[%s1 + $0x6c] sm:$0xf]
  %v55 = vld [vmem:[%s1 + $0x70] sm:$0xf]
  %v56 = vld [vmem:[%s1 + $0x74] sm:$0xf]
  %v57 = vld [vmem:[%s1 + $0x78] sm:$0xf]
  %v58 = vld [vmem:[%s1 + $0x7c] sm:$0xf]
  %v59 = vld [vmem:[%s1 + $0x80] sm:$0xf]
  %v60 = vld [vmem:[%s1 + $0x84] sm:$0xf]
  %v61 = vld [vmem:[%s1 + $0x88] sm:$0xf]
  %v62 = vld [vmem:[%s1 + $0x8c] sm:$0xf]
  %v63 = vld [vmem:[%s1 + $0x90] sm:$0xf]
  %v64 = vld [vmem:[%s1 + $0x94] sm:$0xf]
  %v65 = vld [vmem:[%s1 + $0x98] sm:$0xf]
  %v66 = vld [vmem:[%s1 + $0x9c] sm:$0xf]
  %v67 = vld [vmem:[%s1 + $0xa0] sm:$0xf]
  %v68 = vld [vmem:[%s1 + $0xa4] sm:$0xf]
  %v69 = vld [vmem:[%s1 + $0xa8] sm:$0xf]
  %v70 = vld [vmem:[%s1 + $0xac] sm:$0xf]
  %v71 = vld [vmem:[%s1 + $0xb0] sm:$0xf]
  %v72 = vld [vmem:[%s1 + $0xb4] sm:$0xf]
  %v73 = vld [vmem:[%s1 + $0xb8] sm:$0xf]
  %v74 = vld [vmem:[%s1 + $0xbc] sm:$0xf]
  %v75 = vld [vmem:[%s1 + $0xc0] sm:$0xf]
  %v76 = vld [vmem:[%s1 + $0xc4] sm:$0xf]
  %v77 = vld [vmem:[%s1 + $0xc8] sm:$0xf]
  %v78 = vld [vmem:[%s1 + $0xcc] sm:$0xf]
  %v79 = vld [vmem:[%s1 + $0xd0] sm:$0xf]
  %v80 = vld [vmem:[%s1 + $0xd4] sm:$0xf]
  %v81 = vld [vmem:[%s1 + $0xd8] sm:$0xf]
  %v82 = vld [vmem:[%s1 + $0xdc] sm:$0xf]
  %v83 = vld [vmem:[%s1 + $0xe0] sm:$0xf]
  %v84 = vld [vmem:[%s1 + $0xe4] sm:$0xf]
  %v85 = vld [vmem:[%s1 + $0xe8] sm:$0xf]
  %v86 = vld [vmem:[%s1 + $0xec] sm:$0xf]
  %v87 = vld [vmem:[%s1 + $0xf0] sm:$0xf]
  %v88 = vld [vmem:[%s1 + $0xf4] sm:$0xf]
  %v89 = vld [vmem:[%s1 + $0xf8] sm:$0xf]
  %v90 = vld [vmem:[%s1 + $0xfc] sm:$0xf]
  %v91 = vld [vmem:[%s1 + $0x100] sm:$0xf]
  %v92 = vld [vmem:[%s1 + $0x104] sm:$0xf]
  %v93 = vld [vmem:[%s1 + $0x108] sm:$0xf]
  %v94 = vld [vmem:[%s1 + $0x10c] sm:$0xf]
  %v95 = vld [vmem:[%s1 + $0x110] sm:$0xf]
  %v96 = vld [vmem:[%s1 + $0x114] sm:$0xf]
  %v97 = vld [vmem:[%s1 + $0x118] sm:$0xf]
  %v98 = vld [vmem:[%s1 + $0x11c] sm:$0xf]
  %v99 = vld [vmem:[%s2] sm:$0x1]
  %v101 = vlaneseq
  %v102 = vshrl.u32 %v101, 7
  %v103 = vsub.s32 0, %v102
  %v104 = vrot.slane %v99, %v103
  %v118 = vunpack.c.l.b16 %v15
  %v119 = vunpack.c.h.b16 %v15
  %v120 = vunpack.c.l.b16 %v16
  %v121 = vunpack.c.h.b16 %v16
  %v122 = vunpack.c.l.b16 %v17
  %v123 = vunpack.c.l.b16 %v18
  %v124 = vunpack.c.h.b16 %v18
  %v125 = vunpack.c.l.b16 %v19
  %v126 = vunpack.c.h.b16 %v19
  %v127 = vunpack.c.l.b16 %v20
  %v128 = vunpack.c.l.b16 %v21
  %v129 = vunpack.c.h.b16 %v21
  %v130 = vunpack.c.l.b16 %v22
  %v131 = vunpack.c.h.b16 %v22
  %v132 = vunpack.c.l.b16 %v23
  %v133 = vunpack.c.l.b16 %v24
  %v134 = vunpack.c.h.b16 %v24
  %v135 = vunpack.c.l.b16 %v25
  %v136 = vunpack.c.h.b16 %v25
  %v137 = vunpack.c.l.b16 %v26
  %v138 = vpack.c.b16 %v123, %v118
  %v139 = vpack.c.b16 %v124, %v119
  %v140 = vpack.c.b16 %v125, %v120
  %v141 = vpack.c.b16 %v126, %v121
  %v142 = vpack.c.b16 %v127, %v122
  %v143 = vpack.c.b16 %v133, %v128
  %v144 = vpack.c.b16 %v134, %v129
  %v145 = vpack.c.b16 %v135, %v130
  %v146 = vpack.c.b16 %v136, %v131
  %v147 = vpack.c.b16 %v137, %v132
  %v228 = vunpack.c.l.b16 %v27
  %v229 = vunpack.c.l.b16 %v28
  %v230 = vunpack.c.l.b16 %v29
  %v231 = vunpack.c.l.b16 %v30
  %v232 = vunpack.c.l.b16 %v31
  %v233 = vunpack.c.l.b16 %v32
  %v234 = vunpack.c.l.b16 %v33
  %v235 = vunpack.c.l.b16 %v34
  %v236 = vunpack.c.l.b16 %v35
  %v237 = vunpack.c.l.b16 %v36
  %v238 = vunpack.c.l.b16 %v37
  %v239 = vunpack.c.l.b16 %v38
  %v240 = vunpack.c.l.b16 %v39
  %v241 = vunpack.c.l.b16 %v40
  %v242 = vunpack.c.l.b16 %v41
  %v243 = vunpack.c.l.b16 %v42
  %v244 = vunpack.c.l.b16 %v43
  %v245 = vunpack.c.l.b16 %v44
  %v246 = vunpack.c.l.b16 %v45
  %v247 = vunpack.c.l.b16 %v46
  %v248 = vunpack.c.l.b16 %v47
  %v249 = vunpack.c.l.b16 %v48
  %v250 = vunpack.c.l.b16 %v49
  %v251 = vunpack.c.l.b16 %v50
  %v252 = vunpack.c.l.b16 %v51
  %v253 = vunpack.c.l.b16 %v52
  %v254 = vunpack.c.l.b16 %v53
  %v255 = vunpack.c.l.b16 %v54
  %v256 = vunpack.c.l.b16 %v55
  %v257 = vunpack.c.l.b16 %v56
  %v258 = vunpack.c.l.b16 %v57
  %v259 = vunpack.c.l.b16 %v58
  %v260 = vunpack.c.l.b16 %v59
  %v261 = vunpack.c.l.b16 %v60
  %v262 = vunpack.c.l.b16 %v61
  %v263 = vunpack.c.l.b16 %v62
  %v264 = vunpack.c.l.b16 %v63
  %v265 = vunpack.c.l.b16 %v64
  %v266 = vunpack.c.l.b16 %v65
  %v267 = vunpack.c.l.b16 %v66
  %v268 = vunpack.c.l.b16 %v67
  %v269 = vunpack.c.l.b16 %v68
  %v270 = vunpack.c.l.b16 %v69
  %v271 = vunpack.c.l.b16 %v70
  %v272 = vunpack.c.l.b16 %v71
  %v273 = vunpack.c.l.b16 %v72
  %v274 = vunpack.c.l.b16 %v73
  %v275 = vunpack.c.l.b16 %v74
  %v276 = vunpack.c.l.b16 %v75
  %v277 = vunpack.c.l.b16 %v76
  %v278 = vunpack.c.l.b16 %v77
  %v279 = vunpack.c.l.b16 %v78
  %v280 = vunpack.c.l.b16 %v79
  %v281 = vunpack.c.l.b16 %v80
  %v282 = vunpack.c.l.b16 %v81
  %v283 = vunpack.c.l.b16 %v82
  %v284 = vunpack.c.l.b16 %v83
  %v285 = vunpack.c.l.b16 %v84
  %v286 = vunpack.c.l.b16 %v85
  %v287 = vunpack.c.l.b16 %v86
  %v288 = vunpack.c.l.b16 %v87
  %v289 = vunpack.c.l.b16 %v88
  %v290 = vunpack.c.l.b16 %v89
  %v291 = vunpack.c.l.b16 %v90
  %v292 = vunpack.c.l.b16 %v91
  %v293 = vunpack.c.l.b16 %v92
  %v294 = vunpack.c.l.b16 %v93
  %v295 = vunpack.c.l.b16 %v94
  %v296 = vunpack.c.l.b16 %v95
  %v297 = vunpack.c.l.b16 %v96
  %v298 = vunpack.c.l.b16 %v97
  %v299 = vunpack.c.l.b16 %v98
  %v300 = vpack.c.b16 %v229, %v228
  %v301 = vpack.c.b16 %v231, %v230
  %v302 = vpack.c.b16 %v233, %v232
  %v303 = vpack.c.b16 %v235, %v234
  %v304 = vpack.c.b16 %v237, %v236
  %v305 = vpack.c.b16 %v239, %v238
  %v306 = vpack.c.b16 %v241, %v240
  %v307 = vpack.c.b16 %v243, %v242
  %v308 = vpack.c.b16 %v245, %v244
  %v309 = vpack.c.b16 %v247, %v246
  %v310 = vpack.c.b16 %v249, %v248
  %v311 = vpack.c.b16 %v251, %v250
  %v312 = vpack.c.b16 %v253, %v252
  %v313 = vpack.c.b16 %v255, %v254
  %v314 = vpack.c.b16 %v257, %v256
  %v315 = vpack.c.b16 %v259, %v258
  %v316 = vpack.c.b16 %v261, %v260
  %v317 = vpack.c.b16 %v263, %v262
  %v318 = vpack.c.b16 %v265, %v264
  %v319 = vpack.c.b16 %v267, %v266
  %v320 = vpack.c.b16 %v269, %v268
  %v321 = vpack.c.b16 %v271, %v270
  %v322 = vpack.c.b16 %v273, %v272
  %v323 = vpack.c.b16 %v275, %v274
  %v324 = vpack.c.b16 %v277, %v276
  %v325 = vpack.c.b16 %v279, %v278
  %v326 = vpack.c.b16 %v281, %v280
  %v327 = vpack.c.b16 %v283, %v282
  %v328 = vpack.c.b16 %v285, %v284
  %v329 = vpack.c.b16 %v287, %v286
  %v330 = vpack.c.b16 %v289, %v288
  %v331 = vpack.c.b16 %v291, %v290
  %v332 = vpack.c.b16 %v293, %v292
  %v333 = vpack.c.b16 %v295, %v294
  %v334 = vpack.c.b16 %v297, %v296
  %v335 = vpack.c.b16 %v299, %v298
  %vm372 = vcmask 523264
  %v374 = vsel %vm372, %v142, 0
  %v377 = vsel %vm372, %v147, 0
  %379 = vmatprep.subr.bf16.mxu0 0
  %380 = vmatpush1.bf16.msra.mxu0 %v300
  %381 = vmatprep.subr.bf16.mxu0 0
  %382 = vmatpush1.bf16.msra.mxu0 %v301
  %383 = vmatprep.subr.bf16.mxu0 0
  %384 = vmatpush1.bf16.msra.mxu0 %v302
  %385 = vmatprep.subr.bf16.mxu0 0
  %386 = vmatpush1.bf16.msra.mxu0 %v303
  %387 = vmatprep.subr.bf16.mxu0 0
  %388 = vmatpush1.bf16.msra.mxu0 %v304
  %389 = vmatprep.subr.bf16.mxu0 0
  %390 = vmatpush1.bf16.msra.mxu0 %v305
  %391 = vmatprep.subr.bf16.mxu0 0
  %392 = vmatpush1.bf16.msra.mxu0 %v306
  %393 = vmatprep.subr.bf16.mxu0 0
  %394 = vmatpush1.bf16.msra.mxu0 %v307
  %395 = vmatprep.subr.bf16.mxu0 0
  %396 = vmatpush1.bf16.msra.mxu0 %v308
  %397 = vmatprep.subr.bf16.mxu0 0
  %398 = vmatpush1.bf16.msra.mxu0 %v309
  %399 = vmatprep.subr.bf16.mxu0 0
  %400 = vmatpush1.bf16.msra.mxu0 %v310
  %401 = vmatprep.subr.bf16.mxu0 0
  %402 = vmatpush1.bf16.msra.mxu0 %v311
  %403 = vmatprep.subr.bf16.mxu0 0
  %404 = vmatpush1.bf16.msra.mxu0 %v312
  %405 = vmatprep.subr.bf16.mxu0 0
  %406 = vmatpush1.bf16.msra.mxu0 %v313
  %407 = vmatprep.subr.bf16.mxu0 0
  %408 = vmatpush1.bf16.msra.mxu0 %v314
  %409 = vmatprep.subr.bf16.mxu0 0
  %410 = vmatpush1.bf16.msra.mxu0 %v315
  %411 = vmatprep.mubr.bf16.mxu0 %v139
  %412 = vmatmul.mubr.bf16.gmra.mrb[0].mxu0 %v138
  %v413 = vpop.f32.mrb[0].mxu0
  %v414 = vadd.f32 %v104, %v413
  %v415 = vpop.f32.mrb[0].mxu0
  %v416 = vpop.f32.mrb[0].mxu0
  %v417 = vadd.f32 %v104, %v416
  %v418 = vpop.f32.mrb[0].mxu0
  %419 = vmatprep.mubr.bf16.mxu0 %v144
  %420 = vmatmul.mubr.bf16.gmra.mrb[0].mxu0 %v143
  %v421 = vpop.f32.mrb[0].mxu0
  %v422 = vadd.f32 %v104, %v421
  %v423 = vpop.f32.mrb[0].mxu0
  %v424 = vpop.f32.mrb[0].mxu0
  %v425 = vadd.f32 %v104, %v424
  %v426 = vpop.f32.mrb[0].mxu0
  %427 = vdwg.mxu0
  %428 = vmatprep.subr.bf16.mxu0 0
  %429 = vmatpush1.bf16.msra.mxu0 %v316
  %430 = vmatprep.subr.bf16.mxu0 0
  %431 = vmatpush1.bf16.msra.mxu0 %v317
  %432 = vmatprep.subr.bf16.mxu0 0
  %433 = vmatpush1.bf16.msra.mxu0 %v318
  %434 = vmatprep.subr.bf16.mxu0 0
  %435 = vmatpush1.bf16.msra.mxu0 %v319
  %436 = vmatprep.subr.bf16.mxu0 0
  %437 = vmatpush1.bf16.msra.mxu0 %v320
  %438 = vmatprep.subr.bf16.mxu0 0
  %439 = vmatpush1.bf16.msra.mxu0 %v321
  %440 = vmatprep.subr.bf16.mxu0 0
  %441 = vmatpush1.bf16.msra.mxu0 %v322
  %442 = vmatprep.subr.bf16.mxu0 0
  %443 = vmatpush1.bf16.msra.mxu0 %v323
  %444 = vmatprep.subr.bf16.mxu0 0
  %445 = vmatpush1.bf16.msra.mxu0 %v324
  %446 = vmatprep.subr.bf16.mxu0 0
  %447 = vmatpush1.bf16.msra.mxu0 %v325
  %448 = vmatprep.subr.bf16.mxu0 0
  %449 = vmatpush1.bf16.msra.mxu0 %v326
  %450 = vmatprep.subr.bf16.mxu0 0
  %451 = vmatpush1.bf16.msra.mxu0 %v327
  %452 = vmatprep.subr.bf16.mxu0 0
  %453 = vmatpush1.bf16.msra.mxu0 %v328
  %454 = vmatprep.subr.bf16.mxu0 0
  %455 = vmatpush1.bf16.msra.mxu0 %v329
  %456 = vmatprep.subr.bf16.mxu0 0
  %457 = vmatpush1.bf16.msra.mxu0 %v330
  %458 = vmatprep.subr.bf16.mxu0 0
  %459 = vmatpush1.bf16.msra.mxu0 %v331
  %460 = vmatprep.mubr.bf16.mxu0 %v141
  %461 = vmatmul.mubr.bf16.gmra.mrb[0].mxu0 %v140
  %v462 = vpop.f32.mrb[0].mxu0
  %v463 = vadd.f32 %v414, %v462
  %v464 = vpop.f32.mrb[0].mxu0
  %v465 = vpop.f32.mrb[0].mxu0
  %v466 = vadd.f32 %v417, %v465
  %v467 = vpop.f32.mrb[0].mxu0
  %468 = vmatprep.mubr.bf16.mxu0 %v146
  %469 = vmatmul.mubr.bf16.gmra.mrb[0].mxu0 %v145
  %v470 = vpop.f32.mrb[0].mxu0
  %v471 = vadd.f32 %v422, %v470
  %v472 = vpop.f32.mrb[0].mxu0
  %v473 = vpop.f32.mrb[0].mxu0
  %v474 = vadd.f32 %v425, %v473
  %v475 = vpop.f32.mrb[0].mxu0
  %476 = vdwg.mxu0
  %477 = vmatprep.subr.bf16.mxu0 0
  %478 = vmatpush1.bf16.msra.mxu0 %v332
  %479 = vmatprep.subr.bf16.mxu0 0
  %480 = vmatpush1.bf16.msra.mxu0 %v333
  %481 = vmatprep.subr.bf16.mxu0 0
  %482 = vmatpush1.bf16.msra.mxu0 %v334
  %483 = vmatprep.subr.bf16.mxu0 0
  %484 = vmatpush1.bf16.msra.mxu0 %v335
  %485 = vmatprep.subr.bf16.mxu0 0
  %486 = vmatpush1.bf16.msra.mxu0 0
  %487 = vmatprep.subr.bf16.mxu0 0
  %488 = vmatpush1.bf16.msra.mxu0 0
  %489 = vmatprep.subr.bf16.mxu0 0
  %490 = vmatpush1.bf16.msra.mxu0 0
  %491 = vmatprep.subr.bf16.mxu0 0
  %492 = vmatpush1.bf16.msra.mxu0 0
  %493 = vmatprep.subr.bf16.mxu0 0
  %494 = vmatpush1.bf16.msra.mxu0 0
  %495 = vmatprep.subr.bf16.mxu0 0
  %496 = vmatpush1.bf16.msra.mxu0 0
  %497 = vmatprep.subr.bf16.mxu0 0
  %498 = vmatpush1.bf16.msra.mxu0 0
  %499 = vmatprep.subr.bf16.mxu0 0
  %500 = vmatpush1.bf16.msra.mxu0 0
  %501 = vmatprep.subr.bf16.mxu0 0
  %502 = vmatpush1.bf16.msra.mxu0 0
  %503 = vmatprep.subr.bf16.mxu0 0
  %504 = vmatpush1.bf16.msra.mxu0 0
  %505 = vmatprep.subr.bf16.mxu0 0
  %506 = vmatpush1.bf16.msra.mxu0 0
  %507 = vmatprep.subr.bf16.mxu0 0
  %508 = vmatpush1.bf16.msra.mxu0 0
  %509 = vmatprep.mubr.bf16.mxu0 0
  %510 = vmatmul.mubr.bf16.gmra.mrb[0].mxu0 %v374
  %v511 = vpop.f32.mrb[0].mxu0
  %v512 = vadd.f32 %v463, %v511
  %v513 = vpop.f32.mrb[0].mxu0
  %v514 = vpop.f32.mrb[0].mxu0
  %v515 = vadd.f32 %v466, %v514
  %v516 = vpop.f32.mrb[0].mxu0
  %517 = vmatprep.mubr.bf16.mxu0 0
  %518 = vmatmul.mubr.bf16.gmra.mrb[0].mxu0 %v377
  %v519 = vpop.f32.mrb[0].mxu0
  %v520 = vadd.f32 %v471, %v519
  %v521 = vpop.f32.mrb[0].mxu0
  %v522 = vpop.f32.mrb[0].mxu0
  %v523 = vadd.f32 %v474, %v522
  %v524 = vpop.f32.mrb[0].mxu0
  %525 = vdwg.mxu0
  %v526 = vmax.f32 %v512, 0.0
  %v527 = vmax.f32 %v515, 0.0
  %v528 = vmax.f32 %v520, 0.0
  %v529 = vmax.f32 %v523, 0.0
  %v530 = vpack.c.bf16 %v527, %v526
  %v531 = vpack.c.bf16 %v529, %v528
  %v534 = vunpack.c.l.b16 %v530
  %v535 = vunpack.c.h.b16 %v530
  %v536 = vunpack.c.l.b16 %v531
  %v537 = vunpack.c.h.b16 %v531
  %v538 = vpack.c.b16 %v534, %v534
  %v539 = vpack.c.b16 %v535, %v535
  %v540 = vpack.c.b16 %v536, %v536
  %v541 = vpack.c.b16 %v537, %v537
  %546 = vst [vmem:[%s3] sm:$0xf] %v538
  %547 = vst [vmem:[%s3 + $0x4] sm:$0xf] %v539
  %548 = vst [vmem:[%s3 + $0x8] sm:$0xf] %v540
  %549 = vst [vmem:[%s3 + $0xc] sm:$0xf] %v541
  // Predicated region
  $region14: #{image_encoder_forward.38} parent=0 // pred_check
    _
  $region15: #{image_encoder_forward.38} parent=0 // pred_check_branch
    %551 = sbr.rel (0) target = $region17
  $region16: #{image_encoder_forward.38} parent=0 // pred_region
    _
  $region17: #{image_encoder_forward.38} parent=0 // pred_fallthru
    _
  // Predicated region
  $region18: #{image_encoder_forward.38} parent=0 // pred_check
    _
  $region19: #{image_encoder_forward.38} parent=0 // pred_check_branch
    %553 = sbr.rel (0) target = $region21
  $region20: #{image_encoder_forward.38} parent=0 // pred_region
    _
  $region21: #{image_encoder_forward.38} parent=0 // pred_fallthru
    _

// kernel: image_encoder_forward.40
$region0: #{image_encoder_forward.40}
  #allocation0 [shape = 'u32[]', space=smem, size = 0x4, offset = 0x4, fixed_abs, tag = 'smem constant byte address 0x4 - core index']
  #allocation1 [shape = 'u32[144,128]{1,0:T(1,128)}', space=vmem, size = 0x12000, scoped, tag = 'internal scratch']
  %s0 = inlined_call_operand.vmem [shape: bf16[32,1152], index: 0, kind: input, shape index: {}]
  %s1 = inlined_call_operand.vmem [shape: bf16[1152,128], index: 1, kind: input, shape index: {}]
  %s2 = inlined_call_operand.vmem [shape: f32[1,128], index: 2, kind: input, shape index: {}]
  %s3 = inlined_call_operand.vmem [shape: bf16[32,128], index: 3, kind: input, shape index: {}]
  %s4 = inlined_call_operand.vmem [shape: bf16[32,128], index: 4, kind: output, shape index: {}]
  %s5 = sld [smem:[#allocation0]]
  $region26: #{image_encoder_forward.40} parent=0
    _
  %s7 = ssub.s32 1, %s5
  %s8 = scalar_select 0, %s7, %s5
  // Predicated region
  $region2: #{image_encoder_forward.40} parent=0 // pred_check
    _
  $region3: #{image_encoder_forward.40} parent=0 // pred_check_branch
    %10 = sbr.rel (0) target = $region5
  $region4: #{image_encoder_forward.40} parent=0 // pred_region
    _
  $region5: #{image_encoder_forward.40} parent=0 // pred_fallthru
    _
  // Predicated region
  $region6: #{image_encoder_forward.40} parent=0 // pred_check
    _
  $region7: #{image_encoder_forward.40} parent=0 // pred_check_branch
    %12 = sbr.rel (0) target = $region9
  $region8: #{image_encoder_forward.40} parent=0 // pred_region
    _
  $region9: #{image_encoder_forward.40} parent=0 // pred_fallthru
    _
  // Predicated region
  $region10: #{image_encoder_forward.40} parent=0 // pred_check
    _
  $region11: #{image_encoder_forward.40} parent=0 // pred_check_branch
    %14 = sbr.rel (0) target = $region13
  $region12: #{image_encoder_forward.40} parent=0 // pred_region
    _
  $region13: #{image_encoder_forward.40} parent=0 // pred_fallthru
    _
  // Predicated region
  $region14: #{image_encoder_forward.40} parent=0 // pred_check
    _
  $region15: #{image_encoder_forward.40} parent=0 // pred_check_branch
    %16 = sbr.rel (0) target = $region17
  $region16: #{image_encoder_forward.40} parent=0 // pred_region
    _
  $region17: #{image_encoder_forward.40} parent=0 // pred_fallthru
    _
  %v18 = vld [vmem:[%s0] sm:$0xff]
  %v19 = vld [vmem:[%s0 + $0x8] sm:$0xff]
  %v20 = vld [vmem:[%s0 + $0x10] sm:$0xff]
  %v21 = vld [vmem:[%s0 + $0x18] sm:$0xff]
  %v22 = vld [vmem:[%s0 + $0x20] sm:$0xf]
  %v23 = vld [vmem:[%s0 + $0x24] sm:$0xff]
  %v24 = vld [vmem:[%s0 + $0x2c] sm:$0xff]
  %v25 = vld [vmem:[%s0 + $0x34] sm:$0xff]
  %v26 = vld [vmem:[%s0 + $0x3c] sm:$0xff]
  %v27 = vld [vmem:[%s0 + $0x44] sm:$0xf]
  %v28 = vld [vmem:[%s0 + $0x48] sm:$0xff]
  %v29 = vld [vmem:[%s0 + $0x50] sm:$0xff]
  %v30 = vld [vmem:[%s0 + $0x58] sm:$0xff]
  %v31 = vld [vmem:[%s0 + $0x60] sm:$0xff]
  %v32 = vld [vmem:[%s0 + $0x68] sm:$0xf]
  %v33 = vld [vmem:[%s0 + $0x6c] sm:$0xff]
  %v34 = vld [vmem:[%s0 + $0x74] sm:$0xff]
  %v35 = vld [vmem:[%s0 + $0x7c] sm:$0xff]
  %v36 = vld [vmem:[%s0 + $0x84] sm:$0xff]
  %v37 = vld [vmem:[%s0 + $0x8c] sm:$0xf]
  %v38 = vld [vmem:[%s1] sm:$0xf]
  %v39 = vld [vmem:[%s1 + $0x4] sm:$0xf]
  %v40 = vld [vmem:[%s1 + $0x8] sm:$0xf]
  %v41 = vld [vmem:[%s1 + $0xc] sm:$0xf]
  %v42 = vld [vmem:[%s1 + $0x10] sm:$0xf]
  %v43 = vld [vmem:[%s1 + $0x14] sm:$0xf]
  %v44 = vld [vmem:[%s1 + $0x18] sm:$0xf]
  %v45 = vld [vmem:[%s1 + $0x1c] sm:$0xf]
  %v46 = vld [vmem:[%s1 + $0x20] sm:$0xf]
  %v47 = vld [vmem:[%s1 + $0x24] sm:$0xf]
  %v48 = vld [vmem:[%s1 + $0x28] sm:$0xf]
  %v49 = vld [vmem:[%s1 + $0x2c] sm:$0xf]
  %v50 = vld [vmem:[%s1 + $0x30] sm:$0xf]
  %v51 = vld [vmem:[%s1 + $0x34] sm:$0xf]
  %v52 = vld [vmem:[%s1 + $0x38] sm:$0xf]
  %v53 = vld [vmem:[%s1 + $0x3c] sm:$0xf]
  %v54 = vld [vmem:[%s1 + $0x40] sm:$0xf]
  %v55 = vld [vmem:[%s1 + $0x44] sm:$0xf]
  %v56 = vld [vmem:[%s1 + $0x48] sm:$0xf]
  %v57 = vld [vmem:[%s1 + $0x4c] sm:$0xf]
  %v58 = vld [vmem:[%s1 + $0x50] sm:$0xf]
  %v59 = vld [vmem:[%s1 + $0x54] sm:$0xf]
  %v60 = vld [vmem:[%s1 + $0x58] sm:$0xf]
  %v61 = vld [vmem:[%s1 + $0x5c] sm:$0xf]
  %v62 = vld [vmem:[%s1 + $0x60] sm:$0xf]
  %v63 = vld [vmem:[%s1 + $0x64] sm:$0xf]
  %v64 = vld [vmem:[%s1 + $0x68] sm:$0xf]
  %v65 = vld [vmem:[%s1 + $0x6c] sm:$0xf]
  %v66 = vld [vmem:[%s1 + $0x70] sm:$0xf]
  %v67 = vld [vmem:[%s1 + $0x74] sm:$0xf]
  %v68 = vld [vmem:[%s1 + $0x78] sm:$0xf]
  %v69 = vld [vmem:[%s1 + $0x7c] sm:$0xf]
  %v70 = vld [vmem:[%s1 + $0x80] sm:$0xf]
  %v71 = vld [vmem:[%s1 + $0x84] sm:$0xf]
  %v72 = vld [vmem:[%s1 + $0x88] sm:$0xf]
  %v73 = vld [vmem:[%s1 + $0x8c] sm:$0xf]
  %v74 = vld [vmem:[%s1 + $0x90] sm:$0xf]
  %v75 = vld [vmem:[%s1 + $0x94] sm:$0xf]
  %v76 = vld [vmem:[%s1 + $0x98] sm:$0xf]
  %v77 = vld [vmem:[%s1 + $0x9c] sm:$0xf]
  %v78 = vld [vmem:[%s1 + $0xa0] sm:$0xf]
  %v79 = vld [vmem:[%s1 + $0xa4] sm:$0xf]
  %v80 = vld [vmem:[%s1 + $0xa8] sm:$0xf]
  %v81 = vld [vmem:[%s1 + $0xac] sm:$0xf]
  %v82 = vld [vmem:[%s1 + $0xb0] sm:$0xf]
  %v83 = vld [vmem:[%s1 + $0xb4] sm:$0xf]
  %v84 = vld [vmem:[%s1 + $0xb8] sm:$0xf]
  %v85 = vld [vmem:[%s1 + $0xbc] sm:$0xf]
  %v86 = vld [vmem:[%s1 + $0xc0] sm:$0xf]
  %v87 = vld [vmem:[%s1 + $0xc4] sm:$0xf]
  %v88 = vld [vmem:[%s1 + $0xc8] sm:$0xf]
  %v89 = vld [vmem:[%s1 + $0xcc] sm:$0xf]
  %v90 = vld [vmem:[%s1 + $0xd0] sm:$0xf]
  %v91 = vld [vmem:[%s1 + $0xd4] sm:$0xf]
  %v92 = vld [vmem:[%s1 + $0xd8] sm:$0xf]
  %v93 = vld [vmem:[%s1 + $0xdc] sm:$0xf]
  %v94 = vld [vmem:[%s1 + $0xe0] sm:$0xf]
  %v95 = vld [vmem:[%s1 + $0xe4] sm:$0xf]
  %v96 = vld [vmem:[%s1 + $0xe8] sm:$0xf]
  %v97 = vld [vmem:[%s1 + $0xec] sm:$0xf]
  %v98 = vld [vmem:[%s1 + $0xf0] sm:$0xf]
  %v99 = vld [vmem:[%s1 + $0xf4] sm:$0xf]
  %v100 = vld [vmem:[%s1 + $0xf8] sm:$0xf]
  %v101 = vld [vmem:[%s1 + $0xfc] sm:$0xf]
  %v102 = vld [vmem:[%s1 + $0x100] sm:$0xf]
  %v103 = vld [vmem:[%s1 + $0x104] sm:$0xf]
  %v104 = vld [vmem:[%s1 + $0x108] sm:$0xf]
  %v105 = vld [vmem:[%s1 + $0x10c] sm:$0xf]
  %v106 = vld [vmem:[%s1 + $0x110] sm:$0xf]
  %v107 = vld [vmem:[%s1 + $0x114] sm:$0xf]
  %v108 = vld [vmem:[%s1 + $0x118] sm:$0xf]
  %v109 = vld [vmem:[%s1 + $0x11c] sm:$0xf]
  %v110 = vld [vmem:[%s1 + $0x120] sm:$0xf]
  %v111 = vld [vmem:[%s1 + $0x124] sm:$0xf]
  %v112 = vld [vmem:[%s1 + $0x128] sm:$0xf]
  %v113 = vld [vmem:[%s1 + $0x12c] sm:$0xf]
  %v114 = vld [vmem:[%s1 + $0x130] sm:$0xf]
  %v115 = vld [vmem:[%s1 + $0x134] sm:$0xf]
  %v116 = vld [vmem:[%s1 + $0x138] sm:$0xf]
  %v117 = vld [vmem:[%s1 + $0x13c] sm:$0xf]
  %v118 = vld [vmem:[%s1 + $0x140] sm:$0xf]
  %v119 = vld [vmem:[%s1 + $0x144] sm:$0xf]
  %v120 = vld [vmem:[%s1 + $0x148] sm:$0xf]
  %v121 = vld [vmem:[%s1 + $0x14c] sm:$0xf]
  %v122 = vld [vmem:[%s1 + $0x150] sm:$0xf]
  %v123 = vld [vmem:[%s1 + $0x154] sm:$0xf]
  %v124 = vld [vmem:[%s1 + $0x158] sm:$0xf]
  %v125 = vld [vmem:[%s1 + $0x15c] sm:$0xf]
  %v126 = vld [vmem:[%s1 + $0x160] sm:$0xf]
  %v127 = vld [vmem:[%s1 + $0x164] sm:$0xf]
  %v128 = vld [vmem:[%s1 + $0x168] sm:$0xf]
  %v129 = vld [vmem:[%s1 + $0x16c] sm:$0xf]
  %v130 = vld [vmem:[%s1 + $0x170] sm:$0xf]
  %v131 = vld [vmem:[%s1 + $0x174] sm:$0xf]
  %v132 = vld [vmem:[%s1 + $0x178] sm:$0xf]
  %v133 = vld [vmem:[%s1 + $0x17c] sm:$0xf]
  %v134 = vld [vmem:[%s1 + $0x180] sm:$0xf]
  %v135 = vld [vmem:[%s1 + $0x184] sm:$0xf]
  %v136 = vld [vmem:[%s1 + $0x188] sm:$0xf]
  %v137 = vld [vmem:[%s1 + $0x18c] sm:$0xf]
  %v138 = vld [vmem:[%s1 + $0x190] sm:$0xf]
  %v139 = vld [vmem:[%s1 + $0x194] sm:$0xf]
  %v140 = vld [vmem:[%s1 + $0x198] sm:$0xf]
  %v141 = vld [vmem:[%s1 + $0x19c] sm:$0xf]
  %v142 = vld [vmem:[%s1 + $0x1a0] sm:$0xf]
  %v143 = vld [vmem:[%s1 + $0x1a4] sm:$0xf]
  %v144 = vld [vmem:[%s1 + $0x1a8] sm:$0xf]
  %v145 = vld [vmem:[%s1 + $0x1ac] sm:$0xf]
  %v146 = vld [vmem:[%s1 + $0x1b0] sm:$0xf]
  %v147 = vld [vmem:[%s1 + $0x1b4] sm:$0xf]
  %v148 = vld [vmem:[%s1 + $0x1b8] sm:$0xf]
  %v149 = vld [vmem:[%s1 + $0x1bc] sm:$0xf]
  %v150 = vld [vmem:[%s1 + $0x1c0] sm:$0xf]
  %v151 = vld [vmem:[%s1 + $0x1c4] sm:$0xf]
  %v152 = vld [vmem:[%s1 + $0x1c8] sm:$0xf]
  %v153 = vld [vmem:[%s1 + $0x1cc] sm:$0xf]
  %v154 = vld [vmem:[%s1 + $0x1d0] sm:$0xf]
  %v155 = vld [vmem:[%s1 + $0x1d4] sm:$0xf]
  %v156 = vld [vmem:[%s1 + $0x1d8] sm:$0xf]
  %v157 = vld [vmem:[%s1 + $0x1dc] sm:$0xf]
  %v158 = vld [vmem:[%s1 + $0x1e0] sm:$0xf]
  %v159 = vld [vmem:[%s1 + $0x1e4] sm:$0xf]
  %v160 = vld [vmem:[%s1 + $0x1e8] sm:$0xf]
  %v161 = vld [vmem:[%s1 + $0x1ec] sm:$0xf]
  %v162 = vld [vmem:[%s1 + $0x1f0] sm:$0xf]
  %v163 = vld [vmem:[%s1 + $0x1f4] sm:$0xf]
  %v164 = vld [vmem:[%s1 + $0x1f8] sm:$0xf]
  %v165 = vld [vmem:[%s1 + $0x1fc] sm:$0xf]
  %v166 = vld [vmem:[%s1 + $0x200] sm:$0xf]
  %v167 = vld [vmem:[%s1 + $0x204] sm:$0xf]
  %v168 = vld [vmem:[%s1 + $0x208] sm:$0xf]
  %v169 = vld [vmem:[%s1 + $0x20c] sm:$0xf]
  %v170 = vld [vmem:[%s1 + $0x210] sm:$0xf]
  %v171 = vld [vmem:[%s1 + $0x214] sm:$0xf]
  %v172 = vld [vmem:[%s1 + $0x218] sm:$0xf]
  %v173 = vld [vmem:[%s1 + $0x21c] sm:$0xf]
  %v174 = vld [vmem:[%s1 + $0x220] sm:$0xf]
  %v175 = vld [vmem:[%s1 + $0x224] sm:$0xf]
  %v176 = vld [vmem:[%s1 + $0x228] sm:$0xf]
  %v177 = vld [vmem:[%s1 + $0x22c] sm:$0xf]
  %v178 = vld [vmem:[%s1 + $0x230] sm:$0xf]
  %v179 = vld [vmem:[%s1 + $0x234] sm:$0xf]
  %v180 = vld [vmem:[%s1 + $0x238] sm:$0xf]
  %v181 = vld [vmem:[%s1 + $0x23c] sm:$0xf]
  %v182 = vld [vmem:[%s2] sm:$0x1]
  %v184 = vlaneseq
  %v185 = vshrl.u32 %v184, 7
  %v186 = vsub.s32 0, %v185
  %v187 = vrot.slane %v182, %v186
  %v209 = vunpack.c.l.b16 %v18
  %v210 = vunpack.c.h.b16 %v18
  %v211 = vunpack.c.l.b16 %v19
  %v212 = vunpack.c.h.b16 %v19
  %v213 = vunpack.c.l.b16 %v20
  %v214 = vunpack.c.h.b16 %v20
  %v215 = vunpack.c.l.b16 %v21
  %v216 = vunpack.c.h.b16 %v21
  %v217 = vunpack.c.l.b16 %v22
  %v218 = vunpack.c.l.b16 %v23
  %v219 = vunpack.c.h.b16 %v23
  %v220 = vunpack.c.l.b16 %v24
  %v221 = vunpack.c.h.b16 %v24
  %v222 = vunpack.c.l.b16 %v25
  %v223 = vunpack.c.h.b16 %v25
  %v224 = vunpack.c.l.b16 %v26
  %v225 = vunpack.c.h.b16 %v26
  %v226 = vunpack.c.l.b16 %v27
  %v227 = vunpack.c.l.b16 %v28
  %v228 = vunpack.c.h.b16 %v28
  %v229 = vunpack.c.l.b16 %v29
  %v230 = vunpack.c.h.b16 %v29
  %v231 = vunpack.c.l.b16 %v30
  %v232 = vunpack.c.h.b16 %v30
  %v233 = vunpack.c.l.b16 %v31
  %v234 = vunpack.c.h.b16 %v31
  %v235 = vunpack.c.l.b16 %v32
  %v236 = vunpack.c.l.b16 %v33
  %v237 = vunpack.c.h.b16 %v33
  %v238 = vunpack.c.l.b16 %v34
  %v239 = vunpack.c.h.b16 %v34
  %v240 = vunpack.c.l.b16 %v35
  %v241 = vunpack.c.h.b16 %v35
  %v242 = vunpack.c.l.b16 %v36
  %v243 = vunpack.c.h.b16 %v36
  %v244 = vunpack.c.l.b16 %v37
  %v245 = vpack.c.b16 %v218, %v209
  %v246 = vpack.c.b16 %v219, %v210
  %v247 = vpack.c.b16 %v220, %v211
  %v248 = vpack.c.b16 %v221, %v212
  %v249 = vpack.c.b16 %v222, %v213
  %v250 = vpack.c.b16 %v223, %v214
  %v251 = vpack.c.b16 %v224, %v215
  %v252 = vpack.c.b16 %v225, %v216
  %v253 = vpack.c.b16 %v226, %v217
  %v254 = vpack.c.b16 %v236, %v227
  %v255 = vpack.c.b16 %v237, %v228
  %v256 = vpack.c.b16 %v238, %v229
  %v257 = vpack.c.b16 %v239, %v230
  %v258 = vpack.c.b16 %v240, %v231
  %v259 = vpack.c.b16 %v241, %v232
  %v260 = vpack.c.b16 %v242, %v233
  %v261 = vpack.c.b16 %v243, %v234
  %v262 = vpack.c.b16 %v244, %v235
  %v425 = vunpack.c.l.b16 %v38
  %v426 = vunpack.c.l.b16 %v39
  %v427 = vunpack.c.l.b16 %v40
  %v428 = vunpack.c.l.b16 %v41
  %v429 = vunpack.c.l.b16 %v42
  %v430 = vunpack.c.l.b16 %v43
  %v431 = vunpack.c.l.b16 %v44
  %v432 = vunpack.c.l.b16 %v45
  %v433 = vunpack.c.l.b16 %v46
  %v434 = vunpack.c.l.b16 %v47
  %v435 = vunpack.c.l.b16 %v48
  %v436 = vunpack.c.l.b16 %v49
  %v437 = vunpack.c.l.b16 %v50
  %v438 = vunpack.c.l.b16 %v51
  %v439 = vunpack.c.l.b16 %v52
  %v440 = vunpack.c.l.b16 %v53
  %v441 = vunpack.c.l.b16 %v54
  %v442 = vunpack.c.l.b16 %v55
  %v443 = vunpack.c.l.b16 %v56
  %v444 = vunpack.c.l.b16 %v57
  %v445 = vunpack.c.l.b16 %v58
  %v446 = vunpack.c.l.b16 %v59
  %v447 = vunpack.c.l.b16 %v60
  %v448 = vunpack.c.l.b16 %v61
  %v449 = vunpack.c.l.b16 %v62
  %v450 = vunpack.c.l.b16 %v63
  %v451 = vunpack.c.l.b16 %v64
  %v452 = vunpack.c.l.b16 %v65
  %v453 = vunpack.c.l.b16 %v66
  %v454 = vunpack.c.l.b16 %v67
  %v455 = vunpack.c.l.b16 %v68
  %v456 = vunpack.c.l.b16 %v69
  %v457 = vunpack.c.l.b16 %v70
  %v458 = vunpack.c.l.b16 %v71
  %v459 = vunpack.c.l.b16 %v72
  %v460 = vunpack.c.l.b16 %v73
  %v461 = vunpack.c.l.b16 %v74
  %v462 = vunpack.c.l.b16 %v75
  %v463 = vunpack.c.l.b16 %v76
  %v464 = vunpack.c.l.b16 %v77
  %v465 = vunpack.c.l.b16 %v78
  %v466 = vunpack.c.l.b16 %v79
  %v467 = vunpack.c.l.b16 %v80
  %v468 = vunpack.c.l.b16 %v81
  %v469 = vunpack.c.l.b16 %v82
  %v470 = vunpack.c.l.b16 %v83
  %v471 = vunpack.c.l.b16 %v84
  %v472 = vunpack.c.l.b16 %v85
  %v473 = vunpack.c.l.b16 %v86
  %v474 = vunpack.c.l.b16 %v87
  %v475 = vunpack.c.l.b16 %v88
  %v476 = vunpack.c.l.b16 %v89
  %v477 = vunpack.c.l.b16 %v90
  %v478 = vunpack.c.l.b16 %v91
  %v479 = vunpack.c.l.b16 %v92
  %v480 = vunpack.c.l.b16 %v93
  %v481 = vunpack.c.l.b16 %v94
  %v482 = vunpack.c.l.b16 %v95
  %v483 = vunpack.c.l.b16 %v96
  %v484 = vunpack.c.l.b16 %v97
  %v485 = vunpack.c.l.b16 %v98
  %v486 = vunpack.c.l.b16 %v99
  %v487 = vunpack.c.l.b16 %v100
  %v488 = vunpack.c.l.b16 %v101
  %v489 = vunpack.c.l.b16 %v102
  %v490 = vunpack.c.l.b16 %v103
  %v491 = vunpack.c.l.b16 %v104
  %v492 = vunpack.c.l.b16 %v105
  %v493 = vunpack.c.l.b16 %v106
  %v494 = vunpack.c.l.b16 %v107
  %v495 = vunpack.c.l.b16 %v108
  %v496 = vunpack.c.l.b16 %v109
  %v497 = vunpack.c.l.b16 %v110
  %v498 = vunpack.c.l.b16 %v111
  %v499 = vunpack.c.l.b16 %v112
  %v500 = vunpack.c.l.b16 %v113
  %v501 = vunpack.c.l.b16 %v114
  %v502 = vunpack.c.l.b16 %v115
  %v503 = vunpack.c.l.b16 %v116
  %v504 = vunpack.c.l.b16 %v117
  %v505 = vunpack.c.l.b16 %v118
  %v506 = vunpack.c.l.b16 %v119
  %v507 = vunpack.c.l.b16 %v120
  %v508 = vunpack.c.l.b16 %v121
  %v509 = vunpack.c.l.b16 %v122
  %v510 = vunpack.c.l.b16 %v123
  %v511 = vunpack.c.l.b16 %v124
  %v512 = vunpack.c.l.b16 %v125
  %v513 = vunpack.c.l.b16 %v126
  %v514 = vunpack.c.l.b16 %v127
  %v515 = vunpack.c.l.b16 %v128
  %v516 = vunpack.c.l.b16 %v129
  %v517 = vunpack.c.l.b16 %v130
  %v518 = vunpack.c.l.b16 %v131
  %v519 = vunpack.c.l.b16 %v132
  %v520 = vunpack.c.l.b16 %v133
  %v521 = vunpack.c.l.b16 %v134
  %v522 = vunpack.c.l.b16 %v135
  %v523 = vunpack.c.l.b16 %v136
  %v524 = vunpack.c.l.b16 %v137
  %v525 = vunpack.c.l.b16 %v138
  %v526 = vunpack.c.l.b16 %v139
  %v527 = vunpack.c.l.b16 %v140
  %v528 = vunpack.c.l.b16 %v141
  %v529 = vunpack.c.l.b16 %v142
  %v530 = vunpack.c.l.b16 %v143
  %v531 = vunpack.c.l.b16 %v144
  %v532 = vunpack.c.l.b16 %v145
  %v533 = vunpack.c.l.b16 %v146
  %v534 = vunpack.c.l.b16 %v147
  %v535 = vunpack.c.l.b16 %v148
  %v536 = vunpack.c.l.b16 %v149
  %v537 = vunpack.c.l.b16 %v150
  %v538 = vunpack.c.l.b16 %v151
  %v539 = vunpack.c.l.b16 %v152
  %v540 = vunpack.c.l.b16 %v153
  %v541 = vunpack.c.l.b16 %v154
  %v542 = vunpack.c.l.b16 %v155
  %v543 = vunpack.c.l.b16 %v156
  %v544 = vunpack.c.l.b16 %v157
  %v545 = vunpack.c.l.b16 %v158
  %v546 = vunpack.c.l.b16 %v159
  %v547 = vunpack.c.l.b16 %v160
  %v548 = vunpack.c.l.b16 %v161
  %v549 = vunpack.c.l.b16 %v162
  %v550 = vunpack.c.l.b16 %v163
  %v551 = vunpack.c.l.b16 %v164
  %v552 = vunpack.c.l.b16 %v165
  %v553 = vunpack.c.l.b16 %v166
  %v554 = vunpack.c.l.b16 %v167
  %v555 = vunpack.c.l.b16 %v168
  %v556 = vunpack.c.l.b16 %v169
  %v557 = vunpack.c.l.b16 %v170
  %v558 = vunpack.c.l.b16 %v171
  %v559 = vunpack.c.l.b16 %v172
  %v560 = vunpack.c.l.b16 %v173
  %v561 = vunpack.c.l.b16 %v174
  %v562 = vunpack.c.l.b16 %v175
  %v563 = vunpack.c.l.b16 %v176
  %v564 = vunpack.c.l.b16 %v177
  %v565 = vunpack.c.l.b16 %v178
  %v566 = vunpack.c.l.b16 %v179
  %v567 = vunpack.c.l.b16 %v180
  %v568 = vunpack.c.l.b16 %v181
  %v569 = vpack.c.b16 %v426, %v425
  %v570 = vpack.c.b16 %v428, %v427
  %v571 = vpack.c.b16 %v430, %v429
  %v572 = vpack.c.b16 %v432, %v431
  %v573 = vpack.c.b16 %v434, %v433
  %v574 = vpack.c.b16 %v436, %v435
  %v575 = vpack.c.b16 %v438, %v437
  %v576 = vpack.c.b16 %v440, %v439
  %v577 = vpack.c.b16 %v442, %v441
  %v578 = vpack.c.b16 %v444, %v443
  %v579 = vpack.c.b16 %v446, %v445
  %v580 = vpack.c.b16 %v448, %v447
  %v581 = vpack.c.b16 %v450, %v449
  %v582 = vpack.c.b16 %v452, %v451
  %v583 = vpack.c.b16 %v454, %v453
  %v584 = vpack.c.b16 %v456, %v455
  %v585 = vpack.c.b16 %v458, %v457
  %v586 = vpack.c.b16 %v460, %v459
  %v587 = vpack.c.b16 %v462, %v461
  %v588 = vpack.c.b16 %v464, %v463
  %v589 = vpack.c.b16 %v466, %v465
  %v590 = vpack.c.b16 %v468, %v467
  %v591 = vpack.c.b16 %v470, %v469
  %v592 = vpack.c.b16 %v472, %v471
  %v593 = vpack.c.b16 %v474, %v473
  %v594 = vpack.c.b16 %v476, %v475
  %v595 = vpack.c.b16 %v478, %v477
  %v596 = vpack.c.b16 %v480, %v479
  %v597 = vpack.c.b16 %v482, %v481
  %v598 = vpack.c.b16 %v484, %v483
  %v599 = vpack.c.b16 %v486, %v485
  %v600 = vpack.c.b16 %v488, %v487
  %v601 = vpack.c.b16 %v490, %v489
  %v602 = vpack.c.b16 %v492, %v491
  %v603 = vpack.c.b16 %v494, %v493
  %v604 = vpack.c.b16 %v496, %v495
  %v605 = vpack.c.b16 %v498, %v497
  %v606 = vpack.c.b16 %v500, %v499
  %v607 = vpack.c.b16 %v502, %v501
  %v608 = vpack.c.b16 %v504, %v503
  %v609 = vpack.c.b16 %v506, %v505
  %v610 = vpack.c.b16 %v508, %v507
  %v611 = vpack.c.b16 %v510, %v509
  %v612 = vpack.c.b16 %v512, %v511
  %v613 = vpack.c.b16 %v514, %v513
  %v614 = vpack.c.b16 %v516, %v515
  %v615 = vpack.c.b16 %v518, %v517
  %v616 = vpack.c.b16 %v520, %v519
  %v617 = vpack.c.b16 %v522, %v521
  %v618 = vpack.c.b16 %v524, %v523
  %v619 = vpack.c.b16 %v526, %v525
  %v620 = vpack.c.b16 %v528, %v527
  %v621 = vpack.c.b16 %v530, %v529
  %v622 = vpack.c.b16 %v532, %v531
  %v623 = vpack.c.b16 %v534, %v533
  %v624 = vpack.c.b16 %v536, %v535
  %v625 = vpack.c.b16 %v538, %v537
  %v626 = vpack.c.b16 %v540, %v539
  %v627 = vpack.c.b16 %v542, %v541
  %v628 = vpack.c.b16 %v544, %v543
  %v629 = vpack.c.b16 %v546, %v545
  %v630 = vpack.c.b16 %v548, %v547
  %v631 = vpack.c.b16 %v550, %v549
  %v632 = vpack.c.b16 %v552, %v551
  %v633 = vpack.c.b16 %v554, %v553
  %v634 = vpack.c.b16 %v556, %v555
  %v635 = vpack.c.b16 %v558, %v557
  %v636 = vpack.c.b16 %v560, %v559
  %v637 = vpack.c.b16 %v562, %v561
  %v638 = vpack.c.b16 %v564, %v563
  %v639 = vpack.c.b16 %v566, %v565
  %v640 = vpack.c.b16 %v568, %v567
  %713 = vmatprep.subr.bf16.mxu0 0
  %714 = vmatpush1.bf16.msra.mxu0 %v569
  %715 = vmatprep.subr.bf16.mxu0 0
  %716 = vmatpush1.bf16.msra.mxu0 %v570
  %717 = vmatprep.subr.bf16.mxu0 0
  %718 = vmatpush1.bf16.msra.mxu0 %v571
  %719 = vmatprep.subr.bf16.mxu0 0
  %720 = vmatpush1.bf16.msra.mxu0 %v572
  %721 = vmatprep.subr.bf16.mxu0 0
  %722 = vmatpush1.bf16.msra.mxu0 %v573
  %723 = vmatprep.subr.bf16.mxu0 0
  %724 = vmatpush1.bf16.msra.mxu0 %v574
  %725 = vmatprep.subr.bf16.mxu0 0
  %726 = vmatpush1.bf16.msra.mxu0 %v575
  %727 = vmatprep.subr.bf16.mxu0 0
  %728 = vmatpush1.bf16.msra.mxu0 %v576
  %729 = vmatprep.subr.bf16.mxu0 0
  %730 = vmatpush1.bf16.msra.mxu0 %v577
  %731 = vmatprep.subr.bf16.mxu0 0
  %732 = vmatpush1.bf16.msra.mxu0 %v578
  %733 = vmatprep.subr.bf16.mxu0 0
  %734 = vmatpush1.bf16.msra.mxu0 %v579
  %735 = vmatprep.subr.bf16.mxu0 0
  %736 = vmatpush1.bf16.msra.mxu0 %v580
  %737 = vmatprep.subr.bf16.mxu0 0
  %738 = vmatpush1.bf16.msra.mxu0 %v581
  %739 = vmatprep.subr.bf16.mxu0 0
  %740 = vmatpush1.bf16.msra.mxu0 %v582
  %741 = vmatprep.subr.bf16.mxu0 0
  %742 = vmatpush1.bf16.msra.mxu0 %v583
  %743 = vmatprep.subr.bf16.mxu0 0
  %744 = vmatpush1.bf16.msra.mxu0 %v584
  %745 = vmatprep.mubr.bf16.mxu0 %v246
  %746 = vmatmul.mubr.bf16.gmra.mrb[0].mxu0 %v245
  %v747 = vpop.f32.mrb[0].mxu0
  %v748 = vadd.f32 %v187, %v747
  %v749 = vpop.f32.mrb[0].mxu0
  %v750 = vpop.f32.mrb[0].mxu0
  %v751 = vadd.f32 %v187, %v750
  %v752 = vpop.f32.mrb[0].mxu0
  %753 = vmatprep.mubr.bf16.mxu0 %v255
  %754 = vmatmul.mubr.bf16.gmra.mrb[0].mxu0 %v254
  %v755 = vpop.f32.mrb[0].mxu0
  %v756 = vadd.f32 %v187, %v755
  %v757 = vpop.f32.mrb[0].mxu0
  %v758 = vpop.f32.mrb[0].mxu0
  %v759 = vadd.f32 %v187, %v758
  %v760 = vpop.f32.mrb[0].mxu0
  %761 = vdwg.mxu0
  %762 = vmatprep.subr.bf16.mxu0 0
  %763 = vmatpush1.bf16.msra.mxu0 %v585
  %764 = vmatprep.subr.bf16.mxu0 0
  %765 = vmatpush1.bf16.msra.mxu0 %v586
  %766 = vmatprep.subr.bf16.mxu0 0
  %767 = vmatpush1.bf16.msra.mxu0 %v587
  %768 = vmatprep.subr.bf16.mxu0 0
  %769 = vmatpush1.bf16.msra.mxu0 %v588
  %770 = vmatprep.subr.bf16.mxu0 0
  %771 = vmatpush1.bf16.msra.mxu0 %v589
  %772 = vmatprep.subr.bf16.mxu0 0
  %773 = vmatpush1.bf16.msra.mxu0 %v590
  %774 = vmatprep.subr.bf16.mxu0 0
  %775 = vmatpush1.bf16.msra.mxu0 %v591
  %776 = vmatprep.subr.bf16.mxu0 0
  %777 = vmatpush1.bf16.msra.mxu0 %v592
  %778 = vmatprep.subr.bf16.mxu0 0
  %779 = vmatpush1.bf16.msra.mxu0 %v593
  %780 = vmatprep.subr.bf16.mxu0 0
  %781 = vmatpush1.bf16.msra.mxu0 %v594
  %782 = vmatprep.subr.bf16.mxu0 0
  %783 = vmatpush1.bf16.msra.mxu0 %v595
  %784 = vmatprep.subr.bf16.mxu0 0
  %785 = vmatpush1.bf16.msra.mxu0 %v596
  %786 = vmatprep.subr.bf16.mxu0 0
  %787 = vmatpush1.bf16.msra.mxu0 %v597
  %788 = vmatprep.subr.bf16.mxu0 0
  %789 = vmatpush1.bf16.msra.mxu0 %v598
  %790 = vmatprep.subr.bf16.mxu0 0
  %791 = vmatpush1.bf16.msra.mxu0 %v599
  %792 = vmatprep.subr.bf16.mxu0 0
  %793 = vmatpush1.bf16.msra.mxu0 %v600
  %794 = vmatprep.mubr.bf16.mxu0 %v248
  %795 = vmatmul.mubr.bf16.gmra.mrb[0].mxu0 %v247
  %v796 = vpop.f32.mrb[0].mxu0
  %v797 = vadd.f32 %v748, %v796
  %v798 = vpop.f32.mrb[0].mxu0
  %v799 = vpop.f32.mrb[0].mxu0
  %v800 = vadd.f32 %v751, %v799
  %v801 = vpop.f32.mrb[0].mxu0
  %802 = vmatprep.mubr.bf16.mxu0 %v257
  %803 = vmatmul.mubr.bf16.gmra.mrb[0].mxu0 %v256
  %v804 = vpop.f32.mrb[0].mxu0
  %v805 = vadd.f32 %v756, %v804
  %v806 = vpop.f32.mrb[0].mxu0
  %v807 = vpop.f32.mrb[0].mxu0
  %v808 = vadd.f32 %v759, %v807
  %v809 = vpop.f32.mrb[0].mxu0
  %810 = vdwg.mxu0
  %811 = vmatprep.subr.bf16.mxu0 0
  %812 = vmatpush1.bf16.msra.mxu0 %v601
  %813 = vmatprep.subr.bf16.mxu0 0
  %814 = vmatpush1.bf16.msra.mxu0 %v602
  %815 = vmatprep.subr.bf16.mxu0 0
  %816 = vmatpush1.bf16.msra.mxu0 %v603
  %817 = vmatprep.subr.bf16.mxu0 0
  %818 = vmatpush1.bf16.msra.mxu0 %v604
  %819 = vmatprep.subr.bf16.mxu0 0
  %820 = vmatpush1.bf16.msra.mxu0 %v605
  %821 = vmatprep.subr.bf16.mxu0 0
  %822 = vmatpush1.bf16.msra.mxu0 %v606
  %823 = vmatprep.subr.bf16.mxu0 0
  %824 = vmatpush1.bf16.msra.mxu0 %v607
  %825 = vmatprep.subr.bf16.mxu0 0
  %826 = vmatpush1.bf16.msra.mxu0 %v608
  %827 = vmatprep.subr.bf16.mxu0 0
  %828 = vmatpush1.bf16.msra.mxu0 %v609
  %829 = vmatprep.subr.bf16.mxu0 0
  %830 = vmatpush1.bf16.msra.mxu0 %v610
  %831 = vmatprep.subr.bf16.mxu0 0
  %832 = vmatpush1.bf16.msra.mxu0 %v611
  %833 = vmatprep.subr.bf16.mxu0 0
  %834 = vmatpush1.bf16.msra.mxu0 %v612
  %835 = vmatprep.subr.bf16.mxu0 0
  %836 = vmatpush1.bf16.msra.mxu0 %v613
  %837 = vmatprep.subr.bf16.mxu0 0
  %838 = vmatpush1.bf16.msra.mxu0 %v614
  %839 = vmatprep.subr.bf16.mxu0 0
  %840 = vmatpush1.bf16.msra.mxu0 %v615
  %841 = vmatprep.subr.bf16.mxu0 0
  %842 = vmatpush1.bf16.msra.mxu0 %v616
  %843 = vmatprep.mubr.bf16.mxu0 %v250
  %844 = vmatmul.mubr.bf16.gmra.mrb[0].mxu0 %v249
  %v845 = vpop.f32.mrb[0].mxu0
  %v846 = vadd.f32 %v797, %v845
  %v847 = vpop.f32.mrb[0].mxu0
  %v848 = vpop.f32.mrb[0].mxu0
  %v849 = vadd.f32 %v800, %v848
  %v850 = vpop.f32.mrb[0].mxu0
  %851 = vmatprep.mubr.bf16.mxu0 %v259
  %852 = vmatmul.mubr.bf16.gmra.mrb[0].mxu0 %v258
  %v853 = vpop.f32.mrb[0].mxu0
  %v854 = vadd.f32 %v805, %v853
  %v855 = vpop.f32.mrb[0].mxu0
  %v856 = vpop.f32.mrb[0].mxu0
  %v857 = vadd.f32 %v808, %v856
  %v858 = vpop.f32.mrb[0].mxu0
  %859 = vdwg.mxu0
  %860 = vmatprep.subr.bf16.mxu0 0
  %861 = vmatpush1.bf16.msra.mxu0 %v617
  %862 = vmatprep.subr.bf16.mxu0 0
  %863 = vmatpush1.bf16.msra.mxu0 %v618
  %864 = vmatprep.subr.bf16.mxu0 0
  %865 = vmatpush1.bf16.msra.mxu0 %v619
  %866 = vmatprep.subr.bf16.mxu0 0
  %867 = vmatpush1.bf16.msra.mxu0 %v620
  %868 = vmatprep.subr.bf16.mxu0 0
  %869 = vmatpush1.bf16.msra.mxu0 %v621
  %870 = vmatprep.subr.bf16.mxu0 0
  %871 = vmatpush1.bf16.msra.mxu0 %v622
  %872 = vmatprep.subr.bf16.mxu0 0
  %873 = vmatpush1.bf16.msra.mxu0 %v623
  %874 = vmatprep.subr.bf16.mxu0 0
  %875 = vmatpush1.bf16.msra.mxu0 %v624
  %876 = vmatprep.subr.bf16.mxu0 0
  %877 = vmatpush1.bf16.msra.mxu0 %v625
  %878 = vmatprep.subr.bf16.mxu0 0
  %879 = vmatpush1.bf16.msra.mxu0 %v626
  %880 = vmatprep.subr.bf16.mxu0 0
  %881 = vmatpush1.bf16.msra.mxu0 %v627
  %882 = vmatprep.subr.bf16.mxu0 0
  %883 = vmatpush1.bf16.msra.mxu0 %v628
  %884 = vmatprep.subr.bf16.mxu0 0
  %885 = vmatpush1.bf16.msra.mxu0 %v629
  %886 = vmatprep.subr.bf16.mxu0 0
  %887 = vmatpush1.bf16.msra.mxu0 %v630
  %888 = vmatprep.subr.bf16.mxu0 0
  %889 = vmatpush1.bf16.msra.mxu0 %v631
  %890 = vmatprep.subr.bf16.mxu0 0
  %891 = vmatpush1.bf16.msra.mxu0 %v632
  %892 = vmatprep.mubr.bf16.mxu0 %v252
  %893 = vmatmul.mubr.bf16.gmra.mrb[0].mxu0 %v251
  %v894 = vpop.f32.mrb[0].mxu0
  %v895 = vadd.f32 %v846, %v894
  %v896 = vpop.f32.mrb[0].mxu0
  %v897 = vpop.f32.mrb[0].mxu0
  %v898 = vadd.f32 %v849, %v897
  %v899 = vpop.f32.mrb[0].mxu0
  %900 = vmatprep.mubr.bf16.mxu0 %v261
  %901 = vmatmul.mubr.bf16.gmra.mrb[0].mxu0 %v260
  %v902 = vpop.f32.mrb[0].mxu0
  %v903 = vadd.f32 %v854, %v902
  %v904 = vpop.f32.mrb[0].mxu0
  %v905 = vpop.f32.mrb[0].mxu0
  %v906 = vadd.f32 %v857, %v905
  %v907 = vpop.f32.mrb[0].mxu0
  %908 = vdwg.mxu0
  %909 = vmatprep.subr.bf16.mxu0 0
  %910 = vmatpush1.bf16.msra.mxu0 %v633
  %911 = vmatprep.subr.bf16.mxu0 0
  %912 = vmatpush1.bf16.msra.mxu0 %v634
  %913 = vmatprep.subr.bf16.mxu0 0
  %914 = vmatpush1.bf16.msra.mxu0 %v635
  %915 = vmatprep.subr.bf16.mxu0 0
  %916 = vmatpush1.bf16.msra.mxu0 %v636
  %917 = vmatprep.subr.bf16.mxu0 0
  %918 = vmatpush1.bf16.msra.mxu0 %v637
  %919 = vmatprep.subr.bf16.mxu0 0
  %920 = vmatpush1.bf16.msra.mxu0 %v638
  %921 = vmatprep.subr.bf16.mxu0 0
  %922 = vmatpush1.bf16.msra.mxu0 %v639
  %923 = vmatprep.subr.bf16.mxu0 0
  %924 = vmatpush1.bf16.msra.mxu0 %v640
  %925 = vmatprep.subr.bf16.mxu0 0
  %926 = vmatpush1.bf16.msra.mxu0 0
  %927 = vmatprep.subr.bf16.mxu0 0
  %928 = vmatpush1.bf16.msra.mxu0 0
  %929 = vmatprep.subr.bf16.mxu0 0
  %930 = vmatpush1.bf16.msra.mxu0 0
  %931 = vmatprep.subr.bf16.mxu0 0
  %932 = vmatpush1.bf16.msra.mxu0 0
  %933 = vmatprep.subr.bf16.mxu0 0
  %934 = vmatpush1.bf16.msra.mxu0 0
  %935 = vmatprep.subr.bf16.mxu0 0
  %936 = vmatpush1.bf16.msra.mxu0 0
  %937 = vmatprep.subr.bf16.mxu0 0
  %938 = vmatpush1.bf16.msra.mxu0 0
  %939 = vmatprep.subr.bf16.mxu0 0
  %940 = vmatpush1.bf16.msra.mxu0 0
  %941 = vmatprep.mubr.bf16.mxu0 0
  %942 = vmatmul.mubr.bf16.gmra.mrb[0].mxu0 %v253
  %v943 = vpop.f32.mrb[0].mxu0
  %v944 = vadd.f32 %v895, %v943
  %v945 = vpop.f32.mrb[0].mxu0
  %v946 = vpop.f32.mrb[0].mxu0
  %v947 = vadd.f32 %v898, %v946
  %v948 = vpop.f32.mrb[0].mxu0
  %949 = vmatprep.mubr.bf16.mxu0 0
  %950 = vmatmul.mubr.bf16.gmra.mrb[0].mxu0 %v262
  %v951 = vpop.f32.mrb[0].mxu0
  %v952 = vadd.f32 %v903, %v951
  %v953 = vpop.f32.mrb[0].mxu0
  %v954 = vpop.f32.mrb[0].mxu0
  %v955 = vadd.f32 %v906, %v954
  %v956 = vpop.f32.mrb[0].mxu0
  %957 = vdwg.mxu0
  %v958 = vld [vmem:[%s3] sm:$0xf]
  %v959 = vld [vmem:[%s3 + $0x4] sm:$0xf]
  %v960 = vld [vmem:[%s3 + $0x8] sm:$0xf]
  %v961 = vld [vmem:[%s3 + $0xc] sm:$0xf]
  %v962 = vunpack.c.l.bf16 %v958
  %v963 = vunpack.c.l.bf16 %v959
  %v964 = vunpack.c.l.bf16 %v960
  %v965 = vunpack.c.l.bf16 %v961
  %v966 = vadd.f32 %v944, %v962
  %v967 = vadd.f32 %v947, %v963
  %v968 = vadd.f32 %v952, %v964
  %v969 = vadd.f32 %v955, %v965
  %v970 = vmax.f32 %v966, 0.0
  %v971 = vmax.f32 %v967, 0.0
  %v972 = vmax.f32 %v968, 0.0
  %v973 = vmax.f32 %v969, 0.0
  %v974 = vpack.c.bf16 %v971, %v970
  %v975 = vpack.c.bf16 %v973, %v972
  %v978 = vunpack.c.l.b16 %v974
  %v979 = vunpack.c.h.b16 %v974
  %v980 = vunpack.c.l.b16 %v975
  %v981 = vunpack.c.h.b16 %v975
  %v982 = vpack.c.b16 %v978, %v978
  %v983 = vpack.c.b16 %v979, %v979
  %v984 = vpack.c.b16 %v980, %v980
  %v985 = vpack.c.b16 %v981, %v981
  %990 = vst [vmem:[%s4] sm:$0xf] %v982
  %991 = vst [vmem:[%s4 + $0x4] sm:$0xf] %v983
  %992 = vst [vmem:[%s4 + $0x8] sm:$0xf] %v984
  %993 = vst [vmem:[%s4 + $0xc] sm:$0xf] %v985
  // Predicated region
  $region18: #{image_encoder_forward.40} parent=0 // pred_check
    _
  $region19: #{image_encoder_forward.40} parent=0 // pred_check_branch
    %995 = sbr.rel (0) target = $region21
  $region20: #{image_encoder_forward.40} parent=0 // pred_region
    _
  $region21: #{image_encoder_forward.40} parent=0 // pred_fallthru
    _
  // Predicated region
  $region22: #{image_encoder_forward.40} parent=0 // pred_check
    _
  $region23: #{image_encoder_forward.40} parent=0 // pred_check_branch
    %997 = sbr.rel (0) target = $region25
  $region24: #{image_encoder_forward.40} parent=0 // pred_region
    _
  $region25: #{image_encoder_forward.40} parent=0 // pred_fallthru
    _

// kernel: image_encoder_forward.41
$region0: #{image_encoder_forward.41}
  #allocation0 [shape = 'u32[]', space=smem, size = 0x4, offset = 0x4, fixed_abs, tag = 'smem constant byte address 0x4 - core index']
  #allocation1 [shape = 'u32[144,128]{1,0:T(1,128)}', space=vmem, size = 0x12000, scoped, tag = 'internal scratch']
  %s0 = inlined_call_operand.vmem [shape: bf16[32,1152], index: 0, kind: input, shape index: {}]
  %s1 = inlined_call_operand.vmem [shape: bf16[1152,128], index: 1, kind: input, shape index: {}]
  %s2 = inlined_call_operand.vmem [shape: f32[1,128], index: 2, kind: input, shape index: {}]
  %s3 = inlined_call_operand.vmem [shape: bf16[32,128], index: 3, kind: output, shape index: {}]
  %s4 = sld [smem:[#allocation0]]
  $region22: #{image_encoder_forward.41} parent=0
    _
  %s6 = ssub.s32 1, %s4
  %s7 = scalar_select 0, %s6, %s4
  // Predicated region
  $region2: #{image_encoder_forward.41} parent=0 // pred_check
    _
  $region3: #{image_encoder_forward.41} parent=0 // pred_check_branch
    %9 = sbr.rel (0) target = $region5
  $region4: #{image_encoder_forward.41} parent=0 // pred_region
    _
  $region5: #{image_encoder_forward.41} parent=0 // pred_fallthru
    _
  // Predicated region
  $region6: #{image_encoder_forward.41} parent=0 // pred_check
    _
  $region7: #{image_encoder_forward.41} parent=0 // pred_check_branch
    %11 = sbr.rel (0) target = $region9
  $region8: #{image_encoder_forward.41} parent=0 // pred_region
    _
  $region9: #{image_encoder_forward.41} parent=0 // pred_fallthru
    _
  // Predicated region
  $region10: #{image_encoder_forward.41} parent=0 // pred_check
    _
  $region11: #{image_encoder_forward.41} parent=0 // pred_check_branch
    %13 = sbr.rel (0) target = $region13
  $region12: #{image_encoder_forward.41} parent=0 // pred_region
    _
  $region13: #{image_encoder_forward.41} parent=0 // pred_fallthru
    _
  %v15 = vld [vmem:[%s0] sm:$0xff]
  %v16 = vld [vmem:[%s0 + $0x8] sm:$0xff]
  %v17 = vld [vmem:[%s0 + $0x10] sm:$0xff]
  %v18 = vld [vmem:[%s0 + $0x18] sm:$0xff]
  %v19 = vld [vmem:[%s0 + $0x20] sm:$0xf]
  %v20 = vld [vmem:[%s0 + $0x24] sm:$0xff]
  %v21 = vld [vmem:[%s0 + $0x2c] sm:$0xff]
  %v22 = vld [vmem:[%s0 + $0x34] sm:$0xff]
  %v23 = vld [vmem:[%s0 + $0x3c] sm:$0xff]
  %v24 = vld [vmem:[%s0 + $0x44] sm:$0xf]
  %v25 = vld [vmem:[%s0 + $0x48] sm:$0xff]
  %v26 = vld [vmem:[%s0 + $0x50] sm:$0xff]
  %v27 = vld [vmem:[%s0 + $0x58] sm:$0xff]
  %v28 = vld [vmem:[%s0 + $0x60] sm:$0xff]
  %v29 = vld [vmem:[%s0 + $0x68] sm:$0xf]
  %v30 = vld [vmem:[%s0 + $0x6c] sm:$0xff]
  %v31 = vld [vmem:[%s0 + $0x74] sm:$0xff]
  %v32 = vld [vmem:[%s0 + $0x7c] sm:$0xff]
  %v33 = vld [vmem:[%s0 + $0x84] sm:$0xff]
  %v34 = vld [vmem:[%s0 + $0x8c] sm:$0xf]
  %v35 = vld [vmem:[%s1] sm:$0xf]
  %v36 = vld [vmem:[%s1 + $0x4] sm:$0xf]
  %v37 = vld [vmem:[%s1 + $0x8] sm:$0xf]
  %v38 = vld [vmem:[%s1 + $0xc] sm:$0xf]
  %v39 = vld [vmem:[%s1 + $0x10] sm:$0xf]
  %v40 = vld [vmem:[%s1 + $0x14] sm:$0xf]
  %v41 = vld [vmem:[%s1 + $0x18] sm:$0xf]
  %v42 = vld [vmem:[%s1 + $0x1c] sm:$0xf]
  %v43 = vld [vmem:[%s1 + $0x20] sm:$0xf]
  %v44 = vld [vmem:[%s1 + $0x24] sm:$0xf]
  %v45 = vld [vmem:[%s1 + $0x28] sm:$0xf]
  %v46 = vld [vmem:[%s1 + $0x2c] sm:$0xf]
  %v47 = vld [vmem:[%s1 + $0x30] sm:$0xf]
  %v48 = vld [vmem:[%s1 + $0x34] sm:$0xf]
  %v49 = vld [vmem:[%s1 + $0x38] sm:$0xf]
  %v50 = vld [vmem:[%s1 + $0x3c] sm:$0xf]
  %v51 = vld [vmem:[%s1 + $0x40] sm:$0xf]
  %v52 = vld [vmem:[%s1 + $0x44] sm:$0xf]
  %v53 = vld [vmem:[%s1 + $0x48] sm:$0xf]
  %v54 = vld [vmem:[%s1 + $0x4c] sm:$0xf]
  %v55 = vld [vmem:[%s1 + $0x50] sm:$0xf]
  %v56 = vld [vmem:[%s1 + $0x54] sm:$0xf]
  %v57 = vld [vmem:[%s1 + $0x58] sm:$0xf]
  %v58 = vld [vmem:[%s1 + $0x5c] sm:$0xf]
  %v59 = vld [vmem:[%s1 + $0x60] sm:$0xf]
  %v60 = vld [vmem:[%s1 + $0x64] sm:$0xf]
  %v61 = vld [vmem:[%s1 + $0x68] sm:$0xf]
  %v62 = vld [vmem:[%s1 + $0x6c] sm:$0xf]
  %v63 = vld [vmem:[%s1 + $0x70] sm:$0xf]
  %v64 = vld [vmem:[%s1 + $0x74] sm:$0xf]
  %v65 = vld [vmem:[%s1 + $0x78] sm:$0xf]
  %v66 = vld [vmem:[%s1 + $0x7c] sm:$0xf]
  %v67 = vld [vmem:[%s1 + $0x80] sm:$0xf]
  %v68 = vld [vmem:[%s1 + $0x84] sm:$0xf]
  %v69 = vld [vmem:[%s1 + $0x88] sm:$0xf]
  %v70 = vld [vmem:[%s1 + $0x8c] sm:$0xf]
  %v71 = vld [vmem:[%s1 + $0x90] sm:$0xf]
  %v72 = vld [vmem:[%s1 + $0x94] sm:$0xf]
  %v73 = vld [vmem:[%s1 + $0x98] sm:$0xf]
  %v74 = vld [vmem:[%s1 + $0x9c] sm:$0xf]
  %v75 = vld [vmem:[%s1 + $0xa0] sm:$0xf]
  %v76 = vld [vmem:[%s1 + $0xa4] sm:$0xf]
  %v77 = vld [vmem:[%s1 + $0xa8] sm:$0xf]
  %v78 = vld [vmem:[%s1 + $0xac] sm:$0xf]
  %v79 = vld [vmem:[%s1 + $0xb0] sm:$0xf]
  %v80 = vld [vmem:[%s1 + $0xb4] sm:$0xf]
  %v81 = vld [vmem:[%s1 + $0xb8] sm:$0xf]
  %v82 = vld [vmem:[%s1 + $0xbc] sm:$0xf]
  %v83 = vld [vmem:[%s1 + $0xc0] sm:$0xf]
  %v84 = vld [vmem:[%s1 + $0xc4] sm:$0xf]
  %v85 = vld [vmem:[%s1 + $0xc8] sm:$0xf]
  %v86 = vld [vmem:[%s1 + $0xcc] sm:$0xf]
  %v87 = vld [vmem:[%s1 + $0xd0] sm:$0xf]
  %v88 = vld [vmem:[%s1 + $0xd4] sm:$0xf]
  %v89 = vld [vmem:[%s1 + $0xd8] sm:$0xf]
  %v90 = vld [vmem:[%s1 + $0xdc] sm:$0xf]
  %v91 = vld [vmem:[%s1 + $0xe0] sm:$0xf]
  %v92 = vld [vmem:[%s1 + $0xe4] sm:$0xf]
  %v93 = vld [vmem:[%s1 + $0xe8] sm:$0xf]
  %v94 = vld [vmem:[%s1 + $0xec] sm:$0xf]
  %v95 = vld [vmem:[%s1 + $0xf0] sm:$0xf]
  %v96 = vld [vmem:[%s1 + $0xf4] sm:$0xf]
  %v97 = vld [vmem:[%s1 + $0xf8] sm:$0xf]
  %v98 = vld [vmem:[%s1 + $0xfc] sm:$0xf]
  %v99 = vld [vmem:[%s1 + $0x100] sm:$0xf]
  %v100 = vld [vmem:[%s1 + $0x104] sm:$0xf]
  %v101 = vld [vmem:[%s1 + $0x108] sm:$0xf]
  %v102 = vld [vmem:[%s1 + $0x10c] sm:$0xf]
  %v103 = vld [vmem:[%s1 + $0x110] sm:$0xf]
  %v104 = vld [vmem:[%s1 + $0x114] sm:$0xf]
  %v105 = vld [vmem:[%s1 + $0x118] sm:$0xf]
  %v106 = vld [vmem:[%s1 + $0x11c] sm:$0xf]
  %v107 = vld [vmem:[%s1 + $0x120] sm:$0xf]
  %v108 = vld [vmem:[%s1 + $0x124] sm:$0xf]
  %v109 = vld [vmem:[%s1 + $0x128] sm:$0xf]
  %v110 = vld [vmem:[%s1 + $0x12c] sm:$0xf]
  %v111 = vld [vmem:[%s1 + $0x130] sm:$0xf]
  %v112 = vld [vmem:[%s1 + $0x134] sm:$0xf]
  %v113 = vld [vmem:[%s1 + $0x138] sm:$0xf]
  %v114 = vld [vmem:[%s1 + $0x13c] sm:$0xf]
  %v115 = vld [vmem:[%s1 + $0x140] sm:$0xf]
  %v116 = vld [vmem:[%s1 + $0x144] sm:$0xf]
  %v117 = vld [vmem:[%s1 + $0x148] sm:$0xf]
  %v118 = vld [vmem:[%s1 + $0x14c] sm:$0xf]
  %v119 = vld [vmem:[%s1 + $0x150] sm:$0xf]
  %v120 = vld [vmem:[%s1 + $0x154] sm:$0xf]
  %v121 = vld [vmem:[%s1 + $0x158] sm:$0xf]
  %v122 = vld [vmem:[%s1 + $0x15c] sm:$0xf]
  %v123 = vld [vmem:[%s1 + $0x160] sm:$0xf]
  %v124 = vld [vmem:[%s1 + $0x164] sm:$0xf]
  %v125 = vld [vmem:[%s1 + $0x168] sm:$0xf]
  %v126 = vld [vmem:[%s1 + $0x16c] sm:$0xf]
  %v127 = vld [vmem:[%s1 + $0x170] sm:$0xf]
  %v128 = vld [vmem:[%s1 + $0x174] sm:$0xf]
  %v129 = vld [vmem:[%s1 + $0x178] sm:$0xf]
  %v130 = vld [vmem:[%s1 + $0x17c] sm:$0xf]
  %v131 = vld [vmem:[%s1 + $0x180] sm:$0xf]
  %v132 = vld [vmem:[%s1 + $0x184] sm:$0xf]
  %v133 = vld [vmem:[%s1 + $0x188] sm:$0xf]
  %v134 = vld [vmem:[%s1 + $0x18c] sm:$0xf]
  %v135 = vld [vmem:[%s1 + $0x190] sm:$0xf]
  %v136 = vld [vmem:[%s1 + $0x194] sm:$0xf]
  %v137 = vld [vmem:[%s1 + $0x198] sm:$0xf]
  %v138 = vld [vmem:[%s1 + $0x19c] sm:$0xf]
  %v139 = vld [vmem:[%s1 + $0x1a0] sm:$0xf]
  %v140 = vld [vmem:[%s1 + $0x1a4] sm:$0xf]
  %v141 = vld [vmem:[%s1 + $0x1a8] sm:$0xf]
  %v142 = vld [vmem:[%s1 + $0x1ac] sm:$0xf]
  %v143 = vld [vmem:[%s1 + $0x1b0] sm:$0xf]
  %v144 = vld [vmem:[%s1 + $0x1b4] sm:$0xf]
  %v145 = vld [vmem:[%s1 + $0x1b8] sm:$0xf]
  %v146 = vld [vmem:[%s1 + $0x1bc] sm:$0xf]
  %v147 = vld [vmem:[%s1 + $0x1c0] sm:$0xf]
  %v148 = vld [vmem:[%s1 + $0x1c4] sm:$0xf]
  %v149 = vld [vmem:[%s1 + $0x1c8] sm:$0xf]
  %v150 = vld [vmem:[%s1 + $0x1cc] sm:$0xf]
  %v151 = vld [vmem:[%s1 + $0x1d0] sm:$0xf]
  %v152 = vld [vmem:[%s1 + $0x1d4] sm:$0xf]
  %v153 = vld [vmem:[%s1 + $0x1d8] sm:$0xf]
  %v154 = vld [vmem:[%s1 + $0x1dc] sm:$0xf]
  %v155 = vld [vmem:[%s1 + $0x1e0] sm:$0xf]
  %v156 = vld [vmem:[%s1 + $0x1e4] sm:$0xf]
  %v157 = vld [vmem:[%s1 + $0x1e8] sm:$0xf]
  %v158 = vld [vmem:[%s1 + $0x1ec] sm:$0xf]
  %v159 = vld [vmem:[%s1 + $0x1f0] sm:$0xf]
  %v160 = vld [vmem:[%s1 + $0x1f4] sm:$0xf]
  %v161 = vld [vmem:[%s1 + $0x1f8] sm:$0xf]
  %v162 = vld [vmem:[%s1 + $0x1fc] sm:$0xf]
  %v163 = vld [vmem:[%s1 + $0x200] sm:$0xf]
  %v164 = vld [vmem:[%s1 + $0x204] sm:$0xf]
  %v165 = vld [vmem:[%s1 + $0x208] sm:$0xf]
  %v166 = vld [vmem:[%s1 + $0x20c] sm:$0xf]
  %v167 = vld [vmem:[%s1 + $0x210] sm:$0xf]
  %v168 = vld [vmem:[%s1 + $0x214] sm:$0xf]
  %v169 = vld [vmem:[%s1 + $0x218] sm:$0xf]
  %v170 = vld [vmem:[%s1 + $0x21c] sm:$0xf]
  %v171 = vld [vmem:[%s1 + $0x220] sm:$0xf]
  %v172 = vld [vmem:[%s1 + $0x224] sm:$0xf]
  %v173 = vld [vmem:[%s1 + $0x228] sm:$0xf]
  %v174 = vld [vmem:[%s1 + $0x22c] sm:$0xf]
  %v175 = vld [vmem:[%s1 + $0x230] sm:$0xf]
  %v176 = vld [vmem:[%s1 + $0x234] sm:$0xf]
  %v177 = vld [vmem:[%s1 + $0x238] sm:$0xf]
  %v178 = vld [vmem:[%s1 + $0x23c] sm:$0xf]
  %v179 = vld [vmem:[%s2] sm:$0x1]
  %v181 = vlaneseq
  %v182 = vshrl.u32 %v181, 7
  %v183 = vsub.s32 0, %v182
  %v184 = vrot.slane %v179, %v183
  %v206 = vunpack.c.l.b16 %v15
  %v207 = vunpack.c.h.b16 %v15
  %v208 = vunpack.c.l.b16 %v16
  %v209 = vunpack.c.h.b16 %v16
  %v210 = vunpack.c.l.b16 %v17
  %v211 = vunpack.c.h.b16 %v17
  %v212 = vunpack.c.l.b16 %v18
  %v213 = vunpack.c.h.b16 %v18
  %v214 = vunpack.c.l.b16 %v19
  %v215 = vunpack.c.l.b16 %v20
  %v216 = vunpack.c.h.b16 %v20
  %v217 = vunpack.c.l.b16 %v21
  %v218 = vunpack.c.h.b16 %v21
  %v219 = vunpack.c.l.b16 %v22
  %v220 = vunpack.c.h.b16 %v22
  %v221 = vunpack.c.l.b16 %v23
  %v222 = vunpack.c.h.b16 %v23
  %v223 = vunpack.c.l.b16 %v24
  %v224 = vunpack.c.l.b16 %v25
  %v225 = vunpack.c.h.b16 %v25
  %v226 = vunpack.c.l.b16 %v26
  %v227 = vunpack.c.h.b16 %v26
  %v228 = vunpack.c.l.b16 %v27
  %v229 = vunpack.c.h.b16 %v27
  %v230 = vunpack.c.l.b16 %v28
  %v231 = vunpack.c.h.b16 %v28
  %v232 = vunpack.c.l.b16 %v29
  %v233 = vunpack.c.l.b16 %v30
  %v234 = vunpack.c.h.b16 %v30
  %v235 = vunpack.c.l.b16 %v31
  %v236 = vunpack.c.h.b16 %v31
  %v237 = vunpack.c.l.b16 %v32
  %v238 = vunpack.c.h.b16 %v32
  %v239 = vunpack.c.l.b16 %v33
  %v240 = vunpack.c.h.b16 %v33
  %v241 = vunpack.c.l.b16 %v34
  %v242 = vpack.c.b16 %v215, %v206
  %v243 = vpack.c.b16 %v216, %v207
  %v244 = vpack.c.b16 %v217, %v208
  %v245 = vpack.c.b16 %v218, %v209
  %v246 = vpack.c.b16 %v219, %v210
  %v247 = vpack.c.b16 %v220, %v211
  %v248 = vpack.c.b16 %v221, %v212
  %v249 = vpack.c.b16 %v222, %v213
  %v250 = vpack.c.b16 %v223, %v214
  %v251 = vpack.c.b16 %v233, %v224
  %v252 = vpack.c.b16 %v234, %v225
  %v253 = vpack.c.b16 %v235, %v226
  %v254 = vpack.c.b16 %v236, %v227
  %v255 = vpack.c.b16 %v237, %v228
  %v256 = vpack.c.b16 %v238, %v229
  %v257 = vpack.c.b16 %v239, %v230
  %v258 = vpack.c.b16 %v240, %v231
  %v259 = vpack.c.b16 %v241, %v232
  %v422 = vunpack.c.l.b16 %v35
  %v423 = vunpack.c.l.b16 %v36
  %v424 = vunpack.c.l.b16 %v37
  %v425 = vunpack.c.l.b16 %v38
  %v426 = vunpack.c.l.b16 %v39
  %v427 = vunpack.c.l.b16 %v40
  %v428 = vunpack.c.l.b16 %v41
  %v429 = vunpack.c.l.b16 %v42
  %v430 = vunpack.c.l.b16 %v43
  %v431 = vunpack.c.l.b16 %v44
  %v432 = vunpack.c.l.b16 %v45
  %v433 = vunpack.c.l.b16 %v46
  %v434 = vunpack.c.l.b16 %v47
  %v435 = vunpack.c.l.b16 %v48
  %v436 = vunpack.c.l.b16 %v49
  %v437 = vunpack.c.l.b16 %v50
  %v438 = vunpack.c.l.b16 %v51
  %v439 = vunpack.c.l.b16 %v52
  %v440 = vunpack.c.l.b16 %v53
  %v441 = vunpack.c.l.b16 %v54
  %v442 = vunpack.c.l.b16 %v55
  %v443 = vunpack.c.l.b16 %v56
  %v444 = vunpack.c.l.b16 %v57
  %v445 = vunpack.c.l.b16 %v58
  %v446 = vunpack.c.l.b16 %v59
  %v447 = vunpack.c.l.b16 %v60
  %v448 = vunpack.c.l.b16 %v61
  %v449 = vunpack.c.l.b16 %v62
  %v450 = vunpack.c.l.b16 %v63
  %v451 = vunpack.c.l.b16 %v64
  %v452 = vunpack.c.l.b16 %v65
  %v453 = vunpack.c.l.b16 %v66
  %v454 = vunpack.c.l.b16 %v67
  %v455 = vunpack.c.l.b16 %v68
  %v456 = vunpack.c.l.b16 %v69
  %v457 = vunpack.c.l.b16 %v70
  %v458 = vunpack.c.l.b16 %v71
  %v459 = vunpack.c.l.b16 %v72
  %v460 = vunpack.c.l.b16 %v73
  %v461 = vunpack.c.l.b16 %v74
  %v462 = vunpack.c.l.b16 %v75
  %v463 = vunpack.c.l.b16 %v76
  %v464 = vunpack.c.l.b16 %v77
  %v465 = vunpack.c.l.b16 %v78
  %v466 = vunpack.c.l.b16 %v79
  %v467 = vunpack.c.l.b16 %v80
  %v468 = vunpack.c.l.b16 %v81
  %v469 = vunpack.c.l.b16 %v82
  %v470 = vunpack.c.l.b16 %v83
  %v471 = vunpack.c.l.b16 %v84
  %v472 = vunpack.c.l.b16 %v85
  %v473 = vunpack.c.l.b16 %v86
  %v474 = vunpack.c.l.b16 %v87
  %v475 = vunpack.c.l.b16 %v88
  %v476 = vunpack.c.l.b16 %v89
  %v477 = vunpack.c.l.b16 %v90
  %v478 = vunpack.c.l.b16 %v91
  %v479 = vunpack.c.l.b16 %v92
  %v480 = vunpack.c.l.b16 %v93
  %v481 = vunpack.c.l.b16 %v94
  %v482 = vunpack.c.l.b16 %v95
  %v483 = vunpack.c.l.b16 %v96
  %v484 = vunpack.c.l.b16 %v97
  %v485 = vunpack.c.l.b16 %v98
  %v486 = vunpack.c.l.b16 %v99
  %v487 = vunpack.c.l.b16 %v100
  %v488 = vunpack.c.l.b16 %v101
  %v489 = vunpack.c.l.b16 %v102
  %v490 = vunpack.c.l.b16 %v103
  %v491 = vunpack.c.l.b16 %v104
  %v492 = vunpack.c.l.b16 %v105
  %v493 = vunpack.c.l.b16 %v106
  %v494 = vunpack.c.l.b16 %v107
  %v495 = vunpack.c.l.b16 %v108
  %v496 = vunpack.c.l.b16 %v109
  %v497 = vunpack.c.l.b16 %v110
  %v498 = vunpack.c.l.b16 %v111
  %v499 = vunpack.c.l.b16 %v112
  %v500 = vunpack.c.l.b16 %v113
  %v501 = vunpack.c.l.b16 %v114
  %v502 = vunpack.c.l.b16 %v115
  %v503 = vunpack.c.l.b16 %v116
  %v504 = vunpack.c.l.b16 %v117
  %v505 = vunpack.c.l.b16 %v118
  %v506 = vunpack.c.l.b16 %v119
  %v507 = vunpack.c.l.b16 %v120
  %v508 = vunpack.c.l.b16 %v121
  %v509 = vunpack.c.l.b16 %v122
  %v510 = vunpack.c.l.b16 %v123
  %v511 = vunpack.c.l.b16 %v124
  %v512 = vunpack.c.l.b16 %v125
  %v513 = vunpack.c.l.b16 %v126
  %v514 = vunpack.c.l.b16 %v127
  %v515 = vunpack.c.l.b16 %v128
  %v516 = vunpack.c.l.b16 %v129
  %v517 = vunpack.c.l.b16 %v130
  %v518 = vunpack.c.l.b16 %v131
  %v519 = vunpack.c.l.b16 %v132
  %v520 = vunpack.c.l.b16 %v133
  %v521 = vunpack.c.l.b16 %v134
  %v522 = vunpack.c.l.b16 %v135
  %v523 = vunpack.c.l.b16 %v136
  %v524 = vunpack.c.l.b16 %v137
  %v525 = vunpack.c.l.b16 %v138
  %v526 = vunpack.c.l.b16 %v139
  %v527 = vunpack.c.l.b16 %v140
  %v528 = vunpack.c.l.b16 %v141
  %v529 = vunpack.c.l.b16 %v142
  %v530 = vunpack.c.l.b16 %v143
  %v531 = vunpack.c.l.b16 %v144
  %v532 = vunpack.c.l.b16 %v145
  %v533 = vunpack.c.l.b16 %v146
  %v534 = vunpack.c.l.b16 %v147
  %v535 = vunpack.c.l.b16 %v148
  %v536 = vunpack.c.l.b16 %v149
  %v537 = vunpack.c.l.b16 %v150
  %v538 = vunpack.c.l.b16 %v151
  %v539 = vunpack.c.l.b16 %v152
  %v540 = vunpack.c.l.b16 %v153
  %v541 = vunpack.c.l.b16 %v154
  %v542 = vunpack.c.l.b16 %v155
  %v543 = vunpack.c.l.b16 %v156
  %v544 = vunpack.c.l.b16 %v157
  %v545 = vunpack.c.l.b16 %v158
  %v546 = vunpack.c.l.b16 %v159
  %v547 = vunpack.c.l.b16 %v160
  %v548 = vunpack.c.l.b16 %v161
  %v549 = vunpack.c.l.b16 %v162
  %v550 = vunpack.c.l.b16 %v163
  %v551 = vunpack.c.l.b16 %v164
  %v552 = vunpack.c.l.b16 %v165
  %v553 = vunpack.c.l.b16 %v166
  %v554 = vunpack.c.l.b16 %v167
  %v555 = vunpack.c.l.b16 %v168
  %v556 = vunpack.c.l.b16 %v169
  %v557 = vunpack.c.l.b16 %v170
  %v558 = vunpack.c.l.b16 %v171
  %v559 = vunpack.c.l.b16 %v172
  %v560 = vunpack.c.l.b16 %v173
  %v561 = vunpack.c.l.b16 %v174
  %v562 = vunpack.c.l.b16 %v175
  %v563 = vunpack.c.l.b16 %v176
  %v564 = vunpack.c.l.b16 %v177
  %v565 = vunpack.c.l.b16 %v178
  %v566 = vpack.c.b16 %v423, %v422
  %v567 = vpack.c.b16 %v425, %v424
  %v568 = vpack.c.b16 %v427, %v426
  %v569 = vpack.c.b16 %v429, %v428
  %v570 = vpack.c.b16 %v431, %v430
  %v571 = vpack.c.b16 %v433, %v432
  %v572 = vpack.c.b16 %v435, %v434
  %v573 = vpack.c.b16 %v437, %v436
  %v574 = vpack.c.b16 %v439, %v438
  %v575 = vpack.c.b16 %v441, %v440
  %v576 = vpack.c.b16 %v443, %v442
  %v577 = vpack.c.b16 %v445, %v444
  %v578 = vpack.c.b16 %v447, %v446
  %v579 = vpack.c.b16 %v449, %v448
  %v580 = vpack.c.b16 %v451, %v450
  %v581 = vpack.c.b16 %v453, %v452
  %v582 = vpack.c.b16 %v455, %v454
  %v583 = vpack.c.b16 %v457, %v456
  %v584 = vpack.c.b16 %v459, %v458
  %v585 = vpack.c.b16 %v461, %v460
  %v586 = vpack.c.b16 %v463, %v462
  %v587 = vpack.c.b16 %v465, %v464
  %v588 = vpack.c.b16 %v467, %v466
  %v589 = vpack.c.b16 %v469, %v468
  %v590 = vpack.c.b16 %v471, %v470
  %v591 = vpack.c.b16 %v473, %v472
  %v592 = vpack.c.b16 %v475, %v474
  %v593 = vpack.c.b16 %v477, %v476
  %v594 = vpack.c.b16 %v479, %v478
  %v595 = vpack.c.b16 %v481, %v480
  %v596 = vpack.c.b16 %v483, %v482
  %v597 = vpack.c.b16 %v485, %v484
  %v598 = vpack.c.b16 %v487, %v486
  %v599 = vpack.c.b16 %v489, %v488
  %v600 = vpack.c.b16 %v491, %v490
  %v601 = vpack.c.b16 %v493, %v492
  %v602 = vpack.c.b16 %v495, %v494
  %v603 = vpack.c.b16 %v497, %v496
  %v604 = vpack.c.b16 %v499, %v498
  %v605 = vpack.c.b16 %v501, %v500
  %v606 = vpack.c.b16 %v503, %v502
  %v607 = vpack.c.b16 %v505, %v504
  %v608 = vpack.c.b16 %v507, %v506
  %v609 = vpack.c.b16 %v509, %v508
  %v610 = vpack.c.b16 %v511, %v510
  %v611 = vpack.c.b16 %v513, %v512
  %v612 = vpack.c.b16 %v515, %v514
  %v613 = vpack.c.b16 %v517, %v516
  %v614 = vpack.c.b16 %v519, %v518
  %v615 = vpack.c.b16 %v521, %v520
  %v616 = vpack.c.b16 %v523, %v522
  %v617 = vpack.c.b16 %v525, %v524
  %v618 = vpack.c.b16 %v527, %v526
  %v619 = vpack.c.b16 %v529, %v528
  %v620 = vpack.c.b16 %v531, %v530
  %v621 = vpack.c.b16 %v533, %v532
  %v622 = vpack.c.b16 %v535, %v534
  %v623 = vpack.c.b16 %v537, %v536
  %v624 = vpack.c.b16 %v539, %v538
  %v625 = vpack.c.b16 %v541, %v540
  %v626 = vpack.c.b16 %v543, %v542
  %v627 = vpack.c.b16 %v545, %v544
  %v628 = vpack.c.b16 %v547, %v546
  %v629 = vpack.c.b16 %v549, %v548
  %v630 = vpack.c.b16 %v551, %v550
  %v631 = vpack.c.b16 %v553, %v552
  %v632 = vpack.c.b16 %v555, %v554
  %v633 = vpack.c.b16 %v557, %v556
  %v634 = vpack.c.b16 %v559, %v558
  %v635 = vpack.c.b16 %v561, %v560
  %v636 = vpack.c.b16 %v563, %v562
  %v637 = vpack.c.b16 %v565, %v564
  %710 = vmatprep.subr.bf16.mxu0 0
  %711 = vmatpush1.bf16.msra.mxu0 %v566
  %712 = vmatprep.subr.bf16.mxu0 0
  %713 = vmatpush1.bf16.msra.mxu0 %v567
  %714 = vmatprep.subr.bf16.mxu0 0
  %715 = vmatpush1.bf16.msra.mxu0 %v568
  %716 = vmatprep.subr.bf16.mxu0 0
  %717 = vmatpush1.bf16.msra.mxu0 %v569
  %718 = vmatprep.subr.bf16.mxu0 0
  %719 = vmatpush1.bf16.msra.mxu0 %v570
  %720 = vmatprep.subr.bf16.mxu0 0
  %721 = vmatpush1.bf16.msra.mxu0 %v571
  %722 = vmatprep.subr.bf16.mxu0 0
  %723 = vmatpush1.bf16.msra.mxu0 %v572
  %724 = vmatprep.subr.bf16.mxu0 0
  %725 = vmatpush1.bf16.msra.mxu0 %v573
  %726 = vmatprep.subr.bf16.mxu0 0
  %727 = vmatpush1.bf16.msra.mxu0 %v574
  %728 = vmatprep.subr.bf16.mxu0 0
  %729 = vmatpush1.bf16.msra.mxu0 %v575
  %730 = vmatprep.subr.bf16.mxu0 0
  %731 = vmatpush1.bf16.msra.mxu0 %v576
  %732 = vmatprep.subr.bf16.mxu0 0
  %733 = vmatpush1.bf16.msra.mxu0 %v577
  %734 = vmatprep.subr.bf16.mxu0 0
  %735 = vmatpush1.bf16.msra.mxu0 %v578
  %736 = vmatprep.subr.bf16.mxu0 0
  %737 = vmatpush1.bf16.msra.mxu0 %v579
  %738 = vmatprep.subr.bf16.mxu0 0
  %739 = vmatpush1.bf16.msra.mxu0 %v580
  %740 = vmatprep.subr.bf16.mxu0 0
  %741 = vmatpush1.bf16.msra.mxu0 %v581
  %742 = vmatprep.mubr.bf16.mxu0 %v243
  %743 = vmatmul.mubr.bf16.gmra.mrb[0].mxu0 %v242
  %v744 = vpop.f32.mrb[0].mxu0
  %v745 = vadd.f32 %v184, %v744
  %v746 = vpop.f32.mrb[0].mxu0
  %v747 = vpop.f32.mrb[0].mxu0
  %v748 = vadd.f32 %v184, %v747
  %v749 = vpop.f32.mrb[0].mxu0
  %750 = vmatprep.mubr.bf16.mxu0 %v252
  %751 = vmatmul.mubr.bf16.gmra.mrb[0].mxu0 %v251
  %v752 = vpop.f32.mrb[0].mxu0
  %v753 = vadd.f32 %v184, %v752
  %v754 = vpop.f32.mrb[0].mxu0
  %v755 = vpop.f32.mrb[0].mxu0
  %v756 = vadd.f32 %v184, %v755
  %v757 = vpop.f32.mrb[0].mxu0
  %758 = vdwg.mxu0
  %759 = vmatprep.subr.bf16.mxu0 0
  %760 = vmatpush1.bf16.msra.mxu0 %v582
  %761 = vmatprep.subr.bf16.mxu0 0
  %762 = vmatpush1.bf16.msra.mxu0 %v583
  %763 = vmatprep.subr.bf16.mxu0 0
  %764 = vmatpush1.bf16.msra.mxu0 %v584
  %765 = vmatprep.subr.bf16.mxu0 0
  %766 = vmatpush1.bf16.msra.mxu0 %v585
  %767 = vmatprep.subr.bf16.mxu0 0
  %768 = vmatpush1.bf16.msra.mxu0 %v586
  %769 = vmatprep.subr.bf16.mxu0 0
  %770 = vmatpush1.bf16.msra.mxu0 %v587
  %771 = vmatprep.subr.bf16.mxu0 0
  %772 = vmatpush1.bf16.msra.mxu0 %v588
  %773 = vmatprep.subr.bf16.mxu0 0
  %774 = vmatpush1.bf16.msra.mxu0 %v589
  %775 = vmatprep.subr.bf16.mxu0 0
  %776 = vmatpush1.bf16.msra.mxu0 %v590
  %777 = vmatprep.subr.bf16.mxu0 0
  %778 = vmatpush1.bf16.msra.mxu0 %v591
  %779 = vmatprep.subr.bf16.mxu0 0
  %780 = vmatpush1.bf16.msra.mxu0 %v592
  %781 = vmatprep.subr.bf16.mxu0 0
  %782 = vmatpush1.bf16.msra.mxu0 %v593
  %783 = vmatprep.subr.bf16.mxu0 0
  %784 = vmatpush1.bf16.msra.mxu0 %v594
  %785 = vmatprep.subr.bf16.mxu0 0
  %786 = vmatpush1.bf16.msra.mxu0 %v595
  %787 = vmatprep.subr.bf16.mxu0 0
  %788 = vmatpush1.bf16.msra.mxu0 %v596
  %789 = vmatprep.subr.bf16.mxu0 0
  %790 = vmatpush1.bf16.msra.mxu0 %v597
  %791 = vmatprep.mubr.bf16.mxu0 %v245
  %792 = vmatmul.mubr.bf16.gmra.mrb[0].mxu0 %v244
  %v793 = vpop.f32.mrb[0].mxu0
  %v794 = vadd.f32 %v745, %v793
  %v795 = vpop.f32.mrb[0].mxu0
  %v796 = vpop.f32.mrb[0].mxu0
  %v797 = vadd.f32 %v748, %v796
  %v798 = vpop.f32.mrb[0].mxu0
  %799 = vmatprep.mubr.bf16.mxu0 %v254
  %800 = vmatmul.mubr.bf16.gmra.mrb[0].mxu0 %v253
  %v801 = vpop.f32.mrb[0].mxu0
  %v802 = vadd.f32 %v753, %v801
  %v803 = vpop.f32.mrb[0].mxu0
  %v804 = vpop.f32.mrb[0].mxu0
  %v805 = vadd.f32 %v756, %v804
  %v806 = vpop.f32.mrb[0].mxu0
  %807 = vdwg.mxu0
  %808 = vmatprep.subr.bf16.mxu0 0
  %809 = vmatpush1.bf16.msra.mxu0 %v598
  %810 = vmatprep.subr.bf16.mxu0 0
  %811 = vmatpush1.bf16.msra.mxu0 %v599
  %812 = vmatprep.subr.bf16.mxu0 0
  %813 = vmatpush1.bf16.msra.mxu0 %v600
  %814 = vmatprep.subr.bf16.mxu0 0
  %815 = vmatpush1.bf16.msra.mxu0 %v601
  %816 = vmatprep.subr.bf16.mxu0 0
  %817 = vmatpush1.bf16.msra.mxu0 %v602
  %818 = vmatprep.subr.bf16.mxu0 0
  %819 = vmatpush1.bf16.msra.mxu0 %v603
  %820 = vmatprep.subr.bf16.mxu0 0
  %821 = vmatpush1.bf16.msra.mxu0 %v604
  %822 = vmatprep.subr.bf16.mxu0 0
  %823 = vmatpush1.bf16.msra.mxu0 %v605
  %824 = vmatprep.subr.bf16.mxu0 0
  %825 = vmatpush1.bf16.msra.mxu0 %v606
  %826 = vmatprep.subr.bf16.mxu0 0
  %827 = vmatpush1.bf16.msra.mxu0 %v607
  %828 = vmatprep.subr.bf16.mxu0 0
  %829 = vmatpush1.bf16.msra.mxu0 %v608
  %830 = vmatprep.subr.bf16.mxu0 0
  %831 = vmatpush1.bf16.msra.mxu0 %v609
  %832 = vmatprep.subr.bf16.mxu0 0
  %833 = vmatpush1.bf16.msra.mxu0 %v610
  %834 = vmatprep.subr.bf16.mxu0 0
  %835 = vmatpush1.bf16.msra.mxu0 %v611
  %836 = vmatprep.subr.bf16.mxu0 0
  %837 = vmatpush1.bf16.msra.mxu0 %v612
  %838 = vmatprep.subr.bf16.mxu0 0
  %839 = vmatpush1.bf16.msra.mxu0 %v613
  %840 = vmatprep.mubr.bf16.mxu0 %v247
  %841 = vmatmul.mubr.bf16.gmra.mrb[0].mxu0 %v246
  %v842 = vpop.f32.mrb[0].mxu0
  %v843 = vadd.f32 %v794, %v842
  %v844 = vpop.f32.mrb[0].mxu0
  %v845 = vpop.f32.mrb[0].mxu0
  %v846 = vadd.f32 %v797, %v845
  %v847 = vpop.f32.mrb[0].mxu0
  %848 = vmatprep.mubr.bf16.mxu0 %v256
  %849 = vmatmul.mubr.bf16.gmra.mrb[0].mxu0 %v255
  %v850 = vpop.f32.mrb[0].mxu0
  %v851 = vadd.f32 %v802, %v850
  %v852 = vpop.f32.mrb[0].mxu0
  %v853 = vpop.f32.mrb[0].mxu0
  %v854 = vadd.f32 %v805, %v853
  %v855 = vpop.f32.mrb[0].mxu0
  %856 = vdwg.mxu0
  %857 = vmatprep.subr.bf16.mxu0 0
  %858 = vmatpush1.bf16.msra.mxu0 %v614
  %859 = vmatprep.subr.bf16.mxu0 0
  %860 = vmatpush1.bf16.msra.mxu0 %v615
  %861 = vmatprep.subr.bf16.mxu0 0
  %862 = vmatpush1.bf16.msra.mxu0 %v616
  %863 = vmatprep.subr.bf16.mxu0 0
  %864 = vmatpush1.bf16.msra.mxu0 %v617
  %865 = vmatprep.subr.bf16.mxu0 0
  %866 = vmatpush1.bf16.msra.mxu0 %v618
  %867 = vmatprep.subr.bf16.mxu0 0
  %868 = vmatpush1.bf16.msra.mxu0 %v619
  %869 = vmatprep.subr.bf16.mxu0 0
  %870 = vmatpush1.bf16.msra.mxu0 %v620
  %871 = vmatprep.subr.bf16.mxu0 0
  %872 = vmatpush1.bf16.msra.mxu0 %v621
  %873 = vmatprep.subr.bf16.mxu0 0
  %874 = vmatpush1.bf16.msra.mxu0 %v622
  %875 = vmatprep.subr.bf16.mxu0 0
  %876 = vmatpush1.bf16.msra.mxu0 %v623
  %877 = vmatprep.subr.bf16.mxu0 0
  %878 = vmatpush1.bf16.msra.mxu0 %v624
  %879 = vmatprep.subr.bf16.mxu0 0
  %880 = vmatpush1.bf16.msra.mxu0 %v625
  %881 = vmatprep.subr.bf16.mxu0 0
  %882 = vmatpush1.bf16.msra.mxu0 %v626
  %883 = vmatprep.subr.bf16.mxu0 0
  %884 = vmatpush1.bf16.msra.mxu0 %v627
  %885 = vmatprep.subr.bf16.mxu0 0
  %886 = vmatpush1.bf16.msra.mxu0 %v628
  %887 = vmatprep.subr.bf16.mxu0 0
  %888 = vmatpush1.bf16.msra.mxu0 %v629
  %889 = vmatprep.mubr.bf16.mxu0 %v249
  %890 = vmatmul.mubr.bf16.gmra.mrb[0].mxu0 %v248
  %v891 = vpop.f32.mrb[0].mxu0
  %v892 = vadd.f32 %v843, %v891
  %v893 = vpop.f32.mrb[0].mxu0
  %v894 = vpop.f32.mrb[0].mxu0
  %v895 = vadd.f32 %v846, %v894
  %v896 = vpop.f32.mrb[0].mxu0
  %897 = vmatprep.mubr.bf16.mxu0 %v258
  %898 = vmatmul.mubr.bf16.gmra.mrb[0].mxu0 %v257
  %v899 = vpop.f32.mrb[0].mxu0
  %v900 = vadd.f32 %v851, %v899
  %v901 = vpop.f32.mrb[0].mxu0
  %v902 = vpop.f32.mrb[0].mxu0
  %v903 = vadd.f32 %v854, %v902
  %v904 = vpop.f32.mrb[0].mxu0
  %905 = vdwg.mxu0
  %906 = vmatprep.subr.bf16.mxu0 0
  %907 = vmatpush1.bf16.msra.mxu0 %v630
  %908 = vmatprep.subr.bf16.mxu0 0
  %909 = vmatpush1.bf16.msra.mxu0 %v631
  %910 = vmatprep.subr.bf16.mxu0 0
  %911 = vmatpush1.bf16.msra.mxu0 %v632
  %912 = vmatprep.subr.bf16.mxu0 0
  %913 = vmatpush1.bf16.msra.mxu0 %v633
  %914 = vmatprep.subr.bf16.mxu0 0
  %915 = vmatpush1.bf16.msra.mxu0 %v634
  %916 = vmatprep.subr.bf16.mxu0 0
  %917 = vmatpush1.bf16.msra.mxu0 %v635
  %918 = vmatprep.subr.bf16.mxu0 0
  %919 = vmatpush1.bf16.msra.mxu0 %v636
  %920 = vmatprep.subr.bf16.mxu0 0
  %921 = vmatpush1.bf16.msra.mxu0 %v637
  %922 = vmatprep.subr.bf16.mxu0 0
  %923 = vmatpush1.bf16.msra.mxu0 0
  %924 = vmatprep.subr.bf16.mxu0 0
  %925 = vmatpush1.bf16.msra.mxu0 0
  %926 = vmatprep.subr.bf16.mxu0 0
  %927 = vmatpush1.bf16.msra.mxu0 0
  %928 = vmatprep.subr.bf16.mxu0 0
  %929 = vmatpush1.bf16.msra.mxu0 0
  %930 = vmatprep.subr.bf16.mxu0 0
  %931 = vmatpush1.bf16.msra.mxu0 0
  %932 = vmatprep.subr.bf16.mxu0 0
  %933 = vmatpush1.bf16.msra.mxu0 0
  %934 = vmatprep.subr.bf16.mxu0 0
  %935 = vmatpush1.bf16.msra.mxu0 0
  %936 = vmatprep.subr.bf16.mxu0 0
  %937 = vmatpush1.bf16.msra.mxu0 0
  %938 = vmatprep.mubr.bf16.mxu0 0
  %939 = vmatmul.mubr.bf16.gmra.mrb[0].mxu0 %v250
  %v940 = vpop.f32.mrb[0].mxu0
  %v941 = vadd.f32 %v892, %v940
  %v942 = vpop.f32.mrb[0].mxu0
  %v943 = vpop.f32.mrb[0].mxu0
  %v944 = vadd.f32 %v895, %v943
  %v945 = vpop.f32.mrb[0].mxu0
  %946 = vmatprep.mubr.bf16.mxu0 0
  %947 = vmatmul.mubr.bf16.gmra.mrb[0].mxu0 %v259
  %v948 = vpop.f32.mrb[0].mxu0
  %v949 = vadd.f32 %v900, %v948
  %v950 = vpop.f32.mrb[0].mxu0
  %v951 = vpop.f32.mrb[0].mxu0
  %v952 = vadd.f32 %v903, %v951
  %v953 = vpop.f32.mrb[0].mxu0
  %954 = vdwg.mxu0
  %v955 = vmax.f32 %v941, 0.0
  %v956 = vmax.f32 %v944, 0.0
  %v957 = vmax.f32 %v949, 0.0
  %v958 = vmax.f32 %v952, 0.0
  %v959 = vpack.c.bf16 %v956, %v955
  %v960 = vpack.c.bf16 %v958, %v957
  %v963 = vunpack.c.l.b16 %v959
  %v964 = vunpack.c.h.b16 %v959
  %v965 = vunpack.c.l.b16 %v960
  %v966 = vunpack.c.h.b16 %v960
  %v967 = vpack.c.b16 %v963, %v963
  %v968 = vpack.c.b16 %v964, %v964
  %v969 = vpack.c.b16 %v965, %v965
  %v970 = vpack.c.b16 %v966, %v966
  %975 = vst [vmem:[%s3] sm:$0xf] %v967
  %976 = vst [vmem:[%s3 + $0x4] sm:$0xf] %v968
  %977 = vst [vmem:[%s3 + $0x8] sm:$0xf] %v969
  %978 = vst [vmem:[%s3 + $0xc] sm:$0xf] %v970
  // Predicated region
  $region14: #{image_encoder_forward.41} parent=0 // pred_check
    _
  $region15: #{image_encoder_forward.41} parent=0 // pred_check_branch
    %980 = sbr.rel (0) target = $region17
  $region16: #{image_encoder_forward.41} parent=0 // pred_region
    _
  $region17: #{image_encoder_forward.41} parent=0 // pred_fallthru
    _
  // Predicated region
  $region18: #{image_encoder_forward.41} parent=0 // pred_check
    _
  $region19: #{image_encoder_forward.41} parent=0 // pred_check_branch
    %982 = sbr.rel (0) target = $region21
  $region20: #{image_encoder_forward.41} parent=0 // pred_region
    _
  $region21: #{image_encoder_forward.41} parent=0 // pred_fallthru
    _

// kernel: image_encoder_forward.48
$region0: #{image_encoder_forward.48}
  #allocation0 [shape = 'u32[]', space=smem, size = 0x4, offset = 0x4, fixed_abs, tag = 'smem constant byte address 0x4 - core index']
  #allocation1 [shape = 'u32[144,128]{1,0:T(1,128)}', space=vmem, size = 0x12000, scoped, tag = 'internal scratch']
  %s0 = inlined_call_operand.vmem [shape: bf16[8,128], index: 0, kind: input, shape index: {}]
  %s1 = inlined_call_operand.vmem [shape: bf16[128,256], index: 1, kind: input, shape index: {}]
  %s2 = inlined_call_operand.vmem [shape: f32[1,256], index: 2, kind: input, shape index: {}]
  %s3 = inlined_call_operand.vmem [shape: bf16[8,256], index: 3, kind: output, shape index: {}]
  %s4 = sld [smem:[#allocation0]]
  $region22: #{image_encoder_forward.48} parent=0
    _
  %s6 = ssub.s32 1, %s4
  %s7 = scalar_select 0, %s6, %s4
  // Predicated region
  $region2: #{image_encoder_forward.48} parent=0 // pred_check
    _
  $region3: #{image_encoder_forward.48} parent=0 // pred_check_branch
    %9 = sbr.rel (0) target = $region5
  $region4: #{image_encoder_forward.48} parent=0 // pred_region
    _
  $region5: #{image_encoder_forward.48} parent=0 // pred_fallthru
    _
  // Predicated region
  $region6: #{image_encoder_forward.48} parent=0 // pred_check
    _
  $region7: #{image_encoder_forward.48} parent=0 // pred_check_branch
    %11 = sbr.rel (0) target = $region9
  $region8: #{image_encoder_forward.48} parent=0 // pred_region
    _
  $region9: #{image_encoder_forward.48} parent=0 // pred_fallthru
    _
  // Predicated region
  $region10: #{image_encoder_forward.48} parent=0 // pred_check
    _
  $region11: #{image_encoder_forward.48} parent=0 // pred_check_branch
    %13 = sbr.rel (0) target = $region13
  $region12: #{image_encoder_forward.48} parent=0 // pred_region
    _
  $region13: #{image_encoder_forward.48} parent=0 // pred_fallthru
    _
  %v15 = vld [vmem:[%s0] sm:$0xf]
  %v16 = vld [vmem:[%s1] sm:$0xff]
  %v17 = vld [vmem:[%s1 + $0x8] sm:$0xff]
  %v18 = vld [vmem:[%s1 + $0x10] sm:$0xff]
  %v19 = vld [vmem:[%s1 + $0x18] sm:$0xff]
  %v20 = vld [vmem:[%s1 + $0x20] sm:$0xff]
  %v21 = vld [vmem:[%s1 + $0x28] sm:$0xff]
  %v22 = vld [vmem:[%s1 + $0x30] sm:$0xff]
  %v23 = vld [vmem:[%s1 + $0x38] sm:$0xff]
  %v24 = vld [vmem:[%s1 + $0x40] sm:$0xff]
  %v25 = vld [vmem:[%s1 + $0x48] sm:$0xff]
  %v26 = vld [vmem:[%s1 + $0x50] sm:$0xff]
  %v27 = vld [vmem:[%s1 + $0x58] sm:$0xff]
  %v28 = vld [vmem:[%s1 + $0x60] sm:$0xff]
  %v29 = vld [vmem:[%s1 + $0x68] sm:$0xff]
  %v30 = vld [vmem:[%s1 + $0x70] sm:$0xff]
  %v31 = vld [vmem:[%s1 + $0x78] sm:$0xff]
  %v32 = vld [vmem:[%s2] sm:$0x3]
  %v34 = vlaneseq
  %v35 = vshrl.u32 %v34, 7
  %v36 = vsub.s32 0, %v35
  %v37 = vrot.slane %v32, %v36
  %v38 = vlaneseq
  %v39 = vshrl.u32 %v38, 7
  %v40 = vsub.s32 1, %v39
  %v41 = vrot.slane %v32, %v40
  %v60 = vunpack.c.l.b16 %v16
  %v61 = vunpack.c.h.b16 %v16
  %v62 = vunpack.c.l.b16 %v17
  %v63 = vunpack.c.h.b16 %v17
  %v64 = vunpack.c.l.b16 %v18
  %v65 = vunpack.c.h.b16 %v18
  %v66 = vunpack.c.l.b16 %v19
  %v67 = vunpack.c.h.b16 %v19
  %v68 = vunpack.c.l.b16 %v20
  %v69 = vunpack.c.h.b16 %v20
  %v70 = vunpack.c.l.b16 %v21
  %v71 = vunpack.c.h.b16 %v21
  %v72 = vunpack.c.l.b16 %v22
  %v73 = vunpack.c.h.b16 %v22
  %v74 = vunpack.c.l.b16 %v23
  %v75 = vunpack.c.h.b16 %v23
  %v76 = vunpack.c.l.b16 %v24
  %v77 = vunpack.c.h.b16 %v24
  %v78 = vunpack.c.l.b16 %v25
  %v79 = vunpack.c.h.b16 %v25
  %v80 = vunpack.c.l.b16 %v26
  %v81 = vunpack.c.h.b16 %v26
  %v82 = vunpack.c.l.b16 %v27
  %v83 = vunpack.c.h.b16 %v27
  %v84 = vunpack.c.l.b16 %v28
  %v85 = vunpack.c.h.b16 %v28
  %v86 = vunpack.c.l.b16 %v29
  %v87 = vunpack.c.h.b16 %v29
  %v88 = vunpack.c.l.b16 %v30
  %v89 = vunpack.c.h.b16 %v30
  %v90 = vunpack.c.l.b16 %v31
  %v91 = vunpack.c.h.b16 %v31
  %v92 = vpack.c.b16 %v62, %v60
  %v93 = vpack.c.b16 %v63, %v61
  %v94 = vpack.c.b16 %v66, %v64
  %v95 = vpack.c.b16 %v67, %v65
  %v96 = vpack.c.b16 %v70, %v68
  %v97 = vpack.c.b16 %v71, %v69
  %v98 = vpack.c.b16 %v74, %v72
  %v99 = vpack.c.b16 %v75, %v73
  %v100 = vpack.c.b16 %v78, %v76
  %v101 = vpack.c.b16 %v79, %v77
  %v102 = vpack.c.b16 %v82, %v80
  %v103 = vpack.c.b16 %v83, %v81
  %v104 = vpack.c.b16 %v86, %v84
  %v105 = vpack.c.b16 %v87, %v85
  %v106 = vpack.c.b16 %v90, %v88
  %v107 = vpack.c.b16 %v91, %v89
  %124 = vmatprep.subr.bf16.mxu0 %v93
  %125 = vmatpush1.bf16.msra.mxu0 %v92
  %126 = vmatprep.subr.bf16.mxu0 %v95
  %127 = vmatpush1.bf16.msra.mxu0 %v94
  %128 = vmatprep.subr.bf16.mxu0 %v97
  %129 = vmatpush1.bf16.msra.mxu0 %v96
  %130 = vmatprep.subr.bf16.mxu0 %v99
  %131 = vmatpush1.bf16.msra.mxu0 %v98
  %132 = vmatprep.subr.bf16.mxu0 %v101
  %133 = vmatpush1.bf16.msra.mxu0 %v100
  %134 = vmatprep.subr.bf16.mxu0 %v103
  %135 = vmatpush1.bf16.msra.mxu0 %v102
  %136 = vmatprep.subr.bf16.mxu0 %v105
  %137 = vmatpush1.bf16.msra.mxu0 %v104
  %138 = vmatprep.subr.bf16.mxu0 %v107
  %139 = vmatpush1.bf16.msra.mxu0 %v106
  %140 = vmatprep.subr.bf16.mxu0 0
  %141 = vmatpush1.bf16.msra.mxu0 0
  %142 = vmatprep.subr.bf16.mxu0 0
  %143 = vmatpush1.bf16.msra.mxu0 0
  %144 = vmatprep.subr.bf16.mxu0 0
  %145 = vmatpush1.bf16.msra.mxu0 0
  %146 = vmatprep.subr.bf16.mxu0 0
  %147 = vmatpush1.bf16.msra.mxu0 0
  %148 = vmatprep.subr.bf16.mxu0 0
  %149 = vmatpush1.bf16.msra.mxu0 0
  %150 = vmatprep.subr.bf16.mxu0 0
  %151 = vmatpush1.bf16.msra.mxu0 0
  %152 = vmatprep.subr.bf16.mxu0 0
  %153 = vmatpush1.bf16.msra.mxu0 0
  %154 = vmatprep.subr.bf16.mxu0 0
  %155 = vmatpush1.bf16.msra.mxu0 0
  %156 = vmatprep.mubr.bf16.mxu0 0
  %157 = vmatmul.mubr.bf16.gmra.mrb[0].mxu0 %v15
  %v158 = vpop.f32.mrb[0].mxu0
  %v159 = vadd.f32 %v37, %v158
  %v160 = vpop.f32.mrb[0].mxu0
  %v161 = vadd.f32 %v41, %v160
  %v162 = vpop.f32.mrb[0].mxu0
  %v163 = vpop.f32.mrb[0].mxu0
  %164 = vdwg.mxu0
  %v165 = vpack.c.bf16 %v159, %v159
  %v166 = vpack.c.bf16 %v161, %v161
  %v169 = vunpack.c.l.b16 %v165
  %v170 = vunpack.c.l.b16 %v166
  %v171 = vpack.c.b16 %v170, %v169
  %173 = vst [vmem:[%s3] sm:$0xff] %v171
  // Predicated region
  $region14: #{image_encoder_forward.48} parent=0 // pred_check
    _
  $region15: #{image_encoder_forward.48} parent=0 // pred_check_branch
    %175 = sbr.rel (0) target = $region17
  $region16: #{image_encoder_forward.48} parent=0 // pred_region
    _
  $region17: #{image_encoder_forward.48} parent=0 // pred_fallthru
    _
  // Predicated region
  $region18: #{image_encoder_forward.48} parent=0 // pred_check
    _
  $region19: #{image_encoder_forward.48} parent=0 // pred_check_branch
    %177 = sbr.rel (0) target = $region21
  $region20: #{image_encoder_forward.48} parent=0 // pred_region
    _
  $region21: #{image_encoder_forward.48} parent=0 // pred_fallthru
    _

// kernel: image_encoder_forward.47
$region0: #{image_encoder_forward.47}
  #allocation0 [shape = 'u32[]', space=smem, size = 0x4, offset = 0x4, fixed_abs, tag = 'smem constant byte address 0x4 - core index']
  #allocation1 [shape = 'u32[144,128]{1,0:T(1,128)}', space=vmem, size = 0x12000, scoped, tag = 'internal scratch']
  %s0 = inlined_call_operand.vmem [shape: bf16[8,1152], index: 0, kind: input, shape index: {}]
  %s1 = inlined_call_operand.vmem [shape: bf16[1152,256], index: 1, kind: input, shape index: {}]
  %s2 = inlined_call_operand.vmem [shape: f32[1,256], index: 2, kind: input, shape index: {}]
  %s3 = inlined_call_operand.vmem [shape: bf16[8,256], index: 3, kind: output, shape index: {}]
  %s4 = sld [smem:[#allocation0]]
  $region22: #{image_encoder_forward.47} parent=0
    _
  %s6 = ssub.s32 1, %s4
  %s7 = scalar_select 0, %s6, %s4
  // Predicated region
  $region2: #{image_encoder_forward.47} parent=0 // pred_check
    _
  $region3: #{image_encoder_forward.47} parent=0 // pred_check_branch
    %9 = sbr.rel (0) target = $region5
  $region4: #{image_encoder_forward.47} parent=0 // pred_region
    _
  $region5: #{image_encoder_forward.47} parent=0 // pred_fallthru
    _
  // Predicated region
  $region6: #{image_encoder_forward.47} parent=0 // pred_check
    _
  $region7: #{image_encoder_forward.47} parent=0 // pred_check_branch
    %11 = sbr.rel (0) target = $region9
  $region8: #{image_encoder_forward.47} parent=0 // pred_region
    _
  $region9: #{image_encoder_forward.47} parent=0 // pred_fallthru
    _
  // Predicated region
  $region10: #{image_encoder_forward.47} parent=0 // pred_check
    _
  $region11: #{image_encoder_forward.47} parent=0 // pred_check_branch
    %13 = sbr.rel (0) target = $region13
  $region12: #{image_encoder_forward.47} parent=0 // pred_region
    _
  $region13: #{image_encoder_forward.47} parent=0 // pred_fallthru
    _
  %v15 = vld [vmem:[%s0] sm:$0xff]
  %v16 = vld [vmem:[%s0 + $0x8] sm:$0xff]
  %v17 = vld [vmem:[%s0 + $0x10] sm:$0xff]
  %v18 = vld [vmem:[%s0 + $0x18] sm:$0xff]
  %v19 = vld [vmem:[%s0 + $0x20] sm:$0xf]
  %v20 = vld [vmem:[%s1] sm:$0xff]
  %v21 = vld [vmem:[%s1 + $0x8] sm:$0xff]
  %v22 = vld [vmem:[%s1 + $0x10] sm:$0xff]
  %v23 = vld [vmem:[%s1 + $0x18] sm:$0xff]
  %v24 = vld [vmem:[%s1 + $0x20] sm:$0xff]
  %v25 = vld [vmem:[%s1 + $0x28] sm:$0xff]
  %v26 = vld [vmem:[%s1 + $0x30] sm:$0xff]
  %v27 = vld [vmem:[%s1 + $0x38] sm:$0xff]
  %v28 = vld [vmem:[%s1 + $0x40] sm:$0xff]
  %v29 = vld [vmem:[%s1 + $0x48] sm:$0xff]
  %v30 = vld [vmem:[%s1 + $0x50] sm:$0xff]
  %v31 = vld [vmem:[%s1 + $0x58] sm:$0xff]
  %v32 = vld [vmem:[%s1 + $0x60] sm:$0xff]
  %v33 = vld [vmem:[%s1 + $0x68] sm:$0xff]
  %v34 = vld [vmem:[%s1 + $0x70] sm:$0xff]
  %v35 = vld [vmem:[%s1 + $0x78] sm:$0xff]
  %v36 = vld [vmem:[%s1 + $0x80] sm:$0xff]
  %v37 = vld [vmem:[%s1 + $0x88] sm:$0xff]
  %v38 = vld [vmem:[%s1 + $0x90] sm:$0xff]
  %v39 = vld [vmem:[%s1 + $0x98] sm:$0xff]
  %v40 = vld [vmem:[%s1 + $0xa0] sm:$0xff]
  %v41 = vld [vmem:[%s1 + $0xa8] sm:$0xff]
  %v42 = vld [vmem:[%s1 + $0xb0] sm:$0xff]
  %v43 = vld [vmem:[%s1 + $0xb8] sm:$0xff]
  %v44 = vld [vmem:[%s1 + $0xc0] sm:$0xff]
  %v45 = vld [vmem:[%s1 + $0xc8] sm:$0xff]
  %v46 = vld [vmem:[%s1 + $0xd0] sm:$0xff]
  %v47 = vld [vmem:[%s1 + $0xd8] sm:$0xff]
  %v48 = vld [vmem:[%s1 + $0xe0] sm:$0xff]
  %v49 = vld [vmem:[%s1 + $0xe8] sm:$0xff]
  %v50 = vld [vmem:[%s1 + $0xf0] sm:$0xff]
  %v51 = vld [vmem:[%s1 + $0xf8] sm:$0xff]
  %v52 = vld [vmem:[%s1 + $0x100] sm:$0xff]
  %v53 = vld [vmem:[%s1 + $0x108] sm:$0xff]
  %v54 = vld [vmem:[%s1 + $0x110] sm:$0xff]
  %v55 = vld [vmem:[%s1 + $0x118] sm:$0xff]
  %v56 = vld [vmem:[%s1 + $0x120] sm:$0xff]
  %v57 = vld [vmem:[%s1 + $0x128] sm:$0xff]
  %v58 = vld [vmem:[%s1 + $0x130] sm:$0xff]
  %v59 = vld [vmem:[%s1 + $0x138] sm:$0xff]
  %v60 = vld [vmem:[%s1 + $0x140] sm:$0xff]
  %v61 = vld [vmem:[%s1 + $0x148] sm:$0xff]
  %v62 = vld [vmem:[%s1 + $0x150] sm:$0xff]
  %v63 = vld [vmem:[%s1 + $0x158] sm:$0xff]
  %v64 = vld [vmem:[%s1 + $0x160] sm:$0xff]
  %v65 = vld [vmem:[%s1 + $0x168] sm:$0xff]
  %v66 = vld [vmem:[%s1 + $0x170] sm:$0xff]
  %v67 = vld [vmem:[%s1 + $0x178] sm:$0xff]
  %v68 = vld [vmem:[%s1 + $0x180] sm:$0xff]
  %v69 = vld [vmem:[%s1 + $0x188] sm:$0xff]
  %v70 = vld [vmem:[%s1 + $0x190] sm:$0xff]
  %v71 = vld [vmem:[%s1 + $0x198] sm:$0xff]
  %v72 = vld [vmem:[%s1 + $0x1a0] sm:$0xff]
  %v73 = vld [vmem:[%s1 + $0x1a8] sm:$0xff]
  %v74 = vld [vmem:[%s1 + $0x1b0] sm:$0xff]
  %v75 = vld [vmem:[%s1 + $0x1b8] sm:$0xff]
  %v76 = vld [vmem:[%s1 + $0x1c0] sm:$0xff]
  %v77 = vld [vmem:[%s1 + $0x1c8] sm:$0xff]
  %v78 = vld [vmem:[%s1 + $0x1d0] sm:$0xff]
  %v79 = vld [vmem:[%s1 + $0x1d8] sm:$0xff]
  %v80 = vld [vmem:[%s1 + $0x1e0] sm:$0xff]
  %v81 = vld [vmem:[%s1 + $0x1e8] sm:$0xff]
  %v82 = vld [vmem:[%s1 + $0x1f0] sm:$0xff]
  %v83 = vld [vmem:[%s1 + $0x1f8] sm:$0xff]
  %v84 = vld [vmem:[%s1 + $0x200] sm:$0xff]
  %v85 = vld [vmem:[%s1 + $0x208] sm:$0xff]
  %v86 = vld [vmem:[%s1 + $0x210] sm:$0xff]
  %v87 = vld [vmem:[%s1 + $0x218] sm:$0xff]
  %v88 = vld [vmem:[%s1 + $0x220] sm:$0xff]
  %v89 = vld [vmem:[%s1 + $0x228] sm:$0xff]
  %v90 = vld [vmem:[%s1 + $0x230] sm:$0xff]
  %v91 = vld [vmem:[%s1 + $0x238] sm:$0xff]
  %v92 = vld [vmem:[%s1 + $0x240] sm:$0xff]
  %v93 = vld [vmem:[%s1 + $0x248] sm:$0xff]
  %v94 = vld [vmem:[%s1 + $0x250] sm:$0xff]
  %v95 = vld [vmem:[%s1 + $0x258] sm:$0xff]
  %v96 = vld [vmem:[%s1 + $0x260] sm:$0xff]
  %v97 = vld [vmem:[%s1 + $0x268] sm:$0xff]
  %v98 = vld [vmem:[%s1 + $0x270] sm:$0xff]
  %v99 = vld [vmem:[%s1 + $0x278] sm:$0xff]
  %v100 = vld [vmem:[%s1 + $0x280] sm:$0xff]
  %v101 = vld [vmem:[%s1 + $0x288] sm:$0xff]
  %v102 = vld [vmem:[%s1 + $0x290] sm:$0xff]
  %v103 = vld [vmem:[%s1 + $0x298] sm:$0xff]
  %v104 = vld [vmem:[%s1 + $0x2a0] sm:$0xff]
  %v105 = vld [vmem:[%s1 + $0x2a8] sm:$0xff]
  %v106 = vld [vmem:[%s1 + $0x2b0] sm:$0xff]
  %v107 = vld [vmem:[%s1 + $0x2b8] sm:$0xff]
  %v108 = vld [vmem:[%s1 + $0x2c0] sm:$0xff]
  %v109 = vld [vmem:[%s1 + $0x2c8] sm:$0xff]
  %v110 = vld [vmem:[%s1 + $0x2d0] sm:$0xff]
  %v111 = vld [vmem:[%s1 + $0x2d8] sm:$0xff]
  %v112 = vld [vmem:[%s1 + $0x2e0] sm:$0xff]
  %v113 = vld [vmem:[%s1 + $0x2e8] sm:$0xff]
  %v114 = vld [vmem:[%s1 + $0x2f0] sm:$0xff]
  %v115 = vld [vmem:[%s1 + $0x2f8] sm:$0xff]
  %v116 = vld [vmem:[%s1 + $0x300] sm:$0xff]
  %v117 = vld [vmem:[%s1 + $0x308] sm:$0xff]
  %v118 = vld [vmem:[%s1 + $0x310] sm:$0xff]
  %v119 = vld [vmem:[%s1 + $0x318] sm:$0xff]
  %v120 = vld [vmem:[%s1 + $0x320] sm:$0xff]
  %v121 = vld [vmem:[%s1 + $0x328] sm:$0xff]
  %v122 = vld [vmem:[%s1 + $0x330] sm:$0xff]
  %v123 = vld [vmem:[%s1 + $0x338] sm:$0xff]
  %v124 = vld [vmem:[%s1 + $0x340] sm:$0xff]
  %v125 = vld [vmem:[%s1 + $0x348] sm:$0xff]
  %v126 = vld [vmem:[%s1 + $0x350] sm:$0xff]
  %v127 = vld [vmem:[%s1 + $0x358] sm:$0xff]
  %v128 = vld [vmem:[%s1 + $0x360] sm:$0xff]
  %v129 = vld [vmem:[%s1 + $0x368] sm:$0xff]
  %v130 = vld [vmem:[%s1 + $0x370] sm:$0xff]
  %v131 = vld [vmem:[%s1 + $0x378] sm:$0xff]
  %v132 = vld [vmem:[%s1 + $0x380] sm:$0xff]
  %v133 = vld [vmem:[%s1 + $0x388] sm:$0xff]
  %v134 = vld [vmem:[%s1 + $0x390] sm:$0xff]
  %v135 = vld [vmem:[%s1 + $0x398] sm:$0xff]
  %v136 = vld [vmem:[%s1 + $0x3a0] sm:$0xff]
  %v137 = vld [vmem:[%s1 + $0x3a8] sm:$0xff]
  %v138 = vld [vmem:[%s1 + $0x3b0] sm:$0xff]
  %v139 = vld [vmem:[%s1 + $0x3b8] sm:$0xff]
  %v140 = vld [vmem:[%s1 + $0x3c0] sm:$0xff]
  %v141 = vld [vmem:[%s1 + $0x3c8] sm:$0xff]
  %v142 = vld [vmem:[%s1 + $0x3d0] sm:$0xff]
  %v143 = vld [vmem:[%s1 + $0x3d8] sm:$0xff]
  %v144 = vld [vmem:[%s1 + $0x3e0] sm:$0xff]
  %v145 = vld [vmem:[%s1 + $0x3e8] sm:$0xff]
  %v146 = vld [vmem:[%s1 + $0x3f0] sm:$0xff]
  %v147 = vld [vmem:[%s1 + $0x3f8] sm:$0xff]
  %v148 = vld [vmem:[%s1 + $0x400] sm:$0xff]
  %v149 = vld [vmem:[%s1 + $0x408] sm:$0xff]
  %v150 = vld [vmem:[%s1 + $0x410] sm:$0xff]
  %v151 = vld [vmem:[%s1 + $0x418] sm:$0xff]
  %v152 = vld [vmem:[%s1 + $0x420] sm:$0xff]
  %v153 = vld [vmem:[%s1 + $0x428] sm:$0xff]
  %v154 = vld [vmem:[%s1 + $0x430] sm:$0xff]
  %v155 = vld [vmem:[%s1 + $0x438] sm:$0xff]
  %v156 = vld [vmem:[%s1 + $0x440] sm:$0xff]
  %v157 = vld [vmem:[%s1 + $0x448] sm:$0xff]
  %v158 = vld [vmem:[%s1 + $0x450] sm:$0xff]
  %v159 = vld [vmem:[%s1 + $0x458] sm:$0xff]
  %v160 = vld [vmem:[%s1 + $0x460] sm:$0xff]
  %v161 = vld [vmem:[%s1 + $0x468] sm:$0xff]
  %v162 = vld [vmem:[%s1 + $0x470] sm:$0xff]
  %v163 = vld [vmem:[%s1 + $0x478] sm:$0xff]
  %v164 = vld [vmem:[%s2] sm:$0x3]
  %v166 = vlaneseq
  %v167 = vshrl.u32 %v166, 7
  %v168 = vsub.s32 0, %v167
  %v169 = vrot.slane %v164, %v168
  %v170 = vlaneseq
  %v171 = vshrl.u32 %v170, 7
  %v172 = vsub.s32 1, %v171
  %v173 = vrot.slane %v164, %v172
  %v181 = vunpack.c.l.b16 %v15
  %v182 = vunpack.c.h.b16 %v15
  %v183 = vunpack.c.l.b16 %v16
  %v184 = vunpack.c.h.b16 %v16
  %v185 = vunpack.c.l.b16 %v17
  %v186 = vunpack.c.h.b16 %v17
  %v187 = vunpack.c.l.b16 %v18
  %v188 = vunpack.c.h.b16 %v18
  %v189 = vunpack.c.l.b16 %v19
  %v190 = vpack.c.b16 %v181, %v181
  %v191 = vpack.c.b16 %v182, %v182
  %v192 = vpack.c.b16 %v183, %v183
  %v193 = vpack.c.b16 %v184, %v184
  %v194 = vpack.c.b16 %v185, %v185
  %v195 = vpack.c.b16 %v186, %v186
  %v196 = vpack.c.b16 %v187, %v187
  %v197 = vpack.c.b16 %v188, %v188
  %v198 = vpack.c.b16 %v189, %v189
  %v352 = vunpack.c.l.b16 %v20
  %v353 = vunpack.c.h.b16 %v20
  %v354 = vunpack.c.l.b16 %v21
  %v355 = vunpack.c.h.b16 %v21
  %v356 = vunpack.c.l.b16 %v22
  %v357 = vunpack.c.h.b16 %v22
  %v358 = vunpack.c.l.b16 %v23
  %v359 = vunpack.c.h.b16 %v23
  %v360 = vunpack.c.l.b16 %v24
  %v361 = vunpack.c.h.b16 %v24
  %v362 = vunpack.c.l.b16 %v25
  %v363 = vunpack.c.h.b16 %v25
  %v364 = vunpack.c.l.b16 %v26
  %v365 = vunpack.c.h.b16 %v26
  %v366 = vunpack.c.l.b16 %v27
  %v367 = vunpack.c.h.b16 %v27
  %v368 = vunpack.c.l.b16 %v28
  %v369 = vunpack.c.h.b16 %v28
  %v370 = vunpack.c.l.b16 %v29
  %v371 = vunpack.c.h.b16 %v29
  %v372 = vunpack.c.l.b16 %v30
  %v373 = vunpack.c.h.b16 %v30
  %v374 = vunpack.c.l.b16 %v31
  %v375 = vunpack.c.h.b16 %v31
  %v376 = vunpack.c.l.b16 %v32
  %v377 = vunpack.c.h.b16 %v32
  %v378 = vunpack.c.l.b16 %v33
  %v379 = vunpack.c.h.b16 %v33
  %v380 = vunpack.c.l.b16 %v34
  %v381 = vunpack.c.h.b16 %v34
  %v382 = vunpack.c.l.b16 %v35
  %v383 = vunpack.c.h.b16 %v35
  %v384 = vunpack.c.l.b16 %v36
  %v385 = vunpack.c.h.b16 %v36
  %v386 = vunpack.c.l.b16 %v37
  %v387 = vunpack.c.h.b16 %v37
  %v388 = vunpack.c.l.b16 %v38
  %v389 = vunpack.c.h.b16 %v38
  %v390 = vunpack.c.l.b16 %v39
  %v391 = vunpack.c.h.b16 %v39
  %v392 = vunpack.c.l.b16 %v40
  %v393 = vunpack.c.h.b16 %v40
  %v394 = vunpack.c.l.b16 %v41
  %v395 = vunpack.c.h.b16 %v41
  %v396 = vunpack.c.l.b16 %v42
  %v397 = vunpack.c.h.b16 %v42
  %v398 = vunpack.c.l.b16 %v43
  %v399 = vunpack.c.h.b16 %v43
  %v400 = vunpack.c.l.b16 %v44
  %v401 = vunpack.c.h.b16 %v44
  %v402 = vunpack.c.l.b16 %v45
  %v403 = vunpack.c.h.b16 %v45
  %v404 = vunpack.c.l.b16 %v46
  %v405 = vunpack.c.h.b16 %v46
  %v406 = vunpack.c.l.b16 %v47
  %v407 = vunpack.c.h.b16 %v47
  %v408 = vunpack.c.l.b16 %v48
  %v409 = vunpack.c.h.b16 %v48
  %v410 = vunpack.c.l.b16 %v49
  %v411 = vunpack.c.h.b16 %v49
  %v412 = vunpack.c.l.b16 %v50
  %v413 = vunpack.c.h.b16 %v50
  %v414 = vunpack.c.l.b16 %v51
  %v415 = vunpack.c.h.b16 %v51
  %v416 = vunpack.c.l.b16 %v52
  %v417 = vunpack.c.h.b16 %v52
  %v418 = vunpack.c.l.b16 %v53
  %v419 = vunpack.c.h.b16 %v53
  %v420 = vunpack.c.l.b16 %v54
  %v421 = vunpack.c.h.b16 %v54
  %v422 = vunpack.c.l.b16 %v55
  %v423 = vunpack.c.h.b16 %v55
  %v424 = vunpack.c.l.b16 %v56
  %v425 = vunpack.c.h.b16 %v56
  %v426 = vunpack.c.l.b16 %v57
  %v427 = vunpack.c.h.b16 %v57
  %v428 = vunpack.c.l.b16 %v58
  %v429 = vunpack.c.h.b16 %v58
  %v430 = vunpack.c.l.b16 %v59
  %v431 = vunpack.c.h.b16 %v59
  %v432 = vunpack.c.l.b16 %v60
  %v433 = vunpack.c.h.b16 %v60
  %v434 = vunpack.c.l.b16 %v61
  %v435 = vunpack.c.h.b16 %v61
  %v436 = vunpack.c.l.b16 %v62
  %v437 = vunpack.c.h.b16 %v62
  %v438 = vunpack.c.l.b16 %v63
  %v439 = vunpack.c.h.b16 %v63
  %v440 = vunpack.c.l.b16 %v64
  %v441 = vunpack.c.h.b16 %v64
  %v442 = vunpack.c.l.b16 %v65
  %v443 = vunpack.c.h.b16 %v65
  %v444 = vunpack.c.l.b16 %v66
  %v445 = vunpack.c.h.b16 %v66
  %v446 = vunpack.c.l.b16 %v67
  %v447 = vunpack.c.h.b16 %v67
  %v448 = vunpack.c.l.b16 %v68
  %v449 = vunpack.c.h.b16 %v68
  %v450 = vunpack.c.l.b16 %v69
  %v451 = vunpack.c.h.b16 %v69
  %v452 = vunpack.c.l.b16 %v70
  %v453 = vunpack.c.h.b16 %v70
  %v454 = vunpack.c.l.b16 %v71
  %v455 = vunpack.c.h.b16 %v71
  %v456 = vunpack.c.l.b16 %v72
  %v457 = vunpack.c.h.b16 %v72
  %v458 = vunpack.c.l.b16 %v73
  %v459 = vunpack.c.h.b16 %v73
  %v460 = vunpack.c.l.b16 %v74
  %v461 = vunpack.c.h.b16 %v74
  %v462 = vunpack.c.l.b16 %v75
  %v463 = vunpack.c.h.b16 %v75
  %v464 = vunpack.c.l.b16 %v76
  %v465 = vunpack.c.h.b16 %v76
  %v466 = vunpack.c.l.b16 %v77
  %v467 = vunpack.c.h.b16 %v77
  %v468 = vunpack.c.l.b16 %v78
  %v469 = vunpack.c.h.b16 %v78
  %v470 = vunpack.c.l.b16 %v79
  %v471 = vunpack.c.h.b16 %v79
  %v472 = vunpack.c.l.b16 %v80
  %v473 = vunpack.c.h.b16 %v80
  %v474 = vunpack.c.l.b16 %v81
  %v475 = vunpack.c.h.b16 %v81
  %v476 = vunpack.c.l.b16 %v82
  %v477 = vunpack.c.h.b16 %v82
  %v478 = vunpack.c.l.b16 %v83
  %v479 = vunpack.c.h.b16 %v83
  %v480 = vunpack.c.l.b16 %v84
  %v481 = vunpack.c.h.b16 %v84
  %v482 = vunpack.c.l.b16 %v85
  %v483 = vunpack.c.h.b16 %v85
  %v484 = vunpack.c.l.b16 %v86
  %v485 = vunpack.c.h.b16 %v86
  %v486 = vunpack.c.l.b16 %v87
  %v487 = vunpack.c.h.b16 %v87
  %v488 = vunpack.c.l.b16 %v88
  %v489 = vunpack.c.h.b16 %v88
  %v490 = vunpack.c.l.b16 %v89
  %v491 = vunpack.c.h.b16 %v89
  %v492 = vunpack.c.l.b16 %v90
  %v493 = vunpack.c.h.b16 %v90
  %v494 = vunpack.c.l.b16 %v91
  %v495 = vunpack.c.h.b16 %v91
  %v496 = vunpack.c.l.b16 %v92
  %v497 = vunpack.c.h.b16 %v92
  %v498 = vunpack.c.l.b16 %v93
  %v499 = vunpack.c.h.b16 %v93
  %v500 = vunpack.c.l.b16 %v94
  %v501 = vunpack.c.h.b16 %v94
  %v502 = vunpack.c.l.b16 %v95
  %v503 = vunpack.c.h.b16 %v95
  %v504 = vunpack.c.l.b16 %v96
  %v505 = vunpack.c.h.b16 %v96
  %v506 = vunpack.c.l.b16 %v97
  %v507 = vunpack.c.h.b16 %v97
  %v508 = vunpack.c.l.b16 %v98
  %v509 = vunpack.c.h.b16 %v98
  %v510 = vunpack.c.l.b16 %v99
  %v511 = vunpack.c.h.b16 %v99
  %v512 = vunpack.c.l.b16 %v100
  %v513 = vunpack.c.h.b16 %v100
  %v514 = vunpack.c.l.b16 %v101
  %v515 = vunpack.c.h.b16 %v101
  %v516 = vunpack.c.l.b16 %v102
  %v517 = vunpack.c.h.b16 %v102
  %v518 = vunpack.c.l.b16 %v103
  %v519 = vunpack.c.h.b16 %v103
  %v520 = vunpack.c.l.b16 %v104
  %v521 = vunpack.c.h.b16 %v104
  %v522 = vunpack.c.l.b16 %v105
  %v523 = vunpack.c.h.b16 %v105
  %v524 = vunpack.c.l.b16 %v106
  %v525 = vunpack.c.h.b16 %v106
  %v526 = vunpack.c.l.b16 %v107
  %v527 = vunpack.c.h.b16 %v107
  %v528 = vunpack.c.l.b16 %v108
  %v529 = vunpack.c.h.b16 %v108
  %v530 = vunpack.c.l.b16 %v109
  %v531 = vunpack.c.h.b16 %v109
  %v532 = vunpack.c.l.b16 %v110
  %v533 = vunpack.c.h.b16 %v110
  %v534 = vunpack.c.l.b16 %v111
  %v535 = vunpack.c.h.b16 %v111
  %v536 = vunpack.c.l.b16 %v112
  %v537 = vunpack.c.h.b16 %v112
  %v538 = vunpack.c.l.b16 %v113
  %v539 = vunpack.c.h.b16 %v113
  %v540 = vunpack.c.l.b16 %v114
  %v541 = vunpack.c.h.b16 %v114
  %v542 = vunpack.c.l.b16 %v115
  %v543 = vunpack.c.h.b16 %v115
  %v544 = vunpack.c.l.b16 %v116
  %v545 = vunpack.c.h.b16 %v116
  %v546 = vunpack.c.l.b16 %v117
  %v547 = vunpack.c.h.b16 %v117
  %v548 = vunpack.c.l.b16 %v118
  %v549 = vunpack.c.h.b16 %v118
  %v550 = vunpack.c.l.b16 %v119
  %v551 = vunpack.c.h.b16 %v119
  %v552 = vunpack.c.l.b16 %v120
  %v553 = vunpack.c.h.b16 %v120
  %v554 = vunpack.c.l.b16 %v121
  %v555 = vunpack.c.h.b16 %v121
  %v556 = vunpack.c.l.b16 %v122
  %v557 = vunpack.c.h.b16 %v122
  %v558 = vunpack.c.l.b16 %v123
  %v559 = vunpack.c.h.b16 %v123
  %v560 = vunpack.c.l.b16 %v124
  %v561 = vunpack.c.h.b16 %v124
  %v562 = vunpack.c.l.b16 %v125
  %v563 = vunpack.c.h.b16 %v125
  %v564 = vunpack.c.l.b16 %v126
  %v565 = vunpack.c.h.b16 %v126
  %v566 = vunpack.c.l.b16 %v127
  %v567 = vunpack.c.h.b16 %v127
  %v568 = vunpack.c.l.b16 %v128
  %v569 = vunpack.c.h.b16 %v128
  %v570 = vunpack.c.l.b16 %v129
  %v571 = vunpack.c.h.b16 %v129
  %v572 = vunpack.c.l.b16 %v130
  %v573 = vunpack.c.h.b16 %v130
  %v574 = vunpack.c.l.b16 %v131
  %v575 = vunpack.c.h.b16 %v131
  %v576 = vunpack.c.l.b16 %v132
  %v577 = vunpack.c.h.b16 %v132
  %v578 = vunpack.c.l.b16 %v133
  %v579 = vunpack.c.h.b16 %v133
  %v580 = vunpack.c.l.b16 %v134
  %v581 = vunpack.c.h.b16 %v134
  %v582 = vunpack.c.l.b16 %v135
  %v583 = vunpack.c.h.b16 %v135
  %v584 = vunpack.c.l.b16 %v136
  %v585 = vunpack.c.h.b16 %v136
  %v586 = vunpack.c.l.b16 %v137
  %v587 = vunpack.c.h.b16 %v137
  %v588 = vunpack.c.l.b16 %v138
  %v589 = vunpack.c.h.b16 %v138
  %v590 = vunpack.c.l.b16 %v139
  %v591 = vunpack.c.h.b16 %v139
  %v592 = vunpack.c.l.b16 %v140
  %v593 = vunpack.c.h.b16 %v140
  %v594 = vunpack.c.l.b16 %v141
  %v595 = vunpack.c.h.b16 %v141
  %v596 = vunpack.c.l.b16 %v142
  %v597 = vunpack.c.h.b16 %v142
  %v598 = vunpack.c.l.b16 %v143
  %v599 = vunpack.c.h.b16 %v143
  %v600 = vunpack.c.l.b16 %v144
  %v601 = vunpack.c.h.b16 %v144
  %v602 = vunpack.c.l.b16 %v145
  %v603 = vunpack.c.h.b16 %v145
  %v604 = vunpack.c.l.b16 %v146
  %v605 = vunpack.c.h.b16 %v146
  %v606 = vunpack.c.l.b16 %v147
  %v607 = vunpack.c.h.b16 %v147
  %v608 = vunpack.c.l.b16 %v148
  %v609 = vunpack.c.h.b16 %v148
  %v610 = vunpack.c.l.b16 %v149
  %v611 = vunpack.c.h.b16 %v149
  %v612 = vunpack.c.l.b16 %v150
  %v613 = vunpack.c.h.b16 %v150
  %v614 = vunpack.c.l.b16 %v151
  %v615 = vunpack.c.h.b16 %v151
  %v616 = vunpack.c.l.b16 %v152
  %v617 = vunpack.c.h.b16 %v152
  %v618 = vunpack.c.l.b16 %v153
  %v619 = vunpack.c.h.b16 %v153
  %v620 = vunpack.c.l.b16 %v154
  %v621 = vunpack.c.h.b16 %v154
  %v622 = vunpack.c.l.b16 %v155
  %v623 = vunpack.c.h.b16 %v155
  %v624 = vunpack.c.l.b16 %v156
  %v625 = vunpack.c.h.b16 %v156
  %v626 = vunpack.c.l.b16 %v157
  %v627 = vunpack.c.h.b16 %v157
  %v628 = vunpack.c.l.b16 %v158
  %v629 = vunpack.c.h.b16 %v158
  %v630 = vunpack.c.l.b16 %v159
  %v631 = vunpack.c.h.b16 %v159
  %v632 = vunpack.c.l.b16 %v160
  %v633 = vunpack.c.h.b16 %v160
  %v634 = vunpack.c.l.b16 %v161
  %v635 = vunpack.c.h.b16 %v161
  %v636 = vunpack.c.l.b16 %v162
  %v637 = vunpack.c.h.b16 %v162
  %v638 = vunpack.c.l.b16 %v163
  %v639 = vunpack.c.h.b16 %v163
  %v640 = vpack.c.b16 %v354, %v352
  %v641 = vpack.c.b16 %v355, %v353
  %v642 = vpack.c.b16 %v358, %v356
  %v643 = vpack.c.b16 %v359, %v357
  %v644 = vpack.c.b16 %v362, %v360
  %v645 = vpack.c.b16 %v363, %v361
  %v646 = vpack.c.b16 %v366, %v364
  %v647 = vpack.c.b16 %v367, %v365
  %v648 = vpack.c.b16 %v370, %v368
  %v649 = vpack.c.b16 %v371, %v369
  %v650 = vpack.c.b16 %v374, %v372
  %v651 = vpack.c.b16 %v375, %v373
  %v652 = vpack.c.b16 %v378, %v376
  %v653 = vpack.c.b16 %v379, %v377
  %v654 = vpack.c.b16 %v382, %v380
  %v655 = vpack.c.b16 %v383, %v381
  %v656 = vpack.c.b16 %v386, %v384
  %v657 = vpack.c.b16 %v387, %v385
  %v658 = vpack.c.b16 %v390, %v388
  %v659 = vpack.c.b16 %v391, %v389
  %v660 = vpack.c.b16 %v394, %v392
  %v661 = vpack.c.b16 %v395, %v393
  %v662 = vpack.c.b16 %v398, %v396
  %v663 = vpack.c.b16 %v399, %v397
  %v664 = vpack.c.b16 %v402, %v400
  %v665 = vpack.c.b16 %v403, %v401
  %v666 = vpack.c.b16 %v406, %v404
  %v667 = vpack.c.b16 %v407, %v405
  %v668 = vpack.c.b16 %v410, %v408
  %v669 = vpack.c.b16 %v411, %v409
  %v670 = vpack.c.b16 %v414, %v412
  %v671 = vpack.c.b16 %v415, %v413
  %v672 = vpack.c.b16 %v418, %v416
  %v673 = vpack.c.b16 %v419, %v417
  %v674 = vpack.c.b16 %v422, %v420
  %v675 = vpack.c.b16 %v423, %v421
  %v676 = vpack.c.b16 %v426, %v424
  %v677 = vpack.c.b16 %v427, %v425
  %v678 = vpack.c.b16 %v430, %v428
  %v679 = vpack.c.b16 %v431, %v429
  %v680 = vpack.c.b16 %v434, %v432
  %v681 = vpack.c.b16 %v435, %v433
  %v682 = vpack.c.b16 %v438, %v436
  %v683 = vpack.c.b16 %v439, %v437
  %v684 = vpack.c.b16 %v442, %v440
  %v685 = vpack.c.b16 %v443, %v441
  %v686 = vpack.c.b16 %v446, %v444
  %v687 = vpack.c.b16 %v447, %v445
  %v688 = vpack.c.b16 %v450, %v448
  %v689 = vpack.c.b16 %v451, %v449
  %v690 = vpack.c.b16 %v454, %v452
  %v691 = vpack.c.b16 %v455, %v453
  %v692 = vpack.c.b16 %v458, %v456
  %v693 = vpack.c.b16 %v459, %v457
  %v694 = vpack.c.b16 %v462, %v460
  %v695 = vpack.c.b16 %v463, %v461
  %v696 = vpack.c.b16 %v466, %v464
  %v697 = vpack.c.b16 %v467, %v465
  %v698 = vpack.c.b16 %v470, %v468
  %v699 = vpack.c.b16 %v471, %v469
  %v700 = vpack.c.b16 %v474, %v472
  %v701 = vpack.c.b16 %v475, %v473
  %v702 = vpack.c.b16 %v478, %v476
  %v703 = vpack.c.b16 %v479, %v477
  %v704 = vpack.c.b16 %v482, %v480
  %v705 = vpack.c.b16 %v483, %v481
  %v706 = vpack.c.b16 %v486, %v484
  %v707 = vpack.c.b16 %v487, %v485
  %v708 = vpack.c.b16 %v490, %v488
  %v709 = vpack.c.b16 %v491, %v489
  %v710 = vpack.c.b16 %v494, %v492
  %v711 = vpack.c.b16 %v495, %v493
  %v712 = vpack.c.b16 %v498, %v496
  %v713 = vpack.c.b16 %v499, %v497
  %v714 = vpack.c.b16 %v502, %v500
  %v715 = vpack.c.b16 %v503, %v501
  %v716 = vpack.c.b16 %v506, %v504
  %v717 = vpack.c.b16 %v507, %v505
  %v718 = vpack.c.b16 %v510, %v508
  %v719 = vpack.c.b16 %v511, %v509
  %v720 = vpack.c.b16 %v514, %v512
  %v721 = vpack.c.b16 %v515, %v513
  %v722 = vpack.c.b16 %v518, %v516
  %v723 = vpack.c.b16 %v519, %v517
  %v724 = vpack.c.b16 %v522, %v520
  %v725 = vpack.c.b16 %v523, %v521
  %v726 = vpack.c.b16 %v526, %v524
  %v727 = vpack.c.b16 %v527, %v525
  %v728 = vpack.c.b16 %v530, %v528
  %v729 = vpack.c.b16 %v531, %v529
  %v730 = vpack.c.b16 %v534, %v532
  %v731 = vpack.c.b16 %v535, %v533
  %v732 = vpack.c.b16 %v538, %v536
  %v733 = vpack.c.b16 %v539, %v537
  %v734 = vpack.c.b16 %v542, %v540
  %v735 = vpack.c.b16 %v543, %v541
  %v736 = vpack.c.b16 %v546, %v544
  %v737 = vpack.c.b16 %v547, %v545
  %v738 = vpack.c.b16 %v550, %v548
  %v739 = vpack.c.b16 %v551, %v549
  %v740 = vpack.c.b16 %v554, %v552
  %v741 = vpack.c.b16 %v555, %v553
  %v742 = vpack.c.b16 %v558, %v556
  %v743 = vpack.c.b16 %v559, %v557
  %v744 = vpack.c.b16 %v562, %v560
  %v745 = vpack.c.b16 %v563, %v561
  %v746 = vpack.c.b16 %v566, %v564
  %v747 = vpack.c.b16 %v567, %v565
  %v748 = vpack.c.b16 %v570, %v568
  %v749 = vpack.c.b16 %v571, %v569
  %v750 = vpack.c.b16 %v574, %v572
  %v751 = vpack.c.b16 %v575, %v573
  %v752 = vpack.c.b16 %v578, %v576
  %v753 = vpack.c.b16 %v579, %v577
  %v754 = vpack.c.b16 %v582, %v580
  %v755 = vpack.c.b16 %v583, %v581
  %v756 = vpack.c.b16 %v586, %v584
  %v757 = vpack.c.b16 %v587, %v585
  %v758 = vpack.c.b16 %v590, %v588
  %v759 = vpack.c.b16 %v591, %v589
  %v760 = vpack.c.b16 %v594, %v592
  %v761 = vpack.c.b16 %v595, %v593
  %v762 = vpack.c.b16 %v598, %v596
  %v763 = vpack.c.b16 %v599, %v597
  %v764 = vpack.c.b16 %v602, %v600
  %v765 = vpack.c.b16 %v603, %v601
  %v766 = vpack.c.b16 %v606, %v604
  %v767 = vpack.c.b16 %v607, %v605
  %v768 = vpack.c.b16 %v610, %v608
  %v769 = vpack.c.b16 %v611, %v609
  %v770 = vpack.c.b16 %v614, %v612
  %v771 = vpack.c.b16 %v615, %v613
  %v772 = vpack.c.b16 %v618, %v616
  %v773 = vpack.c.b16 %v619, %v617
  %v774 = vpack.c.b16 %v622, %v620
  %v775 = vpack.c.b16 %v623, %v621
  %v776 = vpack.c.b16 %v626, %v624
  %v777 = vpack.c.b16 %v627, %v625
  %v778 = vpack.c.b16 %v630, %v628
  %v779 = vpack.c.b16 %v631, %v629
  %v780 = vpack.c.b16 %v634, %v632
  %v781 = vpack.c.b16 %v635, %v633
  %v782 = vpack.c.b16 %v638, %v636
  %v783 = vpack.c.b16 %v639, %v637
  %928 = vmatprep.subr.bf16.mxu0 %v641
  %929 = vmatpush1.bf16.msra.mxu0 %v640
  %930 = vmatprep.subr.bf16.mxu0 %v643
  %931 = vmatpush1.bf16.msra.mxu0 %v642
  %932 = vmatprep.subr.bf16.mxu0 %v645
  %933 = vmatpush1.bf16.msra.mxu0 %v644
  %934 = vmatprep.subr.bf16.mxu0 %v647
  %935 = vmatpush1.bf16.msra.mxu0 %v646
  %936 = vmatprep.subr.bf16.mxu0 %v649
  %937 = vmatpush1.bf16.msra.mxu0 %v648
  %938 = vmatprep.subr.bf16.mxu0 %v651
  %939 = vmatpush1.bf16.msra.mxu0 %v650
  %940 = vmatprep.subr.bf16.mxu0 %v653
  %941 = vmatpush1.bf16.msra.mxu0 %v652
  %942 = vmatprep.subr.bf16.mxu0 %v655
  %943 = vmatpush1.bf16.msra.mxu0 %v654
  %944 = vmatprep.subr.bf16.mxu0 %v657
  %945 = vmatpush1.bf16.msra.mxu0 %v656
  %946 = vmatprep.subr.bf16.mxu0 %v659
  %947 = vmatpush1.bf16.msra.mxu0 %v658
  %948 = vmatprep.subr.bf16.mxu0 %v661
  %949 = vmatpush1.bf16.msra.mxu0 %v660
  %950 = vmatprep.subr.bf16.mxu0 %v663
  %951 = vmatpush1.bf16.msra.mxu0 %v662
  %952 = vmatprep.subr.bf16.mxu0 %v665
  %953 = vmatpush1.bf16.msra.mxu0 %v664
  %954 = vmatprep.subr.bf16.mxu0 %v667
  %955 = vmatpush1.bf16.msra.mxu0 %v666
  %956 = vmatprep.subr.bf16.mxu0 %v669
  %957 = vmatpush1.bf16.msra.mxu0 %v668
  %958 = vmatprep.subr.bf16.mxu0 %v671
  %959 = vmatpush1.bf16.msra.mxu0 %v670
  %960 = vmatprep.mubr.bf16.mxu0 %v191
  %961 = vmatmul.mubr.bf16.gmra.mrb[0].mxu0 %v190
  %v962 = vpop.f32.mrb[0].mxu0
  %v963 = vadd.f32 %v169, %v962
  %v964 = vpop.f32.mrb[0].mxu0
  %v965 = vadd.f32 %v173, %v964
  %v966 = vpop.f32.mrb[0].mxu0
  %v967 = vpop.f32.mrb[0].mxu0
  %968 = vdwg.mxu0
  %969 = vmatprep.subr.bf16.mxu0 %v673
  %970 = vmatpush1.bf16.msra.mxu0 %v672
  %971 = vmatprep.subr.bf16.mxu0 %v675
  %972 = vmatpush1.bf16.msra.mxu0 %v674
  %973 = vmatprep.subr.bf16.mxu0 %v677
  %974 = vmatpush1.bf16.msra.mxu0 %v676
  %975 = vmatprep.subr.bf16.mxu0 %v679
  %976 = vmatpush1.bf16.msra.mxu0 %v678
  %977 = vmatprep.subr.bf16.mxu0 %v681
  %978 = vmatpush1.bf16.msra.mxu0 %v680
  %979 = vmatprep.subr.bf16.mxu0 %v683
  %980 = vmatpush1.bf16.msra.mxu0 %v682
  %981 = vmatprep.subr.bf16.mxu0 %v685
  %982 = vmatpush1.bf16.msra.mxu0 %v684
  %983 = vmatprep.subr.bf16.mxu0 %v687
  %984 = vmatpush1.bf16.msra.mxu0 %v686
  %985 = vmatprep.subr.bf16.mxu0 %v689
  %986 = vmatpush1.bf16.msra.mxu0 %v688
  %987 = vmatprep.subr.bf16.mxu0 %v691
  %988 = vmatpush1.bf16.msra.mxu0 %v690
  %989 = vmatprep.subr.bf16.mxu0 %v693
  %990 = vmatpush1.bf16.msra.mxu0 %v692
  %991 = vmatprep.subr.bf16.mxu0 %v695
  %992 = vmatpush1.bf16.msra.mxu0 %v694
  %993 = vmatprep.subr.bf16.mxu0 %v697
  %994 = vmatpush1.bf16.msra.mxu0 %v696
  %995 = vmatprep.subr.bf16.mxu0 %v699
  %996 = vmatpush1.bf16.msra.mxu0 %v698
  %997 = vmatprep.subr.bf16.mxu0 %v701
  %998 = vmatpush1.bf16.msra.mxu0 %v700
  %999 = vmatprep.subr.bf16.mxu0 %v703
  %1000 = vmatpush1.bf16.msra.mxu0 %v702
  %1001 = vmatprep.mubr.bf16.mxu0 %v193
  %1002 = vmatmul.mubr.bf16.gmra.mrb[0].mxu0 %v192
  %v1003 = vpop.f32.mrb[0].mxu0
  %v1004 = vadd.f32 %v963, %v1003
  %v1005 = vpop.f32.mrb[0].mxu0
  %v1006 = vadd.f32 %v965, %v1005
  %v1007 = vpop.f32.mrb[0].mxu0
  %v1008 = vpop.f32.mrb[0].mxu0
  %1009 = vdwg.mxu0
  %1010 = vmatprep.subr.bf16.mxu0 %v705
  %1011 = vmatpush1.bf16.msra.mxu0 %v704
  %1012 = vmatprep.subr.bf16.mxu0 %v707
  %1013 = vmatpush1.bf16.msra.mxu0 %v706
  %1014 = vmatprep.subr.bf16.mxu0 %v709
  %1015 = vmatpush1.bf16.msra.mxu0 %v708
  %1016 = vmatprep.subr.bf16.mxu0 %v711
  %1017 = vmatpush1.bf16.msra.mxu0 %v710
  %1018 = vmatprep.subr.bf16.mxu0 %v713
  %1019 = vmatpush1.bf16.msra.mxu0 %v712
  %1020 = vmatprep.subr.bf16.mxu0 %v715
  %1021 = vmatpush1.bf16.msra.mxu0 %v714
  %1022 = vmatprep.subr.bf16.mxu0 %v717
  %1023 = vmatpush1.bf16.msra.mxu0 %v716
  %1024 = vmatprep.subr.bf16.mxu0 %v719
  %1025 = vmatpush1.bf16.msra.mxu0 %v718
  %1026 = vmatprep.subr.bf16.mxu0 %v721
  %1027 = vmatpush1.bf16.msra.mxu0 %v720
  %1028 = vmatprep.subr.bf16.mxu0 %v723
  %1029 = vmatpush1.bf16.msra.mxu0 %v722
  %1030 = vmatprep.subr.bf16.mxu0 %v725
  %1031 = vmatpush1.bf16.msra.mxu0 %v724
  %1032 = vmatprep.subr.bf16.mxu0 %v727
  %1033 = vmatpush1.bf16.msra.mxu0 %v726
  %1034 = vmatprep.subr.bf16.mxu0 %v729
  %1035 = vmatpush1.bf16.msra.mxu0 %v728
  %1036 = vmatprep.subr.bf16.mxu0 %v731
  %1037 = vmatpush1.bf16.msra.mxu0 %v730
  %1038 = vmatprep.subr.bf16.mxu0 %v733
  %1039 = vmatpush1.bf16.msra.mxu0 %v732
  %1040 = vmatprep.subr.bf16.mxu0 %v735
  %1041 = vmatpush1.bf16.msra.mxu0 %v734
  %1042 = vmatprep.mubr.bf16.mxu0 %v195
  %1043 = vmatmul.mubr.bf16.gmra.mrb[0].mxu0 %v194
  %v1044 = vpop.f32.mrb[0].mxu0
  %v1045 = vadd.f32 %v1004, %v1044
  %v1046 = vpop.f32.mrb[0].mxu0
  %v1047 = vadd.f32 %v1006, %v1046
  %v1048 = vpop.f32.mrb[0].mxu0
  %v1049 = vpop.f32.mrb[0].mxu0
  %1050 = vdwg.mxu0
  %1051 = vmatprep.subr.bf16.mxu0 %v737
  %1052 = vmatpush1.bf16.msra.mxu0 %v736
  %1053 = vmatprep.subr.bf16.mxu0 %v739
  %1054 = vmatpush1.bf16.msra.mxu0 %v738
  %1055 = vmatprep.subr.bf16.mxu0 %v741
  %1056 = vmatpush1.bf16.msra.mxu0 %v740
  %1057 = vmatprep.subr.bf16.mxu0 %v743
  %1058 = vmatpush1.bf16.msra.mxu0 %v742
  %1059 = vmatprep.subr.bf16.mxu0 %v745
  %1060 = vmatpush1.bf16.msra.mxu0 %v744
  %1061 = vmatprep.subr.bf16.mxu0 %v747
  %1062 = vmatpush1.bf16.msra.mxu0 %v746
  %1063 = vmatprep.subr.bf16.mxu0 %v749
  %1064 = vmatpush1.bf16.msra.mxu0 %v748
  %1065 = vmatprep.subr.bf16.mxu0 %v751
  %1066 = vmatpush1.bf16.msra.mxu0 %v750
  %1067 = vmatprep.subr.bf16.mxu0 %v753
  %1068 = vmatpush1.bf16.msra.mxu0 %v752
  %1069 = vmatprep.subr.bf16.mxu0 %v755
  %1070 = vmatpush1.bf16.msra.mxu0 %v754
  %1071 = vmatprep.subr.bf16.mxu0 %v757
  %1072 = vmatpush1.bf16.msra.mxu0 %v756
  %1073 = vmatprep.subr.bf16.mxu0 %v759
  %1074 = vmatpush1.bf16.msra.mxu0 %v758
  %1075 = vmatprep.subr.bf16.mxu0 %v761
  %1076 = vmatpush1.bf16.msra.mxu0 %v760
  %1077 = vmatprep.subr.bf16.mxu0 %v763
  %1078 = vmatpush1.bf16.msra.mxu0 %v762
  %1079 = vmatprep.subr.bf16.mxu0 %v765
  %1080 = vmatpush1.bf16.msra.mxu0 %v764
  %1081 = vmatprep.subr.bf16.mxu0 %v767
  %1082 = vmatpush1.bf16.msra.mxu0 %v766
  %1083 = vmatprep.mubr.bf16.mxu0 %v197
  %1084 = vmatmul.mubr.bf16.gmra.mrb[0].mxu0 %v196
  %v1085 = vpop.f32.mrb[0].mxu0
  %v1086 = vadd.f32 %v1045, %v1085
  %v1087 = vpop.f32.mrb[0].mxu0
  %v1088 = vadd.f32 %v1047, %v1087
  %v1089 = vpop.f32.mrb[0].mxu0
  %v1090 = vpop.f32.mrb[0].mxu0
  %1091 = vdwg.mxu0
  %1092 = vmatprep.subr.bf16.mxu0 %v769
  %1093 = vmatpush1.bf16.msra.mxu0 %v768
  %1094 = vmatprep.subr.bf16.mxu0 %v771
  %1095 = vmatpush1.bf16.msra.mxu0 %v770
  %1096 = vmatprep.subr.bf16.mxu0 %v773
  %1097 = vmatpush1.bf16.msra.mxu0 %v772
  %1098 = vmatprep.subr.bf16.mxu0 %v775
  %1099 = vmatpush1.bf16.msra.mxu0 %v774
  %1100 = vmatprep.subr.bf16.mxu0 %v777
  %1101 = vmatpush1.bf16.msra.mxu0 %v776
  %1102 = vmatprep.subr.bf16.mxu0 %v779
  %1103 = vmatpush1.bf16.msra.mxu0 %v778
  %1104 = vmatprep.subr.bf16.mxu0 %v781
  %1105 = vmatpush1.bf16.msra.mxu0 %v780
  %1106 = vmatprep.subr.bf16.mxu0 %v783
  %1107 = vmatpush1.bf16.msra.mxu0 %v782
  %1108 = vmatprep.subr.bf16.mxu0 0
  %1109 = vmatpush1.bf16.msra.mxu0 0
  %1110 = vmatprep.subr.bf16.mxu0 0
  %1111 = vmatpush1.bf16.msra.mxu0 0
  %1112 = vmatprep.subr.bf16.mxu0 0
  %1113 = vmatpush1.bf16.msra.mxu0 0
  %1114 = vmatprep.subr.bf16.mxu0 0
  %1115 = vmatpush1.bf16.msra.mxu0 0
  %1116 = vmatprep.subr.bf16.mxu0 0
  %1117 = vmatpush1.bf16.msra.mxu0 0
  %1118 = vmatprep.subr.bf16.mxu0 0
  %1119 = vmatpush1.bf16.msra.mxu0 0
  %1120 = vmatprep.subr.bf16.mxu0 0
  %1121 = vmatpush1.bf16.msra.mxu0 0
  %1122 = vmatprep.subr.bf16.mxu0 0
  %1123 = vmatpush1.bf16.msra.mxu0 0
  %1124 = vmatprep.mubr.bf16.mxu0 0
  %1125 = vmatmul.mubr.bf16.gmra.mrb[0].mxu0 %v198
  %v1126 = vpop.f32.mrb[0].mxu0
  %v1127 = vadd.f32 %v1086, %v1126
  %v1128 = vpop.f32.mrb[0].mxu0
  %v1129 = vadd.f32 %v1088, %v1128
  %v1130 = vpop.f32.mrb[0].mxu0
  %v1131 = vpop.f32.mrb[0].mxu0
  %1132 = vdwg.mxu0
  %v1133 = vmax.f32 %v1127, 0.0
  %v1134 = vmax.f32 %v1129, 0.0
  %v1135 = vpack.c.bf16 %v1133, %v1133
  %v1136 = vpack.c.bf16 %v1134, %v1134
  %v1139 = vunpack.c.l.b16 %v1135
  %v1140 = vunpack.c.l.b16 %v1136
  %v1141 = vpack.c.b16 %v1140, %v1139
  %1143 = vst [vmem:[%s3] sm:$0xff] %v1141
  // Predicated region
  $region14: #{image_encoder_forward.47} parent=0 // pred_check
    _
  $region15: #{image_encoder_forward.47} parent=0 // pred_check_branch
    %1145 = sbr.rel (0) target = $region17
  $region16: #{image_encoder_forward.47} parent=0 // pred_region
    _
  $region17: #{image_encoder_forward.47} parent=0 // pred_fallthru
    _
  // Predicated region
  $region18: #{image_encoder_forward.47} parent=0 // pred_check
    _
  $region19: #{image_encoder_forward.47} parent=0 // pred_check_branch
    %1147 = sbr.rel (0) target = $region21
  $region20: #{image_encoder_forward.47} parent=0 // pred_region
    _
  $region21: #{image_encoder_forward.47} parent=0 // pred_fallthru
    _

// kernel: image_encoder_forward.50
$region0: #{image_encoder_forward.50}
  #allocation0 [shape = 'u32[]', space=smem, size = 0x4, offset = 0x4, fixed_abs, tag = 'smem constant byte address 0x4 - core index']
  #allocation1 [shape = 'u32[144,128]{1,0:T(1,128)}', space=vmem, size = 0x12000, scoped, tag = 'internal scratch']
  %s0 = inlined_call_operand.vmem [shape: bf16[8,2304], index: 0, kind: input, shape index: {}]
  %s1 = inlined_call_operand.vmem [shape: bf16[2304,256], index: 1, kind: input, shape index: {}]
  %s2 = inlined_call_operand.vmem [shape: f32[1,256], index: 2, kind: input, shape index: {}]
  %s3 = inlined_call_operand.vmem [shape: bf16[8,256], index: 3, kind: output, shape index: {}]
  %s4 = sld [smem:[#allocation0]]
  $region22: #{image_encoder_forward.50} parent=0
    _
  %s6 = ssub.s32 1, %s4
  %s7 = scalar_select 0, %s6, %s4
  // Predicated region
  $region2: #{image_encoder_forward.50} parent=0 // pred_check
    _
  $region3: #{image_encoder_forward.50} parent=0 // pred_check_branch
    %9 = sbr.rel (0) target = $region5
  $region4: #{image_encoder_forward.50} parent=0 // pred_region
    _
  $region5: #{image_encoder_forward.50} parent=0 // pred_fallthru
    _
  // Predicated region
  $region6: #{image_encoder_forward.50} parent=0 // pred_check
    _
  $region7: #{image_encoder_forward.50} parent=0 // pred_check_branch
    %11 = sbr.rel (0) target = $region9
  $region8: #{image_encoder_forward.50} parent=0 // pred_region
    _
  $region9: #{image_encoder_forward.50} parent=0 // pred_fallthru
    _
  // Predicated region
  $region10: #{image_encoder_forward.50} parent=0 // pred_check
    _
  $region11: #{image_encoder_forward.50} parent=0 // pred_check_branch
    %13 = sbr.rel (0) target = $region13
  $region12: #{image_encoder_forward.50} parent=0 // pred_region
    _
  $region13: #{image_encoder_forward.50} parent=0 // pred_fallthru
    _
  %v14 = vld [vmem:[%s0] sm:$0xff]
  %v15 = vld [vmem:[%s0 + $0x8] sm:$0xff]
  %v16 = vld [vmem:[%s0 + $0x10] sm:$0xff]
  %v17 = vld [vmem:[%s0 + $0x18] sm:$0xff]
  %v18 = vld [vmem:[%s0 + $0x20] sm:$0xff]
  %v19 = vld [vmem:[%s0 + $0x28] sm:$0xff]
  %v20 = vld [vmem:[%s0 + $0x30] sm:$0xff]
  %v21 = vld [vmem:[%s0 + $0x38] sm:$0xff]
  %v22 = vld [vmem:[%s0 + $0x40] sm:$0xff]
  %v23 = vld [vmem:[%s1] sm:$0xff]
  %v24 = vld [vmem:[%s1 + $0x8] sm:$0xff]
  %v25 = vld [vmem:[%s1 + $0x10] sm:$0xff]
  %v26 = vld [vmem:[%s1 + $0x18] sm:$0xff]
  %v27 = vld [vmem:[%s1 + $0x20] sm:$0xff]
  %v28 = vld [vmem:[%s1 + $0x28] sm:$0xff]
  %v29 = vld [vmem:[%s1 + $0x30] sm:$0xff]
  %v30 = vld [vmem:[%s1 + $0x38] sm:$0xff]
  %v31 = vld [vmem:[%s1 + $0x40] sm:$0xff]
  %v32 = vld [vmem:[%s1 + $0x48] sm:$0xff]
  %v33 = vld [vmem:[%s1 + $0x50] sm:$0xff]
  %v34 = vld [vmem:[%s1 + $0x58] sm:$0xff]
  %v35 = vld [vmem:[%s1 + $0x60] sm:$0xff]
  %v36 = vld [vmem:[%s1 + $0x68] sm:$0xff]
  %v37 = vld [vmem:[%s1 + $0x70] sm:$0xff]
  %v38 = vld [vmem:[%s1 + $0x78] sm:$0xff]
  %v39 = vld [vmem:[%s1 + $0x80] sm:$0xff]
  %v40 = vld [vmem:[%s1 + $0x88] sm:$0xff]
  %v41 = vld [vmem:[%s1 + $0x90] sm:$0xff]
  %v42 = vld [vmem:[%s1 + $0x98] sm:$0xff]
  %v43 = vld [vmem:[%s1 + $0xa0] sm:$0xff]
  %v44 = vld [vmem:[%s1 + $0xa8] sm:$0xff]
  %v45 = vld [vmem:[%s1 + $0xb0] sm:$0xff]
  %v46 = vld [vmem:[%s1 + $0xb8] sm:$0xff]
  %v47 = vld [vmem:[%s1 + $0xc0] sm:$0xff]
  %v48 = vld [vmem:[%s1 + $0xc8] sm:$0xff]
  %v49 = vld [vmem:[%s1 + $0xd0] sm:$0xff]
  %v50 = vld [vmem:[%s1 + $0xd8] sm:$0xff]
  %v51 = vld [vmem:[%s1 + $0xe0] sm:$0xff]
  %v52 = vld [vmem:[%s1 + $0xe8] sm:$0xff]
  %v53 = vld [vmem:[%s1 + $0xf0] sm:$0xff]
  %v54 = vld [vmem:[%s1 + $0xf8] sm:$0xff]
  %v55 = vld [vmem:[%s1 + $0x100] sm:$0xff]
  %v56 = vld [vmem:[%s1 + $0x108] sm:$0xff]
  %v57 = vld [vmem:[%s1 + $0x110] sm:$0xff]
  %v58 = vld [vmem:[%s1 + $0x118] sm:$0xff]
  %v59 = vld [vmem:[%s1 + $0x120] sm:$0xff]
  %v60 = vld [vmem:[%s1 + $0x128] sm:$0xff]
  %v61 = vld [vmem:[%s1 + $0x130] sm:$0xff]
  %v62 = vld [vmem:[%s1 + $0x138] sm:$0xff]
  %v63 = vld [vmem:[%s1 + $0x140] sm:$0xff]
  %v64 = vld [vmem:[%s1 + $0x148] sm:$0xff]
  %v65 = vld [vmem:[%s1 + $0x150] sm:$0xff]
  %v66 = vld [vmem:[%s1 + $0x158] sm:$0xff]
  %v67 = vld [vmem:[%s1 + $0x160] sm:$0xff]
  %v68 = vld [vmem:[%s1 + $0x168] sm:$0xff]
  %v69 = vld [vmem:[%s1 + $0x170] sm:$0xff]
  %v70 = vld [vmem:[%s1 + $0x178] sm:$0xff]
  %v71 = vld [vmem:[%s1 + $0x180] sm:$0xff]
  %v72 = vld [vmem:[%s1 + $0x188] sm:$0xff]
  %v73 = vld [vmem:[%s1 + $0x190] sm:$0xff]
  %v74 = vld [vmem:[%s1 + $0x198] sm:$0xff]
  %v75 = vld [vmem:[%s1 + $0x1a0] sm:$0xff]
  %v76 = vld [vmem:[%s1 + $0x1a8] sm:$0xff]
  %v77 = vld [vmem:[%s1 + $0x1b0] sm:$0xff]
  %v78 = vld [vmem:[%s1 + $0x1b8] sm:$0xff]
  %v79 = vld [vmem:[%s1 + $0x1c0] sm:$0xff]
  %v80 = vld [vmem:[%s1 + $0x1c8] sm:$0xff]
  %v81 = vld [vmem:[%s1 + $0x1d0] sm:$0xff]
  %v82 = vld [vmem:[%s1 + $0x1d8] sm:$0xff]
  %v83 = vld [vmem:[%s1 + $0x1e0] sm:$0xff]
  %v84 = vld [vmem:[%s1 + $0x1e8] sm:$0xff]
  %v85 = vld [vmem:[%s1 + $0x1f0] sm:$0xff]
  %v86 = vld [vmem:[%s1 + $0x1f8] sm:$0xff]
  %v87 = vld [vmem:[%s1 + $0x200] sm:$0xff]
  %v88 = vld [vmem:[%s1 + $0x208] sm:$0xff]
  %v89 = vld [vmem:[%s1 + $0x210] sm:$0xff]
  %v90 = vld [vmem:[%s1 + $0x218] sm:$0xff]
  %v91 = vld [vmem:[%s1 + $0x220] sm:$0xff]
  %v92 = vld [vmem:[%s1 + $0x228] sm:$0xff]
  %v93 = vld [vmem:[%s1 + $0x230] sm:$0xff]
  %v94 = vld [vmem:[%s1 + $0x238] sm:$0xff]
  %v95 = vld [vmem:[%s1 + $0x240] sm:$0xff]
  %v96 = vld [vmem:[%s1 + $0x248] sm:$0xff]
  %v97 = vld [vmem:[%s1 + $0x250] sm:$0xff]
  %v98 = vld [vmem:[%s1 + $0x258] sm:$0xff]
  %v99 = vld [vmem:[%s1 + $0x260] sm:$0xff]
  %v100 = vld [vmem:[%s1 + $0x268] sm:$0xff]
  %v101 = vld [vmem:[%s1 + $0x270] sm:$0xff]
  %v102 = vld [vmem:[%s1 + $0x278] sm:$0xff]
  %v103 = vld [vmem:[%s1 + $0x280] sm:$0xff]
  %v104 = vld [vmem:[%s1 + $0x288] sm:$0xff]
  %v105 = vld [vmem:[%s1 + $0x290] sm:$0xff]
  %v106 = vld [vmem:[%s1 + $0x298] sm:$0xff]
  %v107 = vld [vmem:[%s1 + $0x2a0] sm:$0xff]
  %v108 = vld [vmem:[%s1 + $0x2a8] sm:$0xff]
  %v109 = vld [vmem:[%s1 + $0x2b0] sm:$0xff]
  %v110 = vld [vmem:[%s1 + $0x2b8] sm:$0xff]
  %v111 = vld [vmem:[%s1 + $0x2c0] sm:$0xff]
  %v112 = vld [vmem:[%s1 + $0x2c8] sm:$0xff]
  %v113 = vld [vmem:[%s1 + $0x2d0] sm:$0xff]
  %v114 = vld [vmem:[%s1 + $0x2d8] sm:$0xff]
  %v115 = vld [vmem:[%s1 + $0x2e0] sm:$0xff]
  %v116 = vld [vmem:[%s1 + $0x2e8] sm:$0xff]
  %v117 = vld [vmem:[%s1 + $0x2f0] sm:$0xff]
  %v118 = vld [vmem:[%s1 + $0x2f8] sm:$0xff]
  %v119 = vld [vmem:[%s1 + $0x300] sm:$0xff]
  %v120 = vld [vmem:[%s1 + $0x308] sm:$0xff]
  %v121 = vld [vmem:[%s1 + $0x310] sm:$0xff]
  %v122 = vld [vmem:[%s1 + $0x318] sm:$0xff]
  %v123 = vld [vmem:[%s1 + $0x320] sm:$0xff]
  %v124 = vld [vmem:[%s1 + $0x328] sm:$0xff]
  %v125 = vld [vmem:[%s1 + $0x330] sm:$0xff]
  %v126 = vld [vmem:[%s1 + $0x338] sm:$0xff]
  %v127 = vld [vmem:[%s1 + $0x340] sm:$0xff]
  %v128 = vld [vmem:[%s1 + $0x348] sm:$0xff]
  %v129 = vld [vmem:[%s1 + $0x350] sm:$0xff]
  %v130 = vld [vmem:[%s1 + $0x358] sm:$0xff]
  %v131 = vld [vmem:[%s1 + $0x360] sm:$0xff]
  %v132 = vld [vmem:[%s1 + $0x368] sm:$0xff]
  %v133 = vld [vmem:[%s1 + $0x370] sm:$0xff]
  %v134 = vld [vmem:[%s1 + $0x378] sm:$0xff]
  %v135 = vld [vmem:[%s1 + $0x380] sm:$0xff]
  %v136 = vld [vmem:[%s1 + $0x388] sm:$0xff]
  %v137 = vld [vmem:[%s1 + $0x390] sm:$0xff]
  %v138 = vld [vmem:[%s1 + $0x398] sm:$0xff]
  %v139 = vld [vmem:[%s1 + $0x3a0] sm:$0xff]
  %v140 = vld [vmem:[%s1 + $0x3a8] sm:$0xff]
  %v141 = vld [vmem:[%s1 + $0x3b0] sm:$0xff]
  %v142 = vld [vmem:[%s1 + $0x3b8] sm:$0xff]
  %v143 = vld [vmem:[%s1 + $0x3c0] sm:$0xff]
  %v144 = vld [vmem:[%s1 + $0x3c8] sm:$0xff]
  %v145 = vld [vmem:[%s1 + $0x3d0] sm:$0xff]
  %v146 = vld [vmem:[%s1 + $0x3d8] sm:$0xff]
  %v147 = vld [vmem:[%s1 + $0x3e0] sm:$0xff]
  %v148 = vld [vmem:[%s1 + $0x3e8] sm:$0xff]
  %v149 = vld [vmem:[%s1 + $0x3f0] sm:$0xff]
  %v150 = vld [vmem:[%s1 + $0x3f8] sm:$0xff]
  %v151 = vld [vmem:[%s1 + $0x400] sm:$0xff]
  %v152 = vld [vmem:[%s1 + $0x408] sm:$0xff]
  %v153 = vld [vmem:[%s1 + $0x410] sm:$0xff]
  %v154 = vld [vmem:[%s1 + $0x418] sm:$0xff]
  %v155 = vld [vmem:[%s1 + $0x420] sm:$0xff]
  %v156 = vld [vmem:[%s1 + $0x428] sm:$0xff]
  %v157 = vld [vmem:[%s1 + $0x430] sm:$0xff]
  %v158 = vld [vmem:[%s1 + $0x438] sm:$0xff]
  %v159 = vld [vmem:[%s1 + $0x440] sm:$0xff]
  %v160 = vld [vmem:[%s1 + $0x448] sm:$0xff]
  %v161 = vld [vmem:[%s1 + $0x450] sm:$0xff]
  %v162 = vld [vmem:[%s1 + $0x458] sm:$0xff]
  %v163 = vld [vmem:[%s1 + $0x460] sm:$0xff]
  %v164 = vld [vmem:[%s1 + $0x468] sm:$0xff]
  %v165 = vld [vmem:[%s1 + $0x470] sm:$0xff]
  %v166 = vld [vmem:[%s1 + $0x478] sm:$0xff]
  %v167 = vld [vmem:[%s1 + $0x480] sm:$0xff]
  %v168 = vld [vmem:[%s1 + $0x488] sm:$0xff]
  %v169 = vld [vmem:[%s1 + $0x490] sm:$0xff]
  %v170 = vld [vmem:[%s1 + $0x498] sm:$0xff]
  %v171 = vld [vmem:[%s1 + $0x4a0] sm:$0xff]
  %v172 = vld [vmem:[%s1 + $0x4a8] sm:$0xff]
  %v173 = vld [vmem:[%s1 + $0x4b0] sm:$0xff]
  %v174 = vld [vmem:[%s1 + $0x4b8] sm:$0xff]
  %v175 = vld [vmem:[%s1 + $0x4c0] sm:$0xff]
  %v176 = vld [vmem:[%s1 + $0x4c8] sm:$0xff]
  %v177 = vld [vmem:[%s1 + $0x4d0] sm:$0xff]
  %v178 = vld [vmem:[%s1 + $0x4d8] sm:$0xff]
  %v179 = vld [vmem:[%s1 + $0x4e0] sm:$0xff]
  %v180 = vld [vmem:[%s1 + $0x4e8] sm:$0xff]
  %v181 = vld [vmem:[%s1 + $0x4f0] sm:$0xff]
  %v182 = vld [vmem:[%s1 + $0x4f8] sm:$0xff]
  %v183 = vld [vmem:[%s1 + $0x500] sm:$0xff]
  %v184 = vld [vmem:[%s1 + $0x508] sm:$0xff]
  %v185 = vld [vmem:[%s1 + $0x510] sm:$0xff]
  %v186 = vld [vmem:[%s1 + $0x518] sm:$0xff]
  %v187 = vld [vmem:[%s1 + $0x520] sm:$0xff]
  %v188 = vld [vmem:[%s1 + $0x528] sm:$0xff]
  %v189 = vld [vmem:[%s1 + $0x530] sm:$0xff]
  %v190 = vld [vmem:[%s1 + $0x538] sm:$0xff]
  %v191 = vld [vmem:[%s1 + $0x540] sm:$0xff]
  %v192 = vld [vmem:[%s1 + $0x548] sm:$0xff]
  %v193 = vld [vmem:[%s1 + $0x550] sm:$0xff]
  %v194 = vld [vmem:[%s1 + $0x558] sm:$0xff]
  %v195 = vld [vmem:[%s1 + $0x560] sm:$0xff]
  %v196 = vld [vmem:[%s1 + $0x568] sm:$0xff]
  %v197 = vld [vmem:[%s1 + $0x570] sm:$0xff]
  %v198 = vld [vmem:[%s1 + $0x578] sm:$0xff]
  %v199 = vld [vmem:[%s1 + $0x580] sm:$0xff]
  %v200 = vld [vmem:[%s1 + $0x588] sm:$0xff]
  %v201 = vld [vmem:[%s1 + $0x590] sm:$0xff]
  %v202 = vld [vmem:[%s1 + $0x598] sm:$0xff]
  %v203 = vld [vmem:[%s1 + $0x5a0] sm:$0xff]
  %v204 = vld [vmem:[%s1 + $0x5a8] sm:$0xff]
  %v205 = vld [vmem:[%s1 + $0x5b0] sm:$0xff]
  %v206 = vld [vmem:[%s1 + $0x5b8] sm:$0xff]
  %v207 = vld [vmem:[%s1 + $0x5c0] sm:$0xff]
  %v208 = vld [vmem:[%s1 + $0x5c8] sm:$0xff]
  %v209 = vld [vmem:[%s1 + $0x5d0] sm:$0xff]
  %v210 = vld [vmem:[%s1 + $0x5d8] sm:$0xff]
  %v211 = vld [vmem:[%s1 + $0x5e0] sm:$0xff]
  %v212 = vld [vmem:[%s1 + $0x5e8] sm:$0xff]
  %v213 = vld [vmem:[%s1 + $0x5f0] sm:$0xff]
  %v214 = vld [vmem:[%s1 + $0x5f8] sm:$0xff]
  %v215 = vld [vmem:[%s1 + $0x600] sm:$0xff]
  %v216 = vld [vmem:[%s1 + $0x608] sm:$0xff]
  %v217 = vld [vmem:[%s1 + $0x610] sm:$0xff]
  %v218 = vld [vmem:[%s1 + $0x618] sm:$0xff]
  %v219 = vld [vmem:[%s1 + $0x620] sm:$0xff]
  %v220 = vld [vmem:[%s1 + $0x628] sm:$0xff]
  %v221 = vld [vmem:[%s1 + $0x630] sm:$0xff]
  %v222 = vld [vmem:[%s1 + $0x638] sm:$0xff]
  %v223 = vld [vmem:[%s1 + $0x640] sm:$0xff]
  %v224 = vld [vmem:[%s1 + $0x648] sm:$0xff]
  %v225 = vld [vmem:[%s1 + $0x650] sm:$0xff]
  %v226 = vld [vmem:[%s1 + $0x658] sm:$0xff]
  %v227 = vld [vmem:[%s1 + $0x660] sm:$0xff]
  %v228 = vld [vmem:[%s1 + $0x668] sm:$0xff]
  %v229 = vld [vmem:[%s1 + $0x670] sm:$0xff]
  %v230 = vld [vmem:[%s1 + $0x678] sm:$0xff]
  %v231 = vld [vmem:[%s1 + $0x680] sm:$0xff]
  %v232 = vld [vmem:[%s1 + $0x688] sm:$0xff]
  %v233 = vld [vmem:[%s1 + $0x690] sm:$0xff]
  %v234 = vld [vmem:[%s1 + $0x698] sm:$0xff]
  %v235 = vld [vmem:[%s1 + $0x6a0] sm:$0xff]
  %v236 = vld [vmem:[%s1 + $0x6a8] sm:$0xff]
  %v237 = vld [vmem:[%s1 + $0x6b0] sm:$0xff]
  %v238 = vld [vmem:[%s1 + $0x6b8] sm:$0xff]
  %v239 = vld [vmem:[%s1 + $0x6c0] sm:$0xff]
  %v240 = vld [vmem:[%s1 + $0x6c8] sm:$0xff]
  %v241 = vld [vmem:[%s1 + $0x6d0] sm:$0xff]
  %v242 = vld [vmem:[%s1 + $0x6d8] sm:$0xff]
  %v243 = vld [vmem:[%s1 + $0x6e0] sm:$0xff]
  %v244 = vld [vmem:[%s1 + $0x6e8] sm:$0xff]
  %v245 = vld [vmem:[%s1 + $0x6f0] sm:$0xff]
  %v246 = vld [vmem:[%s1 + $0x6f8] sm:$0xff]
  %v247 = vld [vmem:[%s1 + $0x700] sm:$0xff]
  %v248 = vld [vmem:[%s1 + $0x708] sm:$0xff]
  %v249 = vld [vmem:[%s1 + $0x710] sm:$0xff]
  %v250 = vld [vmem:[%s1 + $0x718] sm:$0xff]
  %v251 = vld [vmem:[%s1 + $0x720] sm:$0xff]
  %v252 = vld [vmem:[%s1 + $0x728] sm:$0xff]
  %v253 = vld [vmem:[%s1 + $0x730] sm:$0xff]
  %v254 = vld [vmem:[%s1 + $0x738] sm:$0xff]
  %v255 = vld [vmem:[%s1 + $0x740] sm:$0xff]
  %v256 = vld [vmem:[%s1 + $0x748] sm:$0xff]
  %v257 = vld [vmem:[%s1 + $0x750] sm:$0xff]
  %v258 = vld [vmem:[%s1 + $0x758] sm:$0xff]
  %v259 = vld [vmem:[%s1 + $0x760] sm:$0xff]
  %v260 = vld [vmem:[%s1 + $0x768] sm:$0xff]
  %v261 = vld [vmem:[%s1 + $0x770] sm:$0xff]
  %v262 = vld [vmem:[%s1 + $0x778] sm:$0xff]
  %v263 = vld [vmem:[%s1 + $0x780] sm:$0xff]
  %v264 = vld [vmem:[%s1 + $0x788] sm:$0xff]
  %v265 = vld [vmem:[%s1 + $0x790] sm:$0xff]
  %v266 = vld [vmem:[%s1 + $0x798] sm:$0xff]
  %v267 = vld [vmem:[%s1 + $0x7a0] sm:$0xff]
  %v268 = vld [vmem:[%s1 + $0x7a8] sm:$0xff]
  %v269 = vld [vmem:[%s1 + $0x7b0] sm:$0xff]
  %v270 = vld [vmem:[%s1 + $0x7b8] sm:$0xff]
  %v271 = vld [vmem:[%s1 + $0x7c0] sm:$0xff]
  %v272 = vld [vmem:[%s1 + $0x7c8] sm:$0xff]
  %v273 = vld [vmem:[%s1 + $0x7d0] sm:$0xff]
  %v274 = vld [vmem:[%s1 + $0x7d8] sm:$0xff]
  %v275 = vld [vmem:[%s1 + $0x7e0] sm:$0xff]
  %v276 = vld [vmem:[%s1 + $0x7e8] sm:$0xff]
  %v277 = vld [vmem:[%s1 + $0x7f0] sm:$0xff]
  %v278 = vld [vmem:[%s1 + $0x7f8] sm:$0xff]
  %v279 = vld [vmem:[%s1 + $0x800] sm:$0xff]
  %v280 = vld [vmem:[%s1 + $0x808] sm:$0xff]
  %v281 = vld [vmem:[%s1 + $0x810] sm:$0xff]
  %v282 = vld [vmem:[%s1 + $0x818] sm:$0xff]
  %v283 = vld [vmem:[%s1 + $0x820] sm:$0xff]
  %v284 = vld [vmem:[%s1 + $0x828] sm:$0xff]
  %v285 = vld [vmem:[%s1 + $0x830] sm:$0xff]
  %v286 = vld [vmem:[%s1 + $0x838] sm:$0xff]
  %v287 = vld [vmem:[%s1 + $0x840] sm:$0xff]
  %v288 = vld [vmem:[%s1 + $0x848] sm:$0xff]
  %v289 = vld [vmem:[%s1 + $0x850] sm:$0xff]
  %v290 = vld [vmem:[%s1 + $0x858] sm:$0xff]
  %v291 = vld [vmem:[%s1 + $0x860] sm:$0xff]
  %v292 = vld [vmem:[%s1 + $0x868] sm:$0xff]
  %v293 = vld [vmem:[%s1 + $0x870] sm:$0xff]
  %v294 = vld [vmem:[%s1 + $0x878] sm:$0xff]
  %v295 = vld [vmem:[%s1 + $0x880] sm:$0xff]
  %v296 = vld [vmem:[%s1 + $0x888] sm:$0xff]
  %v297 = vld [vmem:[%s1 + $0x890] sm:$0xff]
  %v298 = vld [vmem:[%s1 + $0x898] sm:$0xff]
  %v299 = vld [vmem:[%s1 + $0x8a0] sm:$0xff]
  %v300 = vld [vmem:[%s1 + $0x8a8] sm:$0xff]
  %v301 = vld [vmem:[%s1 + $0x8b0] sm:$0xff]
  %v302 = vld [vmem:[%s1 + $0x8b8] sm:$0xff]
  %v303 = vld [vmem:[%s1 + $0x8c0] sm:$0xff]
  %v304 = vld [vmem:[%s1 + $0x8c8] sm:$0xff]
  %v305 = vld [vmem:[%s1 + $0x8d0] sm:$0xff]
  %v306 = vld [vmem:[%s1 + $0x8d8] sm:$0xff]
  %v307 = vld [vmem:[%s1 + $0x8e0] sm:$0xff]
  %v308 = vld [vmem:[%s1 + $0x8e8] sm:$0xff]
  %v309 = vld [vmem:[%s1 + $0x8f0] sm:$0xff]
  %v310 = vld [vmem:[%s1 + $0x8f8] sm:$0xff]
  %v311 = vld [vmem:[%s2] sm:$0x3]
  %v313 = vlaneseq
  %v314 = vshrl.u32 %v313, 7
  %v315 = vsub.s32 0, %v314
  %v316 = vrot.slane %v311, %v315
  %v317 = vlaneseq
  %v318 = vshrl.u32 %v317, 7
  %v319 = vsub.s32 1, %v318
  %v320 = vrot.slane %v311, %v319
  %v332 = vunpack.c.l.b16 %v14
  %v333 = vunpack.c.h.b16 %v14
  %v334 = vunpack.c.l.b16 %v15
  %v335 = vunpack.c.h.b16 %v15
  %v336 = vunpack.c.l.b16 %v16
  %v337 = vunpack.c.h.b16 %v16
  %v338 = vunpack.c.l.b16 %v17
  %v339 = vunpack.c.h.b16 %v17
  %v340 = vunpack.c.l.b16 %v18
  %v341 = vunpack.c.h.b16 %v18
  %v342 = vunpack.c.l.b16 %v19
  %v343 = vunpack.c.h.b16 %v19
  %v344 = vunpack.c.l.b16 %v20
  %v345 = vunpack.c.h.b16 %v20
  %v346 = vunpack.c.l.b16 %v21
  %v347 = vunpack.c.h.b16 %v21
  %v348 = vunpack.c.l.b16 %v22
  %v349 = vunpack.c.h.b16 %v22
  %v350 = vpack.c.b16 %v332, %v332
  %v351 = vpack.c.b16 %v333, %v333
  %v352 = vpack.c.b16 %v334, %v334
  %v353 = vpack.c.b16 %v335, %v335
  %v354 = vpack.c.b16 %v336, %v336
  %v355 = vpack.c.b16 %v337, %v337
  %v356 = vpack.c.b16 %v338, %v338
  %v357 = vpack.c.b16 %v339, %v339
  %v358 = vpack.c.b16 %v340, %v340
  %v359 = vpack.c.b16 %v341, %v341
  %v360 = vpack.c.b16 %v342, %v342
  %v361 = vpack.c.b16 %v343, %v343
  %v362 = vpack.c.b16 %v344, %v344
  %v363 = vpack.c.b16 %v345, %v345
  %v364 = vpack.c.b16 %v346, %v346
  %v365 = vpack.c.b16 %v347, %v347
  %v366 = vpack.c.b16 %v348, %v348
  %v367 = vpack.c.b16 %v349, %v349
  %v674 = vunpack.c.l.b16 %v23
  %v675 = vunpack.c.h.b16 %v23
  %v676 = vunpack.c.l.b16 %v24
  %v677 = vunpack.c.h.b16 %v24
  %v678 = vunpack.c.l.b16 %v25
  %v679 = vunpack.c.h.b16 %v25
  %v680 = vunpack.c.l.b16 %v26
  %v681 = vunpack.c.h.b16 %v26
  %v682 = vunpack.c.l.b16 %v27
  %v683 = vunpack.c.h.b16 %v27
  %v684 = vunpack.c.l.b16 %v28
  %v685 = vunpack.c.h.b16 %v28
  %v686 = vunpack.c.l.b16 %v29
  %v687 = vunpack.c.h.b16 %v29
  %v688 = vunpack.c.l.b16 %v30
  %v689 = vunpack.c.h.b16 %v30
  %v690 = vunpack.c.l.b16 %v31
  %v691 = vunpack.c.h.b16 %v31
  %v692 = vunpack.c.l.b16 %v32
  %v693 = vunpack.c.h.b16 %v32
  %v694 = vunpack.c.l.b16 %v33
  %v695 = vunpack.c.h.b16 %v33
  %v696 = vunpack.c.l.b16 %v34
  %v697 = vunpack.c.h.b16 %v34
  %v698 = vunpack.c.l.b16 %v35
  %v699 = vunpack.c.h.b16 %v35
  %v700 = vunpack.c.l.b16 %v36
  %v701 = vunpack.c.h.b16 %v36
  %v702 = vunpack.c.l.b16 %v37
  %v703 = vunpack.c.h.b16 %v37
  %v704 = vunpack.c.l.b16 %v38
  %v705 = vunpack.c.h.b16 %v38
  %v706 = vunpack.c.l.b16 %v39
  %v707 = vunpack.c.h.b16 %v39
  %v708 = vunpack.c.l.b16 %v40
  %v709 = vunpack.c.h.b16 %v40
  %v710 = vunpack.c.l.b16 %v41
  %v711 = vunpack.c.h.b16 %v41
  %v712 = vunpack.c.l.b16 %v42
  %v713 = vunpack.c.h.b16 %v42
  %v714 = vunpack.c.l.b16 %v43
  %v715 = vunpack.c.h.b16 %v43
  %v716 = vunpack.c.l.b16 %v44
  %v717 = vunpack.c.h.b16 %v44
  %v718 = vunpack.c.l.b16 %v45
  %v719 = vunpack.c.h.b16 %v45
  %v720 = vunpack.c.l.b16 %v46
  %v721 = vunpack.c.h.b16 %v46
  %v722 = vunpack.c.l.b16 %v47
  %v723 = vunpack.c.h.b16 %v47
  %v724 = vunpack.c.l.b16 %v48
  %v725 = vunpack.c.h.b16 %v48
  %v726 = vunpack.c.l.b16 %v49
  %v727 = vunpack.c.h.b16 %v49
  %v728 = vunpack.c.l.b16 %v50
  %v729 = vunpack.c.h.b16 %v50
  %v730 = vunpack.c.l.b16 %v51
  %v731 = vunpack.c.h.b16 %v51
  %v732 = vunpack.c.l.b16 %v52
  %v733 = vunpack.c.h.b16 %v52
  %v734 = vunpack.c.l.b16 %v53
  %v735 = vunpack.c.h.b16 %v53
  %v736 = vunpack.c.l.b16 %v54
  %v737 = vunpack.c.h.b16 %v54
  %v738 = vunpack.c.l.b16 %v55
  %v739 = vunpack.c.h.b16 %v55
  %v740 = vunpack.c.l.b16 %v56
  %v741 = vunpack.c.h.b16 %v56
  %v742 = vunpack.c.l.b16 %v57
  %v743 = vunpack.c.h.b16 %v57
  %v744 = vunpack.c.l.b16 %v58
  %v745 = vunpack.c.h.b16 %v58
  %v746 = vunpack.c.l.b16 %v59
  %v747 = vunpack.c.h.b16 %v59
  %v748 = vunpack.c.l.b16 %v60
  %v749 = vunpack.c.h.b16 %v60
  %v750 = vunpack.c.l.b16 %v61
  %v751 = vunpack.c.h.b16 %v61
  %v752 = vunpack.c.l.b16 %v62
  %v753 = vunpack.c.h.b16 %v62
  %v754 = vunpack.c.l.b16 %v63
  %v755 = vunpack.c.h.b16 %v63
  %v756 = vunpack.c.l.b16 %v64
  %v757 = vunpack.c.h.b16 %v64
  %v758 = vunpack.c.l.b16 %v65
  %v759 = vunpack.c.h.b16 %v65
  %v760 = vunpack.c.l.b16 %v66
  %v761 = vunpack.c.h.b16 %v66
  %v762 = vunpack.c.l.b16 %v67
  %v763 = vunpack.c.h.b16 %v67
  %v764 = vunpack.c.l.b16 %v68
  %v765 = vunpack.c.h.b16 %v68
  %v766 = vunpack.c.l.b16 %v69
  %v767 = vunpack.c.h.b16 %v69
  %v768 = vunpack.c.l.b16 %v70
  %v769 = vunpack.c.h.b16 %v70
  %v770 = vunpack.c.l.b16 %v71
  %v771 = vunpack.c.h.b16 %v71
  %v772 = vunpack.c.l.b16 %v72
  %v773 = vunpack.c.h.b16 %v72
  %v774 = vunpack.c.l.b16 %v73
  %v775 = vunpack.c.h.b16 %v73
  %v776 = vunpack.c.l.b16 %v74
  %v777 = vunpack.c.h.b16 %v74
  %v778 = vunpack.c.l.b16 %v75
  %v779 = vunpack.c.h.b16 %v75
  %v780 = vunpack.c.l.b16 %v76
  %v781 = vunpack.c.h.b16 %v76
  %v782 = vunpack.c.l.b16 %v77
  %v783 = vunpack.c.h.b16 %v77
  %v784 = vunpack.c.l.b16 %v78
  %v785 = vunpack.c.h.b16 %v78
  %v786 = vunpack.c.l.b16 %v79
  %v787 = vunpack.c.h.b16 %v79
  %v788 = vunpack.c.l.b16 %v80
  %v789 = vunpack.c.h.b16 %v80
  %v790 = vunpack.c.l.b16 %v81
  %v791 = vunpack.c.h.b16 %v81
  %v792 = vunpack.c.l.b16 %v82
  %v793 = vunpack.c.h.b16 %v82
  %v794 = vunpack.c.l.b16 %v83
  %v795 = vunpack.c.h.b16 %v83
  %v796 = vunpack.c.l.b16 %v84
  %v797 = vunpack.c.h.b16 %v84
  %v798 = vunpack.c.l.b16 %v85
  %v799 = vunpack.c.h.b16 %v85
  %v800 = vunpack.c.l.b16 %v86
  %v801 = vunpack.c.h.b16 %v86
  %v802 = vunpack.c.l.b16 %v87
  %v803 = vunpack.c.h.b16 %v87
  %v804 = vunpack.c.l.b16 %v88
  %v805 = vunpack.c.h.b16 %v88
  %v806 = vunpack.c.l.b16 %v89
  %v807 = vunpack.c.h.b16 %v89
  %v808 = vunpack.c.l.b16 %v90
  %v809 = vunpack.c.h.b16 %v90
  %v810 = vunpack.c.l.b16 %v91
  %v811 = vunpack.c.h.b16 %v91
  %v812 = vunpack.c.l.b16 %v92
  %v813 = vunpack.c.h.b16 %v92
  %v814 = vunpack.c.l.b16 %v93
  %v815 = vunpack.c.h.b16 %v93
  %v816 = vunpack.c.l.b16 %v94
  %v817 = vunpack.c.h.b16 %v94
  %v818 = vunpack.c.l.b16 %v95
  %v819 = vunpack.c.h.b16 %v95
  %v820 = vunpack.c.l.b16 %v96
  %v821 = vunpack.c.h.b16 %v96
  %v822 = vunpack.c.l.b16 %v97
  %v823 = vunpack.c.h.b16 %v97
  %v824 = vunpack.c.l.b16 %v98
  %v825 = vunpack.c.h.b16 %v98
  %v826 = vunpack.c.l.b16 %v99
  %v827 = vunpack.c.h.b16 %v99
  %v828 = vunpack.c.l.b16 %v100
  %v829 = vunpack.c.h.b16 %v100
  %v830 = vunpack.c.l.b16 %v101
  %v831 = vunpack.c.h.b16 %v101
  %v832 = vunpack.c.l.b16 %v102
  %v833 = vunpack.c.h.b16 %v102
  %v834 = vunpack.c.l.b16 %v103
  %v835 = vunpack.c.h.b16 %v103
  %v836 = vunpack.c.l.b16 %v104
  %v837 = vunpack.c.h.b16 %v104
  %v838 = vunpack.c.l.b16 %v105
  %v839 = vunpack.c.h.b16 %v105
  %v840 = vunpack.c.l.b16 %v106
  %v841 = vunpack.c.h.b16 %v106
  %v842 = vunpack.c.l.b16 %v107
  %v843 = vunpack.c.h.b16 %v107
  %v844 = vunpack.c.l.b16 %v108
  %v845 = vunpack.c.h.b16 %v108
  %v846 = vunpack.c.l.b16 %v109
  %v847 = vunpack.c.h.b16 %v109
  %v848 = vunpack.c.l.b16 %v110
  %v849 = vunpack.c.h.b16 %v110
  %v850 = vunpack.c.l.b16 %v111
  %v851 = vunpack.c.h.b16 %v111
  %v852 = vunpack.c.l.b16 %v112
  %v853 = vunpack.c.h.b16 %v112
  %v854 = vunpack.c.l.b16 %v113
  %v855 = vunpack.c.h.b16 %v113
  %v856 = vunpack.c.l.b16 %v114
  %v857 = vunpack.c.h.b16 %v114
  %v858 = vunpack.c.l.b16 %v115
  %v859 = vunpack.c.h.b16 %v115
  %v860 = vunpack.c.l.b16 %v116
  %v861 = vunpack.c.h.b16 %v116
  %v862 = vunpack.c.l.b16 %v117
  %v863 = vunpack.c.h.b16 %v117
  %v864 = vunpack.c.l.b16 %v118
  %v865 = vunpack.c.h.b16 %v118
  %v866 = vunpack.c.l.b16 %v119
  %v867 = vunpack.c.h.b16 %v119
  %v868 = vunpack.c.l.b16 %v120
  %v869 = vunpack.c.h.b16 %v120
  %v870 = vunpack.c.l.b16 %v121
  %v871 = vunpack.c.h.b16 %v121
  %v872 = vunpack.c.l.b16 %v122
  %v873 = vunpack.c.h.b16 %v122
  %v874 = vunpack.c.l.b16 %v123
  %v875 = vunpack.c.h.b16 %v123
  %v876 = vunpack.c.l.b16 %v124
  %v877 = vunpack.c.h.b16 %v124
  %v878 = vunpack.c.l.b16 %v125
  %v879 = vunpack.c.h.b16 %v125
  %v880 = vunpack.c.l.b16 %v126
  %v881 = vunpack.c.h.b16 %v126
  %v882 = vunpack.c.l.b16 %v127
  %v883 = vunpack.c.h.b16 %v127
  %v884 = vunpack.c.l.b16 %v128
  %v885 = vunpack.c.h.b16 %v128
  %v886 = vunpack.c.l.b16 %v129
  %v887 = vunpack.c.h.b16 %v129
  %v888 = vunpack.c.l.b16 %v130
  %v889 = vunpack.c.h.b16 %v130
  %v890 = vunpack.c.l.b16 %v131
  %v891 = vunpack.c.h.b16 %v131
  %v892 = vunpack.c.l.b16 %v132
  %v893 = vunpack.c.h.b16 %v132
  %v894 = vunpack.c.l.b16 %v133
  %v895 = vunpack.c.h.b16 %v133
  %v896 = vunpack.c.l.b16 %v134
  %v897 = vunpack.c.h.b16 %v134
  %v898 = vunpack.c.l.b16 %v135
  %v899 = vunpack.c.h.b16 %v135
  %v900 = vunpack.c.l.b16 %v136
  %v901 = vunpack.c.h.b16 %v136
  %v902 = vunpack.c.l.b16 %v137
  %v903 = vunpack.c.h.b16 %v137
  %v904 = vunpack.c.l.b16 %v138
  %v905 = vunpack.c.h.b16 %v138
  %v906 = vunpack.c.l.b16 %v139
  %v907 = vunpack.c.h.b16 %v139
  %v908 = vunpack.c.l.b16 %v140
  %v909 = vunpack.c.h.b16 %v140
  %v910 = vunpack.c.l.b16 %v141
  %v911 = vunpack.c.h.b16 %v141
  %v912 = vunpack.c.l.b16 %v142
  %v913 = vunpack.c.h.b16 %v142
  %v914 = vunpack.c.l.b16 %v143
  %v915 = vunpack.c.h.b16 %v143
  %v916 = vunpack.c.l.b16 %v144
  %v917 = vunpack.c.h.b16 %v144
  %v918 = vunpack.c.l.b16 %v145
  %v919 = vunpack.c.h.b16 %v145
  %v920 = vunpack.c.l.b16 %v146
  %v921 = vunpack.c.h.b16 %v146
  %v922 = vunpack.c.l.b16 %v147
  %v923 = vunpack.c.h.b16 %v147
  %v924 = vunpack.c.l.b16 %v148
  %v925 = vunpack.c.h.b16 %v148
  %v926 = vunpack.c.l.b16 %v149
  %v927 = vunpack.c.h.b16 %v149
  %v928 = vunpack.c.l.b16 %v150
  %v929 = vunpack.c.h.b16 %v150
  %v930 = vunpack.c.l.b16 %v151
  %v931 = vunpack.c.h.b16 %v151
  %v932 = vunpack.c.l.b16 %v152
  %v933 = vunpack.c.h.b16 %v152
  %v934 = vunpack.c.l.b16 %v153
  %v935 = vunpack.c.h.b16 %v153
  %v936 = vunpack.c.l.b16 %v154
  %v937 = vunpack.c.h.b16 %v154
  %v938 = vunpack.c.l.b16 %v155
  %v939 = vunpack.c.h.b16 %v155
  %v940 = vunpack.c.l.b16 %v156
  %v941 = vunpack.c.h.b16 %v156
  %v942 = vunpack.c.l.b16 %v157
  %v943 = vunpack.c.h.b16 %v157
  %v944 = vunpack.c.l.b16 %v158
  %v945 = vunpack.c.h.b16 %v158
  %v946 = vunpack.c.l.b16 %v159
  %v947 = vunpack.c.h.b16 %v159
  %v948 = vunpack.c.l.b16 %v160
  %v949 = vunpack.c.h.b16 %v160
  %v950 = vunpack.c.l.b16 %v161
  %v951 = vunpack.c.h.b16 %v161
  %v952 = vunpack.c.l.b16 %v162
  %v953 = vunpack.c.h.b16 %v162
  %v954 = vunpack.c.l.b16 %v163
  %v955 = vunpack.c.h.b16 %v163
  %v956 = vunpack.c.l.b16 %v164
  %v957 = vunpack.c.h.b16 %v164
  %v958 = vunpack.c.l.b16 %v165
  %v959 = vunpack.c.h.b16 %v165
  %v960 = vunpack.c.l.b16 %v166
  %v961 = vunpack.c.h.b16 %v166
  %v962 = vunpack.c.l.b16 %v167
  %v963 = vunpack.c.h.b16 %v167
  %v964 = vunpack.c.l.b16 %v168
  %v965 = vunpack.c.h.b16 %v168
  %v966 = vunpack.c.l.b16 %v169
  %v967 = vunpack.c.h.b16 %v169
  %v968 = vunpack.c.l.b16 %v170
  %v969 = vunpack.c.h.b16 %v170
  %v970 = vunpack.c.l.b16 %v171
  %v971 = vunpack.c.h.b16 %v171
  %v972 = vunpack.c.l.b16 %v172
  %v973 = vunpack.c.h.b16 %v172
  %v974 = vunpack.c.l.b16 %v173
  %v975 = vunpack.c.h.b16 %v173
  %v976 = vunpack.c.l.b16 %v174
  %v977 = vunpack.c.h.b16 %v174
  %v978 = vunpack.c.l.b16 %v175
  %v979 = vunpack.c.h.b16 %v175
  %v980 = vunpack.c.l.b16 %v176
  %v981 = vunpack.c.h.b16 %v176
  %v982 = vunpack.c.l.b16 %v177
  %v983 = vunpack.c.h.b16 %v177
  %v984 = vunpack.c.l.b16 %v178
  %v985 = vunpack.c.h.b16 %v178
  %v986 = vunpack.c.l.b16 %v179
  %v987 = vunpack.c.h.b16 %v179
  %v988 = vunpack.c.l.b16 %v180
  %v989 = vunpack.c.h.b16 %v180
  %v990 = vunpack.c.l.b16 %v181
  %v991 = vunpack.c.h.b16 %v181
  %v992 = vunpack.c.l.b16 %v182
  %v993 = vunpack.c.h.b16 %v182
  %v994 = vunpack.c.l.b16 %v183
  %v995 = vunpack.c.h.b16 %v183
  %v996 = vunpack.c.l.b16 %v184
  %v997 = vunpack.c.h.b16 %v184
  %v998 = vunpack.c.l.b16 %v185
  %v999 = vunpack.c.h.b16 %v185
  %v1000 = vunpack.c.l.b16 %v186
  %v1001 = vunpack.c.h.b16 %v186
  %v1002 = vunpack.c.l.b16 %v187
  %v1003 = vunpack.c.h.b16 %v187
  %v1004 = vunpack.c.l.b16 %v188
  %v1005 = vunpack.c.h.b16 %v188
  %v1006 = vunpack.c.l.b16 %v189
  %v1007 = vunpack.c.h.b16 %v189
  %v1008 = vunpack.c.l.b16 %v190
  %v1009 = vunpack.c.h.b16 %v190
  %v1010 = vunpack.c.l.b16 %v191
  %v1011 = vunpack.c.h.b16 %v191
  %v1012 = vunpack.c.l.b16 %v192
  %v1013 = vunpack.c.h.b16 %v192
  %v1014 = vunpack.c.l.b16 %v193
  %v1015 = vunpack.c.h.b16 %v193
  %v1016 = vunpack.c.l.b16 %v194
  %v1017 = vunpack.c.h.b16 %v194
  %v1018 = vunpack.c.l.b16 %v195
  %v1019 = vunpack.c.h.b16 %v195
  %v1020 = vunpack.c.l.b16 %v196
  %v1021 = vunpack.c.h.b16 %v196
  %v1022 = vunpack.c.l.b16 %v197
  %v1023 = vunpack.c.h.b16 %v197
  %v1024 = vunpack.c.l.b16 %v198
  %v1025 = vunpack.c.h.b16 %v198
  %v1026 = vunpack.c.l.b16 %v199
  %v1027 = vunpack.c.h.b16 %v199
  %v1028 = vunpack.c.l.b16 %v200
  %v1029 = vunpack.c.h.b16 %v200
  %v1030 = vunpack.c.l.b16 %v201
  %v1031 = vunpack.c.h.b16 %v201
  %v1032 = vunpack.c.l.b16 %v202
  %v1033 = vunpack.c.h.b16 %v202
  %v1034 = vunpack.c.l.b16 %v203
  %v1035 = vunpack.c.h.b16 %v203
  %v1036 = vunpack.c.l.b16 %v204
  %v1037 = vunpack.c.h.b16 %v204
  %v1038 = vunpack.c.l.b16 %v205
  %v1039 = vunpack.c.h.b16 %v205
  %v1040 = vunpack.c.l.b16 %v206
  %v1041 = vunpack.c.h.b16 %v206
  %v1042 = vunpack.c.l.b16 %v207
  %v1043 = vunpack.c.h.b16 %v207
  %v1044 = vunpack.c.l.b16 %v208
  %v1045 = vunpack.c.h.b16 %v208
  %v1046 = vunpack.c.l.b16 %v209
  %v1047 = vunpack.c.h.b16 %v209
  %v1048 = vunpack.c.l.b16 %v210
  %v1049 = vunpack.c.h.b16 %v210
  %v1050 = vunpack.c.l.b16 %v211
  %v1051 = vunpack.c.h.b16 %v211
  %v1052 = vunpack.c.l.b16 %v212
  %v1053 = vunpack.c.h.b16 %v212
  %v1054 = vunpack.c.l.b16 %v213
  %v1055 = vunpack.c.h.b16 %v213
  %v1056 = vunpack.c.l.b16 %v214
  %v1057 = vunpack.c.h.b16 %v214
  %v1058 = vunpack.c.l.b16 %v215
  %v1059 = vunpack.c.h.b16 %v215
  %v1060 = vunpack.c.l.b16 %v216
  %v1061 = vunpack.c.h.b16 %v216
  %v1062 = vunpack.c.l.b16 %v217
  %v1063 = vunpack.c.h.b16 %v217
  %v1064 = vunpack.c.l.b16 %v218
  %v1065 = vunpack.c.h.b16 %v218
  %v1066 = vunpack.c.l.b16 %v219
  %v1067 = vunpack.c.h.b16 %v219
  %v1068 = vunpack.c.l.b16 %v220
  %v1069 = vunpack.c.h.b16 %v220
  %v1070 = vunpack.c.l.b16 %v221
  %v1071 = vunpack.c.h.b16 %v221
  %v1072 = vunpack.c.l.b16 %v222
  %v1073 = vunpack.c.h.b16 %v222
  %v1074 = vunpack.c.l.b16 %v223
  %v1075 = vunpack.c.h.b16 %v223
  %v1076 = vunpack.c.l.b16 %v224
  %v1077 = vunpack.c.h.b16 %v224
  %v1078 = vunpack.c.l.b16 %v225
  %v1079 = vunpack.c.h.b16 %v225
  %v1080 = vunpack.c.l.b16 %v226
  %v1081 = vunpack.c.h.b16 %v226
  %v1082 = vunpack.c.l.b16 %v227
  %v1083 = vunpack.c.h.b16 %v227
  %v1084 = vunpack.c.l.b16 %v228
  %v1085 = vunpack.c.h.b16 %v228
  %v1086 = vunpack.c.l.b16 %v229
  %v1087 = vunpack.c.h.b16 %v229
  %v1088 = vunpack.c.l.b16 %v230
  %v1089 = vunpack.c.h.b16 %v230
  %v1090 = vunpack.c.l.b16 %v231
  %v1091 = vunpack.c.h.b16 %v231
  %v1092 = vunpack.c.l.b16 %v232
  %v1093 = vunpack.c.h.b16 %v232
  %v1094 = vunpack.c.l.b16 %v233
  %v1095 = vunpack.c.h.b16 %v233
  %v1096 = vunpack.c.l.b16 %v234
  %v1097 = vunpack.c.h.b16 %v234
  %v1098 = vunpack.c.l.b16 %v235
  %v1099 = vunpack.c.h.b16 %v235
  %v1100 = vunpack.c.l.b16 %v236
  %v1101 = vunpack.c.h.b16 %v236
  %v1102 = vunpack.c.l.b16 %v237
  %v1103 = vunpack.c.h.b16 %v237
  %v1104 = vunpack.c.l.b16 %v238
  %v1105 = vunpack.c.h.b16 %v238
  %v1106 = vunpack.c.l.b16 %v239
  %v1107 = vunpack.c.h.b16 %v239
  %v1108 = vunpack.c.l.b16 %v240
  %v1109 = vunpack.c.h.b16 %v240
  %v1110 = vunpack.c.l.b16 %v241
  %v1111 = vunpack.c.h.b16 %v241
  %v1112 = vunpack.c.l.b16 %v242
  %v1113 = vunpack.c.h.b16 %v242
  %v1114 = vunpack.c.l.b16 %v243
  %v1115 = vunpack.c.h.b16 %v243
  %v1116 = vunpack.c.l.b16 %v244
  %v1117 = vunpack.c.h.b16 %v244
  %v1118 = vunpack.c.l.b16 %v245
  %v1119 = vunpack.c.h.b16 %v245
  %v1120 = vunpack.c.l.b16 %v246
  %v1121 = vunpack.c.h.b16 %v246
  %v1122 = vunpack.c.l.b16 %v247
  %v1123 = vunpack.c.h.b16 %v247
  %v1124 = vunpack.c.l.b16 %v248
  %v1125 = vunpack.c.h.b16 %v248
  %v1126 = vunpack.c.l.b16 %v249
  %v1127 = vunpack.c.h.b16 %v249
  %v1128 = vunpack.c.l.b16 %v250
  %v1129 = vunpack.c.h.b16 %v250
  %v1130 = vunpack.c.l.b16 %v251
  %v1131 = vunpack.c.h.b16 %v251
  %v1132 = vunpack.c.l.b16 %v252
  %v1133 = vunpack.c.h.b16 %v252
  %v1134 = vunpack.c.l.b16 %v253
  %v1135 = vunpack.c.h.b16 %v253
  %v1136 = vunpack.c.l.b16 %v254
  %v1137 = vunpack.c.h.b16 %v254
  %v1138 = vunpack.c.l.b16 %v255
  %v1139 = vunpack.c.h.b16 %v255
  %v1140 = vunpack.c.l.b16 %v256
  %v1141 = vunpack.c.h.b16 %v256
  %v1142 = vunpack.c.l.b16 %v257
  %v1143 = vunpack.c.h.b16 %v257
  %v1144 = vunpack.c.l.b16 %v258
  %v1145 = vunpack.c.h.b16 %v258
  %v1146 = vunpack.c.l.b16 %v259
  %v1147 = vunpack.c.h.b16 %v259
  %v1148 = vunpack.c.l.b16 %v260
  %v1149 = vunpack.c.h.b16 %v260
  %v1150 = vunpack.c.l.b16 %v261
  %v1151 = vunpack.c.h.b16 %v261
  %v1152 = vunpack.c.l.b16 %v262
  %v1153 = vunpack.c.h.b16 %v262
  %v1154 = vunpack.c.l.b16 %v263
  %v1155 = vunpack.c.h.b16 %v263
  %v1156 = vunpack.c.l.b16 %v264
  %v1157 = vunpack.c.h.b16 %v264
  %v1158 = vunpack.c.l.b16 %v265
  %v1159 = vunpack.c.h.b16 %v265
  %v1160 = vunpack.c.l.b16 %v266
  %v1161 = vunpack.c.h.b16 %v266
  %v1162 = vunpack.c.l.b16 %v267
  %v1163 = vunpack.c.h.b16 %v267
  %v1164 = vunpack.c.l.b16 %v268
  %v1165 = vunpack.c.h.b16 %v268
  %v1166 = vunpack.c.l.b16 %v269
  %v1167 = vunpack.c.h.b16 %v269
  %v1168 = vunpack.c.l.b16 %v270
  %v1169 = vunpack.c.h.b16 %v270
  %v1170 = vunpack.c.l.b16 %v271
  %v1171 = vunpack.c.h.b16 %v271
  %v1172 = vunpack.c.l.b16 %v272
  %v1173 = vunpack.c.h.b16 %v272
  %v1174 = vunpack.c.l.b16 %v273
  %v1175 = vunpack.c.h.b16 %v273
  %v1176 = vunpack.c.l.b16 %v274
  %v1177 = vunpack.c.h.b16 %v274
  %v1178 = vunpack.c.l.b16 %v275
  %v1179 = vunpack.c.h.b16 %v275
  %v1180 = vunpack.c.l.b16 %v276
  %v1181 = vunpack.c.h.b16 %v276
  %v1182 = vunpack.c.l.b16 %v277
  %v1183 = vunpack.c.h.b16 %v277
  %v1184 = vunpack.c.l.b16 %v278
  %v1185 = vunpack.c.h.b16 %v278
  %v1186 = vunpack.c.l.b16 %v279
  %v1187 = vunpack.c.h.b16 %v279
  %v1188 = vunpack.c.l.b16 %v280
  %v1189 = vunpack.c.h.b16 %v280
  %v1190 = vunpack.c.l.b16 %v281
  %v1191 = vunpack.c.h.b16 %v281
  %v1192 = vunpack.c.l.b16 %v282
  %v1193 = vunpack.c.h.b16 %v282
  %v1194 = vunpack.c.l.b16 %v283
  %v1195 = vunpack.c.h.b16 %v283
  %v1196 = vunpack.c.l.b16 %v284
  %v1197 = vunpack.c.h.b16 %v284
  %v1198 = vunpack.c.l.b16 %v285
  %v1199 = vunpack.c.h.b16 %v285
  %v1200 = vunpack.c.l.b16 %v286
  %v1201 = vunpack.c.h.b16 %v286
  %v1202 = vunpack.c.l.b16 %v287
  %v1203 = vunpack.c.h.b16 %v287
  %v1204 = vunpack.c.l.b16 %v288
  %v1205 = vunpack.c.h.b16 %v288
  %v1206 = vunpack.c.l.b16 %v289
  %v1207 = vunpack.c.h.b16 %v289
  %v1208 = vunpack.c.l.b16 %v290
  %v1209 = vunpack.c.h.b16 %v290
  %v1210 = vunpack.c.l.b16 %v291
  %v1211 = vunpack.c.h.b16 %v291
  %v1212 = vunpack.c.l.b16 %v292
  %v1213 = vunpack.c.h.b16 %v292
  %v1214 = vunpack.c.l.b16 %v293
  %v1215 = vunpack.c.h.b16 %v293
  %v1216 = vunpack.c.l.b16 %v294
  %v1217 = vunpack.c.h.b16 %v294
  %v1218 = vunpack.c.l.b16 %v295
  %v1219 = vunpack.c.h.b16 %v295
  %v1220 = vunpack.c.l.b16 %v296
  %v1221 = vunpack.c.h.b16 %v296
  %v1222 = vunpack.c.l.b16 %v297
  %v1223 = vunpack.c.h.b16 %v297
  %v1224 = vunpack.c.l.b16 %v298
  %v1225 = vunpack.c.h.b16 %v298
  %v1226 = vunpack.c.l.b16 %v299
  %v1227 = vunpack.c.h.b16 %v299
  %v1228 = vunpack.c.l.b16 %v300
  %v1229 = vunpack.c.h.b16 %v300
  %v1230 = vunpack.c.l.b16 %v301
  %v1231 = vunpack.c.h.b16 %v301
  %v1232 = vunpack.c.l.b16 %v302
  %v1233 = vunpack.c.h.b16 %v302
  %v1234 = vunpack.c.l.b16 %v303
  %v1235 = vunpack.c.h.b16 %v303
  %v1236 = vunpack.c.l.b16 %v304
  %v1237 = vunpack.c.h.b16 %v304
  %v1238 = vunpack.c.l.b16 %v305
  %v1239 = vunpack.c.h.b16 %v305
  %v1240 = vunpack.c.l.b16 %v306
  %v1241 = vunpack.c.h.b16 %v306
  %v1242 = vunpack.c.l.b16 %v307
  %v1243 = vunpack.c.h.b16 %v307
  %v1244 = vunpack.c.l.b16 %v308
  %v1245 = vunpack.c.h.b16 %v308
  %v1246 = vunpack.c.l.b16 %v309
  %v1247 = vunpack.c.h.b16 %v309
  %v1248 = vunpack.c.l.b16 %v310
  %v1249 = vunpack.c.h.b16 %v310
  %v1250 = vpack.c.b16 %v676, %v674
  %v1251 = vpack.c.b16 %v677, %v675
  %v1252 = vpack.c.b16 %v680, %v678
  %v1253 = vpack.c.b16 %v681, %v679
  %v1254 = vpack.c.b16 %v684, %v682
  %v1255 = vpack.c.b16 %v685, %v683
  %v1256 = vpack.c.b16 %v688, %v686
  %v1257 = vpack.c.b16 %v689, %v687
  %v1258 = vpack.c.b16 %v692, %v690
  %v1259 = vpack.c.b16 %v693, %v691
  %v1260 = vpack.c.b16 %v696, %v694
  %v1261 = vpack.c.b16 %v697, %v695
  %v1262 = vpack.c.b16 %v700, %v698
  %v1263 = vpack.c.b16 %v701, %v699
  %v1264 = vpack.c.b16 %v704, %v702
  %v1265 = vpack.c.b16 %v705, %v703
  %v1266 = vpack.c.b16 %v708, %v706
  %v1267 = vpack.c.b16 %v709, %v707
  %v1268 = vpack.c.b16 %v712, %v710
  %v1269 = vpack.c.b16 %v713, %v711
  %v1270 = vpack.c.b16 %v716, %v714
  %v1271 = vpack.c.b16 %v717, %v715
  %v1272 = vpack.c.b16 %v720, %v718
  %v1273 = vpack.c.b16 %v721, %v719
  %v1274 = vpack.c.b16 %v724, %v722
  %v1275 = vpack.c.b16 %v725, %v723
  %v1276 = vpack.c.b16 %v728, %v726
  %v1277 = vpack.c.b16 %v729, %v727
  %v1278 = vpack.c.b16 %v732, %v730
  %v1279 = vpack.c.b16 %v733, %v731
  %v1280 = vpack.c.b16 %v736, %v734
  %v1281 = vpack.c.b16 %v737, %v735
  %v1282 = vpack.c.b16 %v740, %v738
  %v1283 = vpack.c.b16 %v741, %v739
  %v1284 = vpack.c.b16 %v744, %v742
  %v1285 = vpack.c.b16 %v745, %v743
  %v1286 = vpack.c.b16 %v748, %v746
  %v1287 = vpack.c.b16 %v749, %v747
  %v1288 = vpack.c.b16 %v752, %v750
  %v1289 = vpack.c.b16 %v753, %v751
  %v1290 = vpack.c.b16 %v756, %v754
  %v1291 = vpack.c.b16 %v757, %v755
  %v1292 = vpack.c.b16 %v760, %v758
  %v1293 = vpack.c.b16 %v761, %v759
  %v1294 = vpack.c.b16 %v764, %v762
  %v1295 = vpack.c.b16 %v765, %v763
  %v1296 = vpack.c.b16 %v768, %v766
  %v1297 = vpack.c.b16 %v769, %v767
  %v1298 = vpack.c.b16 %v772, %v770
  %v1299 = vpack.c.b16 %v773, %v771
  %v1300 = vpack.c.b16 %v776, %v774
  %v1301 = vpack.c.b16 %v777, %v775
  %v1302 = vpack.c.b16 %v780, %v778
  %v1303 = vpack.c.b16 %v781, %v779
  %v1304 = vpack.c.b16 %v784, %v782
  %v1305 = vpack.c.b16 %v785, %v783
  %v1306 = vpack.c.b16 %v788, %v786
  %v1307 = vpack.c.b16 %v789, %v787
  %v1308 = vpack.c.b16 %v792, %v790
  %v1309 = vpack.c.b16 %v793, %v791
  %v1310 = vpack.c.b16 %v796, %v794
  %v1311 = vpack.c.b16 %v797, %v795
  %v1312 = vpack.c.b16 %v800, %v798
  %v1313 = vpack.c.b16 %v801, %v799
  %v1314 = vpack.c.b16 %v804, %v802
  %v1315 = vpack.c.b16 %v805, %v803
  %v1316 = vpack.c.b16 %v808, %v806
  %v1317 = vpack.c.b16 %v809, %v807
  %v1318 = vpack.c.b16 %v812, %v810
  %v1319 = vpack.c.b16 %v813, %v811
  %v1320 = vpack.c.b16 %v816, %v814
  %v1321 = vpack.c.b16 %v817, %v815
  %v1322 = vpack.c.b16 %v820, %v818
  %v1323 = vpack.c.b16 %v821, %v819
  %v1324 = vpack.c.b16 %v824, %v822
  %v1325 = vpack.c.b16 %v825, %v823
  %v1326 = vpack.c.b16 %v828, %v826
  %v1327 = vpack.c.b16 %v829, %v827
  %v1328 = vpack.c.b16 %v832, %v830
  %v1329 = vpack.c.b16 %v833, %v831
  %v1330 = vpack.c.b16 %v836, %v834
  %v1331 = vpack.c.b16 %v837, %v835
  %v1332 = vpack.c.b16 %v840, %v838
  %v1333 = vpack.c.b16 %v841, %v839
  %v1334 = vpack.c.b16 %v844, %v842
  %v1335 = vpack.c.b16 %v845, %v843
  %v1336 = vpack.c.b16 %v848, %v846
  %v1337 = vpack.c.b16 %v849, %v847
  %v1338 = vpack.c.b16 %v852, %v850
  %v1339 = vpack.c.b16 %v853, %v851
  %v1340 = vpack.c.b16 %v856, %v854
  %v1341 = vpack.c.b16 %v857, %v855
  %v1342 = vpack.c.b16 %v860, %v858
  %v1343 = vpack.c.b16 %v861, %v859
  %v1344 = vpack.c.b16 %v864, %v862
  %v1345 = vpack.c.b16 %v865, %v863
  %v1346 = vpack.c.b16 %v868, %v866
  %v1347 = vpack.c.b16 %v869, %v867
  %v1348 = vpack.c.b16 %v872, %v870
  %v1349 = vpack.c.b16 %v873, %v871
  %v1350 = vpack.c.b16 %v876, %v874
  %v1351 = vpack.c.b16 %v877, %v875
  %v1352 = vpack.c.b16 %v880, %v878
  %v1353 = vpack.c.b16 %v881, %v879
  %v1354 = vpack.c.b16 %v884, %v882
  %v1355 = vpack.c.b16 %v885, %v883
  %v1356 = vpack.c.b16 %v888, %v886
  %v1357 = vpack.c.b16 %v889, %v887
  %v1358 = vpack.c.b16 %v892, %v890
  %v1359 = vpack.c.b16 %v893, %v891
  %v1360 = vpack.c.b16 %v896, %v894
  %v1361 = vpack.c.b16 %v897, %v895
  %v1362 = vpack.c.b16 %v900, %v898
  %v1363 = vpack.c.b16 %v901, %v899
  %v1364 = vpack.c.b16 %v904, %v902
  %v1365 = vpack.c.b16 %v905, %v903
  %v1366 = vpack.c.b16 %v908, %v906
  %v1367 = vpack.c.b16 %v909, %v907
  %v1368 = vpack.c.b16 %v912, %v910
  %v1369 = vpack.c.b16 %v913, %v911
  %v1370 = vpack.c.b16 %v916, %v914
  %v1371 = vpack.c.b16 %v917, %v915
  %v1372 = vpack.c.b16 %v920, %v918
  %v1373 = vpack.c.b16 %v921, %v919
  %v1374 = vpack.c.b16 %v924, %v922
  %v1375 = vpack.c.b16 %v925, %v923
  %v1376 = vpack.c.b16 %v928, %v926
  %v1377 = vpack.c.b16 %v929, %v927
  %v1378 = vpack.c.b16 %v932, %v930
  %v1379 = vpack.c.b16 %v933, %v931
  %v1380 = vpack.c.b16 %v936, %v934
  %v1381 = vpack.c.b16 %v937, %v935
  %v1382 = vpack.c.b16 %v940, %v938
  %v1383 = vpack.c.b16 %v941, %v939
  %v1384 = vpack.c.b16 %v944, %v942
  %v1385 = vpack.c.b16 %v945, %v943
  %v1386 = vpack.c.b16 %v948, %v946
  %v1387 = vpack.c.b16 %v949, %v947
  %v1388 = vpack.c.b16 %v952, %v950
  %v1389 = vpack.c.b16 %v953, %v951
  %v1390 = vpack.c.b16 %v956, %v954
  %v1391 = vpack.c.b16 %v957, %v955
  %v1392 = vpack.c.b16 %v960, %v958
  %v1393 = vpack.c.b16 %v961, %v959
  %v1394 = vpack.c.b16 %v964, %v962
  %v1395 = vpack.c.b16 %v965, %v963
  %v1396 = vpack.c.b16 %v968, %v966
  %v1397 = vpack.c.b16 %v969, %v967
  %v1398 = vpack.c.b16 %v972, %v970
  %v1399 = vpack.c.b16 %v973, %v971
  %v1400 = vpack.c.b16 %v976, %v974
  %v1401 = vpack.c.b16 %v977, %v975
  %v1402 = vpack.c.b16 %v980, %v978
  %v1403 = vpack.c.b16 %v981, %v979
  %v1404 = vpack.c.b16 %v984, %v982
  %v1405 = vpack.c.b16 %v985, %v983
  %v1406 = vpack.c.b16 %v988, %v986
  %v1407 = vpack.c.b16 %v989, %v987
  %v1408 = vpack.c.b16 %v992, %v990
  %v1409 = vpack.c.b16 %v993, %v991
  %v1410 = vpack.c.b16 %v996, %v994
  %v1411 = vpack.c.b16 %v997, %v995
  %v1412 = vpack.c.b16 %v1000, %v998
  %v1413 = vpack.c.b16 %v1001, %v999
  %v1414 = vpack.c.b16 %v1004, %v1002
  %v1415 = vpack.c.b16 %v1005, %v1003
  %v1416 = vpack.c.b16 %v1008, %v1006
  %v1417 = vpack.c.b16 %v1009, %v1007
  %v1418 = vpack.c.b16 %v1012, %v1010
  %v1419 = vpack.c.b16 %v1013, %v1011
  %v1420 = vpack.c.b16 %v1016, %v1014
  %v1421 = vpack.c.b16 %v1017, %v1015
  %v1422 = vpack.c.b16 %v1020, %v1018
  %v1423 = vpack.c.b16 %v1021, %v1019
  %v1424 = vpack.c.b16 %v1024, %v1022
  %v1425 = vpack.c.b16 %v1025, %v1023
  %v1426 = vpack.c.b16 %v1028, %v1026
  %v1427 = vpack.c.b16 %v1029, %v1027
  %v1428 = vpack.c.b16 %v1032, %v1030
  %v1429 = vpack.c.b16 %v1033, %v1031
  %v1430 = vpack.c.b16 %v1036, %v1034
  %v1431 = vpack.c.b16 %v1037, %v1035
  %v1432 = vpack.c.b16 %v1040, %v1038
  %v1433 = vpack.c.b16 %v1041, %v1039
  %v1434 = vpack.c.b16 %v1044, %v1042
  %v1435 = vpack.c.b16 %v1045, %v1043
  %v1436 = vpack.c.b16 %v1048, %v1046
  %v1437 = vpack.c.b16 %v1049, %v1047
  %v1438 = vpack.c.b16 %v1052, %v1050
  %v1439 = vpack.c.b16 %v1053, %v1051
  %v1440 = vpack.c.b16 %v1056, %v1054
  %v1441 = vpack.c.b16 %v1057, %v1055
  %v1442 = vpack.c.b16 %v1060, %v1058
  %v1443 = vpack.c.b16 %v1061, %v1059
  %v1444 = vpack.c.b16 %v1064, %v1062
  %v1445 = vpack.c.b16 %v1065, %v1063
  %v1446 = vpack.c.b16 %v1068, %v1066
  %v1447 = vpack.c.b16 %v1069, %v1067
  %v1448 = vpack.c.b16 %v1072, %v1070
  %v1449 = vpack.c.b16 %v1073, %v1071
  %v1450 = vpack.c.b16 %v1076, %v1074
  %v1451 = vpack.c.b16 %v1077, %v1075
  %v1452 = vpack.c.b16 %v1080, %v1078
  %v1453 = vpack.c.b16 %v1081, %v1079
  %v1454 = vpack.c.b16 %v1084, %v1082
  %v1455 = vpack.c.b16 %v1085, %v1083
  %v1456 = vpack.c.b16 %v1088, %v1086
  %v1457 = vpack.c.b16 %v1089, %v1087
  %v1458 = vpack.c.b16 %v1092, %v1090
  %v1459 = vpack.c.b16 %v1093, %v1091
  %v1460 = vpack.c.b16 %v1096, %v1094
  %v1461 = vpack.c.b16 %v1097, %v1095
  %v1462 = vpack.c.b16 %v1100, %v1098
  %v1463 = vpack.c.b16 %v1101, %v1099
  %v1464 = vpack.c.b16 %v1104, %v1102
  %v1465 = vpack.c.b16 %v1105, %v1103
  %v1466 = vpack.c.b16 %v1108, %v1106
  %v1467 = vpack.c.b16 %v1109, %v1107
  %v1468 = vpack.c.b16 %v1112, %v1110
  %v1469 = vpack.c.b16 %v1113, %v1111
  %v1470 = vpack.c.b16 %v1116, %v1114
  %v1471 = vpack.c.b16 %v1117, %v1115
  %v1472 = vpack.c.b16 %v1120, %v1118
  %v1473 = vpack.c.b16 %v1121, %v1119
  %v1474 = vpack.c.b16 %v1124, %v1122
  %v1475 = vpack.c.b16 %v1125, %v1123
  %v1476 = vpack.c.b16 %v1128, %v1126
  %v1477 = vpack.c.b16 %v1129, %v1127
  %v1478 = vpack.c.b16 %v1132, %v1130
  %v1479 = vpack.c.b16 %v1133, %v1131
  %v1480 = vpack.c.b16 %v1136, %v1134
  %v1481 = vpack.c.b16 %v1137, %v1135
  %v1482 = vpack.c.b16 %v1140, %v1138
  %v1483 = vpack.c.b16 %v1141, %v1139
  %v1484 = vpack.c.b16 %v1144, %v1142
  %v1485 = vpack.c.b16 %v1145, %v1143
  %v1486 = vpack.c.b16 %v1148, %v1146
  %v1487 = vpack.c.b16 %v1149, %v1147
  %v1488 = vpack.c.b16 %v1152, %v1150
  %v1489 = vpack.c.b16 %v1153, %v1151
  %v1490 = vpack.c.b16 %v1156, %v1154
  %v1491 = vpack.c.b16 %v1157, %v1155
  %v1492 = vpack.c.b16 %v1160, %v1158
  %v1493 = vpack.c.b16 %v1161, %v1159
  %v1494 = vpack.c.b16 %v1164, %v1162
  %v1495 = vpack.c.b16 %v1165, %v1163
  %v1496 = vpack.c.b16 %v1168, %v1166
  %v1497 = vpack.c.b16 %v1169, %v1167
  %v1498 = vpack.c.b16 %v1172, %v1170
  %v1499 = vpack.c.b16 %v1173, %v1171
  %v1500 = vpack.c.b16 %v1176, %v1174
  %v1501 = vpack.c.b16 %v1177, %v1175
  %v1502 = vpack.c.b16 %v1180, %v1178
  %v1503 = vpack.c.b16 %v1181, %v1179
  %v1504 = vpack.c.b16 %v1184, %v1182
  %v1505 = vpack.c.b16 %v1185, %v1183
  %v1506 = vpack.c.b16 %v1188, %v1186
  %v1507 = vpack.c.b16 %v1189, %v1187
  %v1508 = vpack.c.b16 %v1192, %v1190
  %v1509 = vpack.c.b16 %v1193, %v1191
  %v1510 = vpack.c.b16 %v1196, %v1194
  %v1511 = vpack.c.b16 %v1197, %v1195
  %v1512 = vpack.c.b16 %v1200, %v1198
  %v1513 = vpack.c.b16 %v1201, %v1199
  %v1514 = vpack.c.b16 %v1204, %v1202
  %v1515 = vpack.c.b16 %v1205, %v1203
  %v1516 = vpack.c.b16 %v1208, %v1206
  %v1517 = vpack.c.b16 %v1209, %v1207
  %v1518 = vpack.c.b16 %v1212, %v1210
  %v1519 = vpack.c.b16 %v1213, %v1211
  %v1520 = vpack.c.b16 %v1216, %v1214
  %v1521 = vpack.c.b16 %v1217, %v1215
  %v1522 = vpack.c.b16 %v1220, %v1218
  %v1523 = vpack.c.b16 %v1221, %v1219
  %v1524 = vpack.c.b16 %v1224, %v1222
  %v1525 = vpack.c.b16 %v1225, %v1223
  %v1526 = vpack.c.b16 %v1228, %v1226
  %v1527 = vpack.c.b16 %v1229, %v1227
  %v1528 = vpack.c.b16 %v1232, %v1230
  %v1529 = vpack.c.b16 %v1233, %v1231
  %v1530 = vpack.c.b16 %v1236, %v1234
  %v1531 = vpack.c.b16 %v1237, %v1235
  %v1532 = vpack.c.b16 %v1240, %v1238
  %v1533 = vpack.c.b16 %v1241, %v1239
  %v1534 = vpack.c.b16 %v1244, %v1242
  %v1535 = vpack.c.b16 %v1245, %v1243
  %v1536 = vpack.c.b16 %v1248, %v1246
  %v1537 = vpack.c.b16 %v1249, %v1247
  %1826 = vmatprep.subr.bf16.mxu0 %v1251
  %1827 = vmatpush1.bf16.msra.mxu0 %v1250
  %1828 = vmatprep.subr.bf16.mxu0 %v1253
  %1829 = vmatpush1.bf16.msra.mxu0 %v1252
  %1830 = vmatprep.subr.bf16.mxu0 %v1255
  %1831 = vmatpush1.bf16.msra.mxu0 %v1254
  %1832 = vmatprep.subr.bf16.mxu0 %v1257
  %1833 = vmatpush1.bf16.msra.mxu0 %v1256
  %1834 = vmatprep.subr.bf16.mxu0 %v1259
  %1835 = vmatpush1.bf16.msra.mxu0 %v1258
  %1836 = vmatprep.subr.bf16.mxu0 %v1261
  %1837 = vmatpush1.bf16.msra.mxu0 %v1260
  %1838 = vmatprep.subr.bf16.mxu0 %v1263
  %1839 = vmatpush1.bf16.msra.mxu0 %v1262
  %1840 = vmatprep.subr.bf16.mxu0 %v1265
  %1841 = vmatpush1.bf16.msra.mxu0 %v1264
  %1842 = vmatprep.subr.bf16.mxu0 %v1267
  %1843 = vmatpush1.bf16.msra.mxu0 %v1266
  %1844 = vmatprep.subr.bf16.mxu0 %v1269
  %1845 = vmatpush1.bf16.msra.mxu0 %v1268
  %1846 = vmatprep.subr.bf16.mxu0 %v1271
  %1847 = vmatpush1.bf16.msra.mxu0 %v1270
  %1848 = vmatprep.subr.bf16.mxu0 %v1273
  %1849 = vmatpush1.bf16.msra.mxu0 %v1272
  %1850 = vmatprep.subr.bf16.mxu0 %v1275
  %1851 = vmatpush1.bf16.msra.mxu0 %v1274
  %1852 = vmatprep.subr.bf16.mxu0 %v1277
  %1853 = vmatpush1.bf16.msra.mxu0 %v1276
  %1854 = vmatprep.subr.bf16.mxu0 %v1279
  %1855 = vmatpush1.bf16.msra.mxu0 %v1278
  %1856 = vmatprep.subr.bf16.mxu0 %v1281
  %1857 = vmatpush1.bf16.msra.mxu0 %v1280
  %1858 = vmatprep.mubr.bf16.mxu0 %v351
  %1859 = vmatmul.mubr.bf16.gmra.mrb[0].mxu0 %v350
  %v1860 = vpop.f32.mrb[0].mxu0
  %v1861 = vadd.f32 %v316, %v1860
  %v1862 = vpop.f32.mrb[0].mxu0
  %v1863 = vadd.f32 %v320, %v1862
  %v1864 = vpop.f32.mrb[0].mxu0
  %v1865 = vpop.f32.mrb[0].mxu0
  %1866 = vdwg.mxu0
  %1867 = vmatprep.subr.bf16.mxu0 %v1283
  %1868 = vmatpush1.bf16.msra.mxu0 %v1282
  %1869 = vmatprep.subr.bf16.mxu0 %v1285
  %1870 = vmatpush1.bf16.msra.mxu0 %v1284
  %1871 = vmatprep.subr.bf16.mxu0 %v1287
  %1872 = vmatpush1.bf16.msra.mxu0 %v1286
  %1873 = vmatprep.subr.bf16.mxu0 %v1289
  %1874 = vmatpush1.bf16.msra.mxu0 %v1288
  %1875 = vmatprep.subr.bf16.mxu0 %v1291
  %1876 = vmatpush1.bf16.msra.mxu0 %v1290
  %1877 = vmatprep.subr.bf16.mxu0 %v1293
  %1878 = vmatpush1.bf16.msra.mxu0 %v1292
  %1879 = vmatprep.subr.bf16.mxu0 %v1295
  %1880 = vmatpush1.bf16.msra.mxu0 %v1294
  %1881 = vmatprep.subr.bf16.mxu0 %v1297
  %1882 = vmatpush1.bf16.msra.mxu0 %v1296
  %1883 = vmatprep.subr.bf16.mxu0 %v1299
  %1884 = vmatpush1.bf16.msra.mxu0 %v1298
  %1885 = vmatprep.subr.bf16.mxu0 %v1301
  %1886 = vmatpush1.bf16.msra.mxu0 %v1300
  %1887 = vmatprep.subr.bf16.mxu0 %v1303
  %1888 = vmatpush1.bf16.msra.mxu0 %v1302
  %1889 = vmatprep.subr.bf16.mxu0 %v1305
  %1890 = vmatpush1.bf16.msra.mxu0 %v1304
  %1891 = vmatprep.subr.bf16.mxu0 %v1307
  %1892 = vmatpush1.bf16.msra.mxu0 %v1306
  %1893 = vmatprep.subr.bf16.mxu0 %v1309
  %1894 = vmatpush1.bf16.msra.mxu0 %v1308
  %1895 = vmatprep.subr.bf16.mxu0 %v1311
  %1896 = vmatpush1.bf16.msra.mxu0 %v1310
  %1897 = vmatprep.subr.bf16.mxu0 %v1313
  %1898 = vmatpush1.bf16.msra.mxu0 %v1312
  %1899 = vmatprep.mubr.bf16.mxu0 %v353
  %1900 = vmatmul.mubr.bf16.gmra.mrb[0].mxu0 %v352
  %v1901 = vpop.f32.mrb[0].mxu0
  %v1902 = vadd.f32 %v1861, %v1901
  %v1903 = vpop.f32.mrb[0].mxu0
  %v1904 = vadd.f32 %v1863, %v1903
  %v1905 = vpop.f32.mrb[0].mxu0
  %v1906 = vpop.f32.mrb[0].mxu0
  %1907 = vdwg.mxu0
  %1908 = vmatprep.subr.bf16.mxu0 %v1315
  %1909 = vmatpush1.bf16.msra.mxu0 %v1314
  %1910 = vmatprep.subr.bf16.mxu0 %v1317
  %1911 = vmatpush1.bf16.msra.mxu0 %v1316
  %1912 = vmatprep.subr.bf16.mxu0 %v1319
  %1913 = vmatpush1.bf16.msra.mxu0 %v1318
  %1914 = vmatprep.subr.bf16.mxu0 %v1321
  %1915 = vmatpush1.bf16.msra.mxu0 %v1320
  %1916 = vmatprep.subr.bf16.mxu0 %v1323
  %1917 = vmatpush1.bf16.msra.mxu0 %v1322
  %1918 = vmatprep.subr.bf16.mxu0 %v1325
  %1919 = vmatpush1.bf16.msra.mxu0 %v1324
  %1920 = vmatprep.subr.bf16.mxu0 %v1327
  %1921 = vmatpush1.bf16.msra.mxu0 %v1326
  %1922 = vmatprep.subr.bf16.mxu0 %v1329
  %1923 = vmatpush1.bf16.msra.mxu0 %v1328
  %1924 = vmatprep.subr.bf16.mxu0 %v1331
  %1925 = vmatpush1.bf16.msra.mxu0 %v1330
  %1926 = vmatprep.subr.bf16.mxu0 %v1333
  %1927 = vmatpush1.bf16.msra.mxu0 %v1332
  %1928 = vmatprep.subr.bf16.mxu0 %v1335
  %1929 = vmatpush1.bf16.msra.mxu0 %v1334
  %1930 = vmatprep.subr.bf16.mxu0 %v1337
  %1931 = vmatpush1.bf16.msra.mxu0 %v1336
  %1932 = vmatprep.subr.bf16.mxu0 %v1339
  %1933 = vmatpush1.bf16.msra.mxu0 %v1338
  %1934 = vmatprep.subr.bf16.mxu0 %v1341
  %1935 = vmatpush1.bf16.msra.mxu0 %v1340
  %1936 = vmatprep.subr.bf16.mxu0 %v1343
  %1937 = vmatpush1.bf16.msra.mxu0 %v1342
  %1938 = vmatprep.subr.bf16.mxu0 %v1345
  %1939 = vmatpush1.bf16.msra.mxu0 %v1344
  %1940 = vmatprep.mubr.bf16.mxu0 %v355
  %1941 = vmatmul.mubr.bf16.gmra.mrb[0].mxu0 %v354
  %v1942 = vpop.f32.mrb[0].mxu0
  %v1943 = vadd.f32 %v1902, %v1942
  %v1944 = vpop.f32.mrb[0].mxu0
  %v1945 = vadd.f32 %v1904, %v1944
  %v1946 = vpop.f32.mrb[0].mxu0
  %v1947 = vpop.f32.mrb[0].mxu0
  %1948 = vdwg.mxu0
  %1949 = vmatprep.subr.bf16.mxu0 %v1347
  %1950 = vmatpush1.bf16.msra.mxu0 %v1346
  %1951 = vmatprep.subr.bf16.mxu0 %v1349
  %1952 = vmatpush1.bf16.msra.mxu0 %v1348
  %1953 = vmatprep.subr.bf16.mxu0 %v1351
  %1954 = vmatpush1.bf16.msra.mxu0 %v1350
  %1955 = vmatprep.subr.bf16.mxu0 %v1353
  %1956 = vmatpush1.bf16.msra.mxu0 %v1352
  %1957 = vmatprep.subr.bf16.mxu0 %v1355
  %1958 = vmatpush1.bf16.msra.mxu0 %v1354
  %1959 = vmatprep.subr.bf16.mxu0 %v1357
  %1960 = vmatpush1.bf16.msra.mxu0 %v1356
  %1961 = vmatprep.subr.bf16.mxu0 %v1359
  %1962 = vmatpush1.bf16.msra.mxu0 %v1358
  %1963 = vmatprep.subr.bf16.mxu0 %v1361
  %1964 = vmatpush1.bf16.msra.mxu0 %v1360
  %1965 = vmatprep.subr.bf16.mxu0 %v1363
  %1966 = vmatpush1.bf16.msra.mxu0 %v1362
  %1967 = vmatprep.subr.bf16.mxu0 %v1365
  %1968 = vmatpush1.bf16.msra.mxu0 %v1364
  %1969 = vmatprep.subr.bf16.mxu0 %v1367
  %1970 = vmatpush1.bf16.msra.mxu0 %v1366
  %1971 = vmatprep.subr.bf16.mxu0 %v1369
  %1972 = vmatpush1.bf16.msra.mxu0 %v1368
  %1973 = vmatprep.subr.bf16.mxu0 %v1371
  %1974 = vmatpush1.bf16.msra.mxu0 %v1370
  %1975 = vmatprep.subr.bf16.mxu0 %v1373
  %1976 = vmatpush1.bf16.msra.mxu0 %v1372
  %1977 = vmatprep.subr.bf16.mxu0 %v1375
  %1978 = vmatpush1.bf16.msra.mxu0 %v1374
  %1979 = vmatprep.subr.bf16.mxu0 %v1377
  %1980 = vmatpush1.bf16.msra.mxu0 %v1376
  %1981 = vmatprep.mubr.bf16.mxu0 %v357
  %1982 = vmatmul.mubr.bf16.gmra.mrb[0].mxu0 %v356
  %v1983 = vpop.f32.mrb[0].mxu0
  %v1984 = vadd.f32 %v1943, %v1983
  %v1985 = vpop.f32.mrb[0].mxu0
  %v1986 = vadd.f32 %v1945, %v1985
  %v1987 = vpop.f32.mrb[0].mxu0
  %v1988 = vpop.f32.mrb[0].mxu0
  %1989 = vdwg.mxu0
  %1990 = vmatprep.subr.bf16.mxu0 %v1379
  %1991 = vmatpush1.bf16.msra.mxu0 %v1378
  %1992 = vmatprep.subr.bf16.mxu0 %v1381
  %1993 = vmatpush1.bf16.msra.mxu0 %v1380
  %1994 = vmatprep.subr.bf16.mxu0 %v1383
  %1995 = vmatpush1.bf16.msra.mxu0 %v1382
  %1996 = vmatprep.subr.bf16.mxu0 %v1385
  %1997 = vmatpush1.bf16.msra.mxu0 %v1384
  %1998 = vmatprep.subr.bf16.mxu0 %v1387
  %1999 = vmatpush1.bf16.msra.mxu0 %v1386
  %2000 = vmatprep.subr.bf16.mxu0 %v1389
  %2001 = vmatpush1.bf16.msra.mxu0 %v1388
  %2002 = vmatprep.subr.bf16.mxu0 %v1391
  %2003 = vmatpush1.bf16.msra.mxu0 %v1390
  %2004 = vmatprep.subr.bf16.mxu0 %v1393
  %2005 = vmatpush1.bf16.msra.mxu0 %v1392
  %2006 = vmatprep.subr.bf16.mxu0 %v1395
  %2007 = vmatpush1.bf16.msra.mxu0 %v1394
  %2008 = vmatprep.subr.bf16.mxu0 %v1397
  %2009 = vmatpush1.bf16.msra.mxu0 %v1396
  %2010 = vmatprep.subr.bf16.mxu0 %v1399
  %2011 = vmatpush1.bf16.msra.mxu0 %v1398
  %2012 = vmatprep.subr.bf16.mxu0 %v1401
  %2013 = vmatpush1.bf16.msra.mxu0 %v1400
  %2014 = vmatprep.subr.bf16.mxu0 %v1403
  %2015 = vmatpush1.bf16.msra.mxu0 %v1402
  %2016 = vmatprep.subr.bf16.mxu0 %v1405
  %2017 = vmatpush1.bf16.msra.mxu0 %v1404
  %2018 = vmatprep.subr.bf16.mxu0 %v1407
  %2019 = vmatpush1.bf16.msra.mxu0 %v1406
  %2020 = vmatprep.subr.bf16.mxu0 %v1409
  %2021 = vmatpush1.bf16.msra.mxu0 %v1408
  %2022 = vmatprep.mubr.bf16.mxu0 %v359
  %2023 = vmatmul.mubr.bf16.gmra.mrb[0].mxu0 %v358
  %v2024 = vpop.f32.mrb[0].mxu0
  %v2025 = vadd.f32 %v1984, %v2024
  %v2026 = vpop.f32.mrb[0].mxu0
  %v2027 = vadd.f32 %v1986, %v2026
  %v2028 = vpop.f32.mrb[0].mxu0
  %v2029 = vpop.f32.mrb[0].mxu0
  %2030 = vdwg.mxu0
  %2031 = vmatprep.subr.bf16.mxu0 %v1411
  %2032 = vmatpush1.bf16.msra.mxu0 %v1410
  %2033 = vmatprep.subr.bf16.mxu0 %v1413
  %2034 = vmatpush1.bf16.msra.mxu0 %v1412
  %2035 = vmatprep.subr.bf16.mxu0 %v1415
  %2036 = vmatpush1.bf16.msra.mxu0 %v1414
  %2037 = vmatprep.subr.bf16.mxu0 %v1417
  %2038 = vmatpush1.bf16.msra.mxu0 %v1416
  %2039 = vmatprep.subr.bf16.mxu0 %v1419
  %2040 = vmatpush1.bf16.msra.mxu0 %v1418
  %2041 = vmatprep.subr.bf16.mxu0 %v1421
  %2042 = vmatpush1.bf16.msra.mxu0 %v1420
  %2043 = vmatprep.subr.bf16.mxu0 %v1423
  %2044 = vmatpush1.bf16.msra.mxu0 %v1422
  %2045 = vmatprep.subr.bf16.mxu0 %v1425
  %2046 = vmatpush1.bf16.msra.mxu0 %v1424
  %2047 = vmatprep.subr.bf16.mxu0 %v1427
  %2048 = vmatpush1.bf16.msra.mxu0 %v1426
  %2049 = vmatprep.subr.bf16.mxu0 %v1429
  %2050 = vmatpush1.bf16.msra.mxu0 %v1428
  %2051 = vmatprep.subr.bf16.mxu0 %v1431
  %2052 = vmatpush1.bf16.msra.mxu0 %v1430
  %2053 = vmatprep.subr.bf16.mxu0 %v1433
  %2054 = vmatpush1.bf16.msra.mxu0 %v1432
  %2055 = vmatprep.subr.bf16.mxu0 %v1435
  %2056 = vmatpush1.bf16.msra.mxu0 %v1434
  %2057 = vmatprep.subr.bf16.mxu0 %v1437
  %2058 = vmatpush1.bf16.msra.mxu0 %v1436
  %2059 = vmatprep.subr.bf16.mxu0 %v1439
  %2060 = vmatpush1.bf16.msra.mxu0 %v1438
  %2061 = vmatprep.subr.bf16.mxu0 %v1441
  %2062 = vmatpush1.bf16.msra.mxu0 %v1440
  %2063 = vmatprep.mubr.bf16.mxu0 %v361
  %2064 = vmatmul.mubr.bf16.gmra.mrb[0].mxu0 %v360
  %v2065 = vpop.f32.mrb[0].mxu0
  %v2066 = vadd.f32 %v2025, %v2065
  %v2067 = vpop.f32.mrb[0].mxu0
  %v2068 = vadd.f32 %v2027, %v2067
  %v2069 = vpop.f32.mrb[0].mxu0
  %v2070 = vpop.f32.mrb[0].mxu0
  %2071 = vdwg.mxu0
  %2072 = vmatprep.subr.bf16.mxu0 %v1443
  %2073 = vmatpush1.bf16.msra.mxu0 %v1442
  %2074 = vmatprep.subr.bf16.mxu0 %v1445
  %2075 = vmatpush1.bf16.msra.mxu0 %v1444
  %2076 = vmatprep.subr.bf16.mxu0 %v1447
  %2077 = vmatpush1.bf16.msra.mxu0 %v1446
  %2078 = vmatprep.subr.bf16.mxu0 %v1449
  %2079 = vmatpush1.bf16.msra.mxu0 %v1448
  %2080 = vmatprep.subr.bf16.mxu0 %v1451
  %2081 = vmatpush1.bf16.msra.mxu0 %v1450
  %2082 = vmatprep.subr.bf16.mxu0 %v1453
  %2083 = vmatpush1.bf16.msra.mxu0 %v1452
  %2084 = vmatprep.subr.bf16.mxu0 %v1455
  %2085 = vmatpush1.bf16.msra.mxu0 %v1454
  %2086 = vmatprep.subr.bf16.mxu0 %v1457
  %2087 = vmatpush1.bf16.msra.mxu0 %v1456
  %2088 = vmatprep.subr.bf16.mxu0 %v1459
  %2089 = vmatpush1.bf16.msra.mxu0 %v1458
  %2090 = vmatprep.subr.bf16.mxu0 %v1461
  %2091 = vmatpush1.bf16.msra.mxu0 %v1460
  %2092 = vmatprep.subr.bf16.mxu0 %v1463
  %2093 = vmatpush1.bf16.msra.mxu0 %v1462
  %2094 = vmatprep.subr.bf16.mxu0 %v1465
  %2095 = vmatpush1.bf16.msra.mxu0 %v1464
  %2096 = vmatprep.subr.bf16.mxu0 %v1467
  %2097 = vmatpush1.bf16.msra.mxu0 %v1466
  %2098 = vmatprep.subr.bf16.mxu0 %v1469
  %2099 = vmatpush1.bf16.msra.mxu0 %v1468
  %2100 = vmatprep.subr.bf16.mxu0 %v1471
  %2101 = vmatpush1.bf16.msra.mxu0 %v1470
  %2102 = vmatprep.subr.bf16.mxu0 %v1473
  %2103 = vmatpush1.bf16.msra.mxu0 %v1472
  %2104 = vmatprep.mubr.bf16.mxu0 %v363
  %2105 = vmatmul.mubr.bf16.gmra.mrb[0].mxu0 %v362
  %v2106 = vpop.f32.mrb[0].mxu0
  %v2107 = vadd.f32 %v2066, %v2106
  %v2108 = vpop.f32.mrb[0].mxu0
  %v2109 = vadd.f32 %v2068, %v2108
  %v2110 = vpop.f32.mrb[0].mxu0
  %v2111 = vpop.f32.mrb[0].mxu0
  %2112 = vdwg.mxu0
  %2113 = vmatprep.subr.bf16.mxu0 %v1475
  %2114 = vmatpush1.bf16.msra.mxu0 %v1474
  %2115 = vmatprep.subr.bf16.mxu0 %v1477
  %2116 = vmatpush1.bf16.msra.mxu0 %v1476
  %2117 = vmatprep.subr.bf16.mxu0 %v1479
  %2118 = vmatpush1.bf16.msra.mxu0 %v1478
  %2119 = vmatprep.subr.bf16.mxu0 %v1481
  %2120 = vmatpush1.bf16.msra.mxu0 %v1480
  %2121 = vmatprep.subr.bf16.mxu0 %v1483
  %2122 = vmatpush1.bf16.msra.mxu0 %v1482
  %2123 = vmatprep.subr.bf16.mxu0 %v1485
  %2124 = vmatpush1.bf16.msra.mxu0 %v1484
  %2125 = vmatprep.subr.bf16.mxu0 %v1487
  %2126 = vmatpush1.bf16.msra.mxu0 %v1486
  %2127 = vmatprep.subr.bf16.mxu0 %v1489
  %2128 = vmatpush1.bf16.msra.mxu0 %v1488
  %2129 = vmatprep.subr.bf16.mxu0 %v1491
  %2130 = vmatpush1.bf16.msra.mxu0 %v1490
  %2131 = vmatprep.subr.bf16.mxu0 %v1493
  %2132 = vmatpush1.bf16.msra.mxu0 %v1492
  %2133 = vmatprep.subr.bf16.mxu0 %v1495
  %2134 = vmatpush1.bf16.msra.mxu0 %v1494
  %2135 = vmatprep.subr.bf16.mxu0 %v1497
  %2136 = vmatpush1.bf16.msra.mxu0 %v1496
  %2137 = vmatprep.subr.bf16.mxu0 %v1499
  %2138 = vmatpush1.bf16.msra.mxu0 %v1498
  %2139 = vmatprep.subr.bf16.mxu0 %v1501
  %2140 = vmatpush1.bf16.msra.mxu0 %v1500
  %2141 = vmatprep.subr.bf16.mxu0 %v1503
  %2142 = vmatpush1.bf16.msra.mxu0 %v1502
  %2143 = vmatprep.subr.bf16.mxu0 %v1505
  %2144 = vmatpush1.bf16.msra.mxu0 %v1504
  %2145 = vmatprep.mubr.bf16.mxu0 %v365
  %2146 = vmatmul.mubr.bf16.gmra.mrb[0].mxu0 %v364
  %v2147 = vpop.f32.mrb[0].mxu0
  %v2148 = vadd.f32 %v2107, %v2147
  %v2149 = vpop.f32.mrb[0].mxu0
  %v2150 = vadd.f32 %v2109, %v2149
  %v2151 = vpop.f32.mrb[0].mxu0
  %v2152 = vpop.f32.mrb[0].mxu0
  %2153 = vdwg.mxu0
  %2154 = vmatprep.subr.bf16.mxu0 %v1507
  %2155 = vmatpush1.bf16.msra.mxu0 %v1506
  %2156 = vmatprep.subr.bf16.mxu0 %v1509
  %2157 = vmatpush1.bf16.msra.mxu0 %v1508
  %2158 = vmatprep.subr.bf16.mxu0 %v1511
  %2159 = vmatpush1.bf16.msra.mxu0 %v1510
  %2160 = vmatprep.subr.bf16.mxu0 %v1513
  %2161 = vmatpush1.bf16.msra.mxu0 %v1512
  %2162 = vmatprep.subr.bf16.mxu0 %v1515
  %2163 = vmatpush1.bf16.msra.mxu0 %v1514
  %2164 = vmatprep.subr.bf16.mxu0 %v1517
  %2165 = vmatpush1.bf16.msra.mxu0 %v1516
  %2166 = vmatprep.subr.bf16.mxu0 %v1519
  %2167 = vmatpush1.bf16.msra.mxu0 %v1518
  %2168 = vmatprep.subr.bf16.mxu0 %v1521
  %2169 = vmatpush1.bf16.msra.mxu0 %v1520
  %2170 = vmatprep.subr.bf16.mxu0 %v1523
  %2171 = vmatpush1.bf16.msra.mxu0 %v1522
  %2172 = vmatprep.subr.bf16.mxu0 %v1525
  %2173 = vmatpush1.bf16.msra.mxu0 %v1524
  %2174 = vmatprep.subr.bf16.mxu0 %v1527
  %2175 = vmatpush1.bf16.msra.mxu0 %v1526
  %2176 = vmatprep.subr.bf16.mxu0 %v1529
  %2177 = vmatpush1.bf16.msra.mxu0 %v1528
  %2178 = vmatprep.subr.bf16.mxu0 %v1531
  %2179 = vmatpush1.bf16.msra.mxu0 %v1530
  %2180 = vmatprep.subr.bf16.mxu0 %v1533
  %2181 = vmatpush1.bf16.msra.mxu0 %v1532
  %2182 = vmatprep.subr.bf16.mxu0 %v1535
  %2183 = vmatpush1.bf16.msra.mxu0 %v1534
  %2184 = vmatprep.subr.bf16.mxu0 %v1537
  %2185 = vmatpush1.bf16.msra.mxu0 %v1536
  %2186 = vmatprep.mubr.bf16.mxu0 %v367
  %2187 = vmatmul.mubr.bf16.gmra.mrb[0].mxu0 %v366
  %v2188 = vpop.f32.mrb[0].mxu0
  %v2189 = vadd.f32 %v2148, %v2188
  %v2190 = vpop.f32.mrb[0].mxu0
  %v2191 = vadd.f32 %v2150, %v2190
  %v2192 = vpop.f32.mrb[0].mxu0
  %v2193 = vpop.f32.mrb[0].mxu0
  %2194 = vdwg.mxu0
  %v2195 = vmax.f32 %v2189, 0.0
  %v2196 = vmax.f32 %v2191, 0.0
  %v2197 = vpack.c.bf16 %v2195, %v2195
  %v2198 = vpack.c.bf16 %v2196, %v2196
  %v2201 = vunpack.c.l.b16 %v2197
  %v2202 = vunpack.c.l.b16 %v2198
  %v2203 = vpack.c.b16 %v2202, %v2201
  %2205 = vst [vmem:[%s3] sm:$0xff] %v2203
  // Predicated region
  $region14: #{image_encoder_forward.50} parent=0 // pred_check
    _
  $region15: #{image_encoder_forward.50} parent=0 // pred_check_branch
    %2207 = sbr.rel (0) target = $region17
  $region16: #{image_encoder_forward.50} parent=0 // pred_region
    _
  $region17: #{image_encoder_forward.50} parent=0 // pred_fallthru
    _
  // Predicated region
  $region18: #{image_encoder_forward.50} parent=0 // pred_check
    _
  $region19: #{image_encoder_forward.50} parent=0 // pred_check_branch
    %2209 = sbr.rel (0) target = $region21
  $region20: #{image_encoder_forward.50} parent=0 // pred_region
    _
  $region21: #{image_encoder_forward.50} parent=0 // pred_fallthru
    _

// kernel: image_encoder_forward.49
$region0: #{image_encoder_forward.49}
  #allocation0 [shape = 'u32[]', space=smem, size = 0x4, offset = 0x4, fixed_abs, tag = 'smem constant byte address 0x4 - core index']
  #allocation1 [shape = 'u32[144,128]{1,0:T(1,128)}', space=vmem, size = 0x12000, scoped, tag = 'internal scratch']
  %s0 = inlined_call_operand.vmem [shape: bf16[8,2304], index: 0, kind: input, shape index: {}]
  %s1 = inlined_call_operand.vmem [shape: bf16[2304,256], index: 1, kind: input, shape index: {}]
  %s2 = inlined_call_operand.vmem [shape: f32[1,256], index: 2, kind: input, shape index: {}]
  %s3 = inlined_call_operand.vmem [shape: bf16[8,256], index: 3, kind: input, shape index: {}]
  %s4 = inlined_call_operand.vmem [shape: bf16[8,256], index: 4, kind: output, shape index: {}]
  %s5 = sld [smem:[#allocation0]]
  $region26: #{image_encoder_forward.49} parent=0
    _
  %s7 = ssub.s32 1, %s5
  %s8 = scalar_select 0, %s7, %s5
  // Predicated region
  $region2: #{image_encoder_forward.49} parent=0 // pred_check
    _
  $region3: #{image_encoder_forward.49} parent=0 // pred_check_branch
    %10 = sbr.rel (0) target = $region5
  $region4: #{image_encoder_forward.49} parent=0 // pred_region
    _
  $region5: #{image_encoder_forward.49} parent=0 // pred_fallthru
    _
  // Predicated region
  $region6: #{image_encoder_forward.49} parent=0 // pred_check
    _
  $region7: #{image_encoder_forward.49} parent=0 // pred_check_branch
    %12 = sbr.rel (0) target = $region9
  $region8: #{image_encoder_forward.49} parent=0 // pred_region
    _
  $region9: #{image_encoder_forward.49} parent=0 // pred_fallthru
    _
  // Predicated region
  $region10: #{image_encoder_forward.49} parent=0 // pred_check
    _
  $region11: #{image_encoder_forward.49} parent=0 // pred_check_branch
    %14 = sbr.rel (0) target = $region13
  $region12: #{image_encoder_forward.49} parent=0 // pred_region
    _
  $region13: #{image_encoder_forward.49} parent=0 // pred_fallthru
    _
  // Predicated region
  $region14: #{image_encoder_forward.49} parent=0 // pred_check
    _
  $region15: #{image_encoder_forward.49} parent=0 // pred_check_branch
    %16 = sbr.rel (0) target = $region17
  $region16: #{image_encoder_forward.49} parent=0 // pred_region
    _
  $region17: #{image_encoder_forward.49} parent=0 // pred_fallthru
    _
  %v17 = vld [vmem:[%s0] sm:$0xff]
  %v18 = vld [vmem:[%s0 + $0x8] sm:$0xff]
  %v19 = vld [vmem:[%s0 + $0x10] sm:$0xff]
  %v20 = vld [vmem:[%s0 + $0x18] sm:$0xff]
  %v21 = vld [vmem:[%s0 + $0x20] sm:$0xff]
  %v22 = vld [vmem:[%s0 + $0x28] sm:$0xff]
  %v23 = vld [vmem:[%s0 + $0x30] sm:$0xff]
  %v24 = vld [vmem:[%s0 + $0x38] sm:$0xff]
  %v25 = vld [vmem:[%s0 + $0x40] sm:$0xff]
  %v26 = vld [vmem:[%s1] sm:$0xff]
  %v27 = vld [vmem:[%s1 + $0x8] sm:$0xff]
  %v28 = vld [vmem:[%s1 + $0x10] sm:$0xff]
  %v29 = vld [vmem:[%s1 + $0x18] sm:$0xff]
  %v30 = vld [vmem:[%s1 + $0x20] sm:$0xff]
  %v31 = vld [vmem:[%s1 + $0x28] sm:$0xff]
  %v32 = vld [vmem:[%s1 + $0x30] sm:$0xff]
  %v33 = vld [vmem:[%s1 + $0x38] sm:$0xff]
  %v34 = vld [vmem:[%s1 + $0x40] sm:$0xff]
  %v35 = vld [vmem:[%s1 + $0x48] sm:$0xff]
  %v36 = vld [vmem:[%s1 + $0x50] sm:$0xff]
  %v37 = vld [vmem:[%s1 + $0x58] sm:$0xff]
  %v38 = vld [vmem:[%s1 + $0x60] sm:$0xff]
  %v39 = vld [vmem:[%s1 + $0x68] sm:$0xff]
  %v40 = vld [vmem:[%s1 + $0x70] sm:$0xff]
  %v41 = vld [vmem:[%s1 + $0x78] sm:$0xff]
  %v42 = vld [vmem:[%s1 + $0x80] sm:$0xff]
  %v43 = vld [vmem:[%s1 + $0x88] sm:$0xff]
  %v44 = vld [vmem:[%s1 + $0x90] sm:$0xff]
  %v45 = vld [vmem:[%s1 + $0x98] sm:$0xff]
  %v46 = vld [vmem:[%s1 + $0xa0] sm:$0xff]
  %v47 = vld [vmem:[%s1 + $0xa8] sm:$0xff]
  %v48 = vld [vmem:[%s1 + $0xb0] sm:$0xff]
  %v49 = vld [vmem:[%s1 + $0xb8] sm:$0xff]
  %v50 = vld [vmem:[%s1 + $0xc0] sm:$0xff]
  %v51 = vld [vmem:[%s1 + $0xc8] sm:$0xff]
  %v52 = vld [vmem:[%s1 + $0xd0] sm:$0xff]
  %v53 = vld [vmem:[%s1 + $0xd8] sm:$0xff]
  %v54 = vld [vmem:[%s1 + $0xe0] sm:$0xff]
  %v55 = vld [vmem:[%s1 + $0xe8] sm:$0xff]
  %v56 = vld [vmem:[%s1 + $0xf0] sm:$0xff]
  %v57 = vld [vmem:[%s1 + $0xf8] sm:$0xff]
  %v58 = vld [vmem:[%s1 + $0x100] sm:$0xff]
  %v59 = vld [vmem:[%s1 + $0x108] sm:$0xff]
  %v60 = vld [vmem:[%s1 + $0x110] sm:$0xff]
  %v61 = vld [vmem:[%s1 + $0x118] sm:$0xff]
  %v62 = vld [vmem:[%s1 + $0x120] sm:$0xff]
  %v63 = vld [vmem:[%s1 + $0x128] sm:$0xff]
  %v64 = vld [vmem:[%s1 + $0x130] sm:$0xff]
  %v65 = vld [vmem:[%s1 + $0x138] sm:$0xff]
  %v66 = vld [vmem:[%s1 + $0x140] sm:$0xff]
  %v67 = vld [vmem:[%s1 + $0x148] sm:$0xff]
  %v68 = vld [vmem:[%s1 + $0x150] sm:$0xff]
  %v69 = vld [vmem:[%s1 + $0x158] sm:$0xff]
  %v70 = vld [vmem:[%s1 + $0x160] sm:$0xff]
  %v71 = vld [vmem:[%s1 + $0x168] sm:$0xff]
  %v72 = vld [vmem:[%s1 + $0x170] sm:$0xff]
  %v73 = vld [vmem:[%s1 + $0x178] sm:$0xff]
  %v74 = vld [vmem:[%s1 + $0x180] sm:$0xff]
  %v75 = vld [vmem:[%s1 + $0x188] sm:$0xff]
  %v76 = vld [vmem:[%s1 + $0x190] sm:$0xff]
  %v77 = vld [vmem:[%s1 + $0x198] sm:$0xff]
  %v78 = vld [vmem:[%s1 + $0x1a0] sm:$0xff]
  %v79 = vld [vmem:[%s1 + $0x1a8] sm:$0xff]
  %v80 = vld [vmem:[%s1 + $0x1b0] sm:$0xff]
  %v81 = vld [vmem:[%s1 + $0x1b8] sm:$0xff]
  %v82 = vld [vmem:[%s1 + $0x1c0] sm:$0xff]
  %v83 = vld [vmem:[%s1 + $0x1c8] sm:$0xff]
  %v84 = vld [vmem:[%s1 + $0x1d0] sm:$0xff]
  %v85 = vld [vmem:[%s1 + $0x1d8] sm:$0xff]
  %v86 = vld [vmem:[%s1 + $0x1e0] sm:$0xff]
  %v87 = vld [vmem:[%s1 + $0x1e8] sm:$0xff]
  %v88 = vld [vmem:[%s1 + $0x1f0] sm:$0xff]
  %v89 = vld [vmem:[%s1 + $0x1f8] sm:$0xff]
  %v90 = vld [vmem:[%s1 + $0x200] sm:$0xff]
  %v91 = vld [vmem:[%s1 + $0x208] sm:$0xff]
  %v92 = vld [vmem:[%s1 + $0x210] sm:$0xff]
  %v93 = vld [vmem:[%s1 + $0x218] sm:$0xff]
  %v94 = vld [vmem:[%s1 + $0x220] sm:$0xff]
  %v95 = vld [vmem:[%s1 + $0x228] sm:$0xff]
  %v96 = vld [vmem:[%s1 + $0x230] sm:$0xff]
  %v97 = vld [vmem:[%s1 + $0x238] sm:$0xff]
  %v98 = vld [vmem:[%s1 + $0x240] sm:$0xff]
  %v99 = vld [vmem:[%s1 + $0x248] sm:$0xff]
  %v100 = vld [vmem:[%s1 + $0x250] sm:$0xff]
  %v101 = vld [vmem:[%s1 + $0x258] sm:$0xff]
  %v102 = vld [vmem:[%s1 + $0x260] sm:$0xff]
  %v103 = vld [vmem:[%s1 + $0x268] sm:$0xff]
  %v104 = vld [vmem:[%s1 + $0x270] sm:$0xff]
  %v105 = vld [vmem:[%s1 + $0x278] sm:$0xff]
  %v106 = vld [vmem:[%s1 + $0x280] sm:$0xff]
  %v107 = vld [vmem:[%s1 + $0x288] sm:$0xff]
  %v108 = vld [vmem:[%s1 + $0x290] sm:$0xff]
  %v109 = vld [vmem:[%s1 + $0x298] sm:$0xff]
  %v110 = vld [vmem:[%s1 + $0x2a0] sm:$0xff]
  %v111 = vld [vmem:[%s1 + $0x2a8] sm:$0xff]
  %v112 = vld [vmem:[%s1 + $0x2b0] sm:$0xff]
  %v113 = vld [vmem:[%s1 + $0x2b8] sm:$0xff]
  %v114 = vld [vmem:[%s1 + $0x2c0] sm:$0xff]
  %v115 = vld [vmem:[%s1 + $0x2c8] sm:$0xff]
  %v116 = vld [vmem:[%s1 + $0x2d0] sm:$0xff]
  %v117 = vld [vmem:[%s1 + $0x2d8] sm:$0xff]
  %v118 = vld [vmem:[%s1 + $0x2e0] sm:$0xff]
  %v119 = vld [vmem:[%s1 + $0x2e8] sm:$0xff]
  %v120 = vld [vmem:[%s1 + $0x2f0] sm:$0xff]
  %v121 = vld [vmem:[%s1 + $0x2f8] sm:$0xff]
  %v122 = vld [vmem:[%s1 + $0x300] sm:$0xff]
  %v123 = vld [vmem:[%s1 + $0x308] sm:$0xff]
  %v124 = vld [vmem:[%s1 + $0x310] sm:$0xff]
  %v125 = vld [vmem:[%s1 + $0x318] sm:$0xff]
  %v126 = vld [vmem:[%s1 + $0x320] sm:$0xff]
  %v127 = vld [vmem:[%s1 + $0x328] sm:$0xff]
  %v128 = vld [vmem:[%s1 + $0x330] sm:$0xff]
  %v129 = vld [vmem:[%s1 + $0x338] sm:$0xff]
  %v130 = vld [vmem:[%s1 + $0x340] sm:$0xff]
  %v131 = vld [vmem:[%s1 + $0x348] sm:$0xff]
  %v132 = vld [vmem:[%s1 + $0x350] sm:$0xff]
  %v133 = vld [vmem:[%s1 + $0x358] sm:$0xff]
  %v134 = vld [vmem:[%s1 + $0x360] sm:$0xff]
  %v135 = vld [vmem:[%s1 + $0x368] sm:$0xff]
  %v136 = vld [vmem:[%s1 + $0x370] sm:$0xff]
  %v137 = vld [vmem:[%s1 + $0x378] sm:$0xff]
  %v138 = vld [vmem:[%s1 + $0x380] sm:$0xff]
  %v139 = vld [vmem:[%s1 + $0x388] sm:$0xff]
  %v140 = vld [vmem:[%s1 + $0x390] sm:$0xff]
  %v141 = vld [vmem:[%s1 + $0x398] sm:$0xff]
  %v142 = vld [vmem:[%s1 + $0x3a0] sm:$0xff]
  %v143 = vld [vmem:[%s1 + $0x3a8] sm:$0xff]
  %v144 = vld [vmem:[%s1 + $0x3b0] sm:$0xff]
  %v145 = vld [vmem:[%s1 + $0x3b8] sm:$0xff]
  %v146 = vld [vmem:[%s1 + $0x3c0] sm:$0xff]
  %v147 = vld [vmem:[%s1 + $0x3c8] sm:$0xff]
  %v148 = vld [vmem:[%s1 + $0x3d0] sm:$0xff]
  %v149 = vld [vmem:[%s1 + $0x3d8] sm:$0xff]
  %v150 = vld [vmem:[%s1 + $0x3e0] sm:$0xff]
  %v151 = vld [vmem:[%s1 + $0x3e8] sm:$0xff]
  %v152 = vld [vmem:[%s1 + $0x3f0] sm:$0xff]
  %v153 = vld [vmem:[%s1 + $0x3f8] sm:$0xff]
  %v154 = vld [vmem:[%s1 + $0x400] sm:$0xff]
  %v155 = vld [vmem:[%s1 + $0x408] sm:$0xff]
  %v156 = vld [vmem:[%s1 + $0x410] sm:$0xff]
  %v157 = vld [vmem:[%s1 + $0x418] sm:$0xff]
  %v158 = vld [vmem:[%s1 + $0x420] sm:$0xff]
  %v159 = vld [vmem:[%s1 + $0x428] sm:$0xff]
  %v160 = vld [vmem:[%s1 + $0x430] sm:$0xff]
  %v161 = vld [vmem:[%s1 + $0x438] sm:$0xff]
  %v162 = vld [vmem:[%s1 + $0x440] sm:$0xff]
  %v163 = vld [vmem:[%s1 + $0x448] sm:$0xff]
  %v164 = vld [vmem:[%s1 + $0x450] sm:$0xff]
  %v165 = vld [vmem:[%s1 + $0x458] sm:$0xff]
  %v166 = vld [vmem:[%s1 + $0x460] sm:$0xff]
  %v167 = vld [vmem:[%s1 + $0x468] sm:$0xff]
  %v168 = vld [vmem:[%s1 + $0x470] sm:$0xff]
  %v169 = vld [vmem:[%s1 + $0x478] sm:$0xff]
  %v170 = vld [vmem:[%s1 + $0x480] sm:$0xff]
  %v171 = vld [vmem:[%s1 + $0x488] sm:$0xff]
  %v172 = vld [vmem:[%s1 + $0x490] sm:$0xff]
  %v173 = vld [vmem:[%s1 + $0x498] sm:$0xff]
  %v174 = vld [vmem:[%s1 + $0x4a0] sm:$0xff]
  %v175 = vld [vmem:[%s1 + $0x4a8] sm:$0xff]
  %v176 = vld [vmem:[%s1 + $0x4b0] sm:$0xff]
  %v177 = vld [vmem:[%s1 + $0x4b8] sm:$0xff]
  %v178 = vld [vmem:[%s1 + $0x4c0] sm:$0xff]
  %v179 = vld [vmem:[%s1 + $0x4c8] sm:$0xff]
  %v180 = vld [vmem:[%s1 + $0x4d0] sm:$0xff]
  %v181 = vld [vmem:[%s1 + $0x4d8] sm:$0xff]
  %v182 = vld [vmem:[%s1 + $0x4e0] sm:$0xff]
  %v183 = vld [vmem:[%s1 + $0x4e8] sm:$0xff]
  %v184 = vld [vmem:[%s1 + $0x4f0] sm:$0xff]
  %v185 = vld [vmem:[%s1 + $0x4f8] sm:$0xff]
  %v186 = vld [vmem:[%s1 + $0x500] sm:$0xff]
  %v187 = vld [vmem:[%s1 + $0x508] sm:$0xff]
  %v188 = vld [vmem:[%s1 + $0x510] sm:$0xff]
  %v189 = vld [vmem:[%s1 + $0x518] sm:$0xff]
  %v190 = vld [vmem:[%s1 + $0x520] sm:$0xff]
  %v191 = vld [vmem:[%s1 + $0x528] sm:$0xff]
  %v192 = vld [vmem:[%s1 + $0x530] sm:$0xff]
  %v193 = vld [vmem:[%s1 + $0x538] sm:$0xff]
  %v194 = vld [vmem:[%s1 + $0x540] sm:$0xff]
  %v195 = vld [vmem:[%s1 + $0x548] sm:$0xff]
  %v196 = vld [vmem:[%s1 + $0x550] sm:$0xff]
  %v197 = vld [vmem:[%s1 + $0x558] sm:$0xff]
  %v198 = vld [vmem:[%s1 + $0x560] sm:$0xff]
  %v199 = vld [vmem:[%s1 + $0x568] sm:$0xff]
  %v200 = vld [vmem:[%s1 + $0x570] sm:$0xff]
  %v201 = vld [vmem:[%s1 + $0x578] sm:$0xff]
  %v202 = vld [vmem:[%s1 + $0x580] sm:$0xff]
  %v203 = vld [vmem:[%s1 + $0x588] sm:$0xff]
  %v204 = vld [vmem:[%s1 + $0x590] sm:$0xff]
  %v205 = vld [vmem:[%s1 + $0x598] sm:$0xff]
  %v206 = vld [vmem:[%s1 + $0x5a0] sm:$0xff]
  %v207 = vld [vmem:[%s1 + $0x5a8] sm:$0xff]
  %v208 = vld [vmem:[%s1 + $0x5b0] sm:$0xff]
  %v209 = vld [vmem:[%s1 + $0x5b8] sm:$0xff]
  %v210 = vld [vmem:[%s1 + $0x5c0] sm:$0xff]
  %v211 = vld [vmem:[%s1 + $0x5c8] sm:$0xff]
  %v212 = vld [vmem:[%s1 + $0x5d0] sm:$0xff]
  %v213 = vld [vmem:[%s1 + $0x5d8] sm:$0xff]
  %v214 = vld [vmem:[%s1 + $0x5e0] sm:$0xff]
  %v215 = vld [vmem:[%s1 + $0x5e8] sm:$0xff]
  %v216 = vld [vmem:[%s1 + $0x5f0] sm:$0xff]
  %v217 = vld [vmem:[%s1 + $0x5f8] sm:$0xff]
  %v218 = vld [vmem:[%s1 + $0x600] sm:$0xff]
  %v219 = vld [vmem:[%s1 + $0x608] sm:$0xff]
  %v220 = vld [vmem:[%s1 + $0x610] sm:$0xff]
  %v221 = vld [vmem:[%s1 + $0x618] sm:$0xff]
  %v222 = vld [vmem:[%s1 + $0x620] sm:$0xff]
  %v223 = vld [vmem:[%s1 + $0x628] sm:$0xff]
  %v224 = vld [vmem:[%s1 + $0x630] sm:$0xff]
  %v225 = vld [vmem:[%s1 + $0x638] sm:$0xff]
  %v226 = vld [vmem:[%s1 + $0x640] sm:$0xff]
  %v227 = vld [vmem:[%s1 + $0x648] sm:$0xff]
  %v228 = vld [vmem:[%s1 + $0x650] sm:$0xff]
  %v229 = vld [vmem:[%s1 + $0x658] sm:$0xff]
  %v230 = vld [vmem:[%s1 + $0x660] sm:$0xff]
  %v231 = vld [vmem:[%s1 + $0x668] sm:$0xff]
  %v232 = vld [vmem:[%s1 + $0x670] sm:$0xff]
  %v233 = vld [vmem:[%s1 + $0x678] sm:$0xff]
  %v234 = vld [vmem:[%s1 + $0x680] sm:$0xff]
  %v235 = vld [vmem:[%s1 + $0x688] sm:$0xff]
  %v236 = vld [vmem:[%s1 + $0x690] sm:$0xff]
  %v237 = vld [vmem:[%s1 + $0x698] sm:$0xff]
  %v238 = vld [vmem:[%s1 + $0x6a0] sm:$0xff]
  %v239 = vld [vmem:[%s1 + $0x6a8] sm:$0xff]
  %v240 = vld [vmem:[%s1 + $0x6b0] sm:$0xff]
  %v241 = vld [vmem:[%s1 + $0x6b8] sm:$0xff]
  %v242 = vld [vmem:[%s1 + $0x6c0] sm:$0xff]
  %v243 = vld [vmem:[%s1 + $0x6c8] sm:$0xff]
  %v244 = vld [vmem:[%s1 + $0x6d0] sm:$0xff]
  %v245 = vld [vmem:[%s1 + $0x6d8] sm:$0xff]
  %v246 = vld [vmem:[%s1 + $0x6e0] sm:$0xff]
  %v247 = vld [vmem:[%s1 + $0x6e8] sm:$0xff]
  %v248 = vld [vmem:[%s1 + $0x6f0] sm:$0xff]
  %v249 = vld [vmem:[%s1 + $0x6f8] sm:$0xff]
  %v250 = vld [vmem:[%s1 + $0x700] sm:$0xff]
  %v251 = vld [vmem:[%s1 + $0x708] sm:$0xff]
  %v252 = vld [vmem:[%s1 + $0x710] sm:$0xff]
  %v253 = vld [vmem:[%s1 + $0x718] sm:$0xff]
  %v254 = vld [vmem:[%s1 + $0x720] sm:$0xff]
  %v255 = vld [vmem:[%s1 + $0x728] sm:$0xff]
  %v256 = vld [vmem:[%s1 + $0x730] sm:$0xff]
  %v257 = vld [vmem:[%s1 + $0x738] sm:$0xff]
  %v258 = vld [vmem:[%s1 + $0x740] sm:$0xff]
  %v259 = vld [vmem:[%s1 + $0x748] sm:$0xff]
  %v260 = vld [vmem:[%s1 + $0x750] sm:$0xff]
  %v261 = vld [vmem:[%s1 + $0x758] sm:$0xff]
  %v262 = vld [vmem:[%s1 + $0x760] sm:$0xff]
  %v263 = vld [vmem:[%s1 + $0x768] sm:$0xff]
  %v264 = vld [vmem:[%s1 + $0x770] sm:$0xff]
  %v265 = vld [vmem:[%s1 + $0x778] sm:$0xff]
  %v266 = vld [vmem:[%s1 + $0x780] sm:$0xff]
  %v267 = vld [vmem:[%s1 + $0x788] sm:$0xff]
  %v268 = vld [vmem:[%s1 + $0x790] sm:$0xff]
  %v269 = vld [vmem:[%s1 + $0x798] sm:$0xff]
  %v270 = vld [vmem:[%s1 + $0x7a0] sm:$0xff]
  %v271 = vld [vmem:[%s1 + $0x7a8] sm:$0xff]
  %v272 = vld [vmem:[%s1 + $0x7b0] sm:$0xff]
  %v273 = vld [vmem:[%s1 + $0x7b8] sm:$0xff]
  %v274 = vld [vmem:[%s1 + $0x7c0] sm:$0xff]
  %v275 = vld [vmem:[%s1 + $0x7c8] sm:$0xff]
  %v276 = vld [vmem:[%s1 + $0x7d0] sm:$0xff]
  %v277 = vld [vmem:[%s1 + $0x7d8] sm:$0xff]
  %v278 = vld [vmem:[%s1 + $0x7e0] sm:$0xff]
  %v279 = vld [vmem:[%s1 + $0x7e8] sm:$0xff]
  %v280 = vld [vmem:[%s1 + $0x7f0] sm:$0xff]
  %v281 = vld [vmem:[%s1 + $0x7f8] sm:$0xff]
  %v282 = vld [vmem:[%s1 + $0x800] sm:$0xff]
  %v283 = vld [vmem:[%s1 + $0x808] sm:$0xff]
  %v284 = vld [vmem:[%s1 + $0x810] sm:$0xff]
  %v285 = vld [vmem:[%s1 + $0x818] sm:$0xff]
  %v286 = vld [vmem:[%s1 + $0x820] sm:$0xff]
  %v287 = vld [vmem:[%s1 + $0x828] sm:$0xff]
  %v288 = vld [vmem:[%s1 + $0x830] sm:$0xff]
  %v289 = vld [vmem:[%s1 + $0x838] sm:$0xff]
  %v290 = vld [vmem:[%s1 + $0x840] sm:$0xff]
  %v291 = vld [vmem:[%s1 + $0x848] sm:$0xff]
  %v292 = vld [vmem:[%s1 + $0x850] sm:$0xff]
  %v293 = vld [vmem:[%s1 + $0x858] sm:$0xff]
  %v294 = vld [vmem:[%s1 + $0x860] sm:$0xff]
  %v295 = vld [vmem:[%s1 + $0x868] sm:$0xff]
  %v296 = vld [vmem:[%s1 + $0x870] sm:$0xff]
  %v297 = vld [vmem:[%s1 + $0x878] sm:$0xff]
  %v298 = vld [vmem:[%s1 + $0x880] sm:$0xff]
  %v299 = vld [vmem:[%s1 + $0x888] sm:$0xff]
  %v300 = vld [vmem:[%s1 + $0x890] sm:$0xff]
  %v301 = vld [vmem:[%s1 + $0x898] sm:$0xff]
  %v302 = vld [vmem:[%s1 + $0x8a0] sm:$0xff]
  %v303 = vld [vmem:[%s1 + $0x8a8] sm:$0xff]
  %v304 = vld [vmem:[%s1 + $0x8b0] sm:$0xff]
  %v305 = vld [vmem:[%s1 + $0x8b8] sm:$0xff]
  %v306 = vld [vmem:[%s1 + $0x8c0] sm:$0xff]
  %v307 = vld [vmem:[%s1 + $0x8c8] sm:$0xff]
  %v308 = vld [vmem:[%s1 + $0x8d0] sm:$0xff]
  %v309 = vld [vmem:[%s1 + $0x8d8] sm:$0xff]
  %v310 = vld [vmem:[%s1 + $0x8e0] sm:$0xff]
  %v311 = vld [vmem:[%s1 + $0x8e8] sm:$0xff]
  %v312 = vld [vmem:[%s1 + $0x8f0] sm:$0xff]
  %v313 = vld [vmem:[%s1 + $0x8f8] sm:$0xff]
  %v314 = vld [vmem:[%s2] sm:$0x3]
  %v316 = vlaneseq
  %v317 = vshrl.u32 %v316, 7
  %v318 = vsub.s32 0, %v317
  %v319 = vrot.slane %v314, %v318
  %v320 = vlaneseq
  %v321 = vshrl.u32 %v320, 7
  %v322 = vsub.s32 1, %v321
  %v323 = vrot.slane %v314, %v322
  %v335 = vunpack.c.l.b16 %v17
  %v336 = vunpack.c.h.b16 %v17
  %v337 = vunpack.c.l.b16 %v18
  %v338 = vunpack.c.h.b16 %v18
  %v339 = vunpack.c.l.b16 %v19
  %v340 = vunpack.c.h.b16 %v19
  %v341 = vunpack.c.l.b16 %v20
  %v342 = vunpack.c.h.b16 %v20
  %v343 = vunpack.c.l.b16 %v21
  %v344 = vunpack.c.h.b16 %v21
  %v345 = vunpack.c.l.b16 %v22
  %v346 = vunpack.c.h.b16 %v22
  %v347 = vunpack.c.l.b16 %v23
  %v348 = vunpack.c.h.b16 %v23
  %v349 = vunpack.c.l.b16 %v24
  %v350 = vunpack.c.h.b16 %v24
  %v351 = vunpack.c.l.b16 %v25
  %v352 = vunpack.c.h.b16 %v25
  %v353 = vpack.c.b16 %v335, %v335
  %v354 = vpack.c.b16 %v336, %v336
  %v355 = vpack.c.b16 %v337, %v337
  %v356 = vpack.c.b16 %v338, %v338
  %v357 = vpack.c.b16 %v339, %v339
  %v358 = vpack.c.b16 %v340, %v340
  %v359 = vpack.c.b16 %v341, %v341
  %v360 = vpack.c.b16 %v342, %v342
  %v361 = vpack.c.b16 %v343, %v343
  %v362 = vpack.c.b16 %v344, %v344
  %v363 = vpack.c.b16 %v345, %v345
  %v364 = vpack.c.b16 %v346, %v346
  %v365 = vpack.c.b16 %v347, %v347
  %v366 = vpack.c.b16 %v348, %v348
  %v367 = vpack.c.b16 %v349, %v349
  %v368 = vpack.c.b16 %v350, %v350
  %v369 = vpack.c.b16 %v351, %v351
  %v370 = vpack.c.b16 %v352, %v352
  %v677 = vunpack.c.l.b16 %v26
  %v678 = vunpack.c.h.b16 %v26
  %v679 = vunpack.c.l.b16 %v27
  %v680 = vunpack.c.h.b16 %v27
  %v681 = vunpack.c.l.b16 %v28
  %v682 = vunpack.c.h.b16 %v28
  %v683 = vunpack.c.l.b16 %v29
  %v684 = vunpack.c.h.b16 %v29
  %v685 = vunpack.c.l.b16 %v30
  %v686 = vunpack.c.h.b16 %v30
  %v687 = vunpack.c.l.b16 %v31
  %v688 = vunpack.c.h.b16 %v31
  %v689 = vunpack.c.l.b16 %v32
  %v690 = vunpack.c.h.b16 %v32
  %v691 = vunpack.c.l.b16 %v33
  %v692 = vunpack.c.h.b16 %v33
  %v693 = vunpack.c.l.b16 %v34
  %v694 = vunpack.c.h.b16 %v34
  %v695 = vunpack.c.l.b16 %v35
  %v696 = vunpack.c.h.b16 %v35
  %v697 = vunpack.c.l.b16 %v36
  %v698 = vunpack.c.h.b16 %v36
  %v699 = vunpack.c.l.b16 %v37
  %v700 = vunpack.c.h.b16 %v37
  %v701 = vunpack.c.l.b16 %v38
  %v702 = vunpack.c.h.b16 %v38
  %v703 = vunpack.c.l.b16 %v39
  %v704 = vunpack.c.h.b16 %v39
  %v705 = vunpack.c.l.b16 %v40
  %v706 = vunpack.c.h.b16 %v40
  %v707 = vunpack.c.l.b16 %v41
  %v708 = vunpack.c.h.b16 %v41
  %v709 = vunpack.c.l.b16 %v42
  %v710 = vunpack.c.h.b16 %v42
  %v711 = vunpack.c.l.b16 %v43
  %v712 = vunpack.c.h.b16 %v43
  %v713 = vunpack.c.l.b16 %v44
  %v714 = vunpack.c.h.b16 %v44
  %v715 = vunpack.c.l.b16 %v45
  %v716 = vunpack.c.h.b16 %v45
  %v717 = vunpack.c.l.b16 %v46
  %v718 = vunpack.c.h.b16 %v46
  %v719 = vunpack.c.l.b16 %v47
  %v720 = vunpack.c.h.b16 %v47
  %v721 = vunpack.c.l.b16 %v48
  %v722 = vunpack.c.h.b16 %v48
  %v723 = vunpack.c.l.b16 %v49
  %v724 = vunpack.c.h.b16 %v49
  %v725 = vunpack.c.l.b16 %v50
  %v726 = vunpack.c.h.b16 %v50
  %v727 = vunpack.c.l.b16 %v51
  %v728 = vunpack.c.h.b16 %v51
  %v729 = vunpack.c.l.b16 %v52
  %v730 = vunpack.c.h.b16 %v52
  %v731 = vunpack.c.l.b16 %v53
  %v732 = vunpack.c.h.b16 %v53
  %v733 = vunpack.c.l.b16 %v54
  %v734 = vunpack.c.h.b16 %v54
  %v735 = vunpack.c.l.b16 %v55
  %v736 = vunpack.c.h.b16 %v55
  %v737 = vunpack.c.l.b16 %v56
  %v738 = vunpack.c.h.b16 %v56
  %v739 = vunpack.c.l.b16 %v57
  %v740 = vunpack.c.h.b16 %v57
  %v741 = vunpack.c.l.b16 %v58
  %v742 = vunpack.c.h.b16 %v58
  %v743 = vunpack.c.l.b16 %v59
  %v744 = vunpack.c.h.b16 %v59
  %v745 = vunpack.c.l.b16 %v60
  %v746 = vunpack.c.h.b16 %v60
  %v747 = vunpack.c.l.b16 %v61
  %v748 = vunpack.c.h.b16 %v61
  %v749 = vunpack.c.l.b16 %v62
  %v750 = vunpack.c.h.b16 %v62
  %v751 = vunpack.c.l.b16 %v63
  %v752 = vunpack.c.h.b16 %v63
  %v753 = vunpack.c.l.b16 %v64
  %v754 = vunpack.c.h.b16 %v64
  %v755 = vunpack.c.l.b16 %v65
  %v756 = vunpack.c.h.b16 %v65
  %v757 = vunpack.c.l.b16 %v66
  %v758 = vunpack.c.h.b16 %v66
  %v759 = vunpack.c.l.b16 %v67
  %v760 = vunpack.c.h.b16 %v67
  %v761 = vunpack.c.l.b16 %v68
  %v762 = vunpack.c.h.b16 %v68
  %v763 = vunpack.c.l.b16 %v69
  %v764 = vunpack.c.h.b16 %v69
  %v765 = vunpack.c.l.b16 %v70
  %v766 = vunpack.c.h.b16 %v70
  %v767 = vunpack.c.l.b16 %v71
  %v768 = vunpack.c.h.b16 %v71
  %v769 = vunpack.c.l.b16 %v72
  %v770 = vunpack.c.h.b16 %v72
  %v771 = vunpack.c.l.b16 %v73
  %v772 = vunpack.c.h.b16 %v73
  %v773 = vunpack.c.l.b16 %v74
  %v774 = vunpack.c.h.b16 %v74
  %v775 = vunpack.c.l.b16 %v75
  %v776 = vunpack.c.h.b16 %v75
  %v777 = vunpack.c.l.b16 %v76
  %v778 = vunpack.c.h.b16 %v76
  %v779 = vunpack.c.l.b16 %v77
  %v780 = vunpack.c.h.b16 %v77
  %v781 = vunpack.c.l.b16 %v78
  %v782 = vunpack.c.h.b16 %v78
  %v783 = vunpack.c.l.b16 %v79
  %v784 = vunpack.c.h.b16 %v79
  %v785 = vunpack.c.l.b16 %v80
  %v786 = vunpack.c.h.b16 %v80
  %v787 = vunpack.c.l.b16 %v81
  %v788 = vunpack.c.h.b16 %v81
  %v789 = vunpack.c.l.b16 %v82
  %v790 = vunpack.c.h.b16 %v82
  %v791 = vunpack.c.l.b16 %v83
  %v792 = vunpack.c.h.b16 %v83
  %v793 = vunpack.c.l.b16 %v84
  %v794 = vunpack.c.h.b16 %v84
  %v795 = vunpack.c.l.b16 %v85
  %v796 = vunpack.c.h.b16 %v85
  %v797 = vunpack.c.l.b16 %v86
  %v798 = vunpack.c.h.b16 %v86
  %v799 = vunpack.c.l.b16 %v87
  %v800 = vunpack.c.h.b16 %v87
  %v801 = vunpack.c.l.b16 %v88
  %v802 = vunpack.c.h.b16 %v88
  %v803 = vunpack.c.l.b16 %v89
  %v804 = vunpack.c.h.b16 %v89
  %v805 = vunpack.c.l.b16 %v90
  %v806 = vunpack.c.h.b16 %v90
  %v807 = vunpack.c.l.b16 %v91
  %v808 = vunpack.c.h.b16 %v91
  %v809 = vunpack.c.l.b16 %v92
  %v810 = vunpack.c.h.b16 %v92
  %v811 = vunpack.c.l.b16 %v93
  %v812 = vunpack.c.h.b16 %v93
  %v813 = vunpack.c.l.b16 %v94
  %v814 = vunpack.c.h.b16 %v94
  %v815 = vunpack.c.l.b16 %v95
  %v816 = vunpack.c.h.b16 %v95
  %v817 = vunpack.c.l.b16 %v96
  %v818 = vunpack.c.h.b16 %v96
  %v819 = vunpack.c.l.b16 %v97
  %v820 = vunpack.c.h.b16 %v97
  %v821 = vunpack.c.l.b16 %v98
  %v822 = vunpack.c.h.b16 %v98
  %v823 = vunpack.c.l.b16 %v99
  %v824 = vunpack.c.h.b16 %v99
  %v825 = vunpack.c.l.b16 %v100
  %v826 = vunpack.c.h.b16 %v100
  %v827 = vunpack.c.l.b16 %v101
  %v828 = vunpack.c.h.b16 %v101
  %v829 = vunpack.c.l.b16 %v102
  %v830 = vunpack.c.h.b16 %v102
  %v831 = vunpack.c.l.b16 %v103
  %v832 = vunpack.c.h.b16 %v103
  %v833 = vunpack.c.l.b16 %v104
  %v834 = vunpack.c.h.b16 %v104
  %v835 = vunpack.c.l.b16 %v105
  %v836 = vunpack.c.h.b16 %v105
  %v837 = vunpack.c.l.b16 %v106
  %v838 = vunpack.c.h.b16 %v106
  %v839 = vunpack.c.l.b16 %v107
  %v840 = vunpack.c.h.b16 %v107
  %v841 = vunpack.c.l.b16 %v108
  %v842 = vunpack.c.h.b16 %v108
  %v843 = vunpack.c.l.b16 %v109
  %v844 = vunpack.c.h.b16 %v109
  %v845 = vunpack.c.l.b16 %v110
  %v846 = vunpack.c.h.b16 %v110
  %v847 = vunpack.c.l.b16 %v111
  %v848 = vunpack.c.h.b16 %v111
  %v849 = vunpack.c.l.b16 %v112
  %v850 = vunpack.c.h.b16 %v112
  %v851 = vunpack.c.l.b16 %v113
  %v852 = vunpack.c.h.b16 %v113
  %v853 = vunpack.c.l.b16 %v114
  %v854 = vunpack.c.h.b16 %v114
  %v855 = vunpack.c.l.b16 %v115
  %v856 = vunpack.c.h.b16 %v115
  %v857 = vunpack.c.l.b16 %v116
  %v858 = vunpack.c.h.b16 %v116
  %v859 = vunpack.c.l.b16 %v117
  %v860 = vunpack.c.h.b16 %v117
  %v861 = vunpack.c.l.b16 %v118
  %v862 = vunpack.c.h.b16 %v118
  %v863 = vunpack.c.l.b16 %v119
  %v864 = vunpack.c.h.b16 %v119
  %v865 = vunpack.c.l.b16 %v120
  %v866 = vunpack.c.h.b16 %v120
  %v867 = vunpack.c.l.b16 %v121
  %v868 = vunpack.c.h.b16 %v121
  %v869 = vunpack.c.l.b16 %v122
  %v870 = vunpack.c.h.b16 %v122
  %v871 = vunpack.c.l.b16 %v123
  %v872 = vunpack.c.h.b16 %v123
  %v873 = vunpack.c.l.b16 %v124
  %v874 = vunpack.c.h.b16 %v124
  %v875 = vunpack.c.l.b16 %v125
  %v876 = vunpack.c.h.b16 %v125
  %v877 = vunpack.c.l.b16 %v126
  %v878 = vunpack.c.h.b16 %v126
  %v879 = vunpack.c.l.b16 %v127
  %v880 = vunpack.c.h.b16 %v127
  %v881 = vunpack.c.l.b16 %v128
  %v882 = vunpack.c.h.b16 %v128
  %v883 = vunpack.c.l.b16 %v129
  %v884 = vunpack.c.h.b16 %v129
  %v885 = vunpack.c.l.b16 %v130
  %v886 = vunpack.c.h.b16 %v130
  %v887 = vunpack.c.l.b16 %v131
  %v888 = vunpack.c.h.b16 %v131
  %v889 = vunpack.c.l.b16 %v132
  %v890 = vunpack.c.h.b16 %v132
  %v891 = vunpack.c.l.b16 %v133
  %v892 = vunpack.c.h.b16 %v133
  %v893 = vunpack.c.l.b16 %v134
  %v894 = vunpack.c.h.b16 %v134
  %v895 = vunpack.c.l.b16 %v135
  %v896 = vunpack.c.h.b16 %v135
  %v897 = vunpack.c.l.b16 %v136
  %v898 = vunpack.c.h.b16 %v136
  %v899 = vunpack.c.l.b16 %v137
  %v900 = vunpack.c.h.b16 %v137
  %v901 = vunpack.c.l.b16 %v138
  %v902 = vunpack.c.h.b16 %v138
  %v903 = vunpack.c.l.b16 %v139
  %v904 = vunpack.c.h.b16 %v139
  %v905 = vunpack.c.l.b16 %v140
  %v906 = vunpack.c.h.b16 %v140
  %v907 = vunpack.c.l.b16 %v141
  %v908 = vunpack.c.h.b16 %v141
  %v909 = vunpack.c.l.b16 %v142
  %v910 = vunpack.c.h.b16 %v142
  %v911 = vunpack.c.l.b16 %v143
  %v912 = vunpack.c.h.b16 %v143
  %v913 = vunpack.c.l.b16 %v144
  %v914 = vunpack.c.h.b16 %v144
  %v915 = vunpack.c.l.b16 %v145
  %v916 = vunpack.c.h.b16 %v145
  %v917 = vunpack.c.l.b16 %v146
  %v918 = vunpack.c.h.b16 %v146
  %v919 = vunpack.c.l.b16 %v147
  %v920 = vunpack.c.h.b16 %v147
  %v921 = vunpack.c.l.b16 %v148
  %v922 = vunpack.c.h.b16 %v148
  %v923 = vunpack.c.l.b16 %v149
  %v924 = vunpack.c.h.b16 %v149
  %v925 = vunpack.c.l.b16 %v150
  %v926 = vunpack.c.h.b16 %v150
  %v927 = vunpack.c.l.b16 %v151
  %v928 = vunpack.c.h.b16 %v151
  %v929 = vunpack.c.l.b16 %v152
  %v930 = vunpack.c.h.b16 %v152
  %v931 = vunpack.c.l.b16 %v153
  %v932 = vunpack.c.h.b16 %v153
  %v933 = vunpack.c.l.b16 %v154
  %v934 = vunpack.c.h.b16 %v154
  %v935 = vunpack.c.l.b16 %v155
  %v936 = vunpack.c.h.b16 %v155
  %v937 = vunpack.c.l.b16 %v156
  %v938 = vunpack.c.h.b16 %v156
  %v939 = vunpack.c.l.b16 %v157
  %v940 = vunpack.c.h.b16 %v157
  %v941 = vunpack.c.l.b16 %v158
  %v942 = vunpack.c.h.b16 %v158
  %v943 = vunpack.c.l.b16 %v159
  %v944 = vunpack.c.h.b16 %v159
  %v945 = vunpack.c.l.b16 %v160
  %v946 = vunpack.c.h.b16 %v160
  %v947 = vunpack.c.l.b16 %v161
  %v948 = vunpack.c.h.b16 %v161
  %v949 = vunpack.c.l.b16 %v162
  %v950 = vunpack.c.h.b16 %v162
  %v951 = vunpack.c.l.b16 %v163
  %v952 = vunpack.c.h.b16 %v163
  %v953 = vunpack.c.l.b16 %v164
  %v954 = vunpack.c.h.b16 %v164
  %v955 = vunpack.c.l.b16 %v165
  %v956 = vunpack.c.h.b16 %v165
  %v957 = vunpack.c.l.b16 %v166
  %v958 = vunpack.c.h.b16 %v166
  %v959 = vunpack.c.l.b16 %v167
  %v960 = vunpack.c.h.b16 %v167
  %v961 = vunpack.c.l.b16 %v168
  %v962 = vunpack.c.h.b16 %v168
  %v963 = vunpack.c.l.b16 %v169
  %v964 = vunpack.c.h.b16 %v169
  %v965 = vunpack.c.l.b16 %v170
  %v966 = vunpack.c.h.b16 %v170
  %v967 = vunpack.c.l.b16 %v171
  %v968 = vunpack.c.h.b16 %v171
  %v969 = vunpack.c.l.b16 %v172
  %v970 = vunpack.c.h.b16 %v172
  %v971 = vunpack.c.l.b16 %v173
  %v972 = vunpack.c.h.b16 %v173
  %v973 = vunpack.c.l.b16 %v174
  %v974 = vunpack.c.h.b16 %v174
  %v975 = vunpack.c.l.b16 %v175
  %v976 = vunpack.c.h.b16 %v175
  %v977 = vunpack.c.l.b16 %v176
  %v978 = vunpack.c.h.b16 %v176
  %v979 = vunpack.c.l.b16 %v177
  %v980 = vunpack.c.h.b16 %v177
  %v981 = vunpack.c.l.b16 %v178
  %v982 = vunpack.c.h.b16 %v178
  %v983 = vunpack.c.l.b16 %v179
  %v984 = vunpack.c.h.b16 %v179
  %v985 = vunpack.c.l.b16 %v180
  %v986 = vunpack.c.h.b16 %v180
  %v987 = vunpack.c.l.b16 %v181
  %v988 = vunpack.c.h.b16 %v181
  %v989 = vunpack.c.l.b16 %v182
  %v990 = vunpack.c.h.b16 %v182
  %v991 = vunpack.c.l.b16 %v183
  %v992 = vunpack.c.h.b16 %v183
  %v993 = vunpack.c.l.b16 %v184
  %v994 = vunpack.c.h.b16 %v184
  %v995 = vunpack.c.l.b16 %v185
  %v996 = vunpack.c.h.b16 %v185
  %v997 = vunpack.c.l.b16 %v186
  %v998 = vunpack.c.h.b16 %v186
  %v999 = vunpack.c.l.b16 %v187
  %v1000 = vunpack.c.h.b16 %v187
  %v1001 = vunpack.c.l.b16 %v188
  %v1002 = vunpack.c.h.b16 %v188
  %v1003 = vunpack.c.l.b16 %v189
  %v1004 = vunpack.c.h.b16 %v189
  %v1005 = vunpack.c.l.b16 %v190
  %v1006 = vunpack.c.h.b16 %v190
  %v1007 = vunpack.c.l.b16 %v191
  %v1008 = vunpack.c.h.b16 %v191
  %v1009 = vunpack.c.l.b16 %v192
  %v1010 = vunpack.c.h.b16 %v192
  %v1011 = vunpack.c.l.b16 %v193
  %v1012 = vunpack.c.h.b16 %v193
  %v1013 = vunpack.c.l.b16 %v194
  %v1014 = vunpack.c.h.b16 %v194
  %v1015 = vunpack.c.l.b16 %v195
  %v1016 = vunpack.c.h.b16 %v195
  %v1017 = vunpack.c.l.b16 %v196
  %v1018 = vunpack.c.h.b16 %v196
  %v1019 = vunpack.c.l.b16 %v197
  %v1020 = vunpack.c.h.b16 %v197
  %v1021 = vunpack.c.l.b16 %v198
  %v1022 = vunpack.c.h.b16 %v198
  %v1023 = vunpack.c.l.b16 %v199
  %v1024 = vunpack.c.h.b16 %v199
  %v1025 = vunpack.c.l.b16 %v200
  %v1026 = vunpack.c.h.b16 %v200
  %v1027 = vunpack.c.l.b16 %v201
  %v1028 = vunpack.c.h.b16 %v201
  %v1029 = vunpack.c.l.b16 %v202
  %v1030 = vunpack.c.h.b16 %v202
  %v1031 = vunpack.c.l.b16 %v203
  %v1032 = vunpack.c.h.b16 %v203
  %v1033 = vunpack.c.l.b16 %v204
  %v1034 = vunpack.c.h.b16 %v204
  %v1035 = vunpack.c.l.b16 %v205
  %v1036 = vunpack.c.h.b16 %v205
  %v1037 = vunpack.c.l.b16 %v206
  %v1038 = vunpack.c.h.b16 %v206
  %v1039 = vunpack.c.l.b16 %v207
  %v1040 = vunpack.c.h.b16 %v207
  %v1041 = vunpack.c.l.b16 %v208
  %v1042 = vunpack.c.h.b16 %v208
  %v1043 = vunpack.c.l.b16 %v209
  %v1044 = vunpack.c.h.b16 %v209
  %v1045 = vunpack.c.l.b16 %v210
  %v1046 = vunpack.c.h.b16 %v210
  %v1047 = vunpack.c.l.b16 %v211
  %v1048 = vunpack.c.h.b16 %v211
  %v1049 = vunpack.c.l.b16 %v212
  %v1050 = vunpack.c.h.b16 %v212
  %v1051 = vunpack.c.l.b16 %v213
  %v1052 = vunpack.c.h.b16 %v213
  %v1053 = vunpack.c.l.b16 %v214
  %v1054 = vunpack.c.h.b16 %v214
  %v1055 = vunpack.c.l.b16 %v215
  %v1056 = vunpack.c.h.b16 %v215
  %v1057 = vunpack.c.l.b16 %v216
  %v1058 = vunpack.c.h.b16 %v216
  %v1059 = vunpack.c.l.b16 %v217
  %v1060 = vunpack.c.h.b16 %v217
  %v1061 = vunpack.c.l.b16 %v218
  %v1062 = vunpack.c.h.b16 %v218
  %v1063 = vunpack.c.l.b16 %v219
  %v1064 = vunpack.c.h.b16 %v219
  %v1065 = vunpack.c.l.b16 %v220
  %v1066 = vunpack.c.h.b16 %v220
  %v1067 = vunpack.c.l.b16 %v221
  %v1068 = vunpack.c.h.b16 %v221
  %v1069 = vunpack.c.l.b16 %v222
  %v1070 = vunpack.c.h.b16 %v222
  %v1071 = vunpack.c.l.b16 %v223
  %v1072 = vunpack.c.h.b16 %v223
  %v1073 = vunpack.c.l.b16 %v224
  %v1074 = vunpack.c.h.b16 %v224
  %v1075 = vunpack.c.l.b16 %v225
  %v1076 = vunpack.c.h.b16 %v225
  %v1077 = vunpack.c.l.b16 %v226
  %v1078 = vunpack.c.h.b16 %v226
  %v1079 = vunpack.c.l.b16 %v227
  %v1080 = vunpack.c.h.b16 %v227
  %v1081 = vunpack.c.l.b16 %v228
  %v1082 = vunpack.c.h.b16 %v228
  %v1083 = vunpack.c.l.b16 %v229
  %v1084 = vunpack.c.h.b16 %v229
  %v1085 = vunpack.c.l.b16 %v230
  %v1086 = vunpack.c.h.b16 %v230
  %v1087 = vunpack.c.l.b16 %v231
  %v1088 = vunpack.c.h.b16 %v231
  %v1089 = vunpack.c.l.b16 %v232
  %v1090 = vunpack.c.h.b16 %v232
  %v1091 = vunpack.c.l.b16 %v233
  %v1092 = vunpack.c.h.b16 %v233
  %v1093 = vunpack.c.l.b16 %v234
  %v1094 = vunpack.c.h.b16 %v234
  %v1095 = vunpack.c.l.b16 %v235
  %v1096 = vunpack.c.h.b16 %v235
  %v1097 = vunpack.c.l.b16 %v236
  %v1098 = vunpack.c.h.b16 %v236
  %v1099 = vunpack.c.l.b16 %v237
  %v1100 = vunpack.c.h.b16 %v237
  %v1101 = vunpack.c.l.b16 %v238
  %v1102 = vunpack.c.h.b16 %v238
  %v1103 = vunpack.c.l.b16 %v239
  %v1104 = vunpack.c.h.b16 %v239
  %v1105 = vunpack.c.l.b16 %v240
  %v1106 = vunpack.c.h.b16 %v240
  %v1107 = vunpack.c.l.b16 %v241
  %v1108 = vunpack.c.h.b16 %v241
  %v1109 = vunpack.c.l.b16 %v242
  %v1110 = vunpack.c.h.b16 %v242
  %v1111 = vunpack.c.l.b16 %v243
  %v1112 = vunpack.c.h.b16 %v243
  %v1113 = vunpack.c.l.b16 %v244
  %v1114 = vunpack.c.h.b16 %v244
  %v1115 = vunpack.c.l.b16 %v245
  %v1116 = vunpack.c.h.b16 %v245
  %v1117 = vunpack.c.l.b16 %v246
  %v1118 = vunpack.c.h.b16 %v246
  %v1119 = vunpack.c.l.b16 %v247
  %v1120 = vunpack.c.h.b16 %v247
  %v1121 = vunpack.c.l.b16 %v248
  %v1122 = vunpack.c.h.b16 %v248
  %v1123 = vunpack.c.l.b16 %v249
  %v1124 = vunpack.c.h.b16 %v249
  %v1125 = vunpack.c.l.b16 %v250
  %v1126 = vunpack.c.h.b16 %v250
  %v1127 = vunpack.c.l.b16 %v251
  %v1128 = vunpack.c.h.b16 %v251
  %v1129 = vunpack.c.l.b16 %v252
  %v1130 = vunpack.c.h.b16 %v252
  %v1131 = vunpack.c.l.b16 %v253
  %v1132 = vunpack.c.h.b16 %v253
  %v1133 = vunpack.c.l.b16 %v254
  %v1134 = vunpack.c.h.b16 %v254
  %v1135 = vunpack.c.l.b16 %v255
  %v1136 = vunpack.c.h.b16 %v255
  %v1137 = vunpack.c.l.b16 %v256
  %v1138 = vunpack.c.h.b16 %v256
  %v1139 = vunpack.c.l.b16 %v257
  %v1140 = vunpack.c.h.b16 %v257
  %v1141 = vunpack.c.l.b16 %v258
  %v1142 = vunpack.c.h.b16 %v258
  %v1143 = vunpack.c.l.b16 %v259
  %v1144 = vunpack.c.h.b16 %v259
  %v1145 = vunpack.c.l.b16 %v260
  %v1146 = vunpack.c.h.b16 %v260
  %v1147 = vunpack.c.l.b16 %v261
  %v1148 = vunpack.c.h.b16 %v261
  %v1149 = vunpack.c.l.b16 %v262
  %v1150 = vunpack.c.h.b16 %v262
  %v1151 = vunpack.c.l.b16 %v263
  %v1152 = vunpack.c.h.b16 %v263
  %v1153 = vunpack.c.l.b16 %v264
  %v1154 = vunpack.c.h.b16 %v264
  %v1155 = vunpack.c.l.b16 %v265
  %v1156 = vunpack.c.h.b16 %v265
  %v1157 = vunpack.c.l.b16 %v266
  %v1158 = vunpack.c.h.b16 %v266
  %v1159 = vunpack.c.l.b16 %v267
  %v1160 = vunpack.c.h.b16 %v267
  %v1161 = vunpack.c.l.b16 %v268
  %v1162 = vunpack.c.h.b16 %v268
  %v1163 = vunpack.c.l.b16 %v269
  %v1164 = vunpack.c.h.b16 %v269
  %v1165 = vunpack.c.l.b16 %v270
  %v1166 = vunpack.c.h.b16 %v270
  %v1167 = vunpack.c.l.b16 %v271
  %v1168 = vunpack.c.h.b16 %v271
  %v1169 = vunpack.c.l.b16 %v272
  %v1170 = vunpack.c.h.b16 %v272
  %v1171 = vunpack.c.l.b16 %v273
  %v1172 = vunpack.c.h.b16 %v273
  %v1173 = vunpack.c.l.b16 %v274
  %v1174 = vunpack.c.h.b16 %v274
  %v1175 = vunpack.c.l.b16 %v275
  %v1176 = vunpack.c.h.b16 %v275
  %v1177 = vunpack.c.l.b16 %v276
  %v1178 = vunpack.c.h.b16 %v276
  %v1179 = vunpack.c.l.b16 %v277
  %v1180 = vunpack.c.h.b16 %v277
  %v1181 = vunpack.c.l.b16 %v278
  %v1182 = vunpack.c.h.b16 %v278
  %v1183 = vunpack.c.l.b16 %v279
  %v1184 = vunpack.c.h.b16 %v279
  %v1185 = vunpack.c.l.b16 %v280
  %v1186 = vunpack.c.h.b16 %v280
  %v1187 = vunpack.c.l.b16 %v281
  %v1188 = vunpack.c.h.b16 %v281
  %v1189 = vunpack.c.l.b16 %v282
  %v1190 = vunpack.c.h.b16 %v282
  %v1191 = vunpack.c.l.b16 %v283
  %v1192 = vunpack.c.h.b16 %v283
  %v1193 = vunpack.c.l.b16 %v284
  %v1194 = vunpack.c.h.b16 %v284
  %v1195 = vunpack.c.l.b16 %v285
  %v1196 = vunpack.c.h.b16 %v285
  %v1197 = vunpack.c.l.b16 %v286
  %v1198 = vunpack.c.h.b16 %v286
  %v1199 = vunpack.c.l.b16 %v287
  %v1200 = vunpack.c.h.b16 %v287
  %v1201 = vunpack.c.l.b16 %v288
  %v1202 = vunpack.c.h.b16 %v288
  %v1203 = vunpack.c.l.b16 %v289
  %v1204 = vunpack.c.h.b16 %v289
  %v1205 = vunpack.c.l.b16 %v290
  %v1206 = vunpack.c.h.b16 %v290
  %v1207 = vunpack.c.l.b16 %v291
  %v1208 = vunpack.c.h.b16 %v291
  %v1209 = vunpack.c.l.b16 %v292
  %v1210 = vunpack.c.h.b16 %v292
  %v1211 = vunpack.c.l.b16 %v293
  %v1212 = vunpack.c.h.b16 %v293
  %v1213 = vunpack.c.l.b16 %v294
  %v1214 = vunpack.c.h.b16 %v294
  %v1215 = vunpack.c.l.b16 %v295
  %v1216 = vunpack.c.h.b16 %v295
  %v1217 = vunpack.c.l.b16 %v296
  %v1218 = vunpack.c.h.b16 %v296
  %v1219 = vunpack.c.l.b16 %v297
  %v1220 = vunpack.c.h.b16 %v297
  %v1221 = vunpack.c.l.b16 %v298
  %v1222 = vunpack.c.h.b16 %v298
  %v1223 = vunpack.c.l.b16 %v299
  %v1224 = vunpack.c.h.b16 %v299
  %v1225 = vunpack.c.l.b16 %v300
  %v1226 = vunpack.c.h.b16 %v300
  %v1227 = vunpack.c.l.b16 %v301
  %v1228 = vunpack.c.h.b16 %v301
  %v1229 = vunpack.c.l.b16 %v302
  %v1230 = vunpack.c.h.b16 %v302
  %v1231 = vunpack.c.l.b16 %v303
  %v1232 = vunpack.c.h.b16 %v303
  %v1233 = vunpack.c.l.b16 %v304
  %v1234 = vunpack.c.h.b16 %v304
  %v1235 = vunpack.c.l.b16 %v305
  %v1236 = vunpack.c.h.b16 %v305
  %v1237 = vunpack.c.l.b16 %v306
  %v1238 = vunpack.c.h.b16 %v306
  %v1239 = vunpack.c.l.b16 %v307
  %v1240 = vunpack.c.h.b16 %v307
  %v1241 = vunpack.c.l.b16 %v308
  %v1242 = vunpack.c.h.b16 %v308
  %v1243 = vunpack.c.l.b16 %v309
  %v1244 = vunpack.c.h.b16 %v309
  %v1245 = vunpack.c.l.b16 %v310
  %v1246 = vunpack.c.h.b16 %v310
  %v1247 = vunpack.c.l.b16 %v311
  %v1248 = vunpack.c.h.b16 %v311
  %v1249 = vunpack.c.l.b16 %v312
  %v1250 = vunpack.c.h.b16 %v312
  %v1251 = vunpack.c.l.b16 %v313
  %v1252 = vunpack.c.h.b16 %v313
  %v1253 = vpack.c.b16 %v679, %v677
  %v1254 = vpack.c.b16 %v680, %v678
  %v1255 = vpack.c.b16 %v683, %v681
  %v1256 = vpack.c.b16 %v684, %v682
  %v1257 = vpack.c.b16 %v687, %v685
  %v1258 = vpack.c.b16 %v688, %v686
  %v1259 = vpack.c.b16 %v691, %v689
  %v1260 = vpack.c.b16 %v692, %v690
  %v1261 = vpack.c.b16 %v695, %v693
  %v1262 = vpack.c.b16 %v696, %v694
  %v1263 = vpack.c.b16 %v699, %v697
  %v1264 = vpack.c.b16 %v700, %v698
  %v1265 = vpack.c.b16 %v703, %v701
  %v1266 = vpack.c.b16 %v704, %v702
  %v1267 = vpack.c.b16 %v707, %v705
  %v1268 = vpack.c.b16 %v708, %v706
  %v1269 = vpack.c.b16 %v711, %v709
  %v1270 = vpack.c.b16 %v712, %v710
  %v1271 = vpack.c.b16 %v715, %v713
  %v1272 = vpack.c.b16 %v716, %v714
  %v1273 = vpack.c.b16 %v719, %v717
  %v1274 = vpack.c.b16 %v720, %v718
  %v1275 = vpack.c.b16 %v723, %v721
  %v1276 = vpack.c.b16 %v724, %v722
  %v1277 = vpack.c.b16 %v727, %v725
  %v1278 = vpack.c.b16 %v728, %v726
  %v1279 = vpack.c.b16 %v731, %v729
  %v1280 = vpack.c.b16 %v732, %v730
  %v1281 = vpack.c.b16 %v735, %v733
  %v1282 = vpack.c.b16 %v736, %v734
  %v1283 = vpack.c.b16 %v739, %v737
  %v1284 = vpack.c.b16 %v740, %v738
  %v1285 = vpack.c.b16 %v743, %v741
  %v1286 = vpack.c.b16 %v744, %v742
  %v1287 = vpack.c.b16 %v747, %v745
  %v1288 = vpack.c.b16 %v748, %v746
  %v1289 = vpack.c.b16 %v751, %v749
  %v1290 = vpack.c.b16 %v752, %v750
  %v1291 = vpack.c.b16 %v755, %v753
  %v1292 = vpack.c.b16 %v756, %v754
  %v1293 = vpack.c.b16 %v759, %v757
  %v1294 = vpack.c.b16 %v760, %v758
  %v1295 = vpack.c.b16 %v763, %v761
  %v1296 = vpack.c.b16 %v764, %v762
  %v1297 = vpack.c.b16 %v767, %v765
  %v1298 = vpack.c.b16 %v768, %v766
  %v1299 = vpack.c.b16 %v771, %v769
  %v1300 = vpack.c.b16 %v772, %v770
  %v1301 = vpack.c.b16 %v775, %v773
  %v1302 = vpack.c.b16 %v776, %v774
  %v1303 = vpack.c.b16 %v779, %v777
  %v1304 = vpack.c.b16 %v780, %v778
  %v1305 = vpack.c.b16 %v783, %v781
  %v1306 = vpack.c.b16 %v784, %v782
  %v1307 = vpack.c.b16 %v787, %v785
  %v1308 = vpack.c.b16 %v788, %v786
  %v1309 = vpack.c.b16 %v791, %v789
  %v1310 = vpack.c.b16 %v792, %v790
  %v1311 = vpack.c.b16 %v795, %v793
  %v1312 = vpack.c.b16 %v796, %v794
  %v1313 = vpack.c.b16 %v799, %v797
  %v1314 = vpack.c.b16 %v800, %v798
  %v1315 = vpack.c.b16 %v803, %v801
  %v1316 = vpack.c.b16 %v804, %v802
  %v1317 = vpack.c.b16 %v807, %v805
  %v1318 = vpack.c.b16 %v808, %v806
  %v1319 = vpack.c.b16 %v811, %v809
  %v1320 = vpack.c.b16 %v812, %v810
  %v1321 = vpack.c.b16 %v815, %v813
  %v1322 = vpack.c.b16 %v816, %v814
  %v1323 = vpack.c.b16 %v819, %v817
  %v1324 = vpack.c.b16 %v820, %v818
  %v1325 = vpack.c.b16 %v823, %v821
  %v1326 = vpack.c.b16 %v824, %v822
  %v1327 = vpack.c.b16 %v827, %v825
  %v1328 = vpack.c.b16 %v828, %v826
  %v1329 = vpack.c.b16 %v831, %v829
  %v1330 = vpack.c.b16 %v832, %v830
  %v1331 = vpack.c.b16 %v835, %v833
  %v1332 = vpack.c.b16 %v836, %v834
  %v1333 = vpack.c.b16 %v839, %v837
  %v1334 = vpack.c.b16 %v840, %v838
  %v1335 = vpack.c.b16 %v843, %v841
  %v1336 = vpack.c.b16 %v844, %v842
  %v1337 = vpack.c.b16 %v847, %v845
  %v1338 = vpack.c.b16 %v848, %v846
  %v1339 = vpack.c.b16 %v851, %v849
  %v1340 = vpack.c.b16 %v852, %v850
  %v1341 = vpack.c.b16 %v855, %v853
  %v1342 = vpack.c.b16 %v856, %v854
  %v1343 = vpack.c.b16 %v859, %v857
  %v1344 = vpack.c.b16 %v860, %v858
  %v1345 = vpack.c.b16 %v863, %v861
  %v1346 = vpack.c.b16 %v864, %v862
  %v1347 = vpack.c.b16 %v867, %v865
  %v1348 = vpack.c.b16 %v868, %v866
  %v1349 = vpack.c.b16 %v871, %v869
  %v1350 = vpack.c.b16 %v872, %v870
  %v1351 = vpack.c.b16 %v875, %v873
  %v1352 = vpack.c.b16 %v876, %v874
  %v1353 = vpack.c.b16 %v879, %v877
  %v1354 = vpack.c.b16 %v880, %v878
  %v1355 = vpack.c.b16 %v883, %v881
  %v1356 = vpack.c.b16 %v884, %v882
  %v1357 = vpack.c.b16 %v887, %v885
  %v1358 = vpack.c.b16 %v888, %v886
  %v1359 = vpack.c.b16 %v891, %v889
  %v1360 = vpack.c.b16 %v892, %v890
  %v1361 = vpack.c.b16 %v895, %v893
  %v1362 = vpack.c.b16 %v896, %v894
  %v1363 = vpack.c.b16 %v899, %v897
  %v1364 = vpack.c.b16 %v900, %v898
  %v1365 = vpack.c.b16 %v903, %v901
  %v1366 = vpack.c.b16 %v904, %v902
  %v1367 = vpack.c.b16 %v907, %v905
  %v1368 = vpack.c.b16 %v908, %v906
  %v1369 = vpack.c.b16 %v911, %v909
  %v1370 = vpack.c.b16 %v912, %v910
  %v1371 = vpack.c.b16 %v915, %v913
  %v1372 = vpack.c.b16 %v916, %v914
  %v1373 = vpack.c.b16 %v919, %v917
  %v1374 = vpack.c.b16 %v920, %v918
  %v1375 = vpack.c.b16 %v923, %v921
  %v1376 = vpack.c.b16 %v924, %v922
  %v1377 = vpack.c.b16 %v927, %v925
  %v1378 = vpack.c.b16 %v928, %v926
  %v1379 = vpack.c.b16 %v931, %v929
  %v1380 = vpack.c.b16 %v932, %v930
  %v1381 = vpack.c.b16 %v935, %v933
  %v1382 = vpack.c.b16 %v936, %v934
  %v1383 = vpack.c.b16 %v939, %v937
  %v1384 = vpack.c.b16 %v940, %v938
  %v1385 = vpack.c.b16 %v943, %v941
  %v1386 = vpack.c.b16 %v944, %v942
  %v1387 = vpack.c.b16 %v947, %v945
  %v1388 = vpack.c.b16 %v948, %v946
  %v1389 = vpack.c.b16 %v951, %v949
  %v1390 = vpack.c.b16 %v952, %v950
  %v1391 = vpack.c.b16 %v955, %v953
  %v1392 = vpack.c.b16 %v956, %v954
  %v1393 = vpack.c.b16 %v959, %v957
  %v1394 = vpack.c.b16 %v960, %v958
  %v1395 = vpack.c.b16 %v963, %v961
  %v1396 = vpack.c.b16 %v964, %v962
  %v1397 = vpack.c.b16 %v967, %v965
  %v1398 = vpack.c.b16 %v968, %v966
  %v1399 = vpack.c.b16 %v971, %v969
  %v1400 = vpack.c.b16 %v972, %v970
  %v1401 = vpack.c.b16 %v975, %v973
  %v1402 = vpack.c.b16 %v976, %v974
  %v1403 = vpack.c.b16 %v979, %v977
  %v1404 = vpack.c.b16 %v980, %v978
  %v1405 = vpack.c.b16 %v983, %v981
  %v1406 = vpack.c.b16 %v984, %v982
  %v1407 = vpack.c.b16 %v987, %v985
  %v1408 = vpack.c.b16 %v988, %v986
  %v1409 = vpack.c.b16 %v991, %v989
  %v1410 = vpack.c.b16 %v992, %v990
  %v1411 = vpack.c.b16 %v995, %v993
  %v1412 = vpack.c.b16 %v996, %v994
  %v1413 = vpack.c.b16 %v999, %v997
  %v1414 = vpack.c.b16 %v1000, %v998
  %v1415 = vpack.c.b16 %v1003, %v1001
  %v1416 = vpack.c.b16 %v1004, %v1002
  %v1417 = vpack.c.b16 %v1007, %v1005
  %v1418 = vpack.c.b16 %v1008, %v1006
  %v1419 = vpack.c.b16 %v1011, %v1009
  %v1420 = vpack.c.b16 %v1012, %v1010
  %v1421 = vpack.c.b16 %v1015, %v1013
  %v1422 = vpack.c.b16 %v1016, %v1014
  %v1423 = vpack.c.b16 %v1019, %v1017
  %v1424 = vpack.c.b16 %v1020, %v1018
  %v1425 = vpack.c.b16 %v1023, %v1021
  %v1426 = vpack.c.b16 %v1024, %v1022
  %v1427 = vpack.c.b16 %v1027, %v1025
  %v1428 = vpack.c.b16 %v1028, %v1026
  %v1429 = vpack.c.b16 %v1031, %v1029
  %v1430 = vpack.c.b16 %v1032, %v1030
  %v1431 = vpack.c.b16 %v1035, %v1033
  %v1432 = vpack.c.b16 %v1036, %v1034
  %v1433 = vpack.c.b16 %v1039, %v1037
  %v1434 = vpack.c.b16 %v1040, %v1038
  %v1435 = vpack.c.b16 %v1043, %v1041
  %v1436 = vpack.c.b16 %v1044, %v1042
  %v1437 = vpack.c.b16 %v1047, %v1045
  %v1438 = vpack.c.b16 %v1048, %v1046
  %v1439 = vpack.c.b16 %v1051, %v1049
  %v1440 = vpack.c.b16 %v1052, %v1050
  %v1441 = vpack.c.b16 %v1055, %v1053
  %v1442 = vpack.c.b16 %v1056, %v1054
  %v1443 = vpack.c.b16 %v1059, %v1057
  %v1444 = vpack.c.b16 %v1060, %v1058
  %v1445 = vpack.c.b16 %v1063, %v1061
  %v1446 = vpack.c.b16 %v1064, %v1062
  %v1447 = vpack.c.b16 %v1067, %v1065
  %v1448 = vpack.c.b16 %v1068, %v1066
  %v1449 = vpack.c.b16 %v1071, %v1069
  %v1450 = vpack.c.b16 %v1072, %v1070
  %v1451 = vpack.c.b16 %v1075, %v1073
  %v1452 = vpack.c.b16 %v1076, %v1074
  %v1453 = vpack.c.b16 %v1079, %v1077
  %v1454 = vpack.c.b16 %v1080, %v1078
  %v1455 = vpack.c.b16 %v1083, %v1081
  %v1456 = vpack.c.b16 %v1084, %v1082
  %v1457 = vpack.c.b16 %v1087, %v1085
  %v1458 = vpack.c.b16 %v1088, %v1086
  %v1459 = vpack.c.b16 %v1091, %v1089
  %v1460 = vpack.c.b16 %v1092, %v1090
  %v1461 = vpack.c.b16 %v1095, %v1093
  %v1462 = vpack.c.b16 %v1096, %v1094
  %v1463 = vpack.c.b16 %v1099, %v1097
  %v1464 = vpack.c.b16 %v1100, %v1098
  %v1465 = vpack.c.b16 %v1103, %v1101
  %v1466 = vpack.c.b16 %v1104, %v1102
  %v1467 = vpack.c.b16 %v1107, %v1105
  %v1468 = vpack.c.b16 %v1108, %v1106
  %v1469 = vpack.c.b16 %v1111, %v1109
  %v1470 = vpack.c.b16 %v1112, %v1110
  %v1471 = vpack.c.b16 %v1115, %v1113
  %v1472 = vpack.c.b16 %v1116, %v1114
  %v1473 = vpack.c.b16 %v1119, %v1117
  %v1474 = vpack.c.b16 %v1120, %v1118
  %v1475 = vpack.c.b16 %v1123, %v1121
  %v1476 = vpack.c.b16 %v1124, %v1122
  %v1477 = vpack.c.b16 %v1127, %v1125
  %v1478 = vpack.c.b16 %v1128, %v1126
  %v1479 = vpack.c.b16 %v1131, %v1129
  %v1480 = vpack.c.b16 %v1132, %v1130
  %v1481 = vpack.c.b16 %v1135, %v1133
  %v1482 = vpack.c.b16 %v1136, %v1134
  %v1483 = vpack.c.b16 %v1139, %v1137
  %v1484 = vpack.c.b16 %v1140, %v1138
  %v1485 = vpack.c.b16 %v1143, %v1141
  %v1486 = vpack.c.b16 %v1144, %v1142
  %v1487 = vpack.c.b16 %v1147, %v1145
  %v1488 = vpack.c.b16 %v1148, %v1146
  %v1489 = vpack.c.b16 %v1151, %v1149
  %v1490 = vpack.c.b16 %v1152, %v1150
  %v1491 = vpack.c.b16 %v1155, %v1153
  %v1492 = vpack.c.b16 %v1156, %v1154
  %v1493 = vpack.c.b16 %v1159, %v1157
  %v1494 = vpack.c.b16 %v1160, %v1158
  %v1495 = vpack.c.b16 %v1163, %v1161
  %v1496 = vpack.c.b16 %v1164, %v1162
  %v1497 = vpack.c.b16 %v1167, %v1165
  %v1498 = vpack.c.b16 %v1168, %v1166
  %v1499 = vpack.c.b16 %v1171, %v1169
  %v1500 = vpack.c.b16 %v1172, %v1170
  %v1501 = vpack.c.b16 %v1175, %v1173
  %v1502 = vpack.c.b16 %v1176, %v1174
  %v1503 = vpack.c.b16 %v1179, %v1177
  %v1504 = vpack.c.b16 %v1180, %v1178
  %v1505 = vpack.c.b16 %v1183, %v1181
  %v1506 = vpack.c.b16 %v1184, %v1182
  %v1507 = vpack.c.b16 %v1187, %v1185
  %v1508 = vpack.c.b16 %v1188, %v1186
  %v1509 = vpack.c.b16 %v1191, %v1189
  %v1510 = vpack.c.b16 %v1192, %v1190
  %v1511 = vpack.c.b16 %v1195, %v1193
  %v1512 = vpack.c.b16 %v1196, %v1194
  %v1513 = vpack.c.b16 %v1199, %v1197
  %v1514 = vpack.c.b16 %v1200, %v1198
  %v1515 = vpack.c.b16 %v1203, %v1201
  %v1516 = vpack.c.b16 %v1204, %v1202
  %v1517 = vpack.c.b16 %v1207, %v1205
  %v1518 = vpack.c.b16 %v1208, %v1206
  %v1519 = vpack.c.b16 %v1211, %v1209
  %v1520 = vpack.c.b16 %v1212, %v1210
  %v1521 = vpack.c.b16 %v1215, %v1213
  %v1522 = vpack.c.b16 %v1216, %v1214
  %v1523 = vpack.c.b16 %v1219, %v1217
  %v1524 = vpack.c.b16 %v1220, %v1218
  %v1525 = vpack.c.b16 %v1223, %v1221
  %v1526 = vpack.c.b16 %v1224, %v1222
  %v1527 = vpack.c.b16 %v1227, %v1225
  %v1528 = vpack.c.b16 %v1228, %v1226
  %v1529 = vpack.c.b16 %v1231, %v1229
  %v1530 = vpack.c.b16 %v1232, %v1230
  %v1531 = vpack.c.b16 %v1235, %v1233
  %v1532 = vpack.c.b16 %v1236, %v1234
  %v1533 = vpack.c.b16 %v1239, %v1237
  %v1534 = vpack.c.b16 %v1240, %v1238
  %v1535 = vpack.c.b16 %v1243, %v1241
  %v1536 = vpack.c.b16 %v1244, %v1242
  %v1537 = vpack.c.b16 %v1247, %v1245
  %v1538 = vpack.c.b16 %v1248, %v1246
  %v1539 = vpack.c.b16 %v1251, %v1249
  %v1540 = vpack.c.b16 %v1252, %v1250
  %1829 = vmatprep.subr.bf16.mxu0 %v1254
  %1830 = vmatpush1.bf16.msra.mxu0 %v1253
  %1831 = vmatprep.subr.bf16.mxu0 %v1256
  %1832 = vmatpush1.bf16.msra.mxu0 %v1255
  %1833 = vmatprep.subr.bf16.mxu0 %v1258
  %1834 = vmatpush1.bf16.msra.mxu0 %v1257
  %1835 = vmatprep.subr.bf16.mxu0 %v1260
  %1836 = vmatpush1.bf16.msra.mxu0 %v1259
  %1837 = vmatprep.subr.bf16.mxu0 %v1262
  %1838 = vmatpush1.bf16.msra.mxu0 %v1261
  %1839 = vmatprep.subr.bf16.mxu0 %v1264
  %1840 = vmatpush1.bf16.msra.mxu0 %v1263
  %1841 = vmatprep.subr.bf16.mxu0 %v1266
  %1842 = vmatpush1.bf16.msra.mxu0 %v1265
  %1843 = vmatprep.subr.bf16.mxu0 %v1268
  %1844 = vmatpush1.bf16.msra.mxu0 %v1267
  %1845 = vmatprep.subr.bf16.mxu0 %v1270
  %1846 = vmatpush1.bf16.msra.mxu0 %v1269
  %1847 = vmatprep.subr.bf16.mxu0 %v1272
  %1848 = vmatpush1.bf16.msra.mxu0 %v1271
  %1849 = vmatprep.subr.bf16.mxu0 %v1274
  %1850 = vmatpush1.bf16.msra.mxu0 %v1273
  %1851 = vmatprep.subr.bf16.mxu0 %v1276
  %1852 = vmatpush1.bf16.msra.mxu0 %v1275
  %1853 = vmatprep.subr.bf16.mxu0 %v1278
  %1854 = vmatpush1.bf16.msra.mxu0 %v1277
  %1855 = vmatprep.subr.bf16.mxu0 %v1280
  %1856 = vmatpush1.bf16.msra.mxu0 %v1279
  %1857 = vmatprep.subr.bf16.mxu0 %v1282
  %1858 = vmatpush1.bf16.msra.mxu0 %v1281
  %1859 = vmatprep.subr.bf16.mxu0 %v1284
  %1860 = vmatpush1.bf16.msra.mxu0 %v1283
  %1861 = vmatprep.mubr.bf16.mxu0 %v354
  %1862 = vmatmul.mubr.bf16.gmra.mrb[0].mxu0 %v353
  %v1863 = vpop.f32.mrb[0].mxu0
  %v1864 = vadd.f32 %v319, %v1863
  %v1865 = vpop.f32.mrb[0].mxu0
  %v1866 = vadd.f32 %v323, %v1865
  %v1867 = vpop.f32.mrb[0].mxu0
  %v1868 = vpop.f32.mrb[0].mxu0
  %1869 = vdwg.mxu0
  %1870 = vmatprep.subr.bf16.mxu0 %v1286
  %1871 = vmatpush1.bf16.msra.mxu0 %v1285
  %1872 = vmatprep.subr.bf16.mxu0 %v1288
  %1873 = vmatpush1.bf16.msra.mxu0 %v1287
  %1874 = vmatprep.subr.bf16.mxu0 %v1290
  %1875 = vmatpush1.bf16.msra.mxu0 %v1289
  %1876 = vmatprep.subr.bf16.mxu0 %v1292
  %1877 = vmatpush1.bf16.msra.mxu0 %v1291
  %1878 = vmatprep.subr.bf16.mxu0 %v1294
  %1879 = vmatpush1.bf16.msra.mxu0 %v1293
  %1880 = vmatprep.subr.bf16.mxu0 %v1296
  %1881 = vmatpush1.bf16.msra.mxu0 %v1295
  %1882 = vmatprep.subr.bf16.mxu0 %v1298
  %1883 = vmatpush1.bf16.msra.mxu0 %v1297
  %1884 = vmatprep.subr.bf16.mxu0 %v1300
  %1885 = vmatpush1.bf16.msra.mxu0 %v1299
  %1886 = vmatprep.subr.bf16.mxu0 %v1302
  %1887 = vmatpush1.bf16.msra.mxu0 %v1301
  %1888 = vmatprep.subr.bf16.mxu0 %v1304
  %1889 = vmatpush1.bf16.msra.mxu0 %v1303
  %1890 = vmatprep.subr.bf16.mxu0 %v1306
  %1891 = vmatpush1.bf16.msra.mxu0 %v1305
  %1892 = vmatprep.subr.bf16.mxu0 %v1308
  %1893 = vmatpush1.bf16.msra.mxu0 %v1307
  %1894 = vmatprep.subr.bf16.mxu0 %v1310
  %1895 = vmatpush1.bf16.msra.mxu0 %v1309
  %1896 = vmatprep.subr.bf16.mxu0 %v1312
  %1897 = vmatpush1.bf16.msra.mxu0 %v1311
  %1898 = vmatprep.subr.bf16.mxu0 %v1314
  %1899 = vmatpush1.bf16.msra.mxu0 %v1313
  %1900 = vmatprep.subr.bf16.mxu0 %v1316
  %1901 = vmatpush1.bf16.msra.mxu0 %v1315
  %1902 = vmatprep.mubr.bf16.mxu0 %v356
  %1903 = vmatmul.mubr.bf16.gmra.mrb[0].mxu0 %v355
  %v1904 = vpop.f32.mrb[0].mxu0
  %v1905 = vadd.f32 %v1864, %v1904
  %v1906 = vpop.f32.mrb[0].mxu0
  %v1907 = vadd.f32 %v1866, %v1906
  %v1908 = vpop.f32.mrb[0].mxu0
  %v1909 = vpop.f32.mrb[0].mxu0
  %1910 = vdwg.mxu0
  %1911 = vmatprep.subr.bf16.mxu0 %v1318
  %1912 = vmatpush1.bf16.msra.mxu0 %v1317
  %1913 = vmatprep.subr.bf16.mxu0 %v1320
  %1914 = vmatpush1.bf16.msra.mxu0 %v1319
  %1915 = vmatprep.subr.bf16.mxu0 %v1322
  %1916 = vmatpush1.bf16.msra.mxu0 %v1321
  %1917 = vmatprep.subr.bf16.mxu0 %v1324
  %1918 = vmatpush1.bf16.msra.mxu0 %v1323
  %1919 = vmatprep.subr.bf16.mxu0 %v1326
  %1920 = vmatpush1.bf16.msra.mxu0 %v1325
  %1921 = vmatprep.subr.bf16.mxu0 %v1328
  %1922 = vmatpush1.bf16.msra.mxu0 %v1327
  %1923 = vmatprep.subr.bf16.mxu0 %v1330
  %1924 = vmatpush1.bf16.msra.mxu0 %v1329
  %1925 = vmatprep.subr.bf16.mxu0 %v1332
  %1926 = vmatpush1.bf16.msra.mxu0 %v1331
  %1927 = vmatprep.subr.bf16.mxu0 %v1334
  %1928 = vmatpush1.bf16.msra.mxu0 %v1333
  %1929 = vmatprep.subr.bf16.mxu0 %v1336
  %1930 = vmatpush1.bf16.msra.mxu0 %v1335
  %1931 = vmatprep.subr.bf16.mxu0 %v1338
  %1932 = vmatpush1.bf16.msra.mxu0 %v1337
  %1933 = vmatprep.subr.bf16.mxu0 %v1340
  %1934 = vmatpush1.bf16.msra.mxu0 %v1339
  %1935 = vmatprep.subr.bf16.mxu0 %v1342
  %1936 = vmatpush1.bf16.msra.mxu0 %v1341
  %1937 = vmatprep.subr.bf16.mxu0 %v1344
  %1938 = vmatpush1.bf16.msra.mxu0 %v1343
  %1939 = vmatprep.subr.bf16.mxu0 %v1346
  %1940 = vmatpush1.bf16.msra.mxu0 %v1345
  %1941 = vmatprep.subr.bf16.mxu0 %v1348
  %1942 = vmatpush1.bf16.msra.mxu0 %v1347
  %1943 = vmatprep.mubr.bf16.mxu0 %v358
  %1944 = vmatmul.mubr.bf16.gmra.mrb[0].mxu0 %v357
  %v1945 = vpop.f32.mrb[0].mxu0
  %v1946 = vadd.f32 %v1905, %v1945
  %v1947 = vpop.f32.mrb[0].mxu0
  %v1948 = vadd.f32 %v1907, %v1947
  %v1949 = vpop.f32.mrb[0].mxu0
  %v1950 = vpop.f32.mrb[0].mxu0
  %1951 = vdwg.mxu0
  %1952 = vmatprep.subr.bf16.mxu0 %v1350
  %1953 = vmatpush1.bf16.msra.mxu0 %v1349
  %1954 = vmatprep.subr.bf16.mxu0 %v1352
  %1955 = vmatpush1.bf16.msra.mxu0 %v1351
  %1956 = vmatprep.subr.bf16.mxu0 %v1354
  %1957 = vmatpush1.bf16.msra.mxu0 %v1353
  %1958 = vmatprep.subr.bf16.mxu0 %v1356
  %1959 = vmatpush1.bf16.msra.mxu0 %v1355
  %1960 = vmatprep.subr.bf16.mxu0 %v1358
  %1961 = vmatpush1.bf16.msra.mxu0 %v1357
  %1962 = vmatprep.subr.bf16.mxu0 %v1360
  %1963 = vmatpush1.bf16.msra.mxu0 %v1359
  %1964 = vmatprep.subr.bf16.mxu0 %v1362
  %1965 = vmatpush1.bf16.msra.mxu0 %v1361
  %1966 = vmatprep.subr.bf16.mxu0 %v1364
  %1967 = vmatpush1.bf16.msra.mxu0 %v1363
  %1968 = vmatprep.subr.bf16.mxu0 %v1366
  %1969 = vmatpush1.bf16.msra.mxu0 %v1365
  %1970 = vmatprep.subr.bf16.mxu0 %v1368
  %1971 = vmatpush1.bf16.msra.mxu0 %v1367
  %1972 = vmatprep.subr.bf16.mxu0 %v1370
  %1973 = vmatpush1.bf16.msra.mxu0 %v1369
  %1974 = vmatprep.subr.bf16.mxu0 %v1372
  %1975 = vmatpush1.bf16.msra.mxu0 %v1371
  %1976 = vmatprep.subr.bf16.mxu0 %v1374
  %1977 = vmatpush1.bf16.msra.mxu0 %v1373
  %1978 = vmatprep.subr.bf16.mxu0 %v1376
  %1979 = vmatpush1.bf16.msra.mxu0 %v1375
  %1980 = vmatprep.subr.bf16.mxu0 %v1378
  %1981 = vmatpush1.bf16.msra.mxu0 %v1377
  %1982 = vmatprep.subr.bf16.mxu0 %v1380
  %1983 = vmatpush1.bf16.msra.mxu0 %v1379
  %1984 = vmatprep.mubr.bf16.mxu0 %v360
  %1985 = vmatmul.mubr.bf16.gmra.mrb[0].mxu0 %v359
  %v1986 = vpop.f32.mrb[0].mxu0
  %v1987 = vadd.f32 %v1946, %v1986
  %v1988 = vpop.f32.mrb[0].mxu0
  %v1989 = vadd.f32 %v1948, %v1988
  %v1990 = vpop.f32.mrb[0].mxu0
  %v1991 = vpop.f32.mrb[0].mxu0
  %1992 = vdwg.mxu0
  %1993 = vmatprep.subr.bf16.mxu0 %v1382
  %1994 = vmatpush1.bf16.msra.mxu0 %v1381
  %1995 = vmatprep.subr.bf16.mxu0 %v1384
  %1996 = vmatpush1.bf16.msra.mxu0 %v1383
  %1997 = vmatprep.subr.bf16.mxu0 %v1386
  %1998 = vmatpush1.bf16.msra.mxu0 %v1385
  %1999 = vmatprep.subr.bf16.mxu0 %v1388
  %2000 = vmatpush1.bf16.msra.mxu0 %v1387
  %2001 = vmatprep.subr.bf16.mxu0 %v1390
  %2002 = vmatpush1.bf16.msra.mxu0 %v1389
  %2003 = vmatprep.subr.bf16.mxu0 %v1392
  %2004 = vmatpush1.bf16.msra.mxu0 %v1391
  %2005 = vmatprep.subr.bf16.mxu0 %v1394
  %2006 = vmatpush1.bf16.msra.mxu0 %v1393
  %2007 = vmatprep.subr.bf16.mxu0 %v1396
  %2008 = vmatpush1.bf16.msra.mxu0 %v1395
  %2009 = vmatprep.subr.bf16.mxu0 %v1398
  %2010 = vmatpush1.bf16.msra.mxu0 %v1397
  %2011 = vmatprep.subr.bf16.mxu0 %v1400
  %2012 = vmatpush1.bf16.msra.mxu0 %v1399
  %2013 = vmatprep.subr.bf16.mxu0 %v1402
  %2014 = vmatpush1.bf16.msra.mxu0 %v1401
  %2015 = vmatprep.subr.bf16.mxu0 %v1404
  %2016 = vmatpush1.bf16.msra.mxu0 %v1403
  %2017 = vmatprep.subr.bf16.mxu0 %v1406
  %2018 = vmatpush1.bf16.msra.mxu0 %v1405
  %2019 = vmatprep.subr.bf16.mxu0 %v1408
  %2020 = vmatpush1.bf16.msra.mxu0 %v1407
  %2021 = vmatprep.subr.bf16.mxu0 %v1410
  %2022 = vmatpush1.bf16.msra.mxu0 %v1409
  %2023 = vmatprep.subr.bf16.mxu0 %v1412
  %2024 = vmatpush1.bf16.msra.mxu0 %v1411
  %2025 = vmatprep.mubr.bf16.mxu0 %v362
  %2026 = vmatmul.mubr.bf16.gmra.mrb[0].mxu0 %v361
  %v2027 = vpop.f32.mrb[0].mxu0
  %v2028 = vadd.f32 %v1987, %v2027
  %v2029 = vpop.f32.mrb[0].mxu0
  %v2030 = vadd.f32 %v1989, %v2029
  %v2031 = vpop.f32.mrb[0].mxu0
  %v2032 = vpop.f32.mrb[0].mxu0
  %2033 = vdwg.mxu0
  %2034 = vmatprep.subr.bf16.mxu0 %v1414
  %2035 = vmatpush1.bf16.msra.mxu0 %v1413
  %2036 = vmatprep.subr.bf16.mxu0 %v1416
  %2037 = vmatpush1.bf16.msra.mxu0 %v1415
  %2038 = vmatprep.subr.bf16.mxu0 %v1418
  %2039 = vmatpush1.bf16.msra.mxu0 %v1417
  %2040 = vmatprep.subr.bf16.mxu0 %v1420
  %2041 = vmatpush1.bf16.msra.mxu0 %v1419
  %2042 = vmatprep.subr.bf16.mxu0 %v1422
  %2043 = vmatpush1.bf16.msra.mxu0 %v1421
  %2044 = vmatprep.subr.bf16.mxu0 %v1424
  %2045 = vmatpush1.bf16.msra.mxu0 %v1423
  %2046 = vmatprep.subr.bf16.mxu0 %v1426
  %2047 = vmatpush1.bf16.msra.mxu0 %v1425
  %2048 = vmatprep.subr.bf16.mxu0 %v1428
  %2049 = vmatpush1.bf16.msra.mxu0 %v1427
  %2050 = vmatprep.subr.bf16.mxu0 %v1430
  %2051 = vmatpush1.bf16.msra.mxu0 %v1429
  %2052 = vmatprep.subr.bf16.mxu0 %v1432
  %2053 = vmatpush1.bf16.msra.mxu0 %v1431
  %2054 = vmatprep.subr.bf16.mxu0 %v1434
  %2055 = vmatpush1.bf16.msra.mxu0 %v1433
  %2056 = vmatprep.subr.bf16.mxu0 %v1436
  %2057 = vmatpush1.bf16.msra.mxu0 %v1435
  %2058 = vmatprep.subr.bf16.mxu0 %v1438
  %2059 = vmatpush1.bf16.msra.mxu0 %v1437
  %2060 = vmatprep.subr.bf16.mxu0 %v1440
  %2061 = vmatpush1.bf16.msra.mxu0 %v1439
  %2062 = vmatprep.subr.bf16.mxu0 %v1442
  %2063 = vmatpush1.bf16.msra.mxu0 %v1441
  %2064 = vmatprep.subr.bf16.mxu0 %v1444
  %2065 = vmatpush1.bf16.msra.mxu0 %v1443
  %2066 = vmatprep.mubr.bf16.mxu0 %v364
  %2067 = vmatmul.mubr.bf16.gmra.mrb[0].mxu0 %v363
  %v2068 = vpop.f32.mrb[0].mxu0
  %v2069 = vadd.f32 %v2028, %v2068
  %v2070 = vpop.f32.mrb[0].mxu0
  %v2071 = vadd.f32 %v2030, %v2070
  %v2072 = vpop.f32.mrb[0].mxu0
  %v2073 = vpop.f32.mrb[0].mxu0
  %2074 = vdwg.mxu0
  %2075 = vmatprep.subr.bf16.mxu0 %v1446
  %2076 = vmatpush1.bf16.msra.mxu0 %v1445
  %2077 = vmatprep.subr.bf16.mxu0 %v1448
  %2078 = vmatpush1.bf16.msra.mxu0 %v1447
  %2079 = vmatprep.subr.bf16.mxu0 %v1450
  %2080 = vmatpush1.bf16.msra.mxu0 %v1449
  %2081 = vmatprep.subr.bf16.mxu0 %v1452
  %2082 = vmatpush1.bf16.msra.mxu0 %v1451
  %2083 = vmatprep.subr.bf16.mxu0 %v1454
  %2084 = vmatpush1.bf16.msra.mxu0 %v1453
  %2085 = vmatprep.subr.bf16.mxu0 %v1456
  %2086 = vmatpush1.bf16.msra.mxu0 %v1455
  %2087 = vmatprep.subr.bf16.mxu0 %v1458
  %2088 = vmatpush1.bf16.msra.mxu0 %v1457
  %2089 = vmatprep.subr.bf16.mxu0 %v1460
  %2090 = vmatpush1.bf16.msra.mxu0 %v1459
  %2091 = vmatprep.subr.bf16.mxu0 %v1462
  %2092 = vmatpush1.bf16.msra.mxu0 %v1461
  %2093 = vmatprep.subr.bf16.mxu0 %v1464
  %2094 = vmatpush1.bf16.msra.mxu0 %v1463
  %2095 = vmatprep.subr.bf16.mxu0 %v1466
  %2096 = vmatpush1.bf16.msra.mxu0 %v1465
  %2097 = vmatprep.subr.bf16.mxu0 %v1468
  %2098 = vmatpush1.bf16.msra.mxu0 %v1467
  %2099 = vmatprep.subr.bf16.mxu0 %v1470
  %2100 = vmatpush1.bf16.msra.mxu0 %v1469
  %2101 = vmatprep.subr.bf16.mxu0 %v1472
  %2102 = vmatpush1.bf16.msra.mxu0 %v1471
  %2103 = vmatprep.subr.bf16.mxu0 %v1474
  %2104 = vmatpush1.bf16.msra.mxu0 %v1473
  %2105 = vmatprep.subr.bf16.mxu0 %v1476
  %2106 = vmatpush1.bf16.msra.mxu0 %v1475
  %2107 = vmatprep.mubr.bf16.mxu0 %v366
  %2108 = vmatmul.mubr.bf16.gmra.mrb[0].mxu0 %v365
  %v2109 = vpop.f32.mrb[0].mxu0
  %v2110 = vadd.f32 %v2069, %v2109
  %v2111 = vpop.f32.mrb[0].mxu0
  %v2112 = vadd.f32 %v2071, %v2111
  %v2113 = vpop.f32.mrb[0].mxu0
  %v2114 = vpop.f32.mrb[0].mxu0
  %2115 = vdwg.mxu0
  %2116 = vmatprep.subr.bf16.mxu0 %v1478
  %2117 = vmatpush1.bf16.msra.mxu0 %v1477
  %2118 = vmatprep.subr.bf16.mxu0 %v1480
  %2119 = vmatpush1.bf16.msra.mxu0 %v1479
  %2120 = vmatprep.subr.bf16.mxu0 %v1482
  %2121 = vmatpush1.bf16.msra.mxu0 %v1481
  %2122 = vmatprep.subr.bf16.mxu0 %v1484
  %2123 = vmatpush1.bf16.msra.mxu0 %v1483
  %2124 = vmatprep.subr.bf16.mxu0 %v1486
  %2125 = vmatpush1.bf16.msra.mxu0 %v1485
  %2126 = vmatprep.subr.bf16.mxu0 %v1488
  %2127 = vmatpush1.bf16.msra.mxu0 %v1487
  %2128 = vmatprep.subr.bf16.mxu0 %v1490
  %2129 = vmatpush1.bf16.msra.mxu0 %v1489
  %2130 = vmatprep.subr.bf16.mxu0 %v1492
  %2131 = vmatpush1.bf16.msra.mxu0 %v1491
  %2132 = vmatprep.subr.bf16.mxu0 %v1494
  %2133 = vmatpush1.bf16.msra.mxu0 %v1493
  %2134 = vmatprep.subr.bf16.mxu0 %v1496
  %2135 = vmatpush1.bf16.msra.mxu0 %v1495
  %2136 = vmatprep.subr.bf16.mxu0 %v1498
  %2137 = vmatpush1.bf16.msra.mxu0 %v1497
  %2138 = vmatprep.subr.bf16.mxu0 %v1500
  %2139 = vmatpush1.bf16.msra.mxu0 %v1499
  %2140 = vmatprep.subr.bf16.mxu0 %v1502
  %2141 = vmatpush1.bf16.msra.mxu0 %v1501
  %2142 = vmatprep.subr.bf16.mxu0 %v1504
  %2143 = vmatpush1.bf16.msra.mxu0 %v1503
  %2144 = vmatprep.subr.bf16.mxu0 %v1506
  %2145 = vmatpush1.bf16.msra.mxu0 %v1505
  %2146 = vmatprep.subr.bf16.mxu0 %v1508
  %2147 = vmatpush1.bf16.msra.mxu0 %v1507
  %2148 = vmatprep.mubr.bf16.mxu0 %v368
  %2149 = vmatmul.mubr.bf16.gmra.mrb[0].mxu0 %v367
  %v2150 = vpop.f32.mrb[0].mxu0
  %v2151 = vadd.f32 %v2110, %v2150
  %v2152 = vpop.f32.mrb[0].mxu0
  %v2153 = vadd.f32 %v2112, %v2152
  %v2154 = vpop.f32.mrb[0].mxu0
  %v2155 = vpop.f32.mrb[0].mxu0
  %2156 = vdwg.mxu0
  %2157 = vmatprep.subr.bf16.mxu0 %v1510
  %2158 = vmatpush1.bf16.msra.mxu0 %v1509
  %2159 = vmatprep.subr.bf16.mxu0 %v1512
  %2160 = vmatpush1.bf16.msra.mxu0 %v1511
  %2161 = vmatprep.subr.bf16.mxu0 %v1514
  %2162 = vmatpush1.bf16.msra.mxu0 %v1513
  %2163 = vmatprep.subr.bf16.mxu0 %v1516
  %2164 = vmatpush1.bf16.msra.mxu0 %v1515
  %2165 = vmatprep.subr.bf16.mxu0 %v1518
  %2166 = vmatpush1.bf16.msra.mxu0 %v1517
  %2167 = vmatprep.subr.bf16.mxu0 %v1520
  %2168 = vmatpush1.bf16.msra.mxu0 %v1519
  %2169 = vmatprep.subr.bf16.mxu0 %v1522
  %2170 = vmatpush1.bf16.msra.mxu0 %v1521
  %2171 = vmatprep.subr.bf16.mxu0 %v1524
  %2172 = vmatpush1.bf16.msra.mxu0 %v1523
  %2173 = vmatprep.subr.bf16.mxu0 %v1526
  %2174 = vmatpush1.bf16.msra.mxu0 %v1525
  %2175 = vmatprep.subr.bf16.mxu0 %v1528
  %2176 = vmatpush1.bf16.msra.mxu0 %v1527
  %2177 = vmatprep.subr.bf16.mxu0 %v1530
  %2178 = vmatpush1.bf16.msra.mxu0 %v1529
  %2179 = vmatprep.subr.bf16.mxu0 %v1532
  %2180 = vmatpush1.bf16.msra.mxu0 %v1531
  %2181 = vmatprep.subr.bf16.mxu0 %v1534
  %2182 = vmatpush1.bf16.msra.mxu0 %v1533
  %2183 = vmatprep.subr.bf16.mxu0 %v1536
  %2184 = vmatpush1.bf16.msra.mxu0 %v1535
  %2185 = vmatprep.subr.bf16.mxu0 %v1538
  %2186 = vmatpush1.bf16.msra.mxu0 %v1537
  %2187 = vmatprep.subr.bf16.mxu0 %v1540
  %2188 = vmatpush1.bf16.msra.mxu0 %v1539
  %2189 = vmatprep.mubr.bf16.mxu0 %v370
  %2190 = vmatmul.mubr.bf16.gmra.mrb[0].mxu0 %v369
  %v2191 = vpop.f32.mrb[0].mxu0
  %v2192 = vadd.f32 %v2151, %v2191
  %v2193 = vpop.f32.mrb[0].mxu0
  %v2194 = vadd.f32 %v2153, %v2193
  %v2195 = vpop.f32.mrb[0].mxu0
  %v2196 = vpop.f32.mrb[0].mxu0
  %2197 = vdwg.mxu0
  %v2198 = vld [vmem:[%s3] sm:$0xff]
  %v2199 = vunpack.c.l.bf16 %v2198
  %v2200 = vunpack.c.h.bf16 %v2198
  %v2201 = vadd.f32 %v2192, %v2199
  %v2202 = vadd.f32 %v2194, %v2200
  %v2203 = vmax.f32 %v2201, 0.0
  %v2204 = vmax.f32 %v2202, 0.0
  %v2205 = vpack.c.bf16 %v2203, %v2203
  %v2206 = vpack.c.bf16 %v2204, %v2204
  %v2209 = vunpack.c.l.b16 %v2205
  %v2210 = vunpack.c.l.b16 %v2206
  %v2211 = vpack.c.b16 %v2210, %v2209
  %2213 = vst [vmem:[%s4] sm:$0xff] %v2211
  // Predicated region
  $region18: #{image_encoder_forward.49} parent=0 // pred_check
    _
  $region19: #{image_encoder_forward.49} parent=0 // pred_check_branch
    %2215 = sbr.rel (0) target = $region21
  $region20: #{image_encoder_forward.49} parent=0 // pred_region
    _
  $region21: #{image_encoder_forward.49} parent=0 // pred_fallthru
    _
  // Predicated region
  $region22: #{image_encoder_forward.49} parent=0 // pred_check
    _
  $region23: #{image_encoder_forward.49} parent=0 // pred_check_branch
    %2217 = sbr.rel (0) target = $region25
  $region24: #{image_encoder_forward.49} parent=0 // pred_region
    _
  $region25: #{image_encoder_forward.49} parent=0 // pred_fallthru
    _

</llo_original>
